<compile_context>
chip_gen: v6e
topology: v6e:2x2x1
jax: 0.10.0
libtpu: 0.0.40
codegen_flags: <defaults>
</compile_context>

<pallas_src>
import jax
import jax.numpy as jnp
from jax.experimental import pallas as pl
from jax.experimental.pallas import tpu as pltpu

# ---------------- model dims (scaled-down but structurally faithful) --------
VOCAB = 512            # stand-in for 201876
EMBED = 300            # same as the PyTorch module
NUM_FILTERS = 16       # out_channels of each conv
KERNEL_SIZES = (4, 5, 6)
NUM_CLASSES = 2

C = NUM_FILTERS
KMAX = max(KERNEL_SIZES)
BRANCH_STRIDE = KMAX * C          # 96 columns reserved per conv branch
W_PAD = 384                       # fused conv-weight columns (3*96 -> 384 lanes)
ACC_W = 256                       # width of the shifted-accumulation slab (>= 2*96+16)
CLS_PAD = 128                     # lane-dense padded class dimension


def _round_up(x, m):
    return ((x + m - 1) // m) * m


def _make_kernel(Bb, L, L_pad):
    """Kernel for one batch block of Bb items (sequence zero-padded to L_pad)."""
    Tacc = L - min(KERNEL_SIZES) + 1      # longest valid conv-output length

    def kernel(emb_ref, w_ref, b_ref, fcw_ref, fcb_ref, out_ref):
        # (1) One wide MXU matmul: every (branch, offset, channel) partial product.
        partials = jnp.dot(emb_ref[...], w_ref[...],
                           preferred_element_type=jnp.float32)      # (Bb*L_pad, 384) f32
        partials = partials.reshape(Bb, L_pad, W_PAD)

        # (2) Conv over time: full 256-lane shifted-window accumulation.
        #     Offsets a branch does not have (j >= k_b) hit zero weight columns,
        #     so no cross-branch masking is required here.
        acc = partials[:, 0:Tacc, 0:ACC_W]
        for j in range(1, KMAX):
            acc = acc + partials[:, j:j + Tacc, j * C:j * C + ACC_W]

        # (3) Penalize per-branch invalid time steps, then a single max over time.
        t_idx = jax.lax.broadcasted_iota(jnp.int32, (1, Tacc, ACC_W), 1)
        lane = jax.lax.broadcasted_iota(jnp.int32, (1, Tacc, ACC_W), 2)
        t_lim = jnp.where(
            lane < BRANCH_STRIDE, L - KERNEL_SIZES[0] + 1,
            jnp.where(lane < 2 * BRANCH_STRIDE, L - KERNEL_SIZES[1] + 1,
                      L - KERNEL_SIZES[2] + 1))
        penalty = jnp.where(t_idx < t_lim, 0.0, jnp.float32(-1e30))  # (1, Tacc, 256)
        pooled = jnp.max(acc + penalty, axis=1)                      # (Bb, 256)

        # (4) Bias + ReLU at full lane width; Dropout(0.5) is identity at inference.
        feat = jnp.maximum(pooled + b_ref[...], 0.0)

        # (5) FC against the zero-scattered (256, 128) weight, then log_softmax.
        #     Padded class columns get a -1e30 bias -> exp underflows to 0.
        logits = jnp.dot(feat, fcw_ref[...],
                         preferred_element_type=jnp.float32) + fcb_ref[...]
        mx = jnp.max(logits, axis=1, keepdims=True)
        shifted = logits - mx
        lse = jnp.log(jnp.sum(jnp.exp(shifted), axis=1, keepdims=True))
        out_ref[...] = shifted - lse                                 # (Bb, 128)

    return kernel


def _prepare_conv_weights(ws):
    """ws[b]: (k_b, EMBED, C) -> fused (EMBED, W_PAD) f32 weight matrix.

    Column BRANCH_STRIDE*b + j*C + c holds w_b[j, :, c]; offsets the branch
    does not have and the tail padding are zero columns.
    """
    w_all = jnp.zeros((EMBED, W_PAD), jnp.float32)
    for b, w in enumerate(ws):
        k = w.shape[0]
        cols = jnp.transpose(w, (1, 0, 2)).reshape(EMBED, k * C)
        w_all = w_all.at[:, b * BRANCH_STRIDE:b * BRANCH_STRIDE + k * C].set(cols)
    return w_all


def textcnn_forward(emb, w1, b1, w2, b2, w3, b3, fc_w, fc_b, *, batch_block=128):
    B, L, E = emb.shape
    assert L >= KMAX, "sequence must be at least as long as the largest kernel"

    # --- host-side layout plumbing (zero kernel cost) -----------------------
    w_all = _prepare_conv_weights([w1, w2, w3]).astype(jnp.bfloat16)

    b_slab = jnp.zeros((1, ACC_W), jnp.float32)
    for b, bv in enumerate((b1, b2, b3)):
        b_slab = b_slab.at[:, b * BRANCH_STRIDE:b * BRANCH_STRIDE + C].set(bv)

    fcw_exp = jnp.zeros((ACC_W, CLS_PAD), jnp.float32)
    for b in range(3):
        fcw_exp = fcw_exp.at[b * BRANCH_STRIDE:b * BRANCH_STRIDE + C,
                             :NUM_CLASSES].set(fc_w[b * C:(b + 1) * C])
    fcb_exp = jnp.full((1, CLS_PAD), -1e30, jnp.float32)
    fcb_exp = fcb_exp.at[:, :NUM_CLASSES].set(fc_b)

    # --- batch/time padding, 2-D bf16 emb (dominant HBM stream halved) ------
    bb = _round_up(max(8, min(batch_block, _round_up(B, 8))), 8)
    Bp = _round_up(B, bb)
    nb = Bp // bb
    L_pad = _round_up(L + KMAX - min(KERNEL_SIZES), 8)   # room for the largest shift

    emb_p = jnp.pad(emb, ((0, Bp - B), (0, L_pad - L), (0, 0)))
    emb2d = emb_p.reshape(Bp * L_pad, E).astype(jnp.bfloat16)

    rows = bb * L_pad
    out = pl.pallas_call(
        _make_kernel(bb, L, L_pad),
        out_shape=jax.ShapeDtypeStruct((Bp, CLS_PAD), jnp.float32),
        grid=(nb,),
        in_specs=[
            # emb: tiled over batch, pipelined/double-buffered across grid steps
            pl.BlockSpec((rows, E), lambda b: (b, 0)),
            # weights/biases: pinned (constant block index -> DMA'd once)
            pl.BlockSpec((E, W_PAD), lambda b: (0, 0)),
            pl.BlockSpec((1, ACC_W), lambda b: (0, 0)),
            pl.BlockSpec((ACC_W, CLS_PAD), lambda b: (0, 0)),
            pl.BlockSpec((1, CLS_PAD), lambda b: (0, 0)),
        ],
        out_specs=pl.BlockSpec((bb, CLS_PAD), lambda b: (b, 0)),
        compiler_params=pltpu.CompilerParams(
            dimension_semantics=("parallel",),
            vmem_limit_bytes=48 * 1024 * 1024),
    )(emb2d, w_all, b_slab, fcw_exp, fcb_exp)
    return out[:B, :NUM_CLASSES]


def reference_forward(emb, w1, b1, w2, b2, w3, b3, fc_w, fc_b):
    """Pure-JAX f32 reference replicating the PyTorch semantics (eval mode)."""
    def branch(w, b, k):
        B, L, E = emb.shape
        Cc = w.shape[-1]
        outs = []
        for t in range(L - k + 1):
            win = emb[:, t:t + k, :].reshape(B, k * E)
            outs.append(win @ w.reshape(k * E, Cc) + b)
        conv = jnp.stack(outs, axis=2)
        return jnp.max(jax.nn.relu(conv), axis=2)

    x1 = branch(w1, b1, KERNEL_SIZES[0])
    x2 = branch(w2, b2, KERNEL_SIZES[1])
    x3 = branch(w3, b3, KERNEL_SIZES[2])
    feat = jnp.concatenate([x1, x2, x3], axis=1)
    logits = feat @ fc_w + fc_b
    return jax.nn.log_softmax(logits, axis=1)


if __name__ == "__main__":
    key = jax.random.PRNGKey(0)
    keys = jax.random.split(key, 10)

    B, L = 64, 16  # batch, sequence length (small but >= max kernel size 6)

    # Deterministic synthetic parameters (shapes per the module __init__).
    emb_table = jax.random.normal(keys[0], (VOCAB, EMBED), jnp.float32) * 0.1
    w1 = jax.random.normal(keys[1], (KERNEL_SIZES[0], EMBED, NUM_FILTERS), jnp.float32) * 0.05
    w2 = jax.random.normal(keys[2], (KERNEL_SIZES[1], EMBED, NUM_FILTERS), jnp.float32) * 0.05
    w3 = jax.random.normal(keys[3], (KERNEL_SIZES[2], EMBED, NUM_FILTERS), jnp.float32) * 0.05
    b1 = jax.random.normal(keys[4], (1, NUM_FILTERS), jnp.float32) * 0.01
    b2 = jax.random.normal(keys[5], (1, NUM_FILTERS), jnp.float32) * 0.01
    b3 = jax.random.normal(keys[6], (1, NUM_FILTERS), jnp.float32) * 0.01
    fc_w = jax.random.normal(keys[7], (3 * NUM_FILTERS, NUM_CLASSES), jnp.float32) * 0.01
    fc_b = jax.random.normal(keys[8], (1, NUM_CLASSES), jnp.float32) * 0.01

    # Token ids and embedding lookup (glue, outside the kernel).
    x_ids = jax.random.randint(keys[9], (B, L), 0, VOCAB, dtype=jnp.int32)
    emb = emb_table[x_ids]  # (B, L, EMBED) f32

    # batch_block=32 -> grid=(2,): even step count (shards across v7x's 2 TCs
    # and keeps the emb DMA pipelined against compute).
    out = jax.block_until_ready(
        textcnn_forward(emb, w1, b1, w2, b2, w3, b3, fc_w, fc_b, batch_block=32)
    )
    ref = reference_forward(emb, w1, b1, w2, b2, w3, b3, fc_w, fc_b)
    assert out.shape == (B, NUM_CLASSES)
    # bf16 operands (f32 accumulation) -> relaxed tolerance vs the f32 reference.
    assert jnp.allclose(out, ref, atol=2e-2, rtol=2e-2), (out, ref)
    print("KERNEL_OK")
</pallas_src>

<mosaic_0001>
module attributes {stable_mosaic.version = 11 : i64} {
  func.func @kernel(%arg0: i32, %arg1: memref<768x300xbf16, #tpu.memory_space<vmem>>, %arg2: memref<300x384xbf16, #tpu.memory_space<vmem>>, %arg3: memref<1x256xf32, #tpu.memory_space<vmem>>, %arg4: memref<256x128xf32, #tpu.memory_space<vmem>>, %arg5: memref<1x128xf32, #tpu.memory_space<vmem>>, %arg6: memref<32x128xf32, #tpu.memory_space<vmem>>) attributes {dimension_semantics = [#tpu.dimension_semantics<parallel>], iteration_bounds = array<i64: 2>, scalar_prefetch = 0 : i64, scratch_operands = 0 : i64, tpu.core_type = #tpu.core_type<tc>, window_params = [{transform_indices = @transform_0, window_bounds = array<i64: 768, 300>}, {pipeline_mode = #tpu.pipeline_mode<synchronous>, transform_indices = @transform_1, window_bounds = array<i64: 300, 384>}, {pipeline_mode = #tpu.pipeline_mode<synchronous>, transform_indices = @transform_2, window_bounds = array<i64: 1, 256>}, {pipeline_mode = #tpu.pipeline_mode<synchronous>, transform_indices = @transform_3, window_bounds = array<i64: 256, 128>}, {pipeline_mode = #tpu.pipeline_mode<synchronous>, transform_indices = @transform_4, window_bounds = array<i64: 1, 128>}, {transform_indices = @transform_5, window_bounds = array<i64: 32, 128>}]} {
    %c0 = arith.constant 0 : index
    %c0_0 = arith.constant 0 : index
    %0 = vector.load %arg1[%c0, %c0_0] : memref<768x300xbf16, #tpu.memory_space<vmem>>, vector<768x300xbf16>
    %c0_1 = arith.constant 0 : index
    %c0_2 = arith.constant 0 : index
    %1 = vector.load %arg2[%c0_1, %c0_2] : memref<300x384xbf16, #tpu.memory_space<vmem>>, vector<300x384xbf16>
    %cst = arith.constant dense<0.000000e+00> : vector<768x384xf32>
    %2 = tpu.matmul %0, %1, %cst {dimension_numbers = #tpu.dot_dimension_numbers<[1], [0], [0], [1], [0, 0, 1, 1], [], []>} : vector<768x300xbf16>, vector<300x384xbf16>, vector<768x384xf32> -> vector<768x384xf32>
    %3 = vector.shape_cast %2 : vector<768x384xf32> to vector<32x24x384xf32>
    %4 = vector.extract_strided_slice %3 {offsets = [0, 0, 0], sizes = [32, 13, 256], strides = [1, 1, 1]} : vector<32x24x384xf32> to vector<32x13x256xf32>
    %5 = vector.extract_strided_slice %3 {offsets = [0, 1, 16], sizes = [32, 13, 256], strides = [1, 1, 1]} : vector<32x24x384xf32> to vector<32x13x256xf32>
    %6 = arith.addf %4, %5 : vector<32x13x256xf32>
    %7 = vector.extract_strided_slice %3 {offsets = [0, 2, 32], sizes = [32, 13, 256], strides = [1, 1, 1]} : vector<32x24x384xf32> to vector<32x13x256xf32>
    %8 = arith.addf %6, %7 : vector<32x13x256xf32>
    %9 = vector.extract_strided_slice %3 {offsets = [0, 3, 48], sizes = [32, 13, 256], strides = [1, 1, 1]} : vector<32x24x384xf32> to vector<32x13x256xf32>
    %10 = arith.addf %8, %9 : vector<32x13x256xf32>
    %11 = vector.extract_strided_slice %3 {offsets = [0, 4, 64], sizes = [32, 13, 256], strides = [1, 1, 1]} : vector<32x24x384xf32> to vector<32x13x256xf32>
    %12 = arith.addf %10, %11 : vector<32x13x256xf32>
    %13 = vector.extract_strided_slice %3 {offsets = [0, 5, 80], sizes = [32, 13, 256], strides = [1, 1, 1]} : vector<32x24x384xf32> to vector<32x13x256xf32>
    %14 = arith.addf %12, %13 : vector<32x13x256xf32>
    %15 = tpu.iota {dimensions = array<i32: 1>} : vector<1x13x256xi32>
    %16 = tpu.iota {dimensions = array<i32: 2>} : vector<1x13x256xi32>
    %c96_i32 = arith.constant 96 : i32
    %17 = vector.broadcast %c96_i32 : i32 to vector<1x13x256xi32>
    %18 = arith.cmpi slt, %16, %17 : vector<1x13x256xi32>
    %c192_i32 = arith.constant 192 : i32
    %19 = vector.broadcast %c192_i32 : i32 to vector<1x13x256xi32>
    %20 = arith.cmpi slt, %16, %19 : vector<1x13x256xi32>
    %c12_i32 = arith.constant 12 : i32
    %c11_i32 = arith.constant 11 : i32
    %21 = vector.broadcast %c12_i32 : i32 to vector<1x13x256xi32>
    %22 = vector.broadcast %c11_i32 : i32 to vector<1x13x256xi32>
    %23 = arith.select %20, %21, %22 : vector<1x13x256xi1>, vector<1x13x256xi32>
    %c13_i32 = arith.constant 13 : i32
    %24 = vector.broadcast %c13_i32 : i32 to vector<1x13x256xi32>
    %25 = arith.select %18, %24, %23 : vector<1x13x256xi1>, vector<1x13x256xi32>
    %26 = arith.cmpi slt, %15, %25 : vector<1x13x256xi32>
    %cst_3 = arith.constant 0.000000e+00 : f32
    %cst_4 = arith.constant -1.000000e+30 : f32
    %27 = vector.broadcast %cst_3 : f32 to vector<1x13x256xf32>
    %28 = vector.broadcast %cst_4 : f32 to vector<1x13x256xf32>
    %29 = arith.select %26, %27, %28 : vector<1x13x256xi1>, vector<1x13x256xf32>
    %30 = vector.broadcast %29 : vector<1x13x256xf32> to vector<32x13x256xf32>
    %31 = arith.addf %14, %30 : vector<32x13x256xf32>
    %cst_5 = arith.constant dense<0xFF800000> : vector<32x256xf32>
    %32 = vector.multi_reduction <maximumf>, %31, %cst_5 [1] : vector<32x13x256xf32> to vector<32x256xf32>
    %c0_6 = arith.constant 0 : index
    %c0_7 = arith.constant 0 : index
    %33 = vector.load %arg3[%c0_6, %c0_7] : memref<1x256xf32, #tpu.memory_space<vmem>>, vector<1x256xf32>
    %34 = vector.broadcast %33 : vector<1x256xf32> to vector<32x256xf32>
    %35 = arith.addf %32, %34 : vector<32x256xf32>
    %cst_8 = arith.constant 0.000000e+00 : f32
    %36 = vector.broadcast %cst_8 : f32 to vector<32x256xf32>
    %37 = arith.maximumf %35, %36 : vector<32x256xf32>
    %c0_9 = arith.constant 0 : index
    %c0_10 = arith.constant 0 : index
    %38 = vector.load %arg4[%c0_9, %c0_10] : memref<256x128xf32, #tpu.memory_space<vmem>>, vector<256x128xf32>
    %cst_11 = arith.constant dense<0.000000e+00> : vector<32x128xf32>
    %39 = tpu.matmul %37, %38, %cst_11 {dimension_numbers = #tpu.dot_dimension_numbers<[1], [0], [0], [1], [0, 0, 1, 1], [], []>} : vector<32x256xf32>, vector<256x128xf32>, vector<32x128xf32> -> vector<32x128xf32>
    %c0_12 = arith.constant 0 : index
    %c0_13 = arith.constant 0 : index
    %40 = vector.load %arg5[%c0_12, %c0_13] : memref<1x128xf32, #tpu.memory_space<vmem>>, vector<1x128xf32>
    %41 = vector.broadcast %40 : vector<1x128xf32> to vector<32x128xf32>
    %42 = arith.addf %39, %41 : vector<32x128xf32>
    %cst_14 = arith.constant dense<0xFF800000> : vector<32xf32>
    %43 = vector.multi_reduction <maximumf>, %42, %cst_14 [1] : vector<32x128xf32> to vector<32xf32>
    %44 = vector.shape_cast %43 : vector<32xf32> to vector<32x1xf32>
    %45 = vector.broadcast %44 : vector<32x1xf32> to vector<32x128xf32>
    %46 = arith.subf %42, %45 : vector<32x128xf32>
    %47 = math.exp %46 : vector<32x128xf32>
    %cst_15 = arith.constant dense<0.000000e+00> : vector<32xf32>
    %48 = vector.multi_reduction <add>, %47, %cst_15 [1] : vector<32x128xf32> to vector<32xf32>
    %49 = vector.shape_cast %48 : vector<32xf32> to vector<32x1xf32>
    %50 = math.log %49 : vector<32x1xf32>
    %51 = vector.broadcast %50 : vector<32x1xf32> to vector<32x128xf32>
    %52 = arith.subf %46, %51 : vector<32x128xf32>
    %c0_16 = arith.constant 0 : index
    %c0_17 = arith.constant 0 : index
    %53 = vector.load %arg6[%c0_16, %c0_17] : memref<32x128xf32, #tpu.memory_space<vmem>>, vector<32x128xf32>
    tpu.vector_store %arg6[%c0_16, %c0_17], %52 {strides = array<i32>} : memref<32x128xf32, #tpu.memory_space<vmem>>, vector<32x128xf32>,
    return
  }
  func.func @transform_0(%arg0: i32) -> (i32, i32) {
    %c0_i32 = arith.constant 0 : i32
    %c0_i32_0 = arith.constant 0 : i32
    return %arg0, %c0_i32 : i32, i32
  }
  func.func @transform_1(%arg0: i32) -> (i32, i32) {
    %c0_i32 = arith.constant 0 : i32
    %c0_i32_0 = arith.constant 0 : i32
    %c0_i32_1 = arith.constant 0 : i32
    return %c0_i32, %c0_i32_0 : i32, i32
  }
  func.func @transform_2(%arg0: i32) -> (i32, i32) {
    %c0_i32 = arith.constant 0 : i32
    %c0_i32_0 = arith.constant 0 : i32
    %c0_i32_1 = arith.constant 0 : i32
    return %c0_i32, %c0_i32_0 : i32, i32
  }
  func.func @transform_3(%arg0: i32) -> (i32, i32) {
    %c0_i32 = arith.constant 0 : i32
    %c0_i32_0 = arith.constant 0 : i32
    %c0_i32_1 = arith.constant 0 : i32
    return %c0_i32, %c0_i32_0 : i32, i32
  }
  func.func @transform_4(%arg0: i32) -> (i32, i32) {
    %c0_i32 = arith.constant 0 : i32
    %c0_i32_0 = arith.constant 0 : i32
    %c0_i32_1 = arith.constant 0 : i32
    return %c0_i32, %c0_i32_0 : i32, i32
  }
  func.func @transform_5(%arg0: i32) -> (i32, i32) {
    %c0_i32 = arith.constant 0 : i32
    %c0_i32_0 = arith.constant 0 : i32
    return %arg0, %c0_i32 : i32, i32
  }
}

</mosaic_0001>

<llo_original>
// kernel: tpu_custom_call.1
$region0: #{tpu_custom_call.1}
  #allocation0 [shape = 'u32[]', space=smem, size = 0x4, offset = 0x4, fixed_abs, tag = 'smem constant byte address 0x4 - core index']
  #allocation1 [shape = 'u32[144,128]{1,0:T(1,128)}', space=vmem, size = 0x12000, scoped, tag = 'internal scratch']
  %s0 = inlined_call_operand.vmem [shape: bf16[1536,300], index: 0, kind: input, shape index: {}]
  %s1 = inlined_call_operand.vmem [shape: bf16[300,384], index: 1, kind: input, shape index: {}]
  %s2 = inlined_call_operand.vmem [shape: f32[1,256], index: 2, kind: input, shape index: {}]
  %s3 = inlined_call_operand.vmem [shape: f32[256,128], index: 3, kind: input, shape index: {}]
  %s4 = inlined_call_operand.vmem [shape: f32[1,128], index: 4, kind: input, shape index: {}]
  %s5 = inlined_call_operand.hbm [shape: f32[64,128], index: 5, kind: output, shape index: {}]
  %s6 = sld [smem:[#allocation0]]
  $region53: #{tpu_custom_call.1} parent=0
    _
  %s8 = ssub.s32 1, %s6
  %s9 = scalar_select 0, %s8, %s6
  $region1: #{tpu_custom_call.1} parent=0
    #allocation2 [shape = 'u8[32768]{0}', space=vmem, size = 0x8000, scoped, tag = 'output window, operand 0']
    #allocation3 [shape = 's32[2]{0}', space=sflag, size = 0x8, scoped, tag = 'scoped memory for tpu_custom_call.1']
    %10 = vsyncpa [#allocation3], 0
    %s11 = scalar_lea.sflag [#allocation3], 1
    %12 = vsyncpa %s11, 0
    loop: start=0, step=1, limit=4
    $region2: #{tpu_custom_call.1} parent=1 // loop_pre_header
      _
    $region3: #{tpu_custom_call.1} parent=1 // loop_header
      %s14 = sphi 0, %s18
      %p15 = scmp.ge.s32.totalorder %s14, 4
      %s24 = sphi 0, %s26
      %s27 = sphi 0, %s24
      %s28 = sphi 0, %s27
      %s44 = sphi 0, %s28
      %s48 = sphi 0, %s48
      %s50 = sphi 0, %s48
      %s51 = sphi 0, %s50
      %s65 = sphi 0, %s51
      %s69 = sphi 0, %s69
      %s71 = sphi 0, %s69
      %s72 = sphi 0, %s71
      %s86 = sphi 0, %s72
      %s90 = sphi 0, %s90
      %s92 = sphi 0, %s90
      %s93 = sphi 0, %s92
      %s107 = sphi 0, %s93
      %s111 = sphi 0, %s111
      %s113 = sphi 0, %s111
      %s114 = sphi 0, %s113
      %s128 = sphi 0, %s114
      %s134 = sphi 0, %s136
      %s137 = sphi 0, %s134
      %s138 = sphi 0, %s137
      %s154 = sphi 0, %s138
    $region4: #{tpu_custom_call.1} parent=1 // loop_header_branch
      %17 = sbr.rel (%p15) target = $region8
    $region5: #{tpu_custom_call.1} parent=1 // loop_body
      %s19 = ssub.s32 %s14, 1
      %s20 = ssub.s32 %s14, 2
      %s21 = sadd.s32 %s14, 1
      %s22 = ssub.s32 %s14, %s21
      %p23 = scmp.eq.s32.totalorder %s22, 0
      %s25 = sadd.s32 %s24, 1
      %s26 = scalar_select %p23, %s24, %s25
      %p29 = pneg %p23
      %p30 = scmp.eq.s32.totalorder %s14, 1
      %p31 = por %p29, %p30
      %p32 = scmp.ne.s32.totalorder %s24, %s27
      %p33 = scmp.eq.s32.totalorder %s14, 0
      %p34 = por %p32, %p33
      %p35 = scmp.ne.s32.totalorder %s24, %s27
      %p36 = scmp.eq.s32.totalorder %s19, 1
      %p37 = por %p35, %p36
      %p38 = scmp.ne.s32.totalorder %s27, %s28
      %p39 = scmp.eq.s32.totalorder %s19, 0
      %p40 = por %p38, %p39
      %p41 = scmp.ne.s32.totalorder %s27, %s28
      %p42 = scmp.eq.s32.totalorder %s20, 1
      %p43 = por %p41, %p42
      %p45 = scmp.ne.s32.totalorder %s28, %s44
      %p46 = scmp.eq.s32.totalorder %s20, 0
      %p47 = por %p45, %p46
      %s49 = sadd.s32 %s48, 1
      %p52 = scmp.eq.s32.totalorder %s14, 1
      %p53 = scmp.ne.s32.totalorder %s48, %s50
      %p54 = scmp.eq.s32.totalorder %s14, 0
      %p55 = por %p53, %p54
      %p56 = scmp.ne.s32.totalorder %s48, %s50
      %p57 = scmp.eq.s32.totalorder %s19, 1
      %p58 = por %p56, %p57
      %p59 = scmp.ne.s32.totalorder %s50, %s51
      %p60 = scmp.eq.s32.totalorder %s19, 0
      %p61 = por %p59, %p60
      %p62 = scmp.ne.s32.totalorder %s50, %s51
      %p63 = scmp.eq.s32.totalorder %s20, 1
      %p64 = por %p62, %p63
      %p66 = scmp.ne.s32.totalorder %s51, %s65
      %p67 = scmp.eq.s32.totalorder %s20, 0
      %p68 = por %p66, %p67
      %s70 = sadd.s32 %s69, 1
      %p73 = scmp.eq.s32.totalorder %s14, 1
      %p74 = scmp.ne.s32.totalorder %s69, %s71
      %p75 = scmp.eq.s32.totalorder %s14, 0
      %p76 = por %p74, %p75
      %p77 = scmp.ne.s32.totalorder %s69, %s71
      %p78 = scmp.eq.s32.totalorder %s19, 1
      %p79 = por %p77, %p78
      %p80 = scmp.ne.s32.totalorder %s71, %s72
      %p81 = scmp.eq.s32.totalorder %s19, 0
      %p82 = por %p80, %p81
      %p83 = scmp.ne.s32.totalorder %s71, %s72
      %p84 = scmp.eq.s32.totalorder %s20, 1
      %p85 = por %p83, %p84
      %p87 = scmp.ne.s32.totalorder %s72, %s86
      %p88 = scmp.eq.s32.totalorder %s20, 0
      %p89 = por %p87, %p88
      %s91 = sadd.s32 %s90, 1
      %p94 = scmp.eq.s32.totalorder %s14, 1
      %p95 = scmp.ne.s32.totalorder %s90, %s92
      %p96 = scmp.eq.s32.totalorder %s14, 0
      %p97 = por %p95, %p96
      %p98 = scmp.ne.s32.totalorder %s90, %s92
      %p99 = scmp.eq.s32.totalorder %s19, 1
      %p100 = por %p98, %p99
      %p101 = scmp.ne.s32.totalorder %s92, %s93
      %p102 = scmp.eq.s32.totalorder %s19, 0
      %p103 = por %p101, %p102
      %p104 = scmp.ne.s32.totalorder %s92, %s93
      %p105 = scmp.eq.s32.totalorder %s20, 1
      %p106 = por %p104, %p105
      %p108 = scmp.ne.s32.totalorder %s93, %s107
      %p109 = scmp.eq.s32.totalorder %s20, 0
      %p110 = por %p108, %p109
      %s112 = sadd.s32 %s111, 1
      %p115 = scmp.eq.s32.totalorder %s14, 1
      %p116 = scmp.ne.s32.totalorder %s111, %s113
      %p117 = scmp.eq.s32.totalorder %s14, 0
      %p118 = por %p116, %p117
      %p119 = scmp.ne.s32.totalorder %s111, %s113
      %p120 = scmp.eq.s32.totalorder %s19, 1
      %p121 = por %p119, %p120
      %p122 = scmp.ne.s32.totalorder %s113, %s114
      %p123 = scmp.eq.s32.totalorder %s19, 0
      %p124 = por %p122, %p123
      %p125 = scmp.ne.s32.totalorder %s113, %s114
      %p126 = scmp.eq.s32.totalorder %s20, 1
      %p127 = por %p125, %p126
      %p129 = scmp.ne.s32.totalorder %s114, %s128
      %p130 = scmp.eq.s32.totalorder %s20, 0
      %p131 = por %p129, %p130
      %s132 = ssub.s32 %s14, %s21
      %p133 = scmp.eq.s32.totalorder %s132, 0
      %s135 = sadd.s32 %s134, 1
      %s136 = scalar_select %p133, %s134, %s135
      %p139 = pneg %p133
      %p140 = scmp.eq.s32.totalorder %s14, 1
      %p141 = por %p139, %p140
      %p142 = scmp.ne.s32.totalorder %s134, %s137
      %p143 = scmp.eq.s32.totalorder %s14, 0
      %p144 = por %p142, %p143
      %p145 = scmp.ne.s32.totalorder %s134, %s137
      %p146 = scmp.eq.s32.totalorder %s19, 1
      %p147 = por %p145, %p146
      %p148 = scmp.ne.s32.totalorder %s137, %s138
      %p149 = scmp.eq.s32.totalorder %s19, 0
      %p150 = por %p148, %p149
      %p151 = scmp.ne.s32.totalorder %s137, %s138
      %p152 = scmp.eq.s32.totalorder %s20, 1
      %p153 = por %p151, %p152
      %p155 = scmp.ne.s32.totalorder %s138, %s154
      %p156 = scmp.eq.s32.totalorder %s20, 0
      %p157 = por %p155, %p156
      %p158 = scmp.le.s32.totalorder 1, %s14
      %p159 = scmp.lt.s32.totalorder %s14, 3
      %p160 = pnand %p158, %p159
      %p161 = pneg %p160
      // Predicated region
      $region9: #{tpu_custom_call.1} parent=5 // pred_check
        _
      $region10: #{tpu_custom_call.1} parent=5 // pred_check_branch
        %163 = sbr.rel (%p160) target = $region12
      $region11: #{tpu_custom_call.1} parent=5 // pred_region
        %s164 = ssub.s32 %s14, 1
        // Predicated region
        $region13: #{tpu_custom_call.1} parent=11 // pred_check
          %p165 = pneg %p61
        $region14: #{tpu_custom_call.1} parent=11 // pred_check_branch
          %167 = sbr.rel (%p165) target = $region16
        $region15: #{tpu_custom_call.1} parent=11 // pred_region
          _
        $region16: #{tpu_custom_call.1} parent=11 // pred_fallthru
          _
        // Predicated region
        $region17: #{tpu_custom_call.1} parent=11 // pred_check
          %p168 = pneg %p82
        $region18: #{tpu_custom_call.1} parent=11 // pred_check_branch
          %170 = sbr.rel (%p168) target = $region20
        $region19: #{tpu_custom_call.1} parent=11 // pred_region
          _
        $region20: #{tpu_custom_call.1} parent=11 // pred_fallthru
          _
        // Predicated region
        $region21: #{tpu_custom_call.1} parent=11 // pred_check
          %p171 = pneg %p103
        $region22: #{tpu_custom_call.1} parent=11 // pred_check_branch
          %173 = sbr.rel (%p171) target = $region24
        $region23: #{tpu_custom_call.1} parent=11 // pred_region
          _
        $region24: #{tpu_custom_call.1} parent=11 // pred_fallthru
          _
        // Predicated region
        $region25: #{tpu_custom_call.1} parent=11 // pred_check
          %p174 = pneg %p124
        $region26: #{tpu_custom_call.1} parent=11 // pred_check_branch
          %176 = sbr.rel (%p174) target = $region28
        $region27: #{tpu_custom_call.1} parent=11 // pred_region
          _
        $region28: #{tpu_custom_call.1} parent=11 // pred_fallthru
          _
      $region12: #{tpu_custom_call.1} parent=5 // pred_fallthru
        _
      %p177 = scmp.lt.s32.totalorder %s14, 2
      // Predicated region
      $region29: #{tpu_custom_call.1} parent=5 // pred_check
        %p178 = pneg %p177
      $region30: #{tpu_custom_call.1} parent=5 // pred_check_branch
        %180 = sbr.rel (%p178) target = $region32
      $region31: #{tpu_custom_call.1} parent=5 // pred_region
        // Predicated region
        $region33: #{tpu_custom_call.1} parent=31 // pred_check
          %p181 = pneg %p34
        $region34: #{tpu_custom_call.1} parent=31 // pred_check_branch
          %183 = sbr.rel (%p181) target = $region36
        $region35: #{tpu_custom_call.1} parent=31 // pred_region
          %s184 = smul.u32 96, %s14
          %p185 = scmp.lt.s32.totalorder %s184, 191
          %s186 = scalar_select %p185, %s184, 191
          %s187 = smul.addr %s186, 3
          %s188 = smul.addr %s187, 4
          %s189 = scalar_lea.vmem %s0, %s188
          %s190 = smul.u32 96, %s14
        $region36: #{tpu_custom_call.1} parent=31 // pred_fallthru
          _
      $region32: #{tpu_custom_call.1} parent=5 // pred_fallthru
        _
      %p191 = scmp.le.s32.totalorder 1, %s14
      %p192 = scmp.lt.s32.totalorder %s14, 3
      %p193 = pnand %p191, %p192
      %p194 = pneg %p193
      // Predicated region
      $region37: #{tpu_custom_call.1} parent=5 // pred_check
        _
      $region38: #{tpu_custom_call.1} parent=5 // pred_check_branch
        %196 = sbr.rel (%p193) target = $region40
      $region39: #{tpu_custom_call.1} parent=5 // pred_region
        %s197 = ssub.s32 %s14, 1
        %s198 = smul.u32 96, %s19
        %p199 = scmp.lt.s32.totalorder %s198, 191
        %s200 = scalar_select %p199, %s198, 191
        %s201 = smul.addr %s200, 3
        %s202 = smul.addr %s201, 4
        %s203 = scalar_lea.vmem %s0, %s202
        %p204 = pneg %p40
        %p205 = pneg %p37
        %p206 = pneg %p61
        %p207 = pneg %p58
        %p208 = pneg %p82
        %p209 = pneg %p79
        %p210 = pneg %p103
        %p211 = pneg %p100
        %p212 = pneg %p124
        %p213 = pneg %p121
        %p214 = pneg %p150
        %p215 = pneg %p147
        %s216 = sand.u32 %s137, 1
        %s217 = scalar_lea.sflag [#allocation3], %s216
        %s218 = sand.u32 %s137, 1
        %s219 = smul.addr %s218, 32
        %s220 = scalar_lea.vmem [#allocation2], %s219
        %s221 = smul.u32 96, %s19
        %p222 = scmp.lt.s32.totalorder %s221, 191
        %s223 = scalar_select %p222, %s221, 191
        %s224 = smul.addr %s223, 3
        %s225 = smul.addr %s224, 4
        %s226 = scalar_lea.vmem %s0, %s225
        %s227 = smul.u32 96, %s19
        %s228 = smul.u32 4, %s19
        %v230 = vld [vmem:[%s226] sm:$0xff]
        %v231 = vld [vmem:[%s226 + $0x8] sm:$0xf]
        %v232 = vld [vmem:[%s226 + $0xc] sm:$0xff]
        %v233 = vld [vmem:[%s226 + $0x14] sm:$0xf]
        %v234 = vld [vmem:[%s226 + $0x18] sm:$0xff]
        %v235 = vld [vmem:[%s226 + $0x20] sm:$0xf]
        %v236 = vld [vmem:[%s226 + $0x24] sm:$0xff]
        %v237 = vld [vmem:[%s226 + $0x2c] sm:$0xf]
        %v238 = vld [vmem:[%s226 + $0x30] sm:$0xff]
        %v239 = vld [vmem:[%s226 + $0x38] sm:$0xf]
        %v240 = vld [vmem:[%s226 + $0x3c] sm:$0xff]
        %v241 = vld [vmem:[%s226 + $0x44] sm:$0xf]
        %v242 = vld [vmem:[%s226 + $0x48] sm:$0xff]
        %v243 = vld [vmem:[%s226 + $0x50] sm:$0xf]
        %v244 = vld [vmem:[%s226 + $0x54] sm:$0xff]
        %v245 = vld [vmem:[%s226 + $0x5c] sm:$0xf]
        %v246 = vld [vmem:[%s226 + $0x60] sm:$0xff]
        %v247 = vld [vmem:[%s226 + $0x68] sm:$0xf]
        %v248 = vld [vmem:[%s226 + $0x6c] sm:$0xff]
        %v249 = vld [vmem:[%s226 + $0x74] sm:$0xf]
        %v250 = vld [vmem:[%s226 + $0x78] sm:$0xff]
        %v251 = vld [vmem:[%s226 + $0x80] sm:$0xf]
        %v252 = vld [vmem:[%s226 + $0x84] sm:$0xff]
        %v253 = vld [vmem:[%s226 + $0x8c] sm:$0xf]
        %v254 = vld [vmem:[%s226 + $0x90] sm:$0xff]
        %v255 = vld [vmem:[%s226 + $0x98] sm:$0xf]
        %v256 = vld [vmem:[%s226 + $0x9c] sm:$0xff]
        %v257 = vld [vmem:[%s226 + $0xa4] sm:$0xf]
        %v258 = vld [vmem:[%s226 + $0xa8] sm:$0xff]
        %v259 = vld [vmem:[%s226 + $0xb0] sm:$0xf]
        %v260 = vld [vmem:[%s226 + $0xb4] sm:$0xff]
        %v261 = vld [vmem:[%s226 + $0xbc] sm:$0xf]
        %v262 = vld [vmem:[%s226 + $0xc0] sm:$0xff]
        %v263 = vld [vmem:[%s226 + $0xc8] sm:$0xf]
        %v264 = vld [vmem:[%s226 + $0xcc] sm:$0xff]
        %v265 = vld [vmem:[%s226 + $0xd4] sm:$0xf]
        %v266 = vld [vmem:[%s226 + $0xd8] sm:$0xff]
        %v267 = vld [vmem:[%s226 + $0xe0] sm:$0xf]
        %v268 = vld [vmem:[%s226 + $0xe4] sm:$0xff]
        %v269 = vld [vmem:[%s226 + $0xec] sm:$0xf]
        %v270 = vld [vmem:[%s226 + $0xf0] sm:$0xff]
        %v271 = vld [vmem:[%s226 + $0xf8] sm:$0xf]
        %v272 = vld [vmem:[%s226 + $0xfc] sm:$0xff]
        %v273 = vld [vmem:[%s226 + $0x104] sm:$0xf]
        %v274 = vld [vmem:[%s226 + $0x108] sm:$0xff]
        %v275 = vld [vmem:[%s226 + $0x110] sm:$0xf]
        %v276 = vld [vmem:[%s226 + $0x114] sm:$0xff]
        %v277 = vld [vmem:[%s226 + $0x11c] sm:$0xf]
        %v278 = vld [vmem:[%s226 + $0x120] sm:$0xff]
        %v279 = vld [vmem:[%s226 + $0x128] sm:$0xf]
        %v280 = vld [vmem:[%s226 + $0x12c] sm:$0xff]
        %v281 = vld [vmem:[%s226 + $0x134] sm:$0xf]
        %v282 = vld [vmem:[%s226 + $0x138] sm:$0xff]
        %v283 = vld [vmem:[%s226 + $0x140] sm:$0xf]
        %v284 = vld [vmem:[%s226 + $0x144] sm:$0xff]
        %v285 = vld [vmem:[%s226 + $0x14c] sm:$0xf]
        %v286 = vld [vmem:[%s226 + $0x150] sm:$0xff]
        %v287 = vld [vmem:[%s226 + $0x158] sm:$0xf]
        %v288 = vld [vmem:[%s226 + $0x15c] sm:$0xff]
        %v289 = vld [vmem:[%s226 + $0x164] sm:$0xf]
        %v290 = vld [vmem:[%s226 + $0x168] sm:$0xff]
        %v291 = vld [vmem:[%s226 + $0x170] sm:$0xf]
        %v292 = vld [vmem:[%s226 + $0x174] sm:$0xff]
        %v293 = vld [vmem:[%s226 + $0x17c] sm:$0xf]
        %v294 = vld [vmem:[%s226 + $0x180] sm:$0xff]
        %v295 = vld [vmem:[%s226 + $0x188] sm:$0xf]
        %v296 = vld [vmem:[%s226 + $0x18c] sm:$0xff]
        %v297 = vld [vmem:[%s226 + $0x194] sm:$0xf]
        %v298 = vld [vmem:[%s226 + $0x198] sm:$0xff]
        %v299 = vld [vmem:[%s226 + $0x1a0] sm:$0xf]
        %v300 = vld [vmem:[%s226 + $0x1a4] sm:$0xff]
        %v301 = vld [vmem:[%s226 + $0x1ac] sm:$0xf]
        %v302 = vld [vmem:[%s226 + $0x1b0] sm:$0xff]
        %v303 = vld [vmem:[%s226 + $0x1b8] sm:$0xf]
        %v304 = vld [vmem:[%s226 + $0x1bc] sm:$0xff]
        %v305 = vld [vmem:[%s226 + $0x1c4] sm:$0xf]
        %v306 = vld [vmem:[%s226 + $0x1c8] sm:$0xff]
        %v307 = vld [vmem:[%s226 + $0x1d0] sm:$0xf]
        %v308 = vld [vmem:[%s226 + $0x1d4] sm:$0xff]
        %v309 = vld [vmem:[%s226 + $0x1dc] sm:$0xf]
        %v310 = vld [vmem:[%s226 + $0x1e0] sm:$0xff]
        %v311 = vld [vmem:[%s226 + $0x1e8] sm:$0xf]
        %v312 = vld [vmem:[%s226 + $0x1ec] sm:$0xff]
        %v313 = vld [vmem:[%s226 + $0x1f4] sm:$0xf]
        %v314 = vld [vmem:[%s226 + $0x1f8] sm:$0xff]
        %v315 = vld [vmem:[%s226 + $0x200] sm:$0xf]
        %v316 = vld [vmem:[%s226 + $0x204] sm:$0xff]
        %v317 = vld [vmem:[%s226 + $0x20c] sm:$0xf]
        %v318 = vld [vmem:[%s226 + $0x210] sm:$0xff]
        %v319 = vld [vmem:[%s226 + $0x218] sm:$0xf]
        %v320 = vld [vmem:[%s226 + $0x21c] sm:$0xff]
        %v321 = vld [vmem:[%s226 + $0x224] sm:$0xf]
        %v322 = vld [vmem:[%s226 + $0x228] sm:$0xff]
        %v323 = vld [vmem:[%s226 + $0x230] sm:$0xf]
        %v324 = vld [vmem:[%s226 + $0x234] sm:$0xff]
        %v325 = vld [vmem:[%s226 + $0x23c] sm:$0xf]
        %v326 = vld [vmem:[%s226 + $0x240] sm:$0xff]
        %v327 = vld [vmem:[%s226 + $0x248] sm:$0xf]
        %v328 = vld [vmem:[%s226 + $0x24c] sm:$0xff]
        %v329 = vld [vmem:[%s226 + $0x254] sm:$0xf]
        %v330 = vld [vmem:[%s226 + $0x258] sm:$0xff]
        %v331 = vld [vmem:[%s226 + $0x260] sm:$0xf]
        %v332 = vld [vmem:[%s226 + $0x264] sm:$0xff]
        %v333 = vld [vmem:[%s226 + $0x26c] sm:$0xf]
        %v334 = vld [vmem:[%s226 + $0x270] sm:$0xff]
        %v335 = vld [vmem:[%s226 + $0x278] sm:$0xf]
        %v336 = vld [vmem:[%s226 + $0x27c] sm:$0xff]
        %v337 = vld [vmem:[%s226 + $0x284] sm:$0xf]
        %v338 = vld [vmem:[%s226 + $0x288] sm:$0xff]
        %v339 = vld [vmem:[%s226 + $0x290] sm:$0xf]
        %v340 = vld [vmem:[%s226 + $0x294] sm:$0xff]
        %v341 = vld [vmem:[%s226 + $0x29c] sm:$0xf]
        %v342 = vld [vmem:[%s226 + $0x2a0] sm:$0xff]
        %v343 = vld [vmem:[%s226 + $0x2a8] sm:$0xf]
        %v344 = vld [vmem:[%s226 + $0x2ac] sm:$0xff]
        %v345 = vld [vmem:[%s226 + $0x2b4] sm:$0xf]
        %v346 = vld [vmem:[%s226 + $0x2b8] sm:$0xff]
        %v347 = vld [vmem:[%s226 + $0x2c0] sm:$0xf]
        %v348 = vld [vmem:[%s226 + $0x2c4] sm:$0xff]
        %v349 = vld [vmem:[%s226 + $0x2cc] sm:$0xf]
        %v350 = vld [vmem:[%s226 + $0x2d0] sm:$0xff]
        %v351 = vld [vmem:[%s226 + $0x2d8] sm:$0xf]
        %v352 = vld [vmem:[%s226 + $0x2dc] sm:$0xff]
        %v353 = vld [vmem:[%s226 + $0x2e4] sm:$0xf]
        %v354 = vld [vmem:[%s226 + $0x2e8] sm:$0xff]
        %v355 = vld [vmem:[%s226 + $0x2f0] sm:$0xf]
        %v356 = vld [vmem:[%s226 + $0x2f4] sm:$0xff]
        %v357 = vld [vmem:[%s226 + $0x2fc] sm:$0xf]
        %v358 = vld [vmem:[%s226 + $0x300] sm:$0xff]
        %v359 = vld [vmem:[%s226 + $0x308] sm:$0xf]
        %v360 = vld [vmem:[%s226 + $0x30c] sm:$0xff]
        %v361 = vld [vmem:[%s226 + $0x314] sm:$0xf]
        %v362 = vld [vmem:[%s226 + $0x318] sm:$0xff]
        %v363 = vld [vmem:[%s226 + $0x320] sm:$0xf]
        %v364 = vld [vmem:[%s226 + $0x324] sm:$0xff]
        %v365 = vld [vmem:[%s226 + $0x32c] sm:$0xf]
        %v366 = vld [vmem:[%s226 + $0x330] sm:$0xff]
        %v367 = vld [vmem:[%s226 + $0x338] sm:$0xf]
        %v368 = vld [vmem:[%s226 + $0x33c] sm:$0xff]
        %v369 = vld [vmem:[%s226 + $0x344] sm:$0xf]
        %v370 = vld [vmem:[%s226 + $0x348] sm:$0xff]
        %v371 = vld [vmem:[%s226 + $0x350] sm:$0xf]
        %v372 = vld [vmem:[%s226 + $0x354] sm:$0xff]
        %v373 = vld [vmem:[%s226 + $0x35c] sm:$0xf]
        %v374 = vld [vmem:[%s226 + $0x360] sm:$0xff]
        %v375 = vld [vmem:[%s226 + $0x368] sm:$0xf]
        %v376 = vld [vmem:[%s226 + $0x36c] sm:$0xff]
        %v377 = vld [vmem:[%s226 + $0x374] sm:$0xf]
        %v378 = vld [vmem:[%s226 + $0x378] sm:$0xff]
        %v379 = vld [vmem:[%s226 + $0x380] sm:$0xf]
        %v380 = vld [vmem:[%s226 + $0x384] sm:$0xff]
        %v381 = vld [vmem:[%s226 + $0x38c] sm:$0xf]
        %v382 = vld [vmem:[%s226 + $0x390] sm:$0xff]
        %v383 = vld [vmem:[%s226 + $0x398] sm:$0xf]
        %v384 = vld [vmem:[%s226 + $0x39c] sm:$0xff]
        %v385 = vld [vmem:[%s226 + $0x3a4] sm:$0xf]
        %v386 = vld [vmem:[%s226 + $0x3a8] sm:$0xff]
        %v387 = vld [vmem:[%s226 + $0x3b0] sm:$0xf]
        %v388 = vld [vmem:[%s226 + $0x3b4] sm:$0xff]
        %v389 = vld [vmem:[%s226 + $0x3bc] sm:$0xf]
        %v390 = vld [vmem:[%s226 + $0x3c0] sm:$0xff]
        %v391 = vld [vmem:[%s226 + $0x3c8] sm:$0xf]
        %v392 = vld [vmem:[%s226 + $0x3cc] sm:$0xff]
        %v393 = vld [vmem:[%s226 + $0x3d4] sm:$0xf]
        %v394 = vld [vmem:[%s226 + $0x3d8] sm:$0xff]
        %v395 = vld [vmem:[%s226 + $0x3e0] sm:$0xf]
        %v396 = vld [vmem:[%s226 + $0x3e4] sm:$0xff]
        %v397 = vld [vmem:[%s226 + $0x3ec] sm:$0xf]
        %v398 = vld [vmem:[%s226 + $0x3f0] sm:$0xff]
        %v399 = vld [vmem:[%s226 + $0x3f8] sm:$0xf]
        %v400 = vld [vmem:[%s226 + $0x3fc] sm:$0xff]
        %v401 = vld [vmem:[%s226 + $0x404] sm:$0xf]
        %v402 = vld [vmem:[%s226 + $0x408] sm:$0xff]
        %v403 = vld [vmem:[%s226 + $0x410] sm:$0xf]
        %v404 = vld [vmem:[%s226 + $0x414] sm:$0xff]
        %v405 = vld [vmem:[%s226 + $0x41c] sm:$0xf]
        %v406 = vld [vmem:[%s226 + $0x420] sm:$0xff]
        %v407 = vld [vmem:[%s226 + $0x428] sm:$0xf]
        %v408 = vld [vmem:[%s226 + $0x42c] sm:$0xff]
        %v409 = vld [vmem:[%s226 + $0x434] sm:$0xf]
        %v410 = vld [vmem:[%s226 + $0x438] sm:$0xff]
        %v411 = vld [vmem:[%s226 + $0x440] sm:$0xf]
        %v412 = vld [vmem:[%s226 + $0x444] sm:$0xff]
        %v413 = vld [vmem:[%s226 + $0x44c] sm:$0xf]
        %v414 = vld [vmem:[%s226 + $0x450] sm:$0xff]
        %v415 = vld [vmem:[%s226 + $0x458] sm:$0xf]
        %v416 = vld [vmem:[%s226 + $0x45c] sm:$0xff]
        %v417 = vld [vmem:[%s226 + $0x464] sm:$0xf]
        %v418 = vld [vmem:[%s226 + $0x468] sm:$0xff]
        %v419 = vld [vmem:[%s226 + $0x470] sm:$0xf]
        %v420 = vld [vmem:[%s226 + $0x474] sm:$0xff]
        %v421 = vld [vmem:[%s226 + $0x47c] sm:$0xf]
        %v422 = vld [vmem:[%s1] sm:$0xff]
        %v423 = vld [vmem:[%s1 + $0x8] sm:$0xf]
        %v424 = vld [vmem:[%s1 + $0xc] sm:$0xff]
        %v425 = vld [vmem:[%s1 + $0x14] sm:$0xf]
        %v426 = vld [vmem:[%s1 + $0x18] sm:$0xff]
        %v427 = vld [vmem:[%s1 + $0x20] sm:$0xf]
        %v428 = vld [vmem:[%s1 + $0x24] sm:$0xff]
        %v429 = vld [vmem:[%s1 + $0x2c] sm:$0xf]
        %v430 = vld [vmem:[%s1 + $0x30] sm:$0xff]
        %v431 = vld [vmem:[%s1 + $0x38] sm:$0xf]
        %v432 = vld [vmem:[%s1 + $0x3c] sm:$0xff]
        %v433 = vld [vmem:[%s1 + $0x44] sm:$0xf]
        %v434 = vld [vmem:[%s1 + $0x48] sm:$0xff]
        %v435 = vld [vmem:[%s1 + $0x50] sm:$0xf]
        %v436 = vld [vmem:[%s1 + $0x54] sm:$0xff]
        %v437 = vld [vmem:[%s1 + $0x5c] sm:$0xf]
        %v438 = vld [vmem:[%s1 + $0x60] sm:$0xff]
        %v439 = vld [vmem:[%s1 + $0x68] sm:$0xf]
        %v440 = vld [vmem:[%s1 + $0x6c] sm:$0xff]
        %v441 = vld [vmem:[%s1 + $0x74] sm:$0xf]
        %v442 = vld [vmem:[%s1 + $0x78] sm:$0xff]
        %v443 = vld [vmem:[%s1 + $0x80] sm:$0xf]
        %v444 = vld [vmem:[%s1 + $0x84] sm:$0xff]
        %v445 = vld [vmem:[%s1 + $0x8c] sm:$0xf]
        %v446 = vld [vmem:[%s1 + $0x90] sm:$0xff]
        %v447 = vld [vmem:[%s1 + $0x98] sm:$0xf]
        %v448 = vld [vmem:[%s1 + $0x9c] sm:$0xff]
        %v449 = vld [vmem:[%s1 + $0xa4] sm:$0xf]
        %v450 = vld [vmem:[%s1 + $0xa8] sm:$0xff]
        %v451 = vld [vmem:[%s1 + $0xb0] sm:$0xf]
        %v452 = vld [vmem:[%s1 + $0xb4] sm:$0xff]
        %v453 = vld [vmem:[%s1 + $0xbc] sm:$0xf]
        %v454 = vld [vmem:[%s1 + $0xc0] sm:$0xff]
        %v455 = vld [vmem:[%s1 + $0xc8] sm:$0xf]
        %v456 = vld [vmem:[%s1 + $0xcc] sm:$0xff]
        %v457 = vld [vmem:[%s1 + $0xd4] sm:$0xf]
        %v458 = vld [vmem:[%s1 + $0xd8] sm:$0xff]
        %v459 = vld [vmem:[%s1 + $0xe0] sm:$0xf]
        %v460 = vld [vmem:[%s1 + $0xe4] sm:$0xff]
        %v461 = vld [vmem:[%s1 + $0xec] sm:$0xf]
        %v462 = vld [vmem:[%s1 + $0xf0] sm:$0xff]
        %v463 = vld [vmem:[%s1 + $0xf8] sm:$0xf]
        %v464 = vld [vmem:[%s1 + $0xfc] sm:$0xff]
        %v465 = vld [vmem:[%s1 + $0x104] sm:$0xf]
        %v466 = vld [vmem:[%s1 + $0x108] sm:$0xff]
        %v467 = vld [vmem:[%s1 + $0x110] sm:$0xf]
        %v468 = vld [vmem:[%s1 + $0x114] sm:$0xff]
        %v469 = vld [vmem:[%s1 + $0x11c] sm:$0xf]
        %v470 = vld [vmem:[%s1 + $0x120] sm:$0xff]
        %v471 = vld [vmem:[%s1 + $0x128] sm:$0xf]
        %v472 = vld [vmem:[%s1 + $0x12c] sm:$0xff]
        %v473 = vld [vmem:[%s1 + $0x134] sm:$0xf]
        %v474 = vld [vmem:[%s1 + $0x138] sm:$0xff]
        %v475 = vld [vmem:[%s1 + $0x140] sm:$0xf]
        %v476 = vld [vmem:[%s1 + $0x144] sm:$0xff]
        %v477 = vld [vmem:[%s1 + $0x14c] sm:$0xf]
        %v478 = vld [vmem:[%s1 + $0x150] sm:$0xff]
        %v479 = vld [vmem:[%s1 + $0x158] sm:$0xf]
        %v480 = vld [vmem:[%s1 + $0x15c] sm:$0xff]
        %v481 = vld [vmem:[%s1 + $0x164] sm:$0xf]
        %v482 = vld [vmem:[%s1 + $0x168] sm:$0xff]
        %v483 = vld [vmem:[%s1 + $0x170] sm:$0xf]
        %v484 = vld [vmem:[%s1 + $0x174] sm:$0xff]
        %v485 = vld [vmem:[%s1 + $0x17c] sm:$0xf]
        %v486 = vld [vmem:[%s1 + $0x180] sm:$0xff]
        %v487 = vld [vmem:[%s1 + $0x188] sm:$0xf]
        %v488 = vld [vmem:[%s1 + $0x18c] sm:$0xff]
        %v489 = vld [vmem:[%s1 + $0x194] sm:$0xf]
        %v490 = vld [vmem:[%s1 + $0x198] sm:$0xff]
        %v491 = vld [vmem:[%s1 + $0x1a0] sm:$0xf]
        %v492 = vld [vmem:[%s1 + $0x1a4] sm:$0xff]
        %v493 = vld [vmem:[%s1 + $0x1ac] sm:$0xf]
        %v494 = vld [vmem:[%s1 + $0x1b0] sm:$0xff]
        %v495 = vld [vmem:[%s1 + $0x1b8] sm:$0xf]
        %v496 = vld [vmem:[%s1 + $0x1bc] sm:$0x33]
        %v497 = vld [vmem:[%s1 + $0x1c4] sm:$0x3]
        %v690 = vunpack.c.l.b16 %v230
        %v691 = vunpack.c.h.b16 %v230
        %v692 = vunpack.c.l.b16 %v231
        %v693 = vunpack.c.l.b16 %v232
        %v694 = vunpack.c.h.b16 %v232
        %v695 = vunpack.c.l.b16 %v233
        %v696 = vunpack.c.l.b16 %v234
        %v697 = vunpack.c.h.b16 %v234
        %v698 = vunpack.c.l.b16 %v235
        %v699 = vunpack.c.l.b16 %v236
        %v700 = vunpack.c.h.b16 %v236
        %v701 = vunpack.c.l.b16 %v237
        %v702 = vunpack.c.l.b16 %v238
        %v703 = vunpack.c.h.b16 %v238
        %v704 = vunpack.c.l.b16 %v239
        %v705 = vunpack.c.l.b16 %v240
        %v706 = vunpack.c.h.b16 %v240
        %v707 = vunpack.c.l.b16 %v241
        %v708 = vunpack.c.l.b16 %v242
        %v709 = vunpack.c.h.b16 %v242
        %v710 = vunpack.c.l.b16 %v243
        %v711 = vunpack.c.l.b16 %v244
        %v712 = vunpack.c.h.b16 %v244
        %v713 = vunpack.c.l.b16 %v245
        %v714 = vunpack.c.l.b16 %v246
        %v715 = vunpack.c.h.b16 %v246
        %v716 = vunpack.c.l.b16 %v247
        %v717 = vunpack.c.l.b16 %v248
        %v718 = vunpack.c.h.b16 %v248
        %v719 = vunpack.c.l.b16 %v249
        %v720 = vunpack.c.l.b16 %v250
        %v721 = vunpack.c.h.b16 %v250
        %v722 = vunpack.c.l.b16 %v251
        %v723 = vunpack.c.l.b16 %v252
        %v724 = vunpack.c.h.b16 %v252
        %v725 = vunpack.c.l.b16 %v253
        %v726 = vunpack.c.l.b16 %v254
        %v727 = vunpack.c.h.b16 %v254
        %v728 = vunpack.c.l.b16 %v255
        %v729 = vunpack.c.l.b16 %v256
        %v730 = vunpack.c.h.b16 %v256
        %v731 = vunpack.c.l.b16 %v257
        %v732 = vunpack.c.l.b16 %v258
        %v733 = vunpack.c.h.b16 %v258
        %v734 = vunpack.c.l.b16 %v259
        %v735 = vunpack.c.l.b16 %v260
        %v736 = vunpack.c.h.b16 %v260
        %v737 = vunpack.c.l.b16 %v261
        %v738 = vunpack.c.l.b16 %v262
        %v739 = vunpack.c.h.b16 %v262
        %v740 = vunpack.c.l.b16 %v263
        %v741 = vunpack.c.l.b16 %v264
        %v742 = vunpack.c.h.b16 %v264
        %v743 = vunpack.c.l.b16 %v265
        %v744 = vunpack.c.l.b16 %v266
        %v745 = vunpack.c.h.b16 %v266
        %v746 = vunpack.c.l.b16 %v267
        %v747 = vunpack.c.l.b16 %v268
        %v748 = vunpack.c.h.b16 %v268
        %v749 = vunpack.c.l.b16 %v269
        %v750 = vunpack.c.l.b16 %v270
        %v751 = vunpack.c.h.b16 %v270
        %v752 = vunpack.c.l.b16 %v271
        %v753 = vunpack.c.l.b16 %v272
        %v754 = vunpack.c.h.b16 %v272
        %v755 = vunpack.c.l.b16 %v273
        %v756 = vunpack.c.l.b16 %v274
        %v757 = vunpack.c.h.b16 %v274
        %v758 = vunpack.c.l.b16 %v275
        %v759 = vunpack.c.l.b16 %v276
        %v760 = vunpack.c.h.b16 %v276
        %v761 = vunpack.c.l.b16 %v277
        %v762 = vunpack.c.l.b16 %v278
        %v763 = vunpack.c.h.b16 %v278
        %v764 = vunpack.c.l.b16 %v279
        %v765 = vunpack.c.l.b16 %v280
        %v766 = vunpack.c.h.b16 %v280
        %v767 = vunpack.c.l.b16 %v281
        %v768 = vunpack.c.l.b16 %v282
        %v769 = vunpack.c.h.b16 %v282
        %v770 = vunpack.c.l.b16 %v283
        %v771 = vunpack.c.l.b16 %v284
        %v772 = vunpack.c.h.b16 %v284
        %v773 = vunpack.c.l.b16 %v285
        %v774 = vunpack.c.l.b16 %v286
        %v775 = vunpack.c.h.b16 %v286
        %v776 = vunpack.c.l.b16 %v287
        %v777 = vunpack.c.l.b16 %v288
        %v778 = vunpack.c.h.b16 %v288
        %v779 = vunpack.c.l.b16 %v289
        %v780 = vunpack.c.l.b16 %v290
        %v781 = vunpack.c.h.b16 %v290
        %v782 = vunpack.c.l.b16 %v291
        %v783 = vunpack.c.l.b16 %v292
        %v784 = vunpack.c.h.b16 %v292
        %v785 = vunpack.c.l.b16 %v293
        %v786 = vunpack.c.l.b16 %v294
        %v787 = vunpack.c.h.b16 %v294
        %v788 = vunpack.c.l.b16 %v295
        %v789 = vunpack.c.l.b16 %v296
        %v790 = vunpack.c.h.b16 %v296
        %v791 = vunpack.c.l.b16 %v297
        %v792 = vunpack.c.l.b16 %v298
        %v793 = vunpack.c.h.b16 %v298
        %v794 = vunpack.c.l.b16 %v299
        %v795 = vunpack.c.l.b16 %v300
        %v796 = vunpack.c.h.b16 %v300
        %v797 = vunpack.c.l.b16 %v301
        %v798 = vunpack.c.l.b16 %v302
        %v799 = vunpack.c.h.b16 %v302
        %v800 = vunpack.c.l.b16 %v303
        %v801 = vunpack.c.l.b16 %v304
        %v802 = vunpack.c.h.b16 %v304
        %v803 = vunpack.c.l.b16 %v305
        %v804 = vunpack.c.l.b16 %v306
        %v805 = vunpack.c.h.b16 %v306
        %v806 = vunpack.c.l.b16 %v307
        %v807 = vunpack.c.l.b16 %v308
        %v808 = vunpack.c.h.b16 %v308
        %v809 = vunpack.c.l.b16 %v309
        %v810 = vunpack.c.l.b16 %v310
        %v811 = vunpack.c.h.b16 %v310
        %v812 = vunpack.c.l.b16 %v311
        %v813 = vunpack.c.l.b16 %v312
        %v814 = vunpack.c.h.b16 %v312
        %v815 = vunpack.c.l.b16 %v313
        %v816 = vunpack.c.l.b16 %v314
        %v817 = vunpack.c.h.b16 %v314
        %v818 = vunpack.c.l.b16 %v315
        %v819 = vunpack.c.l.b16 %v316
        %v820 = vunpack.c.h.b16 %v316
        %v821 = vunpack.c.l.b16 %v317
        %v822 = vunpack.c.l.b16 %v318
        %v823 = vunpack.c.h.b16 %v318
        %v824 = vunpack.c.l.b16 %v319
        %v825 = vunpack.c.l.b16 %v320
        %v826 = vunpack.c.h.b16 %v320
        %v827 = vunpack.c.l.b16 %v321
        %v828 = vunpack.c.l.b16 %v322
        %v829 = vunpack.c.h.b16 %v322
        %v830 = vunpack.c.l.b16 %v323
        %v831 = vunpack.c.l.b16 %v324
        %v832 = vunpack.c.h.b16 %v324
        %v833 = vunpack.c.l.b16 %v325
        %v834 = vunpack.c.l.b16 %v326
        %v835 = vunpack.c.h.b16 %v326
        %v836 = vunpack.c.l.b16 %v327
        %v837 = vunpack.c.l.b16 %v328
        %v838 = vunpack.c.h.b16 %v328
        %v839 = vunpack.c.l.b16 %v329
        %v840 = vunpack.c.l.b16 %v330
        %v841 = vunpack.c.h.b16 %v330
        %v842 = vunpack.c.l.b16 %v331
        %v843 = vunpack.c.l.b16 %v332
        %v844 = vunpack.c.h.b16 %v332
        %v845 = vunpack.c.l.b16 %v333
        %v846 = vunpack.c.l.b16 %v334
        %v847 = vunpack.c.h.b16 %v334
        %v848 = vunpack.c.l.b16 %v335
        %v849 = vunpack.c.l.b16 %v336
        %v850 = vunpack.c.h.b16 %v336
        %v851 = vunpack.c.l.b16 %v337
        %v852 = vunpack.c.l.b16 %v338
        %v853 = vunpack.c.h.b16 %v338
        %v854 = vunpack.c.l.b16 %v339
        %v855 = vunpack.c.l.b16 %v340
        %v856 = vunpack.c.h.b16 %v340
        %v857 = vunpack.c.l.b16 %v341
        %v858 = vunpack.c.l.b16 %v342
        %v859 = vunpack.c.h.b16 %v342
        %v860 = vunpack.c.l.b16 %v343
        %v861 = vunpack.c.l.b16 %v344
        %v862 = vunpack.c.h.b16 %v344
        %v863 = vunpack.c.l.b16 %v345
        %v864 = vunpack.c.l.b16 %v346
        %v865 = vunpack.c.h.b16 %v346
        %v866 = vunpack.c.l.b16 %v347
        %v867 = vunpack.c.l.b16 %v348
        %v868 = vunpack.c.h.b16 %v348
        %v869 = vunpack.c.l.b16 %v349
        %v870 = vunpack.c.l.b16 %v350
        %v871 = vunpack.c.h.b16 %v350
        %v872 = vunpack.c.l.b16 %v351
        %v873 = vunpack.c.l.b16 %v352
        %v874 = vunpack.c.h.b16 %v352
        %v875 = vunpack.c.l.b16 %v353
        %v876 = vunpack.c.l.b16 %v354
        %v877 = vunpack.c.h.b16 %v354
        %v878 = vunpack.c.l.b16 %v355
        %v879 = vunpack.c.l.b16 %v356
        %v880 = vunpack.c.h.b16 %v356
        %v881 = vunpack.c.l.b16 %v357
        %v882 = vunpack.c.l.b16 %v358
        %v883 = vunpack.c.h.b16 %v358
        %v884 = vunpack.c.l.b16 %v359
        %v885 = vunpack.c.l.b16 %v360
        %v886 = vunpack.c.h.b16 %v360
        %v887 = vunpack.c.l.b16 %v361
        %v888 = vunpack.c.l.b16 %v362
        %v889 = vunpack.c.h.b16 %v362
        %v890 = vunpack.c.l.b16 %v363
        %v891 = vunpack.c.l.b16 %v364
        %v892 = vunpack.c.h.b16 %v364
        %v893 = vunpack.c.l.b16 %v365
        %v894 = vunpack.c.l.b16 %v366
        %v895 = vunpack.c.h.b16 %v366
        %v896 = vunpack.c.l.b16 %v367
        %v897 = vunpack.c.l.b16 %v368
        %v898 = vunpack.c.h.b16 %v368
        %v899 = vunpack.c.l.b16 %v369
        %v900 = vunpack.c.l.b16 %v370
        %v901 = vunpack.c.h.b16 %v370
        %v902 = vunpack.c.l.b16 %v371
        %v903 = vunpack.c.l.b16 %v372
        %v904 = vunpack.c.h.b16 %v372
        %v905 = vunpack.c.l.b16 %v373
        %v906 = vunpack.c.l.b16 %v374
        %v907 = vunpack.c.h.b16 %v374
        %v908 = vunpack.c.l.b16 %v375
        %v909 = vunpack.c.l.b16 %v376
        %v910 = vunpack.c.h.b16 %v376
        %v911 = vunpack.c.l.b16 %v377
        %v912 = vunpack.c.l.b16 %v378
        %v913 = vunpack.c.h.b16 %v378
        %v914 = vunpack.c.l.b16 %v379
        %v915 = vunpack.c.l.b16 %v380
        %v916 = vunpack.c.h.b16 %v380
        %v917 = vunpack.c.l.b16 %v381
        %v918 = vunpack.c.l.b16 %v382
        %v919 = vunpack.c.h.b16 %v382
        %v920 = vunpack.c.l.b16 %v383
        %v921 = vunpack.c.l.b16 %v384
        %v922 = vunpack.c.h.b16 %v384
        %v923 = vunpack.c.l.b16 %v385
        %v924 = vunpack.c.l.b16 %v386
        %v925 = vunpack.c.h.b16 %v386
        %v926 = vunpack.c.l.b16 %v387
        %v927 = vunpack.c.l.b16 %v388
        %v928 = vunpack.c.h.b16 %v388
        %v929 = vunpack.c.l.b16 %v389
        %v930 = vunpack.c.l.b16 %v390
        %v931 = vunpack.c.h.b16 %v390
        %v932 = vunpack.c.l.b16 %v391
        %v933 = vunpack.c.l.b16 %v392
        %v934 = vunpack.c.h.b16 %v392
        %v935 = vunpack.c.l.b16 %v393
        %v936 = vunpack.c.l.b16 %v394
        %v937 = vunpack.c.h.b16 %v394
        %v938 = vunpack.c.l.b16 %v395
        %v939 = vunpack.c.l.b16 %v396
        %v940 = vunpack.c.h.b16 %v396
        %v941 = vunpack.c.l.b16 %v397
        %v942 = vunpack.c.l.b16 %v398
        %v943 = vunpack.c.h.b16 %v398
        %v944 = vunpack.c.l.b16 %v399
        %v945 = vunpack.c.l.b16 %v400
        %v946 = vunpack.c.h.b16 %v400
        %v947 = vunpack.c.l.b16 %v401
        %v948 = vunpack.c.l.b16 %v402
        %v949 = vunpack.c.h.b16 %v402
        %v950 = vunpack.c.l.b16 %v403
        %v951 = vunpack.c.l.b16 %v404
        %v952 = vunpack.c.h.b16 %v404
        %v953 = vunpack.c.l.b16 %v405
        %v954 = vunpack.c.l.b16 %v406
        %v955 = vunpack.c.h.b16 %v406
        %v956 = vunpack.c.l.b16 %v407
        %v957 = vunpack.c.l.b16 %v408
        %v958 = vunpack.c.h.b16 %v408
        %v959 = vunpack.c.l.b16 %v409
        %v960 = vunpack.c.l.b16 %v410
        %v961 = vunpack.c.h.b16 %v410
        %v962 = vunpack.c.l.b16 %v411
        %v963 = vunpack.c.l.b16 %v412
        %v964 = vunpack.c.h.b16 %v412
        %v965 = vunpack.c.l.b16 %v413
        %v966 = vunpack.c.l.b16 %v414
        %v967 = vunpack.c.h.b16 %v414
        %v968 = vunpack.c.l.b16 %v415
        %v969 = vunpack.c.l.b16 %v416
        %v970 = vunpack.c.h.b16 %v416
        %v971 = vunpack.c.l.b16 %v417
        %v972 = vunpack.c.l.b16 %v418
        %v973 = vunpack.c.h.b16 %v418
        %v974 = vunpack.c.l.b16 %v419
        %v975 = vunpack.c.l.b16 %v420
        %v976 = vunpack.c.h.b16 %v420
        %v977 = vunpack.c.l.b16 %v421
        %v978 = vpack.c.b16 %v693, %v690
        %v979 = vpack.c.b16 %v694, %v691
        %v980 = vpack.c.b16 %v695, %v692
        %v981 = vpack.c.b16 %v699, %v696
        %v982 = vpack.c.b16 %v700, %v697
        %v983 = vpack.c.b16 %v701, %v698
        %v984 = vpack.c.b16 %v705, %v702
        %v985 = vpack.c.b16 %v706, %v703
        %v986 = vpack.c.b16 %v707, %v704
        %v987 = vpack.c.b16 %v711, %v708
        %v988 = vpack.c.b16 %v712, %v709
        %v989 = vpack.c.b16 %v713, %v710
        %v990 = vpack.c.b16 %v717, %v714
        %v991 = vpack.c.b16 %v718, %v715
        %v992 = vpack.c.b16 %v719, %v716
        %v993 = vpack.c.b16 %v723, %v720
        %v994 = vpack.c.b16 %v724, %v721
        %v995 = vpack.c.b16 %v725, %v722
        %v996 = vpack.c.b16 %v729, %v726
        %v997 = vpack.c.b16 %v730, %v727
        %v998 = vpack.c.b16 %v731, %v728
        %v999 = vpack.c.b16 %v735, %v732
        %v1000 = vpack.c.b16 %v736, %v733
        %v1001 = vpack.c.b16 %v737, %v734
        %v1002 = vpack.c.b16 %v741, %v738
        %v1003 = vpack.c.b16 %v742, %v739
        %v1004 = vpack.c.b16 %v743, %v740
        %v1005 = vpack.c.b16 %v747, %v744
        %v1006 = vpack.c.b16 %v748, %v745
        %v1007 = vpack.c.b16 %v749, %v746
        %v1008 = vpack.c.b16 %v753, %v750
        %v1009 = vpack.c.b16 %v754, %v751
        %v1010 = vpack.c.b16 %v755, %v752
        %v1011 = vpack.c.b16 %v759, %v756
        %v1012 = vpack.c.b16 %v760, %v757
        %v1013 = vpack.c.b16 %v761, %v758
        %v1014 = vpack.c.b16 %v765, %v762
        %v1015 = vpack.c.b16 %v766, %v763
        %v1016 = vpack.c.b16 %v767, %v764
        %v1017 = vpack.c.b16 %v771, %v768
        %v1018 = vpack.c.b16 %v772, %v769
        %v1019 = vpack.c.b16 %v773, %v770
        %v1020 = vpack.c.b16 %v777, %v774
        %v1021 = vpack.c.b16 %v778, %v775
        %v1022 = vpack.c.b16 %v779, %v776
        %v1023 = vpack.c.b16 %v783, %v780
        %v1024 = vpack.c.b16 %v784, %v781
        %v1025 = vpack.c.b16 %v785, %v782
        %v1026 = vpack.c.b16 %v789, %v786
        %v1027 = vpack.c.b16 %v790, %v787
        %v1028 = vpack.c.b16 %v791, %v788
        %v1029 = vpack.c.b16 %v795, %v792
        %v1030 = vpack.c.b16 %v796, %v793
        %v1031 = vpack.c.b16 %v797, %v794
        %v1032 = vpack.c.b16 %v801, %v798
        %v1033 = vpack.c.b16 %v802, %v799
        %v1034 = vpack.c.b16 %v803, %v800
        %v1035 = vpack.c.b16 %v807, %v804
        %v1036 = vpack.c.b16 %v808, %v805
        %v1037 = vpack.c.b16 %v809, %v806
        %v1038 = vpack.c.b16 %v813, %v810
        %v1039 = vpack.c.b16 %v814, %v811
        %v1040 = vpack.c.b16 %v815, %v812
        %v1041 = vpack.c.b16 %v819, %v816
        %v1042 = vpack.c.b16 %v820, %v817
        %v1043 = vpack.c.b16 %v821, %v818
        %v1044 = vpack.c.b16 %v825, %v822
        %v1045 = vpack.c.b16 %v826, %v823
        %v1046 = vpack.c.b16 %v827, %v824
        %v1047 = vpack.c.b16 %v831, %v828
        %v1048 = vpack.c.b16 %v832, %v829
        %v1049 = vpack.c.b16 %v833, %v830
        %v1050 = vpack.c.b16 %v837, %v834
        %v1051 = vpack.c.b16 %v838, %v835
        %v1052 = vpack.c.b16 %v839, %v836
        %v1053 = vpack.c.b16 %v843, %v840
        %v1054 = vpack.c.b16 %v844, %v841
        %v1055 = vpack.c.b16 %v845, %v842
        %v1056 = vpack.c.b16 %v849, %v846
        %v1057 = vpack.c.b16 %v850, %v847
        %v1058 = vpack.c.b16 %v851, %v848
        %v1059 = vpack.c.b16 %v855, %v852
        %v1060 = vpack.c.b16 %v856, %v853
        %v1061 = vpack.c.b16 %v857, %v854
        %v1062 = vpack.c.b16 %v861, %v858
        %v1063 = vpack.c.b16 %v862, %v859
        %v1064 = vpack.c.b16 %v863, %v860
        %v1065 = vpack.c.b16 %v867, %v864
        %v1066 = vpack.c.b16 %v868, %v865
        %v1067 = vpack.c.b16 %v869, %v866
        %v1068 = vpack.c.b16 %v873, %v870
        %v1069 = vpack.c.b16 %v874, %v871
        %v1070 = vpack.c.b16 %v875, %v872
        %v1071 = vpack.c.b16 %v879, %v876
        %v1072 = vpack.c.b16 %v880, %v877
        %v1073 = vpack.c.b16 %v881, %v878
        %v1074 = vpack.c.b16 %v885, %v882
        %v1075 = vpack.c.b16 %v886, %v883
        %v1076 = vpack.c.b16 %v887, %v884
        %v1077 = vpack.c.b16 %v891, %v888
        %v1078 = vpack.c.b16 %v892, %v889
        %v1079 = vpack.c.b16 %v893, %v890
        %v1080 = vpack.c.b16 %v897, %v894
        %v1081 = vpack.c.b16 %v898, %v895
        %v1082 = vpack.c.b16 %v899, %v896
        %v1083 = vpack.c.b16 %v903, %v900
        %v1084 = vpack.c.b16 %v904, %v901
        %v1085 = vpack.c.b16 %v905, %v902
        %v1086 = vpack.c.b16 %v909, %v906
        %v1087 = vpack.c.b16 %v910, %v907
        %v1088 = vpack.c.b16 %v911, %v908
        %v1089 = vpack.c.b16 %v915, %v912
        %v1090 = vpack.c.b16 %v916, %v913
        %v1091 = vpack.c.b16 %v917, %v914
        %v1092 = vpack.c.b16 %v921, %v918
        %v1093 = vpack.c.b16 %v922, %v919
        %v1094 = vpack.c.b16 %v923, %v920
        %v1095 = vpack.c.b16 %v927, %v924
        %v1096 = vpack.c.b16 %v928, %v925
        %v1097 = vpack.c.b16 %v929, %v926
        %v1098 = vpack.c.b16 %v933, %v930
        %v1099 = vpack.c.b16 %v934, %v931
        %v1100 = vpack.c.b16 %v935, %v932
        %v1101 = vpack.c.b16 %v939, %v936
        %v1102 = vpack.c.b16 %v940, %v937
        %v1103 = vpack.c.b16 %v941, %v938
        %v1104 = vpack.c.b16 %v945, %v942
        %v1105 = vpack.c.b16 %v946, %v943
        %v1106 = vpack.c.b16 %v947, %v944
        %v1107 = vpack.c.b16 %v951, %v948
        %v1108 = vpack.c.b16 %v952, %v949
        %v1109 = vpack.c.b16 %v953, %v950
        %v1110 = vpack.c.b16 %v957, %v954
        %v1111 = vpack.c.b16 %v958, %v955
        %v1112 = vpack.c.b16 %v959, %v956
        %v1113 = vpack.c.b16 %v963, %v960
        %v1114 = vpack.c.b16 %v964, %v961
        %v1115 = vpack.c.b16 %v965, %v962
        %v1116 = vpack.c.b16 %v969, %v966
        %v1117 = vpack.c.b16 %v970, %v967
        %v1118 = vpack.c.b16 %v971, %v968
        %v1119 = vpack.c.b16 %v975, %v972
        %v1120 = vpack.c.b16 %v976, %v973
        %v1121 = vpack.c.b16 %v977, %v974
        %v1294 = vunpack.c.l.b16 %v422
        %v1295 = vunpack.c.h.b16 %v422
        %v1296 = vunpack.c.l.b16 %v423
        %v1297 = vunpack.c.l.b16 %v424
        %v1298 = vunpack.c.h.b16 %v424
        %v1299 = vunpack.c.l.b16 %v425
        %v1300 = vunpack.c.l.b16 %v426
        %v1301 = vunpack.c.h.b16 %v426
        %v1302 = vunpack.c.l.b16 %v427
        %v1303 = vunpack.c.l.b16 %v428
        %v1304 = vunpack.c.h.b16 %v428
        %v1305 = vunpack.c.l.b16 %v429
        %v1306 = vunpack.c.l.b16 %v430
        %v1307 = vunpack.c.h.b16 %v430
        %v1308 = vunpack.c.l.b16 %v431
        %v1309 = vunpack.c.l.b16 %v432
        %v1310 = vunpack.c.h.b16 %v432
        %v1311 = vunpack.c.l.b16 %v433
        %v1312 = vunpack.c.l.b16 %v434
        %v1313 = vunpack.c.h.b16 %v434
        %v1314 = vunpack.c.l.b16 %v435
        %v1315 = vunpack.c.l.b16 %v436
        %v1316 = vunpack.c.h.b16 %v436
        %v1317 = vunpack.c.l.b16 %v437
        %v1318 = vunpack.c.l.b16 %v438
        %v1319 = vunpack.c.h.b16 %v438
        %v1320 = vunpack.c.l.b16 %v439
        %v1321 = vunpack.c.l.b16 %v440
        %v1322 = vunpack.c.h.b16 %v440
        %v1323 = vunpack.c.l.b16 %v441
        %v1324 = vunpack.c.l.b16 %v442
        %v1325 = vunpack.c.h.b16 %v442
        %v1326 = vunpack.c.l.b16 %v443
        %v1327 = vunpack.c.l.b16 %v444
        %v1328 = vunpack.c.h.b16 %v444
        %v1329 = vunpack.c.l.b16 %v445
        %v1330 = vunpack.c.l.b16 %v446
        %v1331 = vunpack.c.h.b16 %v446
        %v1332 = vunpack.c.l.b16 %v447
        %v1333 = vunpack.c.l.b16 %v448
        %v1334 = vunpack.c.h.b16 %v448
        %v1335 = vunpack.c.l.b16 %v449
        %v1336 = vunpack.c.l.b16 %v450
        %v1337 = vunpack.c.h.b16 %v450
        %v1338 = vunpack.c.l.b16 %v451
        %v1339 = vunpack.c.l.b16 %v452
        %v1340 = vunpack.c.h.b16 %v452
        %v1341 = vunpack.c.l.b16 %v453
        %v1342 = vunpack.c.l.b16 %v454
        %v1343 = vunpack.c.h.b16 %v454
        %v1344 = vunpack.c.l.b16 %v455
        %v1345 = vunpack.c.l.b16 %v456
        %v1346 = vunpack.c.h.b16 %v456
        %v1347 = vunpack.c.l.b16 %v457
        %v1348 = vunpack.c.l.b16 %v458
        %v1349 = vunpack.c.h.b16 %v458
        %v1350 = vunpack.c.l.b16 %v459
        %v1351 = vunpack.c.l.b16 %v460
        %v1352 = vunpack.c.h.b16 %v460
        %v1353 = vunpack.c.l.b16 %v461
        %v1354 = vunpack.c.l.b16 %v462
        %v1355 = vunpack.c.h.b16 %v462
        %v1356 = vunpack.c.l.b16 %v463
        %v1357 = vunpack.c.l.b16 %v464
        %v1358 = vunpack.c.h.b16 %v464
        %v1359 = vunpack.c.l.b16 %v465
        %v1360 = vunpack.c.l.b16 %v466
        %v1361 = vunpack.c.h.b16 %v466
        %v1362 = vunpack.c.l.b16 %v467
        %v1363 = vunpack.c.l.b16 %v468
        %v1364 = vunpack.c.h.b16 %v468
        %v1365 = vunpack.c.l.b16 %v469
        %v1366 = vunpack.c.l.b16 %v470
        %v1367 = vunpack.c.h.b16 %v470
        %v1368 = vunpack.c.l.b16 %v471
        %v1369 = vunpack.c.l.b16 %v472
        %v1370 = vunpack.c.h.b16 %v472
        %v1371 = vunpack.c.l.b16 %v473
        %v1372 = vunpack.c.l.b16 %v474
        %v1373 = vunpack.c.h.b16 %v474
        %v1374 = vunpack.c.l.b16 %v475
        %v1375 = vunpack.c.l.b16 %v476
        %v1376 = vunpack.c.h.b16 %v476
        %v1377 = vunpack.c.l.b16 %v477
        %v1378 = vunpack.c.l.b16 %v478
        %v1379 = vunpack.c.h.b16 %v478
        %v1380 = vunpack.c.l.b16 %v479
        %v1381 = vunpack.c.l.b16 %v480
        %v1382 = vunpack.c.h.b16 %v480
        %v1383 = vunpack.c.l.b16 %v481
        %v1384 = vunpack.c.l.b16 %v482
        %v1385 = vunpack.c.h.b16 %v482
        %v1386 = vunpack.c.l.b16 %v483
        %v1387 = vunpack.c.l.b16 %v484
        %v1388 = vunpack.c.h.b16 %v484
        %v1389 = vunpack.c.l.b16 %v485
        %v1390 = vunpack.c.l.b16 %v486
        %v1391 = vunpack.c.h.b16 %v486
        %v1392 = vunpack.c.l.b16 %v487
        %v1393 = vunpack.c.l.b16 %v488
        %v1394 = vunpack.c.h.b16 %v488
        %v1395 = vunpack.c.l.b16 %v489
        %v1396 = vunpack.c.l.b16 %v490
        %v1397 = vunpack.c.h.b16 %v490
        %v1398 = vunpack.c.l.b16 %v491
        %v1399 = vunpack.c.l.b16 %v492
        %v1400 = vunpack.c.h.b16 %v492
        %v1401 = vunpack.c.l.b16 %v493
        %v1402 = vunpack.c.l.b16 %v494
        %v1403 = vunpack.c.h.b16 %v494
        %v1404 = vunpack.c.l.b16 %v495
        %v1405 = vunpack.c.l.b16 %v496
        %v1406 = vunpack.c.h.b16 %v496
        %v1407 = vunpack.c.l.b16 %v497
        %v1408 = vpack.c.b16 %v1297, %v1294
        %v1409 = vpack.c.b16 %v1298, %v1295
        %v1410 = vpack.c.b16 %v1299, %v1296
        %v1411 = vpack.c.b16 %v1303, %v1300
        %v1412 = vpack.c.b16 %v1304, %v1301
        %v1413 = vpack.c.b16 %v1305, %v1302
        %v1414 = vpack.c.b16 %v1309, %v1306
        %v1415 = vpack.c.b16 %v1310, %v1307
        %v1416 = vpack.c.b16 %v1311, %v1308
        %v1417 = vpack.c.b16 %v1315, %v1312
        %v1418 = vpack.c.b16 %v1316, %v1313
        %v1419 = vpack.c.b16 %v1317, %v1314
        %v1420 = vpack.c.b16 %v1321, %v1318
        %v1421 = vpack.c.b16 %v1322, %v1319
        %v1422 = vpack.c.b16 %v1323, %v1320
        %v1423 = vpack.c.b16 %v1327, %v1324
        %v1424 = vpack.c.b16 %v1328, %v1325
        %v1425 = vpack.c.b16 %v1329, %v1326
        %v1426 = vpack.c.b16 %v1333, %v1330
        %v1427 = vpack.c.b16 %v1334, %v1331
        %v1428 = vpack.c.b16 %v1335, %v1332
        %v1429 = vpack.c.b16 %v1339, %v1336
        %v1430 = vpack.c.b16 %v1340, %v1337
        %v1431 = vpack.c.b16 %v1341, %v1338
        %v1432 = vpack.c.b16 %v1345, %v1342
        %v1433 = vpack.c.b16 %v1346, %v1343
        %v1434 = vpack.c.b16 %v1347, %v1344
        %v1435 = vpack.c.b16 %v1351, %v1348
        %v1436 = vpack.c.b16 %v1352, %v1349
        %v1437 = vpack.c.b16 %v1353, %v1350
        %v1438 = vpack.c.b16 %v1357, %v1354
        %v1439 = vpack.c.b16 %v1358, %v1355
        %v1440 = vpack.c.b16 %v1359, %v1356
        %v1441 = vpack.c.b16 %v1363, %v1360
        %v1442 = vpack.c.b16 %v1364, %v1361
        %v1443 = vpack.c.b16 %v1365, %v1362
        %v1444 = vpack.c.b16 %v1369, %v1366
        %v1445 = vpack.c.b16 %v1370, %v1367
        %v1446 = vpack.c.b16 %v1371, %v1368
        %v1447 = vpack.c.b16 %v1375, %v1372
        %v1448 = vpack.c.b16 %v1376, %v1373
        %v1449 = vpack.c.b16 %v1377, %v1374
        %v1450 = vpack.c.b16 %v1381, %v1378
        %v1451 = vpack.c.b16 %v1382, %v1379
        %v1452 = vpack.c.b16 %v1383, %v1380
        %v1453 = vpack.c.b16 %v1387, %v1384
        %v1454 = vpack.c.b16 %v1388, %v1385
        %v1455 = vpack.c.b16 %v1389, %v1386
        %v1456 = vpack.c.b16 %v1393, %v1390
        %v1457 = vpack.c.b16 %v1394, %v1391
        %v1458 = vpack.c.b16 %v1395, %v1392
        %v1459 = vpack.c.b16 %v1399, %v1396
        %v1460 = vpack.c.b16 %v1400, %v1397
        %v1461 = vpack.c.b16 %v1401, %v1398
        %v1462 = vpack.c.b16 %v1405, %v1402
        %v1463 = vpack.c.b16 %v1406, %v1403
        %v1464 = vpack.c.b16 %v1407, %v1404
        %vm1519 = vcmask 359424
        %v1521 = vsel %vm1519, %v980, 0
        %v1524 = vsel %vm1519, %v983, 0
        %v1527 = vsel %vm1519, %v986, 0
        %v1530 = vsel %vm1519, %v989, 0
        %v1533 = vsel %vm1519, %v992, 0
        %v1536 = vsel %vm1519, %v995, 0
        %v1539 = vsel %vm1519, %v998, 0
        %v1542 = vsel %vm1519, %v1001, 0
        %v1545 = vsel %vm1519, %v1004, 0
        %v1548 = vsel %vm1519, %v1007, 0
        %v1551 = vsel %vm1519, %v1010, 0
        %v1554 = vsel %vm1519, %v1013, 0
        %v1557 = vsel %vm1519, %v1016, 0
        %v1560 = vsel %vm1519, %v1019, 0
        %v1563 = vsel %vm1519, %v1022, 0
        %v1566 = vsel %vm1519, %v1025, 0
        %v1569 = vsel %vm1519, %v1028, 0
        %v1572 = vsel %vm1519, %v1031, 0
        %v1575 = vsel %vm1519, %v1034, 0
        %v1578 = vsel %vm1519, %v1037, 0
        %v1581 = vsel %vm1519, %v1040, 0
        %v1584 = vsel %vm1519, %v1043, 0
        %v1587 = vsel %vm1519, %v1046, 0
        %v1590 = vsel %vm1519, %v1049, 0
        %v1593 = vsel %vm1519, %v1052, 0
        %v1596 = vsel %vm1519, %v1055, 0
        %v1599 = vsel %vm1519, %v1058, 0
        %v1602 = vsel %vm1519, %v1061, 0
        %v1605 = vsel %vm1519, %v1064, 0
        %v1608 = vsel %vm1519, %v1067, 0
        %v1611 = vsel %vm1519, %v1070, 0
        %v1614 = vsel %vm1519, %v1073, 0
        %v1617 = vsel %vm1519, %v1076, 0
        %v1620 = vsel %vm1519, %v1079, 0
        %v1623 = vsel %vm1519, %v1082, 0
        %v1626 = vsel %vm1519, %v1085, 0
        %v1629 = vsel %vm1519, %v1088, 0
        %v1632 = vsel %vm1519, %v1091, 0
        %v1635 = vsel %vm1519, %v1094, 0
        %v1638 = vsel %vm1519, %v1097, 0
        %v1641 = vsel %vm1519, %v1100, 0
        %v1644 = vsel %vm1519, %v1103, 0
        %v1647 = vsel %vm1519, %v1106, 0
        %v1650 = vsel %vm1519, %v1109, 0
        %v1653 = vsel %vm1519, %v1112, 0
        %v1656 = vsel %vm1519, %v1115, 0
        %v1659 = vsel %vm1519, %v1118, 0
        %v1662 = vsel %vm1519, %v1121, 0
        %vm1664 = vcmask 1045504
        %v1666 = vsel %vm1664, %v1462, 0
        %v1669 = vsel %vm1664, %v1463, 0
        %v1672 = vsel %vm1664, %v1464, 0
        %1674 = vmatprep.subr.bf16.mxu0 %v1430
        %1675 = vmatpush1.bf16.msra.mxu0 %v1429
        %1676 = vmatprep.subr.bf16.mxu0 %v1427
        %1677 = vmatpush1.bf16.msra.mxu0 %v1426
        %1678 = vmatprep.subr.bf16.mxu0 %v1424
        %1679 = vmatpush1.bf16.msra.mxu0 %v1423
        %1680 = vmatprep.subr.bf16.mxu0 %v1421
        %1681 = vmatpush1.bf16.msra.mxu0 %v1420
        %1682 = vmatprep.subr.bf16.mxu0 %v1418
        %1683 = vmatpush1.bf16.msra.mxu0 %v1417
        %1684 = vmatprep.subr.bf16.mxu0 %v1415
        %1685 = vmatpush1.bf16.msra.mxu0 %v1414
        %1686 = vmatprep.subr.bf16.mxu0 %v1412
        %1687 = vmatpush1.bf16.msra.mxu0 %v1411
        %1688 = vmatprep.subr.bf16.mxu0 %v1409
        %1689 = vmatpush1.bf16.msra.mxu0 %v1408
        %1690 = vmatprep.subr.bf16.mxu0 %v1454
        %1691 = vmatpush2.bf16.msra.mxu0 %v1453
        %1692 = vmatprep.subr.bf16.mxu0 %v1451
        %1693 = vmatpush2.bf16.msra.mxu0 %v1450
        %1694 = vmatprep.subr.bf16.mxu0 %v1448
        %1695 = vmatpush2.bf16.msra.mxu0 %v1447
        %1696 = vmatprep.subr.bf16.mxu0 %v1445
        %1697 = vmatpush2.bf16.msra.mxu0 %v1444
        %1698 = vmatprep.subr.bf16.mxu0 %v1442
        %1699 = vmatpush2.bf16.msra.mxu0 %v1441
        %1700 = vmatprep.subr.bf16.mxu0 %v1439
        %1701 = vmatpush2.bf16.msra.mxu0 %v1438
        %1702 = vmatprep.subr.bf16.mxu0 %v1436
        %1703 = vmatpush2.bf16.msra.mxu0 %v1435
        %1704 = vmatprep.subr.bf16.mxu0 %v1433
        %1705 = vmatpush2.bf16.msra.mxu0 %v1432
        %1706 = vmatprep.mubr.bf16.mxu0 %v979
        %1707 = vmatmul.mubr.bf16.gmra.mxu0 %v978
        %v1708 = vpop.f32.mrf.mxu0
        %v1709 = vadd.f32 0.0, %v1708
        %v1710 = vpop.f32.mrf.mxu0
        %v1711 = vadd.f32 0.0, %v1710
        %v1712 = vpop.f32.mrf.mxu0
        %v1713 = vadd.f32 0.0, %v1712
        %v1714 = vpop.f32.mrf.mxu0
        %v1715 = vadd.f32 0.0, %v1714
        %1716 = vmatprep.mubr.bf16.mxu0 %v982
        %1717 = vmatmul.mubr.bf16.gmra.mxu0 %v981
        %v1718 = vpop.f32.mrf.mxu0
        %v1719 = vadd.f32 0.0, %v1718
        %v1720 = vpop.f32.mrf.mxu0
        %v1721 = vadd.f32 0.0, %v1720
        %v1722 = vpop.f32.mrf.mxu0
        %v1723 = vadd.f32 0.0, %v1722
        %v1724 = vpop.f32.mrf.mxu0
        %v1725 = vadd.f32 0.0, %v1724
        %1726 = vmatprep.mubr.bf16.mxu0 %v985
        %1727 = vmatmul.mubr.bf16.gmra.mxu0 %v984
        %v1728 = vpop.f32.mrf.mxu0
        %v1729 = vadd.f32 0.0, %v1728
        %v1730 = vpop.f32.mrf.mxu0
        %v1731 = vadd.f32 0.0, %v1730
        %v1732 = vpop.f32.mrf.mxu0
        %v1733 = vadd.f32 0.0, %v1732
        %v1734 = vpop.f32.mrf.mxu0
        %v1735 = vadd.f32 0.0, %v1734
        %1736 = vmatprep.mubr.bf16.mxu0 %v988
        %1737 = vmatmul.mubr.bf16.gmra.mxu0 %v987
        %v1738 = vpop.f32.mrf.mxu0
        %v1739 = vadd.f32 0.0, %v1738
        %v1740 = vpop.f32.mrf.mxu0
        %v1741 = vadd.f32 0.0, %v1740
        %v1742 = vpop.f32.mrf.mxu0
        %v1743 = vadd.f32 0.0, %v1742
        %v1744 = vpop.f32.mrf.mxu0
        %v1745 = vadd.f32 0.0, %v1744
        %1746 = vmatprep.mubr.bf16.mxu0 %v991
        %1747 = vmatmul.mubr.bf16.gmra.mxu0 %v990
        %v1748 = vpop.f32.mrf.mxu0
        %v1749 = vadd.f32 0.0, %v1748
        %v1750 = vpop.f32.mrf.mxu0
        %v1751 = vadd.f32 0.0, %v1750
        %v1752 = vpop.f32.mrf.mxu0
        %v1753 = vadd.f32 0.0, %v1752
        %v1754 = vpop.f32.mrf.mxu0
        %v1755 = vadd.f32 0.0, %v1754
        %1756 = vmatprep.mubr.bf16.mxu0 %v994
        %1757 = vmatmul.mubr.bf16.gmra.mxu0 %v993
        %v1758 = vpop.f32.mrf.mxu0
        %v1759 = vadd.f32 0.0, %v1758
        %v1760 = vpop.f32.mrf.mxu0
        %v1761 = vadd.f32 0.0, %v1760
        %v1762 = vpop.f32.mrf.mxu0
        %v1763 = vadd.f32 0.0, %v1762
        %v1764 = vpop.f32.mrf.mxu0
        %v1765 = vadd.f32 0.0, %v1764
        %1766 = vmatprep.mubr.bf16.mxu0 %v997
        %1767 = vmatmul.mubr.bf16.gmra.mxu0 %v996
        %v1768 = vpop.f32.mrf.mxu0
        %v1769 = vadd.f32 0.0, %v1768
        %v1770 = vpop.f32.mrf.mxu0
        %v1771 = vadd.f32 0.0, %v1770
        %v1772 = vpop.f32.mrf.mxu0
        %v1773 = vadd.f32 0.0, %v1772
        %v1774 = vpop.f32.mrf.mxu0
        %v1775 = vadd.f32 0.0, %v1774
        %1776 = vmatprep.mubr.bf16.mxu0 %v1000
        %1777 = vmatmul.mubr.bf16.gmra.mxu0 %v999
        %v1778 = vpop.f32.mrf.mxu0
        %v1779 = vadd.f32 0.0, %v1778
        %v1780 = vpop.f32.mrf.mxu0
        %v1781 = vadd.f32 0.0, %v1780
        %v1782 = vpop.f32.mrf.mxu0
        %v1783 = vadd.f32 0.0, %v1782
        %v1784 = vpop.f32.mrf.mxu0
        %v1785 = vadd.f32 0.0, %v1784
        %1786 = vmatprep.mubr.bf16.mxu0 %v1003
        %1787 = vmatmul.mubr.bf16.gmra.mxu0 %v1002
        %v1788 = vpop.f32.mrf.mxu0
        %v1789 = vadd.f32 0.0, %v1788
        %v1790 = vpop.f32.mrf.mxu0
        %v1791 = vadd.f32 0.0, %v1790
        %v1792 = vpop.f32.mrf.mxu0
        %v1793 = vadd.f32 0.0, %v1792
        %v1794 = vpop.f32.mrf.mxu0
        %v1795 = vadd.f32 0.0, %v1794
        %1796 = vmatprep.mubr.bf16.mxu0 %v1006
        %1797 = vmatmul.mubr.bf16.gmra.mxu0 %v1005
        %v1798 = vpop.f32.mrf.mxu0
        %v1799 = vadd.f32 0.0, %v1798
        %v1800 = vpop.f32.mrf.mxu0
        %v1801 = vadd.f32 0.0, %v1800
        %v1802 = vpop.f32.mrf.mxu0
        %v1803 = vadd.f32 0.0, %v1802
        %v1804 = vpop.f32.mrf.mxu0
        %v1805 = vadd.f32 0.0, %v1804
        %1806 = vmatprep.mubr.bf16.mxu0 %v1009
        %1807 = vmatmul.mubr.bf16.gmra.mxu0 %v1008
        %v1808 = vpop.f32.mrf.mxu0
        %v1809 = vadd.f32 0.0, %v1808
        %v1810 = vpop.f32.mrf.mxu0
        %v1811 = vadd.f32 0.0, %v1810
        %v1812 = vpop.f32.mrf.mxu0
        %v1813 = vadd.f32 0.0, %v1812
        %v1814 = vpop.f32.mrf.mxu0
        %v1815 = vadd.f32 0.0, %v1814
        %1816 = vmatprep.mubr.bf16.mxu0 %v1012
        %1817 = vmatmul.mubr.bf16.gmra.mxu0 %v1011
        %v1818 = vpop.f32.mrf.mxu0
        %v1819 = vadd.f32 0.0, %v1818
        %v1820 = vpop.f32.mrf.mxu0
        %v1821 = vadd.f32 0.0, %v1820
        %v1822 = vpop.f32.mrf.mxu0
        %v1823 = vadd.f32 0.0, %v1822
        %v1824 = vpop.f32.mrf.mxu0
        %v1825 = vadd.f32 0.0, %v1824
        %1826 = vmatprep.mubr.bf16.mxu0 %v1015
        %1827 = vmatmul.mubr.bf16.gmra.mxu0 %v1014
        %v1828 = vpop.f32.mrf.mxu0
        %v1829 = vadd.f32 0.0, %v1828
        %v1830 = vpop.f32.mrf.mxu0
        %v1831 = vadd.f32 0.0, %v1830
        %v1832 = vpop.f32.mrf.mxu0
        %v1833 = vadd.f32 0.0, %v1832
        %v1834 = vpop.f32.mrf.mxu0
        %v1835 = vadd.f32 0.0, %v1834
        %1836 = vmatprep.mubr.bf16.mxu0 %v1018
        %1837 = vmatmul.mubr.bf16.gmra.mxu0 %v1017
        %v1838 = vpop.f32.mrf.mxu0
        %v1839 = vadd.f32 0.0, %v1838
        %v1840 = vpop.f32.mrf.mxu0
        %v1841 = vadd.f32 0.0, %v1840
        %v1842 = vpop.f32.mrf.mxu0
        %v1843 = vadd.f32 0.0, %v1842
        %v1844 = vpop.f32.mrf.mxu0
        %v1845 = vadd.f32 0.0, %v1844
        %1846 = vmatprep.mubr.bf16.mxu0 %v1021
        %1847 = vmatmul.mubr.bf16.gmra.mxu0 %v1020
        %v1848 = vpop.f32.mrf.mxu0
        %v1849 = vadd.f32 0.0, %v1848
        %v1850 = vpop.f32.mrf.mxu0
        %v1851 = vadd.f32 0.0, %v1850
        %v1852 = vpop.f32.mrf.mxu0
        %v1853 = vadd.f32 0.0, %v1852
        %v1854 = vpop.f32.mrf.mxu0
        %v1855 = vadd.f32 0.0, %v1854
        %1856 = vmatprep.mubr.bf16.mxu0 %v1024
        %1857 = vmatmul.mubr.bf16.gmra.mxu0 %v1023
        %v1858 = vpop.f32.mrf.mxu0
        %v1859 = vadd.f32 0.0, %v1858
        %v1860 = vpop.f32.mrf.mxu0
        %v1861 = vadd.f32 0.0, %v1860
        %v1862 = vpop.f32.mrf.mxu0
        %v1863 = vadd.f32 0.0, %v1862
        %v1864 = vpop.f32.mrf.mxu0
        %v1865 = vadd.f32 0.0, %v1864
        %1866 = vmatprep.mubr.bf16.mxu0 %v1027
        %1867 = vmatmul.mubr.bf16.gmra.mxu0 %v1026
        %v1868 = vpop.f32.mrf.mxu0
        %v1869 = vadd.f32 0.0, %v1868
        %v1870 = vpop.f32.mrf.mxu0
        %v1871 = vadd.f32 0.0, %v1870
        %v1872 = vpop.f32.mrf.mxu0
        %v1873 = vadd.f32 0.0, %v1872
        %v1874 = vpop.f32.mrf.mxu0
        %v1875 = vadd.f32 0.0, %v1874
        %1876 = vmatprep.mubr.bf16.mxu0 %v1030
        %1877 = vmatmul.mubr.bf16.gmra.mxu0 %v1029
        %v1878 = vpop.f32.mrf.mxu0
        %v1879 = vadd.f32 0.0, %v1878
        %v1880 = vpop.f32.mrf.mxu0
        %v1881 = vadd.f32 0.0, %v1880
        %v1882 = vpop.f32.mrf.mxu0
        %v1883 = vadd.f32 0.0, %v1882
        %v1884 = vpop.f32.mrf.mxu0
        %v1885 = vadd.f32 0.0, %v1884
        %1886 = vmatprep.mubr.bf16.mxu0 %v1033
        %1887 = vmatmul.mubr.bf16.gmra.mxu0 %v1032
        %v1888 = vpop.f32.mrf.mxu0
        %v1889 = vadd.f32 0.0, %v1888
        %v1890 = vpop.f32.mrf.mxu0
        %v1891 = vadd.f32 0.0, %v1890
        %v1892 = vpop.f32.mrf.mxu0
        %v1893 = vadd.f32 0.0, %v1892
        %v1894 = vpop.f32.mrf.mxu0
        %v1895 = vadd.f32 0.0, %v1894
        %1896 = vmatprep.mubr.bf16.mxu0 %v1036
        %1897 = vmatmul.mubr.bf16.gmra.mxu0 %v1035
        %v1898 = vpop.f32.mrf.mxu0
        %v1899 = vadd.f32 0.0, %v1898
        %v1900 = vpop.f32.mrf.mxu0
        %v1901 = vadd.f32 0.0, %v1900
        %v1902 = vpop.f32.mrf.mxu0
        %v1903 = vadd.f32 0.0, %v1902
        %v1904 = vpop.f32.mrf.mxu0
        %v1905 = vadd.f32 0.0, %v1904
        %1906 = vmatprep.mubr.bf16.mxu0 %v1039
        %1907 = vmatmul.mubr.bf16.gmra.mxu0 %v1038
        %v1908 = vpop.f32.mrf.mxu0
        %v1909 = vadd.f32 0.0, %v1908
        %v1910 = vpop.f32.mrf.mxu0
        %v1911 = vadd.f32 0.0, %v1910
        %v1912 = vpop.f32.mrf.mxu0
        %v1913 = vadd.f32 0.0, %v1912
        %v1914 = vpop.f32.mrf.mxu0
        %v1915 = vadd.f32 0.0, %v1914
        %1916 = vmatprep.mubr.bf16.mxu0 %v1042
        %1917 = vmatmul.mubr.bf16.gmra.mxu0 %v1041
        %v1918 = vpop.f32.mrf.mxu0
        %v1919 = vadd.f32 0.0, %v1918
        %v1920 = vpop.f32.mrf.mxu0
        %v1921 = vadd.f32 0.0, %v1920
        %v1922 = vpop.f32.mrf.mxu0
        %v1923 = vadd.f32 0.0, %v1922
        %v1924 = vpop.f32.mrf.mxu0
        %v1925 = vadd.f32 0.0, %v1924
        %1926 = vmatprep.mubr.bf16.mxu0 %v1045
        %1927 = vmatmul.mubr.bf16.gmra.mxu0 %v1044
        %v1928 = vpop.f32.mrf.mxu0
        %v1929 = vadd.f32 0.0, %v1928
        %v1930 = vpop.f32.mrf.mxu0
        %v1931 = vadd.f32 0.0, %v1930
        %v1932 = vpop.f32.mrf.mxu0
        %v1933 = vadd.f32 0.0, %v1932
        %v1934 = vpop.f32.mrf.mxu0
        %v1935 = vadd.f32 0.0, %v1934
        %1936 = vmatprep.mubr.bf16.mxu0 %v1048
        %1937 = vmatmul.mubr.bf16.gmra.mxu0 %v1047
        %v1938 = vpop.f32.mrf.mxu0
        %v1939 = vadd.f32 0.0, %v1938
        %v1940 = vpop.f32.mrf.mxu0
        %v1941 = vadd.f32 0.0, %v1940
        %v1942 = vpop.f32.mrf.mxu0
        %v1943 = vadd.f32 0.0, %v1942
        %v1944 = vpop.f32.mrf.mxu0
        %v1945 = vadd.f32 0.0, %v1944
        %1946 = vmatprep.mubr.bf16.mxu0 %v1051
        %1947 = vmatmul.mubr.bf16.gmra.mxu0 %v1050
        %v1948 = vpop.f32.mrf.mxu0
        %v1949 = vadd.f32 0.0, %v1948
        %v1950 = vpop.f32.mrf.mxu0
        %v1951 = vadd.f32 0.0, %v1950
        %v1952 = vpop.f32.mrf.mxu0
        %v1953 = vadd.f32 0.0, %v1952
        %v1954 = vpop.f32.mrf.mxu0
        %v1955 = vadd.f32 0.0, %v1954
        %1956 = vmatprep.mubr.bf16.mxu0 %v1054
        %1957 = vmatmul.mubr.bf16.gmra.mxu0 %v1053
        %v1958 = vpop.f32.mrf.mxu0
        %v1959 = vadd.f32 0.0, %v1958
        %v1960 = vpop.f32.mrf.mxu0
        %v1961 = vadd.f32 0.0, %v1960
        %v1962 = vpop.f32.mrf.mxu0
        %v1963 = vadd.f32 0.0, %v1962
        %v1964 = vpop.f32.mrf.mxu0
        %v1965 = vadd.f32 0.0, %v1964
        %1966 = vmatprep.mubr.bf16.mxu0 %v1057
        %1967 = vmatmul.mubr.bf16.gmra.mxu0 %v1056
        %v1968 = vpop.f32.mrf.mxu0
        %v1969 = vadd.f32 0.0, %v1968
        %v1970 = vpop.f32.mrf.mxu0
        %v1971 = vadd.f32 0.0, %v1970
        %v1972 = vpop.f32.mrf.mxu0
        %v1973 = vadd.f32 0.0, %v1972
        %v1974 = vpop.f32.mrf.mxu0
        %v1975 = vadd.f32 0.0, %v1974
        %1976 = vmatprep.mubr.bf16.mxu0 %v1060
        %1977 = vmatmul.mubr.bf16.gmra.mxu0 %v1059
        %v1978 = vpop.f32.mrf.mxu0
        %v1979 = vadd.f32 0.0, %v1978
        %v1980 = vpop.f32.mrf.mxu0
        %v1981 = vadd.f32 0.0, %v1980
        %v1982 = vpop.f32.mrf.mxu0
        %v1983 = vadd.f32 0.0, %v1982
        %v1984 = vpop.f32.mrf.mxu0
        %v1985 = vadd.f32 0.0, %v1984
        %1986 = vmatprep.mubr.bf16.mxu0 %v1063
        %1987 = vmatmul.mubr.bf16.gmra.mxu0 %v1062
        %v1988 = vpop.f32.mrf.mxu0
        %v1989 = vadd.f32 0.0, %v1988
        %v1990 = vpop.f32.mrf.mxu0
        %v1991 = vadd.f32 0.0, %v1990
        %v1992 = vpop.f32.mrf.mxu0
        %v1993 = vadd.f32 0.0, %v1992
        %v1994 = vpop.f32.mrf.mxu0
        %v1995 = vadd.f32 0.0, %v1994
        %1996 = vmatprep.mubr.bf16.mxu0 %v1066
        %1997 = vmatmul.mubr.bf16.gmra.mxu0 %v1065
        %v1998 = vpop.f32.mrf.mxu0
        %v1999 = vadd.f32 0.0, %v1998
        %v2000 = vpop.f32.mrf.mxu0
        %v2001 = vadd.f32 0.0, %v2000
        %v2002 = vpop.f32.mrf.mxu0
        %v2003 = vadd.f32 0.0, %v2002
        %v2004 = vpop.f32.mrf.mxu0
        %v2005 = vadd.f32 0.0, %v2004
        %2006 = vmatprep.mubr.bf16.mxu0 %v1069
        %2007 = vmatmul.mubr.bf16.gmra.mxu0 %v1068
        %v2008 = vpop.f32.mrf.mxu0
        %v2009 = vadd.f32 0.0, %v2008
        %v2010 = vpop.f32.mrf.mxu0
        %v2011 = vadd.f32 0.0, %v2010
        %v2012 = vpop.f32.mrf.mxu0
        %v2013 = vadd.f32 0.0, %v2012
        %v2014 = vpop.f32.mrf.mxu0
        %v2015 = vadd.f32 0.0, %v2014
        %2016 = vmatprep.mubr.bf16.mxu0 %v1072
        %2017 = vmatmul.mubr.bf16.gmra.mxu0 %v1071
        %v2018 = vpop.f32.mrf.mxu0
        %v2019 = vadd.f32 0.0, %v2018
        %v2020 = vpop.f32.mrf.mxu0
        %v2021 = vadd.f32 0.0, %v2020
        %v2022 = vpop.f32.mrf.mxu0
        %v2023 = vadd.f32 0.0, %v2022
        %v2024 = vpop.f32.mrf.mxu0
        %v2025 = vadd.f32 0.0, %v2024
        %2026 = vmatprep.mubr.bf16.mxu0 %v1075
        %2027 = vmatmul.mubr.bf16.gmra.mxu0 %v1074
        %v2028 = vpop.f32.mrf.mxu0
        %v2029 = vadd.f32 0.0, %v2028
        %v2030 = vpop.f32.mrf.mxu0
        %v2031 = vadd.f32 0.0, %v2030
        %v2032 = vpop.f32.mrf.mxu0
        %v2033 = vadd.f32 0.0, %v2032
        %v2034 = vpop.f32.mrf.mxu0
        %v2035 = vadd.f32 0.0, %v2034
        %2036 = vmatprep.mubr.bf16.mxu0 %v1078
        %2037 = vmatmul.mubr.bf16.gmra.mxu0 %v1077
        %v2038 = vpop.f32.mrf.mxu0
        %v2039 = vadd.f32 0.0, %v2038
        %v2040 = vpop.f32.mrf.mxu0
        %v2041 = vadd.f32 0.0, %v2040
        %v2042 = vpop.f32.mrf.mxu0
        %v2043 = vadd.f32 0.0, %v2042
        %v2044 = vpop.f32.mrf.mxu0
        %v2045 = vadd.f32 0.0, %v2044
        %2046 = vmatprep.mubr.bf16.mxu0 %v1081
        %2047 = vmatmul.mubr.bf16.gmra.mxu0 %v1080
        %v2048 = vpop.f32.mrf.mxu0
        %v2049 = vadd.f32 0.0, %v2048
        %v2050 = vpop.f32.mrf.mxu0
        %v2051 = vadd.f32 0.0, %v2050
        %v2052 = vpop.f32.mrf.mxu0
        %v2053 = vadd.f32 0.0, %v2052
        %v2054 = vpop.f32.mrf.mxu0
        %v2055 = vadd.f32 0.0, %v2054
        %2056 = vmatprep.mubr.bf16.mxu0 %v1084
        %2057 = vmatmul.mubr.bf16.gmra.mxu0 %v1083
        %v2058 = vpop.f32.mrf.mxu0
        %v2059 = vadd.f32 0.0, %v2058
        %v2060 = vpop.f32.mrf.mxu0
        %v2061 = vadd.f32 0.0, %v2060
        %v2062 = vpop.f32.mrf.mxu0
        %v2063 = vadd.f32 0.0, %v2062
        %v2064 = vpop.f32.mrf.mxu0
        %v2065 = vadd.f32 0.0, %v2064
        %2066 = vmatprep.mubr.bf16.mxu0 %v1087
        %2067 = vmatmul.mubr.bf16.gmra.mxu0 %v1086
        %v2068 = vpop.f32.mrf.mxu0
        %v2069 = vadd.f32 0.0, %v2068
        %v2070 = vpop.f32.mrf.mxu0
        %v2071 = vadd.f32 0.0, %v2070
        %v2072 = vpop.f32.mrf.mxu0
        %v2073 = vadd.f32 0.0, %v2072
        %v2074 = vpop.f32.mrf.mxu0
        %v2075 = vadd.f32 0.0, %v2074
        %2076 = vmatprep.mubr.bf16.mxu0 %v1090
        %2077 = vmatmul.mubr.bf16.gmra.mxu0 %v1089
        %v2078 = vpop.f32.mrf.mxu0
        %v2079 = vadd.f32 0.0, %v2078
        %v2080 = vpop.f32.mrf.mxu0
        %v2081 = vadd.f32 0.0, %v2080
        %v2082 = vpop.f32.mrf.mxu0
        %v2083 = vadd.f32 0.0, %v2082
        %v2084 = vpop.f32.mrf.mxu0
        %v2085 = vadd.f32 0.0, %v2084
        %2086 = vmatprep.mubr.bf16.mxu0 %v1093
        %2087 = vmatmul.mubr.bf16.gmra.mxu0 %v1092
        %v2088 = vpop.f32.mrf.mxu0
        %v2089 = vadd.f32 0.0, %v2088
        %v2090 = vpop.f32.mrf.mxu0
        %v2091 = vadd.f32 0.0, %v2090
        %v2092 = vpop.f32.mrf.mxu0
        %v2093 = vadd.f32 0.0, %v2092
        %v2094 = vpop.f32.mrf.mxu0
        %v2095 = vadd.f32 0.0, %v2094
        %2096 = vmatprep.mubr.bf16.mxu0 %v1096
        %2097 = vmatmul.mubr.bf16.gmra.mxu0 %v1095
        %v2098 = vpop.f32.mrf.mxu0
        %v2099 = vadd.f32 0.0, %v2098
        %v2100 = vpop.f32.mrf.mxu0
        %v2101 = vadd.f32 0.0, %v2100
        %v2102 = vpop.f32.mrf.mxu0
        %v2103 = vadd.f32 0.0, %v2102
        %v2104 = vpop.f32.mrf.mxu0
        %v2105 = vadd.f32 0.0, %v2104
        %2106 = vmatprep.mubr.bf16.mxu0 %v1099
        %2107 = vmatmul.mubr.bf16.gmra.mxu0 %v1098
        %v2108 = vpop.f32.mrf.mxu0
        %v2109 = vadd.f32 0.0, %v2108
        %v2110 = vpop.f32.mrf.mxu0
        %v2111 = vadd.f32 0.0, %v2110
        %v2112 = vpop.f32.mrf.mxu0
        %v2113 = vadd.f32 0.0, %v2112
        %v2114 = vpop.f32.mrf.mxu0
        %v2115 = vadd.f32 0.0, %v2114
        %2116 = vmatprep.mubr.bf16.mxu0 %v1102
        %2117 = vmatmul.mubr.bf16.gmra.mxu0 %v1101
        %v2118 = vpop.f32.mrf.mxu0
        %v2119 = vadd.f32 0.0, %v2118
        %v2120 = vpop.f32.mrf.mxu0
        %v2121 = vadd.f32 0.0, %v2120
        %v2122 = vpop.f32.mrf.mxu0
        %v2123 = vadd.f32 0.0, %v2122
        %v2124 = vpop.f32.mrf.mxu0
        %v2125 = vadd.f32 0.0, %v2124
        %2126 = vmatprep.mubr.bf16.mxu0 %v1105
        %2127 = vmatmul.mubr.bf16.gmra.mxu0 %v1104
        %v2128 = vpop.f32.mrf.mxu0
        %v2129 = vadd.f32 0.0, %v2128
        %v2130 = vpop.f32.mrf.mxu0
        %v2131 = vadd.f32 0.0, %v2130
        %v2132 = vpop.f32.mrf.mxu0
        %v2133 = vadd.f32 0.0, %v2132
        %v2134 = vpop.f32.mrf.mxu0
        %v2135 = vadd.f32 0.0, %v2134
        %2136 = vmatprep.mubr.bf16.mxu0 %v1108
        %2137 = vmatmul.mubr.bf16.gmra.mxu0 %v1107
        %v2138 = vpop.f32.mrf.mxu0
        %v2139 = vadd.f32 0.0, %v2138
        %v2140 = vpop.f32.mrf.mxu0
        %v2141 = vadd.f32 0.0, %v2140
        %v2142 = vpop.f32.mrf.mxu0
        %v2143 = vadd.f32 0.0, %v2142
        %v2144 = vpop.f32.mrf.mxu0
        %v2145 = vadd.f32 0.0, %v2144
        %2146 = vmatprep.mubr.bf16.mxu0 %v1111
        %2147 = vmatmul.mubr.bf16.gmra.mxu0 %v1110
        %v2148 = vpop.f32.mrf.mxu0
        %v2149 = vadd.f32 0.0, %v2148
        %v2150 = vpop.f32.mrf.mxu0
        %v2151 = vadd.f32 0.0, %v2150
        %v2152 = vpop.f32.mrf.mxu0
        %v2153 = vadd.f32 0.0, %v2152
        %v2154 = vpop.f32.mrf.mxu0
        %v2155 = vadd.f32 0.0, %v2154
        %2156 = vmatprep.mubr.bf16.mxu0 %v1114
        %2157 = vmatmul.mubr.bf16.gmra.mxu0 %v1113
        %v2158 = vpop.f32.mrf.mxu0
        %v2159 = vadd.f32 0.0, %v2158
        %v2160 = vpop.f32.mrf.mxu0
        %v2161 = vadd.f32 0.0, %v2160
        %v2162 = vpop.f32.mrf.mxu0
        %v2163 = vadd.f32 0.0, %v2162
        %v2164 = vpop.f32.mrf.mxu0
        %v2165 = vadd.f32 0.0, %v2164
        %2166 = vmatprep.mubr.bf16.mxu0 %v1117
        %2167 = vmatmul.mubr.bf16.gmra.mxu0 %v1116
        %v2168 = vpop.f32.mrf.mxu0
        %v2169 = vadd.f32 0.0, %v2168
        %v2170 = vpop.f32.mrf.mxu0
        %v2171 = vadd.f32 0.0, %v2170
        %v2172 = vpop.f32.mrf.mxu0
        %v2173 = vadd.f32 0.0, %v2172
        %v2174 = vpop.f32.mrf.mxu0
        %v2175 = vadd.f32 0.0, %v2174
        %2176 = vmatprep.mubr.bf16.mxu0 %v1120
        %2177 = vmatmul.mubr.bf16.gmra.mxu0 %v1119
        %v2178 = vpop.f32.mrf.mxu0
        %v2179 = vadd.f32 0.0, %v2178
        %v2180 = vpop.f32.mrf.mxu0
        %v2181 = vadd.f32 0.0, %v2180
        %v2182 = vpop.f32.mrf.mxu0
        %v2183 = vadd.f32 0.0, %v2182
        %v2184 = vpop.f32.mrf.mxu0
        %v2185 = vadd.f32 0.0, %v2184
        %2186 = vdwg.mxu0
        %2187 = vmatprep.subr.bf16.mxu0 0
        %2188 = vmatpush1.bf16.msra.mxu0 0
        %2189 = vmatprep.subr.bf16.mxu0 0
        %2190 = vmatpush1.bf16.msra.mxu0 0
        %2191 = vmatprep.subr.bf16.mxu0 0
        %2192 = vmatpush1.bf16.msra.mxu0 0
        %2193 = vmatprep.subr.bf16.mxu0 0
        %2194 = vmatpush1.bf16.msra.mxu0 0
        %2195 = vmatprep.subr.bf16.mxu0 0
        %2196 = vmatpush1.bf16.msra.mxu0 0
        %2197 = vmatprep.subr.bf16.mxu0 %v1669
        %2198 = vmatpush1.bf16.msra.mxu0 %v1666
        %2199 = vmatprep.subr.bf16.mxu0 %v1460
        %2200 = vmatpush1.bf16.msra.mxu0 %v1459
        %2201 = vmatprep.subr.bf16.mxu0 %v1457
        %2202 = vmatpush1.bf16.msra.mxu0 %v1456
        %2203 = vmatprep.subr.bf16.mxu0 0
        %2204 = vmatpush2.bf16.msra.mxu0 0
        %2205 = vmatprep.subr.bf16.mxu0 0
        %2206 = vmatpush2.bf16.msra.mxu0 0
        %2207 = vmatprep.subr.bf16.mxu0 0
        %2208 = vmatpush2.bf16.msra.mxu0 0
        %2209 = vmatprep.subr.bf16.mxu0 0
        %2210 = vmatpush2.bf16.msra.mxu0 0
        %2211 = vmatprep.subr.bf16.mxu0 0
        %2212 = vmatpush2.bf16.msra.mxu0 0
        %2213 = vmatprep.subr.bf16.mxu0 0
        %2214 = vmatpush2.bf16.msra.mxu0 0
        %2215 = vmatprep.subr.bf16.mxu0 0
        %2216 = vmatpush2.bf16.msra.mxu0 0
        %2217 = vmatprep.subr.bf16.mxu0 0
        %2218 = vmatpush2.bf16.msra.mxu0 0
        %2219 = vmatprep.mubr.bf16.mxu0 0
        %2220 = vmatmul.mubr.bf16.gmra.mxu0 %v1521
        %v2221 = vpop.f32.mrf.mxu0
        %v2222 = vadd.f32 %v1709, %v2221
        %v2223 = vpop.f32.mrf.mxu0
        %v2224 = vadd.f32 %v1711, %v2223
        %v2225 = vpop.f32.mrf.mxu0
        %v2226 = vadd.f32 %v1713, %v2225
        %v2227 = vpop.f32.mrf.mxu0
        %v2228 = vadd.f32 %v1715, %v2227
        %2229 = vmatprep.mubr.bf16.mxu0 0
        %2230 = vmatmul.mubr.bf16.gmra.mxu0 %v1524
        %v2231 = vpop.f32.mrf.mxu0
        %v2232 = vadd.f32 %v1719, %v2231
        %v2233 = vpop.f32.mrf.mxu0
        %v2234 = vadd.f32 %v1721, %v2233
        %v2235 = vpop.f32.mrf.mxu0
        %v2236 = vadd.f32 %v1723, %v2235
        %v2237 = vpop.f32.mrf.mxu0
        %v2238 = vadd.f32 %v1725, %v2237
        %2239 = vmatprep.mubr.bf16.mxu0 0
        %2240 = vmatmul.mubr.bf16.gmra.mxu0 %v1527
        %v2241 = vpop.f32.mrf.mxu0
        %v2242 = vadd.f32 %v1729, %v2241
        %v2243 = vpop.f32.mrf.mxu0
        %v2244 = vadd.f32 %v1731, %v2243
        %v2245 = vpop.f32.mrf.mxu0
        %v2246 = vadd.f32 %v1733, %v2245
        %v2247 = vpop.f32.mrf.mxu0
        %v2248 = vadd.f32 %v1735, %v2247
        %2249 = vmatprep.mubr.bf16.mxu0 0
        %2250 = vmatmul.mubr.bf16.gmra.mxu0 %v1530
        %v2251 = vpop.f32.mrf.mxu0
        %v2252 = vadd.f32 %v1739, %v2251
        %v2253 = vpop.f32.mrf.mxu0
        %v2254 = vadd.f32 %v1741, %v2253
        %v2255 = vpop.f32.mrf.mxu0
        %v2256 = vadd.f32 %v1743, %v2255
        %v2257 = vpop.f32.mrf.mxu0
        %v2258 = vadd.f32 %v1745, %v2257
        %2259 = vmatprep.mubr.bf16.mxu0 0
        %2260 = vmatmul.mubr.bf16.gmra.mxu0 %v1533
        %v2261 = vpop.f32.mrf.mxu0
        %v2262 = vadd.f32 %v1749, %v2261
        %v2263 = vpop.f32.mrf.mxu0
        %v2264 = vadd.f32 %v1751, %v2263
        %v2265 = vpop.f32.mrf.mxu0
        %v2266 = vadd.f32 %v1753, %v2265
        %v2267 = vpop.f32.mrf.mxu0
        %v2268 = vadd.f32 %v1755, %v2267
        %2269 = vmatprep.mubr.bf16.mxu0 0
        %2270 = vmatmul.mubr.bf16.gmra.mxu0 %v1536
        %v2271 = vpop.f32.mrf.mxu0
        %v2272 = vadd.f32 %v1759, %v2271
        %v2273 = vpop.f32.mrf.mxu0
        %v2274 = vadd.f32 %v1761, %v2273
        %v2275 = vpop.f32.mrf.mxu0
        %v2276 = vadd.f32 %v1763, %v2275
        %v2277 = vpop.f32.mrf.mxu0
        %v2278 = vadd.f32 %v1765, %v2277
        %2279 = vmatprep.mubr.bf16.mxu0 0
        %2280 = vmatmul.mubr.bf16.gmra.mxu0 %v1539
        %v2281 = vpop.f32.mrf.mxu0
        %v2282 = vadd.f32 %v1769, %v2281
        %v2283 = vpop.f32.mrf.mxu0
        %v2284 = vadd.f32 %v1771, %v2283
        %v2285 = vpop.f32.mrf.mxu0
        %v2286 = vadd.f32 %v1773, %v2285
        %v2287 = vpop.f32.mrf.mxu0
        %v2288 = vadd.f32 %v1775, %v2287
        %2289 = vmatprep.mubr.bf16.mxu0 0
        %2290 = vmatmul.mubr.bf16.gmra.mxu0 %v1542
        %v2291 = vpop.f32.mrf.mxu0
        %v2292 = vadd.f32 %v1779, %v2291
        %v2293 = vpop.f32.mrf.mxu0
        %v2294 = vadd.f32 %v1781, %v2293
        %v2295 = vpop.f32.mrf.mxu0
        %v2296 = vadd.f32 %v1783, %v2295
        %v2297 = vpop.f32.mrf.mxu0
        %v2298 = vadd.f32 %v1785, %v2297
        %2299 = vmatprep.mubr.bf16.mxu0 0
        %2300 = vmatmul.mubr.bf16.gmra.mxu0 %v1545
        %v2301 = vpop.f32.mrf.mxu0
        %v2302 = vadd.f32 %v1789, %v2301
        %v2303 = vpop.f32.mrf.mxu0
        %v2304 = vadd.f32 %v1791, %v2303
        %v2305 = vpop.f32.mrf.mxu0
        %v2306 = vadd.f32 %v1793, %v2305
        %v2307 = vpop.f32.mrf.mxu0
        %v2308 = vadd.f32 %v1795, %v2307
        %2309 = vmatprep.mubr.bf16.mxu0 0
        %2310 = vmatmul.mubr.bf16.gmra.mxu0 %v1548
        %v2311 = vpop.f32.mrf.mxu0
        %v2312 = vadd.f32 %v1799, %v2311
        %v2313 = vpop.f32.mrf.mxu0
        %v2314 = vadd.f32 %v1801, %v2313
        %v2315 = vpop.f32.mrf.mxu0
        %v2316 = vadd.f32 %v1803, %v2315
        %v2317 = vpop.f32.mrf.mxu0
        %v2318 = vadd.f32 %v1805, %v2317
        %2319 = vmatprep.mubr.bf16.mxu0 0
        %2320 = vmatmul.mubr.bf16.gmra.mxu0 %v1551
        %v2321 = vpop.f32.mrf.mxu0
        %v2322 = vadd.f32 %v1809, %v2321
        %v2323 = vpop.f32.mrf.mxu0
        %v2324 = vadd.f32 %v1811, %v2323
        %v2325 = vpop.f32.mrf.mxu0
        %v2326 = vadd.f32 %v1813, %v2325
        %v2327 = vpop.f32.mrf.mxu0
        %v2328 = vadd.f32 %v1815, %v2327
        %2329 = vmatprep.mubr.bf16.mxu0 0
        %2330 = vmatmul.mubr.bf16.gmra.mxu0 %v1554
        %v2331 = vpop.f32.mrf.mxu0
        %v2332 = vadd.f32 %v1819, %v2331
        %v2333 = vpop.f32.mrf.mxu0
        %v2334 = vadd.f32 %v1821, %v2333
        %v2335 = vpop.f32.mrf.mxu0
        %v2336 = vadd.f32 %v1823, %v2335
        %v2337 = vpop.f32.mrf.mxu0
        %v2338 = vadd.f32 %v1825, %v2337
        %2339 = vmatprep.mubr.bf16.mxu0 0
        %2340 = vmatmul.mubr.bf16.gmra.mxu0 %v1557
        %v2341 = vpop.f32.mrf.mxu0
        %v2342 = vadd.f32 %v1829, %v2341
        %v2343 = vpop.f32.mrf.mxu0
        %v2344 = vadd.f32 %v1831, %v2343
        %v2345 = vpop.f32.mrf.mxu0
        %v2346 = vadd.f32 %v1833, %v2345
        %v2347 = vpop.f32.mrf.mxu0
        %v2348 = vadd.f32 %v1835, %v2347
        %2349 = vmatprep.mubr.bf16.mxu0 0
        %2350 = vmatmul.mubr.bf16.gmra.mxu0 %v1560
        %v2351 = vpop.f32.mrf.mxu0
        %v2352 = vadd.f32 %v1839, %v2351
        %v2353 = vpop.f32.mrf.mxu0
        %v2354 = vadd.f32 %v1841, %v2353
        %v2355 = vpop.f32.mrf.mxu0
        %v2356 = vadd.f32 %v1843, %v2355
        %v2357 = vpop.f32.mrf.mxu0
        %v2358 = vadd.f32 %v1845, %v2357
        %2359 = vmatprep.mubr.bf16.mxu0 0
        %2360 = vmatmul.mubr.bf16.gmra.mxu0 %v1563
        %v2361 = vpop.f32.mrf.mxu0
        %v2362 = vadd.f32 %v1849, %v2361
        %v2363 = vpop.f32.mrf.mxu0
        %v2364 = vadd.f32 %v1851, %v2363
        %v2365 = vpop.f32.mrf.mxu0
        %v2366 = vadd.f32 %v1853, %v2365
        %v2367 = vpop.f32.mrf.mxu0
        %v2368 = vadd.f32 %v1855, %v2367
        %2369 = vmatprep.mubr.bf16.mxu0 0
        %2370 = vmatmul.mubr.bf16.gmra.mxu0 %v1566
        %v2371 = vpop.f32.mrf.mxu0
        %v2372 = vadd.f32 %v1859, %v2371
        %v2373 = vpop.f32.mrf.mxu0
        %v2374 = vadd.f32 %v1861, %v2373
        %v2375 = vpop.f32.mrf.mxu0
        %v2376 = vadd.f32 %v1863, %v2375
        %v2377 = vpop.f32.mrf.mxu0
        %v2378 = vadd.f32 %v1865, %v2377
        %2379 = vmatprep.mubr.bf16.mxu0 0
        %2380 = vmatmul.mubr.bf16.gmra.mxu0 %v1569
        %v2381 = vpop.f32.mrf.mxu0
        %v2382 = vadd.f32 %v1869, %v2381
        %v2383 = vpop.f32.mrf.mxu0
        %v2384 = vadd.f32 %v1871, %v2383
        %v2385 = vpop.f32.mrf.mxu0
        %v2386 = vadd.f32 %v1873, %v2385
        %v2387 = vpop.f32.mrf.mxu0
        %v2388 = vadd.f32 %v1875, %v2387
        %2389 = vmatprep.mubr.bf16.mxu0 0
        %2390 = vmatmul.mubr.bf16.gmra.mxu0 %v1572
        %v2391 = vpop.f32.mrf.mxu0
        %v2392 = vadd.f32 %v1879, %v2391
        %v2393 = vpop.f32.mrf.mxu0
        %v2394 = vadd.f32 %v1881, %v2393
        %v2395 = vpop.f32.mrf.mxu0
        %v2396 = vadd.f32 %v1883, %v2395
        %v2397 = vpop.f32.mrf.mxu0
        %v2398 = vadd.f32 %v1885, %v2397
        %2399 = vmatprep.mubr.bf16.mxu0 0
        %2400 = vmatmul.mubr.bf16.gmra.mxu0 %v1575
        %v2401 = vpop.f32.mrf.mxu0
        %v2402 = vadd.f32 %v1889, %v2401
        %v2403 = vpop.f32.mrf.mxu0
        %v2404 = vadd.f32 %v1891, %v2403
        %v2405 = vpop.f32.mrf.mxu0
        %v2406 = vadd.f32 %v1893, %v2405
        %v2407 = vpop.f32.mrf.mxu0
        %v2408 = vadd.f32 %v1895, %v2407
        %2409 = vmatprep.mubr.bf16.mxu0 0
        %2410 = vmatmul.mubr.bf16.gmra.mxu0 %v1578
        %v2411 = vpop.f32.mrf.mxu0
        %v2412 = vadd.f32 %v1899, %v2411
        %v2413 = vpop.f32.mrf.mxu0
        %v2414 = vadd.f32 %v1901, %v2413
        %v2415 = vpop.f32.mrf.mxu0
        %v2416 = vadd.f32 %v1903, %v2415
        %v2417 = vpop.f32.mrf.mxu0
        %v2418 = vadd.f32 %v1905, %v2417
        %2419 = vmatprep.mubr.bf16.mxu0 0
        %2420 = vmatmul.mubr.bf16.gmra.mxu0 %v1581
        %v2421 = vpop.f32.mrf.mxu0
        %v2422 = vadd.f32 %v1909, %v2421
        %v2423 = vpop.f32.mrf.mxu0
        %v2424 = vadd.f32 %v1911, %v2423
        %v2425 = vpop.f32.mrf.mxu0
        %v2426 = vadd.f32 %v1913, %v2425
        %v2427 = vpop.f32.mrf.mxu0
        %v2428 = vadd.f32 %v1915, %v2427
        %2429 = vmatprep.mubr.bf16.mxu0 0
        %2430 = vmatmul.mubr.bf16.gmra.mxu0 %v1584
        %v2431 = vpop.f32.mrf.mxu0
        %v2432 = vadd.f32 %v1919, %v2431
        %v2433 = vpop.f32.mrf.mxu0
        %v2434 = vadd.f32 %v1921, %v2433
        %v2435 = vpop.f32.mrf.mxu0
        %v2436 = vadd.f32 %v1923, %v2435
        %v2437 = vpop.f32.mrf.mxu0
        %v2438 = vadd.f32 %v1925, %v2437
        %2439 = vmatprep.mubr.bf16.mxu0 0
        %2440 = vmatmul.mubr.bf16.gmra.mxu0 %v1587
        %v2441 = vpop.f32.mrf.mxu0
        %v2442 = vadd.f32 %v1929, %v2441
        %v2443 = vpop.f32.mrf.mxu0
        %v2444 = vadd.f32 %v1931, %v2443
        %v2445 = vpop.f32.mrf.mxu0
        %v2446 = vadd.f32 %v1933, %v2445
        %v2447 = vpop.f32.mrf.mxu0
        %v2448 = vadd.f32 %v1935, %v2447
        %2449 = vmatprep.mubr.bf16.mxu0 0
        %2450 = vmatmul.mubr.bf16.gmra.mxu0 %v1590
        %v2451 = vpop.f32.mrf.mxu0
        %v2452 = vadd.f32 %v1939, %v2451
        %v2453 = vpop.f32.mrf.mxu0
        %v2454 = vadd.f32 %v1941, %v2453
        %v2455 = vpop.f32.mrf.mxu0
        %v2456 = vadd.f32 %v1943, %v2455
        %v2457 = vpop.f32.mrf.mxu0
        %v2458 = vadd.f32 %v1945, %v2457
        %2459 = vmatprep.mubr.bf16.mxu0 0
        %2460 = vmatmul.mubr.bf16.gmra.mxu0 %v1593
        %v2461 = vpop.f32.mrf.mxu0
        %v2462 = vadd.f32 %v1949, %v2461
        %v2463 = vpop.f32.mrf.mxu0
        %v2464 = vadd.f32 %v1951, %v2463
        %v2465 = vpop.f32.mrf.mxu0
        %v2466 = vadd.f32 %v1953, %v2465
        %v2467 = vpop.f32.mrf.mxu0
        %v2468 = vadd.f32 %v1955, %v2467
        %2469 = vmatprep.mubr.bf16.mxu0 0
        %2470 = vmatmul.mubr.bf16.gmra.mxu0 %v1596
        %v2471 = vpop.f32.mrf.mxu0
        %v2472 = vadd.f32 %v1959, %v2471
        %v2473 = vpop.f32.mrf.mxu0
        %v2474 = vadd.f32 %v1961, %v2473
        %v2475 = vpop.f32.mrf.mxu0
        %v2476 = vadd.f32 %v1963, %v2475
        %v2477 = vpop.f32.mrf.mxu0
        %v2478 = vadd.f32 %v1965, %v2477
        %2479 = vmatprep.mubr.bf16.mxu0 0
        %2480 = vmatmul.mubr.bf16.gmra.mxu0 %v1599
        %v2481 = vpop.f32.mrf.mxu0
        %v2482 = vadd.f32 %v1969, %v2481
        %v2483 = vpop.f32.mrf.mxu0
        %v2484 = vadd.f32 %v1971, %v2483
        %v2485 = vpop.f32.mrf.mxu0
        %v2486 = vadd.f32 %v1973, %v2485
        %v2487 = vpop.f32.mrf.mxu0
        %v2488 = vadd.f32 %v1975, %v2487
        %2489 = vmatprep.mubr.bf16.mxu0 0
        %2490 = vmatmul.mubr.bf16.gmra.mxu0 %v1602
        %v2491 = vpop.f32.mrf.mxu0
        %v2492 = vadd.f32 %v1979, %v2491
        %v2493 = vpop.f32.mrf.mxu0
        %v2494 = vadd.f32 %v1981, %v2493
        %v2495 = vpop.f32.mrf.mxu0
        %v2496 = vadd.f32 %v1983, %v2495
        %v2497 = vpop.f32.mrf.mxu0
        %v2498 = vadd.f32 %v1985, %v2497
        %2499 = vmatprep.mubr.bf16.mxu0 0
        %2500 = vmatmul.mubr.bf16.gmra.mxu0 %v1605
        %v2501 = vpop.f32.mrf.mxu0
        %v2502 = vadd.f32 %v1989, %v2501
        %v2503 = vpop.f32.mrf.mxu0
        %v2504 = vadd.f32 %v1991, %v2503
        %v2505 = vpop.f32.mrf.mxu0
        %v2506 = vadd.f32 %v1993, %v2505
        %v2507 = vpop.f32.mrf.mxu0
        %v2508 = vadd.f32 %v1995, %v2507
        %2509 = vmatprep.mubr.bf16.mxu0 0
        %2510 = vmatmul.mubr.bf16.gmra.mxu0 %v1608
        %v2511 = vpop.f32.mrf.mxu0
        %v2512 = vadd.f32 %v1999, %v2511
        %v2513 = vpop.f32.mrf.mxu0
        %v2514 = vadd.f32 %v2001, %v2513
        %v2515 = vpop.f32.mrf.mxu0
        %v2516 = vadd.f32 %v2003, %v2515
        %v2517 = vpop.f32.mrf.mxu0
        %v2518 = vadd.f32 %v2005, %v2517
        %2519 = vmatprep.mubr.bf16.mxu0 0
        %2520 = vmatmul.mubr.bf16.gmra.mxu0 %v1611
        %v2521 = vpop.f32.mrf.mxu0
        %v2522 = vadd.f32 %v2009, %v2521
        %v2523 = vpop.f32.mrf.mxu0
        %v2524 = vadd.f32 %v2011, %v2523
        %v2525 = vpop.f32.mrf.mxu0
        %v2526 = vadd.f32 %v2013, %v2525
        %v2527 = vpop.f32.mrf.mxu0
        %v2528 = vadd.f32 %v2015, %v2527
        %2529 = vmatprep.mubr.bf16.mxu0 0
        %2530 = vmatmul.mubr.bf16.gmra.mxu0 %v1614
        %v2531 = vpop.f32.mrf.mxu0
        %v2532 = vadd.f32 %v2019, %v2531
        %v2533 = vpop.f32.mrf.mxu0
        %v2534 = vadd.f32 %v2021, %v2533
        %v2535 = vpop.f32.mrf.mxu0
        %v2536 = vadd.f32 %v2023, %v2535
        %v2537 = vpop.f32.mrf.mxu0
        %v2538 = vadd.f32 %v2025, %v2537
        %2539 = vmatprep.mubr.bf16.mxu0 0
        %2540 = vmatmul.mubr.bf16.gmra.mxu0 %v1617
        %v2541 = vpop.f32.mrf.mxu0
        %v2542 = vadd.f32 %v2029, %v2541
        %v2543 = vpop.f32.mrf.mxu0
        %v2544 = vadd.f32 %v2031, %v2543
        %v2545 = vpop.f32.mrf.mxu0
        %v2546 = vadd.f32 %v2033, %v2545
        %v2547 = vpop.f32.mrf.mxu0
        %v2548 = vadd.f32 %v2035, %v2547
        %2549 = vmatprep.mubr.bf16.mxu0 0
        %2550 = vmatmul.mubr.bf16.gmra.mxu0 %v1620
        %v2551 = vpop.f32.mrf.mxu0
        %v2552 = vadd.f32 %v2039, %v2551
        %v2553 = vpop.f32.mrf.mxu0
        %v2554 = vadd.f32 %v2041, %v2553
        %v2555 = vpop.f32.mrf.mxu0
        %v2556 = vadd.f32 %v2043, %v2555
        %v2557 = vpop.f32.mrf.mxu0
        %v2558 = vadd.f32 %v2045, %v2557
        %2559 = vmatprep.mubr.bf16.mxu0 0
        %2560 = vmatmul.mubr.bf16.gmra.mxu0 %v1623
        %v2561 = vpop.f32.mrf.mxu0
        %v2562 = vadd.f32 %v2049, %v2561
        %v2563 = vpop.f32.mrf.mxu0
        %v2564 = vadd.f32 %v2051, %v2563
        %v2565 = vpop.f32.mrf.mxu0
        %v2566 = vadd.f32 %v2053, %v2565
        %v2567 = vpop.f32.mrf.mxu0
        %v2568 = vadd.f32 %v2055, %v2567
        %2569 = vmatprep.mubr.bf16.mxu0 0
        %2570 = vmatmul.mubr.bf16.gmra.mxu0 %v1626
        %v2571 = vpop.f32.mrf.mxu0
        %v2572 = vadd.f32 %v2059, %v2571
        %v2573 = vpop.f32.mrf.mxu0
        %v2574 = vadd.f32 %v2061, %v2573
        %v2575 = vpop.f32.mrf.mxu0
        %v2576 = vadd.f32 %v2063, %v2575
        %v2577 = vpop.f32.mrf.mxu0
        %v2578 = vadd.f32 %v2065, %v2577
        %2579 = vmatprep.mubr.bf16.mxu0 0
        %2580 = vmatmul.mubr.bf16.gmra.mxu0 %v1629
        %v2581 = vpop.f32.mrf.mxu0
        %v2582 = vadd.f32 %v2069, %v2581
        %v2583 = vpop.f32.mrf.mxu0
        %v2584 = vadd.f32 %v2071, %v2583
        %v2585 = vpop.f32.mrf.mxu0
        %v2586 = vadd.f32 %v2073, %v2585
        %v2587 = vpop.f32.mrf.mxu0
        %v2588 = vadd.f32 %v2075, %v2587
        %2589 = vmatprep.mubr.bf16.mxu0 0
        %2590 = vmatmul.mubr.bf16.gmra.mxu0 %v1632
        %v2591 = vpop.f32.mrf.mxu0
        %v2592 = vadd.f32 %v2079, %v2591
        %v2593 = vpop.f32.mrf.mxu0
        %v2594 = vadd.f32 %v2081, %v2593
        %v2595 = vpop.f32.mrf.mxu0
        %v2596 = vadd.f32 %v2083, %v2595
        %v2597 = vpop.f32.mrf.mxu0
        %v2598 = vadd.f32 %v2085, %v2597
        %2599 = vmatprep.mubr.bf16.mxu0 0
        %2600 = vmatmul.mubr.bf16.gmra.mxu0 %v1635
        %v2601 = vpop.f32.mrf.mxu0
        %v2602 = vadd.f32 %v2089, %v2601
        %v2603 = vpop.f32.mrf.mxu0
        %v2604 = vadd.f32 %v2091, %v2603
        %v2605 = vpop.f32.mrf.mxu0
        %v2606 = vadd.f32 %v2093, %v2605
        %v2607 = vpop.f32.mrf.mxu0
        %v2608 = vadd.f32 %v2095, %v2607
        %2609 = vmatprep.mubr.bf16.mxu0 0
        %2610 = vmatmul.mubr.bf16.gmra.mxu0 %v1638
        %v2611 = vpop.f32.mrf.mxu0
        %v2612 = vadd.f32 %v2099, %v2611
        %v2613 = vpop.f32.mrf.mxu0
        %v2614 = vadd.f32 %v2101, %v2613
        %v2615 = vpop.f32.mrf.mxu0
        %v2616 = vadd.f32 %v2103, %v2615
        %v2617 = vpop.f32.mrf.mxu0
        %v2618 = vadd.f32 %v2105, %v2617
        %2619 = vmatprep.mubr.bf16.mxu0 0
        %2620 = vmatmul.mubr.bf16.gmra.mxu0 %v1641
        %v2621 = vpop.f32.mrf.mxu0
        %v2622 = vadd.f32 %v2109, %v2621
        %v2623 = vpop.f32.mrf.mxu0
        %v2624 = vadd.f32 %v2111, %v2623
        %v2625 = vpop.f32.mrf.mxu0
        %v2626 = vadd.f32 %v2113, %v2625
        %v2627 = vpop.f32.mrf.mxu0
        %v2628 = vadd.f32 %v2115, %v2627
        %2629 = vmatprep.mubr.bf16.mxu0 0
        %2630 = vmatmul.mubr.bf16.gmra.mxu0 %v1644
        %v2631 = vpop.f32.mrf.mxu0
        %v2632 = vadd.f32 %v2119, %v2631
        %v2633 = vpop.f32.mrf.mxu0
        %v2634 = vadd.f32 %v2121, %v2633
        %v2635 = vpop.f32.mrf.mxu0
        %v2636 = vadd.f32 %v2123, %v2635
        %v2637 = vpop.f32.mrf.mxu0
        %v2638 = vadd.f32 %v2125, %v2637
        %2639 = vmatprep.mubr.bf16.mxu0 0
        %2640 = vmatmul.mubr.bf16.gmra.mxu0 %v1647
        %v2641 = vpop.f32.mrf.mxu0
        %v2642 = vadd.f32 %v2129, %v2641
        %v2643 = vpop.f32.mrf.mxu0
        %v2644 = vadd.f32 %v2131, %v2643
        %v2645 = vpop.f32.mrf.mxu0
        %v2646 = vadd.f32 %v2133, %v2645
        %v2647 = vpop.f32.mrf.mxu0
        %v2648 = vadd.f32 %v2135, %v2647
        %2649 = vmatprep.mubr.bf16.mxu0 0
        %2650 = vmatmul.mubr.bf16.gmra.mxu0 %v1650
        %v2651 = vpop.f32.mrf.mxu0
        %v2652 = vadd.f32 %v2139, %v2651
        %v2653 = vpop.f32.mrf.mxu0
        %v2654 = vadd.f32 %v2141, %v2653
        %v2655 = vpop.f32.mrf.mxu0
        %v2656 = vadd.f32 %v2143, %v2655
        %v2657 = vpop.f32.mrf.mxu0
        %v2658 = vadd.f32 %v2145, %v2657
        %2659 = vmatprep.mubr.bf16.mxu0 0
        %2660 = vmatmul.mubr.bf16.gmra.mxu0 %v1653
        %v2661 = vpop.f32.mrf.mxu0
        %v2662 = vadd.f32 %v2149, %v2661
        %v2663 = vpop.f32.mrf.mxu0
        %v2664 = vadd.f32 %v2151, %v2663
        %v2665 = vpop.f32.mrf.mxu0
        %v2666 = vadd.f32 %v2153, %v2665
        %v2667 = vpop.f32.mrf.mxu0
        %v2668 = vadd.f32 %v2155, %v2667
        %2669 = vmatprep.mubr.bf16.mxu0 0
        %2670 = vmatmul.mubr.bf16.gmra.mxu0 %v1656
        %v2671 = vpop.f32.mrf.mxu0
        %v2672 = vadd.f32 %v2159, %v2671
        %v2673 = vpop.f32.mrf.mxu0
        %v2674 = vadd.f32 %v2161, %v2673
        %v2675 = vpop.f32.mrf.mxu0
        %v2676 = vadd.f32 %v2163, %v2675
        %v2677 = vpop.f32.mrf.mxu0
        %v2678 = vadd.f32 %v2165, %v2677
        %2679 = vmatprep.mubr.bf16.mxu0 0
        %2680 = vmatmul.mubr.bf16.gmra.mxu0 %v1659
        %v2681 = vpop.f32.mrf.mxu0
        %v2682 = vadd.f32 %v2169, %v2681
        %v2683 = vpop.f32.mrf.mxu0
        %v2684 = vadd.f32 %v2171, %v2683
        %v2685 = vpop.f32.mrf.mxu0
        %v2686 = vadd.f32 %v2173, %v2685
        %v2687 = vpop.f32.mrf.mxu0
        %v2688 = vadd.f32 %v2175, %v2687
        %2689 = vmatprep.mubr.bf16.mxu0 0
        %2690 = vmatmul.mubr.bf16.gmra.mxu0 %v1662
        %v2691 = vpop.f32.mrf.mxu0
        %v2692 = vadd.f32 %v2179, %v2691
        %v2693 = vpop.f32.mrf.mxu0
        %v2694 = vadd.f32 %v2181, %v2693
        %v2695 = vpop.f32.mrf.mxu0
        %v2696 = vadd.f32 %v2183, %v2695
        %v2697 = vpop.f32.mrf.mxu0
        %v2698 = vadd.f32 %v2185, %v2697
        %2699 = vdwg.mxu0
        %2700 = vmatprep.subr.bf16.mxu0 0
        %2701 = vmatpush1.bf16.msra.mxu0 %v1431
        %2702 = vmatprep.subr.bf16.mxu0 0
        %2703 = vmatpush1.bf16.msra.mxu0 %v1428
        %2704 = vmatprep.subr.bf16.mxu0 0
        %2705 = vmatpush1.bf16.msra.mxu0 %v1425
        %2706 = vmatprep.subr.bf16.mxu0 0
        %2707 = vmatpush1.bf16.msra.mxu0 %v1422
        %2708 = vmatprep.subr.bf16.mxu0 0
        %2709 = vmatpush1.bf16.msra.mxu0 %v1419
        %2710 = vmatprep.subr.bf16.mxu0 0
        %2711 = vmatpush1.bf16.msra.mxu0 %v1416
        %2712 = vmatprep.subr.bf16.mxu0 0
        %2713 = vmatpush1.bf16.msra.mxu0 %v1413
        %2714 = vmatprep.subr.bf16.mxu0 0
        %2715 = vmatpush1.bf16.msra.mxu0 %v1410
        %2716 = vmatprep.subr.bf16.mxu0 0
        %2717 = vmatpush2.bf16.msra.mxu0 %v1455
        %2718 = vmatprep.subr.bf16.mxu0 0
        %2719 = vmatpush2.bf16.msra.mxu0 %v1452
        %2720 = vmatprep.subr.bf16.mxu0 0
        %2721 = vmatpush2.bf16.msra.mxu0 %v1449
        %2722 = vmatprep.subr.bf16.mxu0 0
        %2723 = vmatpush2.bf16.msra.mxu0 %v1446
        %2724 = vmatprep.subr.bf16.mxu0 0
        %2725 = vmatpush2.bf16.msra.mxu0 %v1443
        %2726 = vmatprep.subr.bf16.mxu0 0
        %2727 = vmatpush2.bf16.msra.mxu0 %v1440
        %2728 = vmatprep.subr.bf16.mxu0 0
        %2729 = vmatpush2.bf16.msra.mxu0 %v1437
        %2730 = vmatprep.subr.bf16.mxu0 0
        %2731 = vmatpush2.bf16.msra.mxu0 %v1434
        %2732 = vmatprep.mubr.bf16.mxu0 %v979
        %2733 = vmatmul.mubr.bf16.gmra.mxu0 %v978
        %v2734 = vpop.f32.mrf.mxu0
        %v2735 = vadd.f32 0.0, %v2734
        %v2736 = vpop.f32.mrf.mxu0
        %v2737 = vpop.f32.mrf.mxu0
        %v2738 = vadd.f32 0.0, %v2737
        %v2739 = vpop.f32.mrf.mxu0
        %2740 = vmatprep.mubr.bf16.mxu0 %v982
        %2741 = vmatmul.mubr.bf16.gmra.mxu0 %v981
        %v2742 = vpop.f32.mrf.mxu0
        %v2743 = vadd.f32 0.0, %v2742
        %v2744 = vpop.f32.mrf.mxu0
        %v2745 = vpop.f32.mrf.mxu0
        %v2746 = vadd.f32 0.0, %v2745
        %v2747 = vpop.f32.mrf.mxu0
        %2748 = vmatprep.mubr.bf16.mxu0 %v985
        %2749 = vmatmul.mubr.bf16.gmra.mxu0 %v984
        %v2750 = vpop.f32.mrf.mxu0
        %v2751 = vadd.f32 0.0, %v2750
        %v2752 = vpop.f32.mrf.mxu0
        %v2753 = vpop.f32.mrf.mxu0
        %v2754 = vadd.f32 0.0, %v2753
        %v2755 = vpop.f32.mrf.mxu0
        %2756 = vmatprep.mubr.bf16.mxu0 %v988
        %2757 = vmatmul.mubr.bf16.gmra.mxu0 %v987
        %v2758 = vpop.f32.mrf.mxu0
        %v2759 = vadd.f32 0.0, %v2758
        %v2760 = vpop.f32.mrf.mxu0
        %v2761 = vpop.f32.mrf.mxu0
        %v2762 = vadd.f32 0.0, %v2761
        %v2763 = vpop.f32.mrf.mxu0
        %2764 = vmatprep.mubr.bf16.mxu0 %v991
        %2765 = vmatmul.mubr.bf16.gmra.mxu0 %v990
        %v2766 = vpop.f32.mrf.mxu0
        %v2767 = vadd.f32 0.0, %v2766
        %v2768 = vpop.f32.mrf.mxu0
        %v2769 = vpop.f32.mrf.mxu0
        %v2770 = vadd.f32 0.0, %v2769
        %v2771 = vpop.f32.mrf.mxu0
        %2772 = vmatprep.mubr.bf16.mxu0 %v994
        %2773 = vmatmul.mubr.bf16.gmra.mxu0 %v993
        %v2774 = vpop.f32.mrf.mxu0
        %v2775 = vadd.f32 0.0, %v2774
        %v2776 = vpop.f32.mrf.mxu0
        %v2777 = vpop.f32.mrf.mxu0
        %v2778 = vadd.f32 0.0, %v2777
        %v2779 = vpop.f32.mrf.mxu0
        %2780 = vmatprep.mubr.bf16.mxu0 %v997
        %2781 = vmatmul.mubr.bf16.gmra.mxu0 %v996
        %v2782 = vpop.f32.mrf.mxu0
        %v2783 = vadd.f32 0.0, %v2782
        %v2784 = vpop.f32.mrf.mxu0
        %v2785 = vpop.f32.mrf.mxu0
        %v2786 = vadd.f32 0.0, %v2785
        %v2787 = vpop.f32.mrf.mxu0
        %2788 = vmatprep.mubr.bf16.mxu0 %v1000
        %2789 = vmatmul.mubr.bf16.gmra.mxu0 %v999
        %v2790 = vpop.f32.mrf.mxu0
        %v2791 = vadd.f32 0.0, %v2790
        %v2792 = vpop.f32.mrf.mxu0
        %v2793 = vpop.f32.mrf.mxu0
        %v2794 = vadd.f32 0.0, %v2793
        %v2795 = vpop.f32.mrf.mxu0
        %2796 = vmatprep.mubr.bf16.mxu0 %v1003
        %2797 = vmatmul.mubr.bf16.gmra.mxu0 %v1002
        %v2798 = vpop.f32.mrf.mxu0
        %v2799 = vadd.f32 0.0, %v2798
        %v2800 = vpop.f32.mrf.mxu0
        %v2801 = vpop.f32.mrf.mxu0
        %v2802 = vadd.f32 0.0, %v2801
        %v2803 = vpop.f32.mrf.mxu0
        %2804 = vmatprep.mubr.bf16.mxu0 %v1006
        %2805 = vmatmul.mubr.bf16.gmra.mxu0 %v1005
        %v2806 = vpop.f32.mrf.mxu0
        %v2807 = vadd.f32 0.0, %v2806
        %v2808 = vpop.f32.mrf.mxu0
        %v2809 = vpop.f32.mrf.mxu0
        %v2810 = vadd.f32 0.0, %v2809
        %v2811 = vpop.f32.mrf.mxu0
        %2812 = vmatprep.mubr.bf16.mxu0 %v1009
        %2813 = vmatmul.mubr.bf16.gmra.mxu0 %v1008
        %v2814 = vpop.f32.mrf.mxu0
        %v2815 = vadd.f32 0.0, %v2814
        %v2816 = vpop.f32.mrf.mxu0
        %v2817 = vpop.f32.mrf.mxu0
        %v2818 = vadd.f32 0.0, %v2817
        %v2819 = vpop.f32.mrf.mxu0
        %2820 = vmatprep.mubr.bf16.mxu0 %v1012
        %2821 = vmatmul.mubr.bf16.gmra.mxu0 %v1011
        %v2822 = vpop.f32.mrf.mxu0
        %v2823 = vadd.f32 0.0, %v2822
        %v2824 = vpop.f32.mrf.mxu0
        %v2825 = vpop.f32.mrf.mxu0
        %v2826 = vadd.f32 0.0, %v2825
        %v2827 = vpop.f32.mrf.mxu0
        %2828 = vmatprep.mubr.bf16.mxu0 %v1015
        %2829 = vmatmul.mubr.bf16.gmra.mxu0 %v1014
        %v2830 = vpop.f32.mrf.mxu0
        %v2831 = vadd.f32 0.0, %v2830
        %v2832 = vpop.f32.mrf.mxu0
        %v2833 = vpop.f32.mrf.mxu0
        %v2834 = vadd.f32 0.0, %v2833
        %v2835 = vpop.f32.mrf.mxu0
        %2836 = vmatprep.mubr.bf16.mxu0 %v1018
        %2837 = vmatmul.mubr.bf16.gmra.mxu0 %v1017
        %v2838 = vpop.f32.mrf.mxu0
        %v2839 = vadd.f32 0.0, %v2838
        %v2840 = vpop.f32.mrf.mxu0
        %v2841 = vpop.f32.mrf.mxu0
        %v2842 = vadd.f32 0.0, %v2841
        %v2843 = vpop.f32.mrf.mxu0
        %2844 = vmatprep.mubr.bf16.mxu0 %v1021
        %2845 = vmatmul.mubr.bf16.gmra.mxu0 %v1020
        %v2846 = vpop.f32.mrf.mxu0
        %v2847 = vadd.f32 0.0, %v2846
        %v2848 = vpop.f32.mrf.mxu0
        %v2849 = vpop.f32.mrf.mxu0
        %v2850 = vadd.f32 0.0, %v2849
        %v2851 = vpop.f32.mrf.mxu0
        %2852 = vmatprep.mubr.bf16.mxu0 %v1024
        %2853 = vmatmul.mubr.bf16.gmra.mxu0 %v1023
        %v2854 = vpop.f32.mrf.mxu0
        %v2855 = vadd.f32 0.0, %v2854
        %v2856 = vpop.f32.mrf.mxu0
        %v2857 = vpop.f32.mrf.mxu0
        %v2858 = vadd.f32 0.0, %v2857
        %v2859 = vpop.f32.mrf.mxu0
        %2860 = vmatprep.mubr.bf16.mxu0 %v1027
        %2861 = vmatmul.mubr.bf16.gmra.mxu0 %v1026
        %v2862 = vpop.f32.mrf.mxu0
        %v2863 = vadd.f32 0.0, %v2862
        %v2864 = vpop.f32.mrf.mxu0
        %v2865 = vpop.f32.mrf.mxu0
        %v2866 = vadd.f32 0.0, %v2865
        %v2867 = vpop.f32.mrf.mxu0
        %2868 = vmatprep.mubr.bf16.mxu0 %v1030
        %2869 = vmatmul.mubr.bf16.gmra.mxu0 %v1029
        %v2870 = vpop.f32.mrf.mxu0
        %v2871 = vadd.f32 0.0, %v2870
        %v2872 = vpop.f32.mrf.mxu0
        %v2873 = vpop.f32.mrf.mxu0
        %v2874 = vadd.f32 0.0, %v2873
        %v2875 = vpop.f32.mrf.mxu0
        %2876 = vmatprep.mubr.bf16.mxu0 %v1033
        %2877 = vmatmul.mubr.bf16.gmra.mxu0 %v1032
        %v2878 = vpop.f32.mrf.mxu0
        %v2879 = vadd.f32 0.0, %v2878
        %v2880 = vpop.f32.mrf.mxu0
        %v2881 = vpop.f32.mrf.mxu0
        %v2882 = vadd.f32 0.0, %v2881
        %v2883 = vpop.f32.mrf.mxu0
        %2884 = vmatprep.mubr.bf16.mxu0 %v1036
        %2885 = vmatmul.mubr.bf16.gmra.mxu0 %v1035
        %v2886 = vpop.f32.mrf.mxu0
        %v2887 = vadd.f32 0.0, %v2886
        %v2888 = vpop.f32.mrf.mxu0
        %v2889 = vpop.f32.mrf.mxu0
        %v2890 = vadd.f32 0.0, %v2889
        %v2891 = vpop.f32.mrf.mxu0
        %2892 = vmatprep.mubr.bf16.mxu0 %v1039
        %2893 = vmatmul.mubr.bf16.gmra.mxu0 %v1038
        %v2894 = vpop.f32.mrf.mxu0
        %v2895 = vadd.f32 0.0, %v2894
        %v2896 = vpop.f32.mrf.mxu0
        %v2897 = vpop.f32.mrf.mxu0
        %v2898 = vadd.f32 0.0, %v2897
        %v2899 = vpop.f32.mrf.mxu0
        %2900 = vmatprep.mubr.bf16.mxu0 %v1042
        %2901 = vmatmul.mubr.bf16.gmra.mxu0 %v1041
        %v2902 = vpop.f32.mrf.mxu0
        %v2903 = vadd.f32 0.0, %v2902
        %v2904 = vpop.f32.mrf.mxu0
        %v2905 = vpop.f32.mrf.mxu0
        %v2906 = vadd.f32 0.0, %v2905
        %v2907 = vpop.f32.mrf.mxu0
        %2908 = vmatprep.mubr.bf16.mxu0 %v1045
        %2909 = vmatmul.mubr.bf16.gmra.mxu0 %v1044
        %v2910 = vpop.f32.mrf.mxu0
        %v2911 = vadd.f32 0.0, %v2910
        %v2912 = vpop.f32.mrf.mxu0
        %v2913 = vpop.f32.mrf.mxu0
        %v2914 = vadd.f32 0.0, %v2913
        %v2915 = vpop.f32.mrf.mxu0
        %2916 = vmatprep.mubr.bf16.mxu0 %v1048
        %2917 = vmatmul.mubr.bf16.gmra.mxu0 %v1047
        %v2918 = vpop.f32.mrf.mxu0
        %v2919 = vadd.f32 0.0, %v2918
        %v2920 = vpop.f32.mrf.mxu0
        %v2921 = vpop.f32.mrf.mxu0
        %v2922 = vadd.f32 0.0, %v2921
        %v2923 = vpop.f32.mrf.mxu0
        %2924 = vmatprep.mubr.bf16.mxu0 %v1051
        %2925 = vmatmul.mubr.bf16.gmra.mxu0 %v1050
        %v2926 = vpop.f32.mrf.mxu0
        %v2927 = vadd.f32 0.0, %v2926
        %v2928 = vpop.f32.mrf.mxu0
        %v2929 = vpop.f32.mrf.mxu0
        %v2930 = vadd.f32 0.0, %v2929
        %v2931 = vpop.f32.mrf.mxu0
        %2932 = vmatprep.mubr.bf16.mxu0 %v1054
        %2933 = vmatmul.mubr.bf16.gmra.mxu0 %v1053
        %v2934 = vpop.f32.mrf.mxu0
        %v2935 = vadd.f32 0.0, %v2934
        %v2936 = vpop.f32.mrf.mxu0
        %v2937 = vpop.f32.mrf.mxu0
        %v2938 = vadd.f32 0.0, %v2937
        %v2939 = vpop.f32.mrf.mxu0
        %2940 = vmatprep.mubr.bf16.mxu0 %v1057
        %2941 = vmatmul.mubr.bf16.gmra.mxu0 %v1056
        %v2942 = vpop.f32.mrf.mxu0
        %v2943 = vadd.f32 0.0, %v2942
        %v2944 = vpop.f32.mrf.mxu0
        %v2945 = vpop.f32.mrf.mxu0
        %v2946 = vadd.f32 0.0, %v2945
        %v2947 = vpop.f32.mrf.mxu0
        %2948 = vmatprep.mubr.bf16.mxu0 %v1060
        %2949 = vmatmul.mubr.bf16.gmra.mxu0 %v1059
        %v2950 = vpop.f32.mrf.mxu0
        %v2951 = vadd.f32 0.0, %v2950
        %v2952 = vpop.f32.mrf.mxu0
        %v2953 = vpop.f32.mrf.mxu0
        %v2954 = vadd.f32 0.0, %v2953
        %v2955 = vpop.f32.mrf.mxu0
        %2956 = vmatprep.mubr.bf16.mxu0 %v1063
        %2957 = vmatmul.mubr.bf16.gmra.mxu0 %v1062
        %v2958 = vpop.f32.mrf.mxu0
        %v2959 = vadd.f32 0.0, %v2958
        %v2960 = vpop.f32.mrf.mxu0
        %v2961 = vpop.f32.mrf.mxu0
        %v2962 = vadd.f32 0.0, %v2961
        %v2963 = vpop.f32.mrf.mxu0
        %2964 = vmatprep.mubr.bf16.mxu0 %v1066
        %2965 = vmatmul.mubr.bf16.gmra.mxu0 %v1065
        %v2966 = vpop.f32.mrf.mxu0
        %v2967 = vadd.f32 0.0, %v2966
        %v2968 = vpop.f32.mrf.mxu0
        %v2969 = vpop.f32.mrf.mxu0
        %v2970 = vadd.f32 0.0, %v2969
        %v2971 = vpop.f32.mrf.mxu0
        %2972 = vmatprep.mubr.bf16.mxu0 %v1069
        %2973 = vmatmul.mubr.bf16.gmra.mxu0 %v1068
        %v2974 = vpop.f32.mrf.mxu0
        %v2975 = vadd.f32 0.0, %v2974
        %v2976 = vpop.f32.mrf.mxu0
        %v2977 = vpop.f32.mrf.mxu0
        %v2978 = vadd.f32 0.0, %v2977
        %v2979 = vpop.f32.mrf.mxu0
        %2980 = vmatprep.mubr.bf16.mxu0 %v1072
        %2981 = vmatmul.mubr.bf16.gmra.mxu0 %v1071
        %v2982 = vpop.f32.mrf.mxu0
        %v2983 = vadd.f32 0.0, %v2982
        %v2984 = vpop.f32.mrf.mxu0
        %v2985 = vpop.f32.mrf.mxu0
        %v2986 = vadd.f32 0.0, %v2985
        %v2987 = vpop.f32.mrf.mxu0
        %2988 = vmatprep.mubr.bf16.mxu0 %v1075
        %2989 = vmatmul.mubr.bf16.gmra.mxu0 %v1074
        %v2990 = vpop.f32.mrf.mxu0
        %v2991 = vadd.f32 0.0, %v2990
        %v2992 = vpop.f32.mrf.mxu0
        %v2993 = vpop.f32.mrf.mxu0
        %v2994 = vadd.f32 0.0, %v2993
        %v2995 = vpop.f32.mrf.mxu0
        %2996 = vmatprep.mubr.bf16.mxu0 %v1078
        %2997 = vmatmul.mubr.bf16.gmra.mxu0 %v1077
        %v2998 = vpop.f32.mrf.mxu0
        %v2999 = vadd.f32 0.0, %v2998
        %v3000 = vpop.f32.mrf.mxu0
        %v3001 = vpop.f32.mrf.mxu0
        %v3002 = vadd.f32 0.0, %v3001
        %v3003 = vpop.f32.mrf.mxu0
        %3004 = vmatprep.mubr.bf16.mxu0 %v1081
        %3005 = vmatmul.mubr.bf16.gmra.mxu0 %v1080
        %v3006 = vpop.f32.mrf.mxu0
        %v3007 = vadd.f32 0.0, %v3006
        %v3008 = vpop.f32.mrf.mxu0
        %v3009 = vpop.f32.mrf.mxu0
        %v3010 = vadd.f32 0.0, %v3009
        %v3011 = vpop.f32.mrf.mxu0
        %3012 = vmatprep.mubr.bf16.mxu0 %v1084
        %3013 = vmatmul.mubr.bf16.gmra.mxu0 %v1083
        %v3014 = vpop.f32.mrf.mxu0
        %v3015 = vadd.f32 0.0, %v3014
        %v3016 = vpop.f32.mrf.mxu0
        %v3017 = vpop.f32.mrf.mxu0
        %v3018 = vadd.f32 0.0, %v3017
        %v3019 = vpop.f32.mrf.mxu0
        %3020 = vmatprep.mubr.bf16.mxu0 %v1087
        %3021 = vmatmul.mubr.bf16.gmra.mxu0 %v1086
        %v3022 = vpop.f32.mrf.mxu0
        %v3023 = vadd.f32 0.0, %v3022
        %v3024 = vpop.f32.mrf.mxu0
        %v3025 = vpop.f32.mrf.mxu0
        %v3026 = vadd.f32 0.0, %v3025
        %v3027 = vpop.f32.mrf.mxu0
        %3028 = vmatprep.mubr.bf16.mxu0 %v1090
        %3029 = vmatmul.mubr.bf16.gmra.mxu0 %v1089
        %v3030 = vpop.f32.mrf.mxu0
        %v3031 = vadd.f32 0.0, %v3030
        %v3032 = vpop.f32.mrf.mxu0
        %v3033 = vpop.f32.mrf.mxu0
        %v3034 = vadd.f32 0.0, %v3033
        %v3035 = vpop.f32.mrf.mxu0
        %3036 = vmatprep.mubr.bf16.mxu0 %v1093
        %3037 = vmatmul.mubr.bf16.gmra.mxu0 %v1092
        %v3038 = vpop.f32.mrf.mxu0
        %v3039 = vadd.f32 0.0, %v3038
        %v3040 = vpop.f32.mrf.mxu0
        %v3041 = vpop.f32.mrf.mxu0
        %v3042 = vadd.f32 0.0, %v3041
        %v3043 = vpop.f32.mrf.mxu0
        %3044 = vmatprep.mubr.bf16.mxu0 %v1096
        %3045 = vmatmul.mubr.bf16.gmra.mxu0 %v1095
        %v3046 = vpop.f32.mrf.mxu0
        %v3047 = vadd.f32 0.0, %v3046
        %v3048 = vpop.f32.mrf.mxu0
        %v3049 = vpop.f32.mrf.mxu0
        %v3050 = vadd.f32 0.0, %v3049
        %v3051 = vpop.f32.mrf.mxu0
        %3052 = vmatprep.mubr.bf16.mxu0 %v1099
        %3053 = vmatmul.mubr.bf16.gmra.mxu0 %v1098
        %v3054 = vpop.f32.mrf.mxu0
        %v3055 = vadd.f32 0.0, %v3054
        %v3056 = vpop.f32.mrf.mxu0
        %v3057 = vpop.f32.mrf.mxu0
        %v3058 = vadd.f32 0.0, %v3057
        %v3059 = vpop.f32.mrf.mxu0
        %3060 = vmatprep.mubr.bf16.mxu0 %v1102
        %3061 = vmatmul.mubr.bf16.gmra.mxu0 %v1101
        %v3062 = vpop.f32.mrf.mxu0
        %v3063 = vadd.f32 0.0, %v3062
        %v3064 = vpop.f32.mrf.mxu0
        %v3065 = vpop.f32.mrf.mxu0
        %v3066 = vadd.f32 0.0, %v3065
        %v3067 = vpop.f32.mrf.mxu0
        %3068 = vmatprep.mubr.bf16.mxu0 %v1105
        %3069 = vmatmul.mubr.bf16.gmra.mxu0 %v1104
        %v3070 = vpop.f32.mrf.mxu0
        %v3071 = vadd.f32 0.0, %v3070
        %v3072 = vpop.f32.mrf.mxu0
        %v3073 = vpop.f32.mrf.mxu0
        %v3074 = vadd.f32 0.0, %v3073
        %v3075 = vpop.f32.mrf.mxu0
        %3076 = vmatprep.mubr.bf16.mxu0 %v1108
        %3077 = vmatmul.mubr.bf16.gmra.mxu0 %v1107
        %v3078 = vpop.f32.mrf.mxu0
        %v3079 = vadd.f32 0.0, %v3078
        %v3080 = vpop.f32.mrf.mxu0
        %v3081 = vpop.f32.mrf.mxu0
        %v3082 = vadd.f32 0.0, %v3081
        %v3083 = vpop.f32.mrf.mxu0
        %3084 = vmatprep.mubr.bf16.mxu0 %v1111
        %3085 = vmatmul.mubr.bf16.gmra.mxu0 %v1110
        %v3086 = vpop.f32.mrf.mxu0
        %v3087 = vadd.f32 0.0, %v3086
        %v3088 = vpop.f32.mrf.mxu0
        %v3089 = vpop.f32.mrf.mxu0
        %v3090 = vadd.f32 0.0, %v3089
        %v3091 = vpop.f32.mrf.mxu0
        %3092 = vmatprep.mubr.bf16.mxu0 %v1114
        %3093 = vmatmul.mubr.bf16.gmra.mxu0 %v1113
        %v3094 = vpop.f32.mrf.mxu0
        %v3095 = vadd.f32 0.0, %v3094
        %v3096 = vpop.f32.mrf.mxu0
        %v3097 = vpop.f32.mrf.mxu0
        %v3098 = vadd.f32 0.0, %v3097
        %v3099 = vpop.f32.mrf.mxu0
        %3100 = vmatprep.mubr.bf16.mxu0 %v1117
        %3101 = vmatmul.mubr.bf16.gmra.mxu0 %v1116
        %v3102 = vpop.f32.mrf.mxu0
        %v3103 = vadd.f32 0.0, %v3102
        %v3104 = vpop.f32.mrf.mxu0
        %v3105 = vpop.f32.mrf.mxu0
        %v3106 = vadd.f32 0.0, %v3105
        %v3107 = vpop.f32.mrf.mxu0
        %3108 = vmatprep.mubr.bf16.mxu0 %v1120
        %3109 = vmatmul.mubr.bf16.gmra.mxu0 %v1119
        %v3110 = vpop.f32.mrf.mxu0
        %v3111 = vadd.f32 0.0, %v3110
        %v3112 = vpop.f32.mrf.mxu0
        %v3113 = vpop.f32.mrf.mxu0
        %v3114 = vadd.f32 0.0, %v3113
        %v3115 = vpop.f32.mrf.mxu0
        %3116 = vdwg.mxu0
        %3117 = vmatprep.subr.bf16.mxu0 0
        %3118 = vmatpush1.bf16.msra.mxu0 0
        %3119 = vmatprep.subr.bf16.mxu0 0
        %3120 = vmatpush1.bf16.msra.mxu0 0
        %3121 = vmatprep.subr.bf16.mxu0 0
        %3122 = vmatpush1.bf16.msra.mxu0 0
        %3123 = vmatprep.subr.bf16.mxu0 0
        %3124 = vmatpush1.bf16.msra.mxu0 0
        %3125 = vmatprep.subr.bf16.mxu0 0
        %3126 = vmatpush1.bf16.msra.mxu0 0
        %3127 = vmatprep.subr.bf16.mxu0 0
        %3128 = vmatpush1.bf16.msra.mxu0 %v1672
        %3129 = vmatprep.subr.bf16.mxu0 0
        %3130 = vmatpush1.bf16.msra.mxu0 %v1461
        %3131 = vmatprep.subr.bf16.mxu0 0
        %3132 = vmatpush1.bf16.msra.mxu0 %v1458
        %3133 = vmatprep.subr.bf16.mxu0 0
        %3134 = vmatpush2.bf16.msra.mxu0 0
        %3135 = vmatprep.subr.bf16.mxu0 0
        %3136 = vmatpush2.bf16.msra.mxu0 0
        %3137 = vmatprep.subr.bf16.mxu0 0
        %3138 = vmatpush2.bf16.msra.mxu0 0
        %3139 = vmatprep.subr.bf16.mxu0 0
        %3140 = vmatpush2.bf16.msra.mxu0 0
        %3141 = vmatprep.subr.bf16.mxu0 0
        %3142 = vmatpush2.bf16.msra.mxu0 0
        %3143 = vmatprep.subr.bf16.mxu0 0
        %3144 = vmatpush2.bf16.msra.mxu0 0
        %3145 = vmatprep.subr.bf16.mxu0 0
        %3146 = vmatpush2.bf16.msra.mxu0 0
        %3147 = vmatprep.subr.bf16.mxu0 0
        %3148 = vmatpush2.bf16.msra.mxu0 0
        %3149 = vmatprep.mubr.bf16.mxu0 0
        %3150 = vmatmul.mubr.bf16.gmra.mxu0 %v1521
        %v3151 = vpop.f32.mrf.mxu0
        %v3152 = vadd.f32 %v2735, %v3151
        %v3153 = vpop.f32.mrf.mxu0
        %v3154 = vpop.f32.mrf.mxu0
        %v3155 = vadd.f32 %v2738, %v3154
        %v3156 = vpop.f32.mrf.mxu0
        %3157 = vmatprep.mubr.bf16.mxu0 0
        %3158 = vmatmul.mubr.bf16.gmra.mxu0 %v1524
        %v3159 = vpop.f32.mrf.mxu0
        %v3160 = vadd.f32 %v2743, %v3159
        %v3161 = vpop.f32.mrf.mxu0
        %v3162 = vpop.f32.mrf.mxu0
        %v3163 = vadd.f32 %v2746, %v3162
        %v3164 = vpop.f32.mrf.mxu0
        %3165 = vmatprep.mubr.bf16.mxu0 0
        %3166 = vmatmul.mubr.bf16.gmra.mxu0 %v1527
        %v3167 = vpop.f32.mrf.mxu0
        %v3168 = vadd.f32 %v2751, %v3167
        %v3169 = vpop.f32.mrf.mxu0
        %v3170 = vpop.f32.mrf.mxu0
        %v3171 = vadd.f32 %v2754, %v3170
        %v3172 = vpop.f32.mrf.mxu0
        %3173 = vmatprep.mubr.bf16.mxu0 0
        %3174 = vmatmul.mubr.bf16.gmra.mxu0 %v1530
        %v3175 = vpop.f32.mrf.mxu0
        %v3176 = vadd.f32 %v2759, %v3175
        %v3177 = vpop.f32.mrf.mxu0
        %v3178 = vpop.f32.mrf.mxu0
        %v3179 = vadd.f32 %v2762, %v3178
        %v3180 = vpop.f32.mrf.mxu0
        %3181 = vmatprep.mubr.bf16.mxu0 0
        %3182 = vmatmul.mubr.bf16.gmra.mxu0 %v1533
        %v3183 = vpop.f32.mrf.mxu0
        %v3184 = vadd.f32 %v2767, %v3183
        %v3185 = vpop.f32.mrf.mxu0
        %v3186 = vpop.f32.mrf.mxu0
        %v3187 = vadd.f32 %v2770, %v3186
        %v3188 = vpop.f32.mrf.mxu0
        %3189 = vmatprep.mubr.bf16.mxu0 0
        %3190 = vmatmul.mubr.bf16.gmra.mxu0 %v1536
        %v3191 = vpop.f32.mrf.mxu0
        %v3192 = vadd.f32 %v2775, %v3191
        %v3193 = vpop.f32.mrf.mxu0
        %v3194 = vpop.f32.mrf.mxu0
        %v3195 = vadd.f32 %v2778, %v3194
        %v3196 = vpop.f32.mrf.mxu0
        %3197 = vmatprep.mubr.bf16.mxu0 0
        %3198 = vmatmul.mubr.bf16.gmra.mxu0 %v1539
        %v3199 = vpop.f32.mrf.mxu0
        %v3200 = vadd.f32 %v2783, %v3199
        %v3201 = vpop.f32.mrf.mxu0
        %v3202 = vpop.f32.mrf.mxu0
        %v3203 = vadd.f32 %v2786, %v3202
        %v3204 = vpop.f32.mrf.mxu0
        %3205 = vmatprep.mubr.bf16.mxu0 0
        %3206 = vmatmul.mubr.bf16.gmra.mxu0 %v1542
        %v3207 = vpop.f32.mrf.mxu0
        %v3208 = vadd.f32 %v2791, %v3207
        %v3209 = vpop.f32.mrf.mxu0
        %v3210 = vpop.f32.mrf.mxu0
        %v3211 = vadd.f32 %v2794, %v3210
        %v3212 = vpop.f32.mrf.mxu0
        %3213 = vmatprep.mubr.bf16.mxu0 0
        %3214 = vmatmul.mubr.bf16.gmra.mxu0 %v1545
        %v3215 = vpop.f32.mrf.mxu0
        %v3216 = vadd.f32 %v2799, %v3215
        %v3217 = vpop.f32.mrf.mxu0
        %v3218 = vpop.f32.mrf.mxu0
        %v3219 = vadd.f32 %v2802, %v3218
        %v3220 = vpop.f32.mrf.mxu0
        %3221 = vmatprep.mubr.bf16.mxu0 0
        %3222 = vmatmul.mubr.bf16.gmra.mxu0 %v1548
        %v3223 = vpop.f32.mrf.mxu0
        %v3224 = vadd.f32 %v2807, %v3223
        %v3225 = vpop.f32.mrf.mxu0
        %v3226 = vpop.f32.mrf.mxu0
        %v3227 = vadd.f32 %v2810, %v3226
        %v3228 = vpop.f32.mrf.mxu0
        %3229 = vmatprep.mubr.bf16.mxu0 0
        %3230 = vmatmul.mubr.bf16.gmra.mxu0 %v1551
        %v3231 = vpop.f32.mrf.mxu0
        %v3232 = vadd.f32 %v2815, %v3231
        %v3233 = vpop.f32.mrf.mxu0
        %v3234 = vpop.f32.mrf.mxu0
        %v3235 = vadd.f32 %v2818, %v3234
        %v3236 = vpop.f32.mrf.mxu0
        %3237 = vmatprep.mubr.bf16.mxu0 0
        %3238 = vmatmul.mubr.bf16.gmra.mxu0 %v1554
        %v3239 = vpop.f32.mrf.mxu0
        %v3240 = vadd.f32 %v2823, %v3239
        %v3241 = vpop.f32.mrf.mxu0
        %v3242 = vpop.f32.mrf.mxu0
        %v3243 = vadd.f32 %v2826, %v3242
        %v3244 = vpop.f32.mrf.mxu0
        %3245 = vmatprep.mubr.bf16.mxu0 0
        %3246 = vmatmul.mubr.bf16.gmra.mxu0 %v1557
        %v3247 = vpop.f32.mrf.mxu0
        %v3248 = vadd.f32 %v2831, %v3247
        %v3249 = vpop.f32.mrf.mxu0
        %v3250 = vpop.f32.mrf.mxu0
        %v3251 = vadd.f32 %v2834, %v3250
        %v3252 = vpop.f32.mrf.mxu0
        %3253 = vmatprep.mubr.bf16.mxu0 0
        %3254 = vmatmul.mubr.bf16.gmra.mxu0 %v1560
        %v3255 = vpop.f32.mrf.mxu0
        %v3256 = vadd.f32 %v2839, %v3255
        %v3257 = vpop.f32.mrf.mxu0
        %v3258 = vpop.f32.mrf.mxu0
        %v3259 = vadd.f32 %v2842, %v3258
        %v3260 = vpop.f32.mrf.mxu0
        %3261 = vmatprep.mubr.bf16.mxu0 0
        %3262 = vmatmul.mubr.bf16.gmra.mxu0 %v1563
        %v3263 = vpop.f32.mrf.mxu0
        %v3264 = vadd.f32 %v2847, %v3263
        %v3265 = vpop.f32.mrf.mxu0
        %v3266 = vpop.f32.mrf.mxu0
        %v3267 = vadd.f32 %v2850, %v3266
        %v3268 = vpop.f32.mrf.mxu0
        %3269 = vmatprep.mubr.bf16.mxu0 0
        %3270 = vmatmul.mubr.bf16.gmra.mxu0 %v1566
        %v3271 = vpop.f32.mrf.mxu0
        %v3272 = vadd.f32 %v2855, %v3271
        %v3273 = vpop.f32.mrf.mxu0
        %v3274 = vpop.f32.mrf.mxu0
        %v3275 = vadd.f32 %v2858, %v3274
        %v3276 = vpop.f32.mrf.mxu0
        %3277 = vmatprep.mubr.bf16.mxu0 0
        %3278 = vmatmul.mubr.bf16.gmra.mxu0 %v1569
        %v3279 = vpop.f32.mrf.mxu0
        %v3280 = vadd.f32 %v2863, %v3279
        %v3281 = vpop.f32.mrf.mxu0
        %v3282 = vpop.f32.mrf.mxu0
        %v3283 = vadd.f32 %v2866, %v3282
        %v3284 = vpop.f32.mrf.mxu0
        %3285 = vmatprep.mubr.bf16.mxu0 0
        %3286 = vmatmul.mubr.bf16.gmra.mxu0 %v1572
        %v3287 = vpop.f32.mrf.mxu0
        %v3288 = vadd.f32 %v2871, %v3287
        %v3289 = vpop.f32.mrf.mxu0
        %v3290 = vpop.f32.mrf.mxu0
        %v3291 = vadd.f32 %v2874, %v3290
        %v3292 = vpop.f32.mrf.mxu0
        %3293 = vmatprep.mubr.bf16.mxu0 0
        %3294 = vmatmul.mubr.bf16.gmra.mxu0 %v1575
        %v3295 = vpop.f32.mrf.mxu0
        %v3296 = vadd.f32 %v2879, %v3295
        %v3297 = vpop.f32.mrf.mxu0
        %v3298 = vpop.f32.mrf.mxu0
        %v3299 = vadd.f32 %v2882, %v3298
        %v3300 = vpop.f32.mrf.mxu0
        %3301 = vmatprep.mubr.bf16.mxu0 0
        %3302 = vmatmul.mubr.bf16.gmra.mxu0 %v1578
        %v3303 = vpop.f32.mrf.mxu0
        %v3304 = vadd.f32 %v2887, %v3303
        %v3305 = vpop.f32.mrf.mxu0
        %v3306 = vpop.f32.mrf.mxu0
        %v3307 = vadd.f32 %v2890, %v3306
        %v3308 = vpop.f32.mrf.mxu0
        %3309 = vmatprep.mubr.bf16.mxu0 0
        %3310 = vmatmul.mubr.bf16.gmra.mxu0 %v1581
        %v3311 = vpop.f32.mrf.mxu0
        %v3312 = vadd.f32 %v2895, %v3311
        %v3313 = vpop.f32.mrf.mxu0
        %v3314 = vpop.f32.mrf.mxu0
        %v3315 = vadd.f32 %v2898, %v3314
        %v3316 = vpop.f32.mrf.mxu0
        %3317 = vmatprep.mubr.bf16.mxu0 0
        %3318 = vmatmul.mubr.bf16.gmra.mxu0 %v1584
        %v3319 = vpop.f32.mrf.mxu0
        %v3320 = vadd.f32 %v2903, %v3319
        %v3321 = vpop.f32.mrf.mxu0
        %v3322 = vpop.f32.mrf.mxu0
        %v3323 = vadd.f32 %v2906, %v3322
        %v3324 = vpop.f32.mrf.mxu0
        %3325 = vmatprep.mubr.bf16.mxu0 0
        %3326 = vmatmul.mubr.bf16.gmra.mxu0 %v1587
        %v3327 = vpop.f32.mrf.mxu0
        %v3328 = vadd.f32 %v2911, %v3327
        %v3329 = vpop.f32.mrf.mxu0
        %v3330 = vpop.f32.mrf.mxu0
        %v3331 = vadd.f32 %v2914, %v3330
        %v3332 = vpop.f32.mrf.mxu0
        %3333 = vmatprep.mubr.bf16.mxu0 0
        %3334 = vmatmul.mubr.bf16.gmra.mxu0 %v1590
        %v3335 = vpop.f32.mrf.mxu0
        %v3336 = vadd.f32 %v2919, %v3335
        %v3337 = vpop.f32.mrf.mxu0
        %v3338 = vpop.f32.mrf.mxu0
        %v3339 = vadd.f32 %v2922, %v3338
        %v3340 = vpop.f32.mrf.mxu0
        %3341 = vmatprep.mubr.bf16.mxu0 0
        %3342 = vmatmul.mubr.bf16.gmra.mxu0 %v1593
        %v3343 = vpop.f32.mrf.mxu0
        %v3344 = vadd.f32 %v2927, %v3343
        %v3345 = vpop.f32.mrf.mxu0
        %v3346 = vpop.f32.mrf.mxu0
        %v3347 = vadd.f32 %v2930, %v3346
        %v3348 = vpop.f32.mrf.mxu0
        %3349 = vmatprep.mubr.bf16.mxu0 0
        %3350 = vmatmul.mubr.bf16.gmra.mxu0 %v1596
        %v3351 = vpop.f32.mrf.mxu0
        %v3352 = vadd.f32 %v2935, %v3351
        %v3353 = vpop.f32.mrf.mxu0
        %v3354 = vpop.f32.mrf.mxu0
        %v3355 = vadd.f32 %v2938, %v3354
        %v3356 = vpop.f32.mrf.mxu0
        %3357 = vmatprep.mubr.bf16.mxu0 0
        %3358 = vmatmul.mubr.bf16.gmra.mxu0 %v1599
        %v3359 = vpop.f32.mrf.mxu0
        %v3360 = vadd.f32 %v2943, %v3359
        %v3361 = vpop.f32.mrf.mxu0
        %v3362 = vpop.f32.mrf.mxu0
        %v3363 = vadd.f32 %v2946, %v3362
        %v3364 = vpop.f32.mrf.mxu0
        %3365 = vmatprep.mubr.bf16.mxu0 0
        %3366 = vmatmul.mubr.bf16.gmra.mxu0 %v1602
        %v3367 = vpop.f32.mrf.mxu0
        %v3368 = vadd.f32 %v2951, %v3367
        %v3369 = vpop.f32.mrf.mxu0
        %v3370 = vpop.f32.mrf.mxu0
        %v3371 = vadd.f32 %v2954, %v3370
        %v3372 = vpop.f32.mrf.mxu0
        %3373 = vmatprep.mubr.bf16.mxu0 0
        %3374 = vmatmul.mubr.bf16.gmra.mxu0 %v1605
        %v3375 = vpop.f32.mrf.mxu0
        %v3376 = vadd.f32 %v2959, %v3375
        %v3377 = vpop.f32.mrf.mxu0
        %v3378 = vpop.f32.mrf.mxu0
        %v3379 = vadd.f32 %v2962, %v3378
        %v3380 = vpop.f32.mrf.mxu0
        %3381 = vmatprep.mubr.bf16.mxu0 0
        %3382 = vmatmul.mubr.bf16.gmra.mxu0 %v1608
        %v3383 = vpop.f32.mrf.mxu0
        %v3384 = vadd.f32 %v2967, %v3383
        %v3385 = vpop.f32.mrf.mxu0
        %v3386 = vpop.f32.mrf.mxu0
        %v3387 = vadd.f32 %v2970, %v3386
        %v3388 = vpop.f32.mrf.mxu0
        %3389 = vmatprep.mubr.bf16.mxu0 0
        %3390 = vmatmul.mubr.bf16.gmra.mxu0 %v1611
        %v3391 = vpop.f32.mrf.mxu0
        %v3392 = vadd.f32 %v2975, %v3391
        %v3393 = vpop.f32.mrf.mxu0
        %v3394 = vpop.f32.mrf.mxu0
        %v3395 = vadd.f32 %v2978, %v3394
        %v3396 = vpop.f32.mrf.mxu0
        %3397 = vmatprep.mubr.bf16.mxu0 0
        %3398 = vmatmul.mubr.bf16.gmra.mxu0 %v1614
        %v3399 = vpop.f32.mrf.mxu0
        %v3400 = vadd.f32 %v2983, %v3399
        %v3401 = vpop.f32.mrf.mxu0
        %v3402 = vpop.f32.mrf.mxu0
        %v3403 = vadd.f32 %v2986, %v3402
        %v3404 = vpop.f32.mrf.mxu0
        %3405 = vmatprep.mubr.bf16.mxu0 0
        %3406 = vmatmul.mubr.bf16.gmra.mxu0 %v1617
        %v3407 = vpop.f32.mrf.mxu0
        %v3408 = vadd.f32 %v2991, %v3407
        %v3409 = vpop.f32.mrf.mxu0
        %v3410 = vpop.f32.mrf.mxu0
        %v3411 = vadd.f32 %v2994, %v3410
        %v3412 = vpop.f32.mrf.mxu0
        %3413 = vmatprep.mubr.bf16.mxu0 0
        %3414 = vmatmul.mubr.bf16.gmra.mxu0 %v1620
        %v3415 = vpop.f32.mrf.mxu0
        %v3416 = vadd.f32 %v2999, %v3415
        %v3417 = vpop.f32.mrf.mxu0
        %v3418 = vpop.f32.mrf.mxu0
        %v3419 = vadd.f32 %v3002, %v3418
        %v3420 = vpop.f32.mrf.mxu0
        %3421 = vmatprep.mubr.bf16.mxu0 0
        %3422 = vmatmul.mubr.bf16.gmra.mxu0 %v1623
        %v3423 = vpop.f32.mrf.mxu0
        %v3424 = vadd.f32 %v3007, %v3423
        %v3425 = vpop.f32.mrf.mxu0
        %v3426 = vpop.f32.mrf.mxu0
        %v3427 = vadd.f32 %v3010, %v3426
        %v3428 = vpop.f32.mrf.mxu0
        %3429 = vmatprep.mubr.bf16.mxu0 0
        %3430 = vmatmul.mubr.bf16.gmra.mxu0 %v1626
        %v3431 = vpop.f32.mrf.mxu0
        %v3432 = vadd.f32 %v3015, %v3431
        %v3433 = vpop.f32.mrf.mxu0
        %v3434 = vpop.f32.mrf.mxu0
        %v3435 = vadd.f32 %v3018, %v3434
        %v3436 = vpop.f32.mrf.mxu0
        %3437 = vmatprep.mubr.bf16.mxu0 0
        %3438 = vmatmul.mubr.bf16.gmra.mxu0 %v1629
        %v3439 = vpop.f32.mrf.mxu0
        %v3440 = vadd.f32 %v3023, %v3439
        %v3441 = vpop.f32.mrf.mxu0
        %v3442 = vpop.f32.mrf.mxu0
        %v3443 = vadd.f32 %v3026, %v3442
        %v3444 = vpop.f32.mrf.mxu0
        %3445 = vmatprep.mubr.bf16.mxu0 0
        %3446 = vmatmul.mubr.bf16.gmra.mxu0 %v1632
        %v3447 = vpop.f32.mrf.mxu0
        %v3448 = vadd.f32 %v3031, %v3447
        %v3449 = vpop.f32.mrf.mxu0
        %v3450 = vpop.f32.mrf.mxu0
        %v3451 = vadd.f32 %v3034, %v3450
        %v3452 = vpop.f32.mrf.mxu0
        %3453 = vmatprep.mubr.bf16.mxu0 0
        %3454 = vmatmul.mubr.bf16.gmra.mxu0 %v1635
        %v3455 = vpop.f32.mrf.mxu0
        %v3456 = vadd.f32 %v3039, %v3455
        %v3457 = vpop.f32.mrf.mxu0
        %v3458 = vpop.f32.mrf.mxu0
        %v3459 = vadd.f32 %v3042, %v3458
        %v3460 = vpop.f32.mrf.mxu0
        %3461 = vmatprep.mubr.bf16.mxu0 0
        %3462 = vmatmul.mubr.bf16.gmra.mxu0 %v1638
        %v3463 = vpop.f32.mrf.mxu0
        %v3464 = vadd.f32 %v3047, %v3463
        %v3465 = vpop.f32.mrf.mxu0
        %v3466 = vpop.f32.mrf.mxu0
        %v3467 = vadd.f32 %v3050, %v3466
        %v3468 = vpop.f32.mrf.mxu0
        %3469 = vmatprep.mubr.bf16.mxu0 0
        %3470 = vmatmul.mubr.bf16.gmra.mxu0 %v1641
        %v3471 = vpop.f32.mrf.mxu0
        %v3472 = vadd.f32 %v3055, %v3471
        %v3473 = vpop.f32.mrf.mxu0
        %v3474 = vpop.f32.mrf.mxu0
        %v3475 = vadd.f32 %v3058, %v3474
        %v3476 = vpop.f32.mrf.mxu0
        %3477 = vmatprep.mubr.bf16.mxu0 0
        %3478 = vmatmul.mubr.bf16.gmra.mxu0 %v1644
        %v3479 = vpop.f32.mrf.mxu0
        %v3480 = vadd.f32 %v3063, %v3479
        %v3481 = vpop.f32.mrf.mxu0
        %v3482 = vpop.f32.mrf.mxu0
        %v3483 = vadd.f32 %v3066, %v3482
        %v3484 = vpop.f32.mrf.mxu0
        %3485 = vmatprep.mubr.bf16.mxu0 0
        %3486 = vmatmul.mubr.bf16.gmra.mxu0 %v1647
        %v3487 = vpop.f32.mrf.mxu0
        %v3488 = vadd.f32 %v3071, %v3487
        %v3489 = vpop.f32.mrf.mxu0
        %v3490 = vpop.f32.mrf.mxu0
        %v3491 = vadd.f32 %v3074, %v3490
        %v3492 = vpop.f32.mrf.mxu0
        %3493 = vmatprep.mubr.bf16.mxu0 0
        %3494 = vmatmul.mubr.bf16.gmra.mxu0 %v1650
        %v3495 = vpop.f32.mrf.mxu0
        %v3496 = vadd.f32 %v3079, %v3495
        %v3497 = vpop.f32.mrf.mxu0
        %v3498 = vpop.f32.mrf.mxu0
        %v3499 = vadd.f32 %v3082, %v3498
        %v3500 = vpop.f32.mrf.mxu0
        %3501 = vmatprep.mubr.bf16.mxu0 0
        %3502 = vmatmul.mubr.bf16.gmra.mxu0 %v1653
        %v3503 = vpop.f32.mrf.mxu0
        %v3504 = vadd.f32 %v3087, %v3503
        %v3505 = vpop.f32.mrf.mxu0
        %v3506 = vpop.f32.mrf.mxu0
        %v3507 = vadd.f32 %v3090, %v3506
        %v3508 = vpop.f32.mrf.mxu0
        %3509 = vmatprep.mubr.bf16.mxu0 0
        %3510 = vmatmul.mubr.bf16.gmra.mxu0 %v1656
        %v3511 = vpop.f32.mrf.mxu0
        %v3512 = vadd.f32 %v3095, %v3511
        %v3513 = vpop.f32.mrf.mxu0
        %v3514 = vpop.f32.mrf.mxu0
        %v3515 = vadd.f32 %v3098, %v3514
        %v3516 = vpop.f32.mrf.mxu0
        %3517 = vmatprep.mubr.bf16.mxu0 0
        %3518 = vmatmul.mubr.bf16.gmra.mxu0 %v1659
        %v3519 = vpop.f32.mrf.mxu0
        %v3520 = vadd.f32 %v3103, %v3519
        %v3521 = vpop.f32.mrf.mxu0
        %v3522 = vpop.f32.mrf.mxu0
        %v3523 = vadd.f32 %v3106, %v3522
        %v3524 = vpop.f32.mrf.mxu0
        %3525 = vmatprep.mubr.bf16.mxu0 0
        %3526 = vmatmul.mubr.bf16.gmra.mxu0 %v1662
        %v3527 = vpop.f32.mrf.mxu0
        %v3528 = vadd.f32 %v3111, %v3527
        %v3529 = vpop.f32.mrf.mxu0
        %v3530 = vpop.f32.mrf.mxu0
        %v3531 = vadd.f32 %v3114, %v3530
        %v3532 = vpop.f32.mrf.mxu0
        %3533 = vdwg.mxu0
        %vm3726 = vcmask 1046528
        %v3727 = vrot.slane %v2222, 1
        %v3728 = vrot.slane %v2226, 1
        %v3729 = vsel %vm3726, %v3727, %v3728
        %v3730 = vrot.slane %v2224, 1
        %v3731 = vrot.slane %v2228, 1
        %v3732 = vsel %vm3726, %v3730, %v3731
        %v3733 = vrot.slane %v3152, 1
        %v3734 = vrot.slane %v3155, 1
        %v3735 = vsel %vm3726, %v3733, %v3734
        %v3736 = vrot.slane %v2236, 1
        %v3737 = vrot.slane %v2242, 1
        %v3738 = vsel %vm3726, %v3736, %v3737
        %v3739 = vrot.slane %v2238, 1
        %v3740 = vrot.slane %v2244, 1
        %v3741 = vsel %vm3726, %v3739, %v3740
        %v3742 = vrot.slane %v3163, 1
        %v3743 = vrot.slane %v3168, 1
        %v3744 = vsel %vm3726, %v3742, %v3743
        %v3745 = vrot.slane %v2252, 1
        %v3746 = vrot.slane %v2256, 1
        %v3747 = vsel %vm3726, %v3745, %v3746
        %v3748 = vrot.slane %v2254, 1
        %v3749 = vrot.slane %v2258, 1
        %v3750 = vsel %vm3726, %v3748, %v3749
        %v3751 = vrot.slane %v3176, 1
        %v3752 = vrot.slane %v3179, 1
        %v3753 = vsel %vm3726, %v3751, %v3752
        %v3754 = vrot.slane %v2266, 1
        %v3755 = vrot.slane %v2272, 1
        %v3756 = vsel %vm3726, %v3754, %v3755
        %v3757 = vrot.slane %v2268, 1
        %v3758 = vrot.slane %v2274, 1
        %v3759 = vsel %vm3726, %v3757, %v3758
        %v3760 = vrot.slane %v3187, 1
        %v3761 = vrot.slane %v3192, 1
        %v3762 = vsel %vm3726, %v3760, %v3761
        %v3763 = vrot.slane %v2282, 1
        %v3764 = vrot.slane %v2286, 1
        %v3765 = vsel %vm3726, %v3763, %v3764
        %v3766 = vrot.slane %v2284, 1
        %v3767 = vrot.slane %v2288, 1
        %v3768 = vsel %vm3726, %v3766, %v3767
        %v3769 = vrot.slane %v3200, 1
        %v3770 = vrot.slane %v3203, 1
        %v3771 = vsel %vm3726, %v3769, %v3770
        %v3772 = vrot.slane %v2296, 1
        %v3773 = vrot.slane %v2302, 1
        %v3774 = vsel %vm3726, %v3772, %v3773
        %v3775 = vrot.slane %v2298, 1
        %v3776 = vrot.slane %v2304, 1
        %v3777 = vsel %vm3726, %v3775, %v3776
        %v3778 = vrot.slane %v3211, 1
        %v3779 = vrot.slane %v3216, 1
        %v3780 = vsel %vm3726, %v3778, %v3779
        %v3781 = vrot.slane %v2312, 1
        %v3782 = vrot.slane %v2316, 1
        %v3783 = vsel %vm3726, %v3781, %v3782
        %v3784 = vrot.slane %v2314, 1
        %v3785 = vrot.slane %v2318, 1
        %v3786 = vsel %vm3726, %v3784, %v3785
        %v3787 = vrot.slane %v3224, 1
        %v3788 = vrot.slane %v3227, 1
        %v3789 = vsel %vm3726, %v3787, %v3788
        %v3790 = vrot.slane %v2326, 1
        %v3791 = vrot.slane %v2332, 1
        %v3792 = vsel %vm3726, %v3790, %v3791
        %v3793 = vrot.slane %v2328, 1
        %v3794 = vrot.slane %v2334, 1
        %v3795 = vsel %vm3726, %v3793, %v3794
        %v3796 = vrot.slane %v3235, 1
        %v3797 = vrot.slane %v3240, 1
        %v3798 = vsel %vm3726, %v3796, %v3797
        %v3799 = vrot.slane %v2342, 1
        %v3800 = vrot.slane %v2346, 1
        %v3801 = vsel %vm3726, %v3799, %v3800
        %v3802 = vrot.slane %v2344, 1
        %v3803 = vrot.slane %v2348, 1
        %v3804 = vsel %vm3726, %v3802, %v3803
        %v3805 = vrot.slane %v3248, 1
        %v3806 = vrot.slane %v3251, 1
        %v3807 = vsel %vm3726, %v3805, %v3806
        %v3808 = vrot.slane %v2356, 1
        %v3809 = vrot.slane %v2362, 1
        %v3810 = vsel %vm3726, %v3808, %v3809
        %v3811 = vrot.slane %v2358, 1
        %v3812 = vrot.slane %v2364, 1
        %v3813 = vsel %vm3726, %v3811, %v3812
        %v3814 = vrot.slane %v3259, 1
        %v3815 = vrot.slane %v3264, 1
        %v3816 = vsel %vm3726, %v3814, %v3815
        %v3817 = vrot.slane %v2372, 1
        %v3818 = vrot.slane %v2376, 1
        %v3819 = vsel %vm3726, %v3817, %v3818
        %v3820 = vrot.slane %v2374, 1
        %v3821 = vrot.slane %v2378, 1
        %v3822 = vsel %vm3726, %v3820, %v3821
        %v3823 = vrot.slane %v3272, 1
        %v3824 = vrot.slane %v3275, 1
        %v3825 = vsel %vm3726, %v3823, %v3824
        %v3826 = vrot.slane %v2386, 1
        %v3827 = vrot.slane %v2392, 1
        %v3828 = vsel %vm3726, %v3826, %v3827
        %v3829 = vrot.slane %v2388, 1
        %v3830 = vrot.slane %v2394, 1
        %v3831 = vsel %vm3726, %v3829, %v3830
        %v3832 = vrot.slane %v3283, 1
        %v3833 = vrot.slane %v3288, 1
        %v3834 = vsel %vm3726, %v3832, %v3833
        %v3835 = vrot.slane %v2402, 1
        %v3836 = vrot.slane %v2406, 1
        %v3837 = vsel %vm3726, %v3835, %v3836
        %v3838 = vrot.slane %v2404, 1
        %v3839 = vrot.slane %v2408, 1
        %v3840 = vsel %vm3726, %v3838, %v3839
        %v3841 = vrot.slane %v3296, 1
        %v3842 = vrot.slane %v3299, 1
        %v3843 = vsel %vm3726, %v3841, %v3842
        %v3844 = vrot.slane %v2416, 1
        %v3845 = vrot.slane %v2422, 1
        %v3846 = vsel %vm3726, %v3844, %v3845
        %v3847 = vrot.slane %v2418, 1
        %v3848 = vrot.slane %v2424, 1
        %v3849 = vsel %vm3726, %v3847, %v3848
        %v3850 = vrot.slane %v3307, 1
        %v3851 = vrot.slane %v3312, 1
        %v3852 = vsel %vm3726, %v3850, %v3851
        %v3853 = vrot.slane %v2432, 1
        %v3854 = vrot.slane %v2436, 1
        %v3855 = vsel %vm3726, %v3853, %v3854
        %v3856 = vrot.slane %v2434, 1
        %v3857 = vrot.slane %v2438, 1
        %v3858 = vsel %vm3726, %v3856, %v3857
        %v3859 = vrot.slane %v3320, 1
        %v3860 = vrot.slane %v3323, 1
        %v3861 = vsel %vm3726, %v3859, %v3860
        %v3862 = vrot.slane %v2446, 1
        %v3863 = vrot.slane %v2452, 1
        %v3864 = vsel %vm3726, %v3862, %v3863
        %v3865 = vrot.slane %v2448, 1
        %v3866 = vrot.slane %v2454, 1
        %v3867 = vsel %vm3726, %v3865, %v3866
        %v3868 = vrot.slane %v3331, 1
        %v3869 = vrot.slane %v3336, 1
        %v3870 = vsel %vm3726, %v3868, %v3869
        %v3871 = vrot.slane %v2462, 1
        %v3872 = vrot.slane %v2466, 1
        %v3873 = vsel %vm3726, %v3871, %v3872
        %v3874 = vrot.slane %v2464, 1
        %v3875 = vrot.slane %v2468, 1
        %v3876 = vsel %vm3726, %v3874, %v3875
        %v3877 = vrot.slane %v3344, 1
        %v3878 = vrot.slane %v3347, 1
        %v3879 = vsel %vm3726, %v3877, %v3878
        %v3880 = vrot.slane %v2476, 1
        %v3881 = vrot.slane %v2482, 1
        %v3882 = vsel %vm3726, %v3880, %v3881
        %v3883 = vrot.slane %v2478, 1
        %v3884 = vrot.slane %v2484, 1
        %v3885 = vsel %vm3726, %v3883, %v3884
        %v3886 = vrot.slane %v3355, 1
        %v3887 = vrot.slane %v3360, 1
        %v3888 = vsel %vm3726, %v3886, %v3887
        %v3889 = vrot.slane %v2492, 1
        %v3890 = vrot.slane %v2496, 1
        %v3891 = vsel %vm3726, %v3889, %v3890
        %v3892 = vrot.slane %v2494, 1
        %v3893 = vrot.slane %v2498, 1
        %v3894 = vsel %vm3726, %v3892, %v3893
        %v3895 = vrot.slane %v3368, 1
        %v3896 = vrot.slane %v3371, 1
        %v3897 = vsel %vm3726, %v3895, %v3896
        %v3898 = vrot.slane %v2506, 1
        %v3899 = vrot.slane %v2512, 1
        %v3900 = vsel %vm3726, %v3898, %v3899
        %v3901 = vrot.slane %v2508, 1
        %v3902 = vrot.slane %v2514, 1
        %v3903 = vsel %vm3726, %v3901, %v3902
        %v3904 = vrot.slane %v3379, 1
        %v3905 = vrot.slane %v3384, 1
        %v3906 = vsel %vm3726, %v3904, %v3905
        %v3907 = vrot.slane %v2522, 1
        %v3908 = vrot.slane %v2526, 1
        %v3909 = vsel %vm3726, %v3907, %v3908
        %v3910 = vrot.slane %v2524, 1
        %v3911 = vrot.slane %v2528, 1
        %v3912 = vsel %vm3726, %v3910, %v3911
        %v3913 = vrot.slane %v3392, 1
        %v3914 = vrot.slane %v3395, 1
        %v3915 = vsel %vm3726, %v3913, %v3914
        %v3916 = vrot.slane %v2536, 1
        %v3917 = vrot.slane %v2542, 1
        %v3918 = vsel %vm3726, %v3916, %v3917
        %v3919 = vrot.slane %v2538, 1
        %v3920 = vrot.slane %v2544, 1
        %v3921 = vsel %vm3726, %v3919, %v3920
        %v3922 = vrot.slane %v3403, 1
        %v3923 = vrot.slane %v3408, 1
        %v3924 = vsel %vm3726, %v3922, %v3923
        %v3925 = vrot.slane %v2552, 1
        %v3926 = vrot.slane %v2556, 1
        %v3927 = vsel %vm3726, %v3925, %v3926
        %v3928 = vrot.slane %v2554, 1
        %v3929 = vrot.slane %v2558, 1
        %v3930 = vsel %vm3726, %v3928, %v3929
        %v3931 = vrot.slane %v3416, 1
        %v3932 = vrot.slane %v3419, 1
        %v3933 = vsel %vm3726, %v3931, %v3932
        %v3934 = vrot.slane %v2566, 1
        %v3935 = vrot.slane %v2572, 1
        %v3936 = vsel %vm3726, %v3934, %v3935
        %v3937 = vrot.slane %v2568, 1
        %v3938 = vrot.slane %v2574, 1
        %v3939 = vsel %vm3726, %v3937, %v3938
        %v3940 = vrot.slane %v3427, 1
        %v3941 = vrot.slane %v3432, 1
        %v3942 = vsel %vm3726, %v3940, %v3941
        %v3943 = vrot.slane %v2582, 1
        %v3944 = vrot.slane %v2586, 1
        %v3945 = vsel %vm3726, %v3943, %v3944
        %v3946 = vrot.slane %v2584, 1
        %v3947 = vrot.slane %v2588, 1
        %v3948 = vsel %vm3726, %v3946, %v3947
        %v3949 = vrot.slane %v3440, 1
        %v3950 = vrot.slane %v3443, 1
        %v3951 = vsel %vm3726, %v3949, %v3950
        %v3952 = vrot.slane %v2596, 1
        %v3953 = vrot.slane %v2602, 1
        %v3954 = vsel %vm3726, %v3952, %v3953
        %v3955 = vrot.slane %v2598, 1
        %v3956 = vrot.slane %v2604, 1
        %v3957 = vsel %vm3726, %v3955, %v3956
        %v3958 = vrot.slane %v3451, 1
        %v3959 = vrot.slane %v3456, 1
        %v3960 = vsel %vm3726, %v3958, %v3959
        %v3961 = vrot.slane %v2612, 1
        %v3962 = vrot.slane %v2616, 1
        %v3963 = vsel %vm3726, %v3961, %v3962
        %v3964 = vrot.slane %v2614, 1
        %v3965 = vrot.slane %v2618, 1
        %v3966 = vsel %vm3726, %v3964, %v3965
        %v3967 = vrot.slane %v3464, 1
        %v3968 = vrot.slane %v3467, 1
        %v3969 = vsel %vm3726, %v3967, %v3968
        %v3970 = vrot.slane %v2626, 1
        %v3971 = vrot.slane %v2632, 1
        %v3972 = vsel %vm3726, %v3970, %v3971
        %v3973 = vrot.slane %v2628, 1
        %v3974 = vrot.slane %v2634, 1
        %v3975 = vsel %vm3726, %v3973, %v3974
        %v3976 = vrot.slane %v3475, 1
        %v3977 = vrot.slane %v3480, 1
        %v3978 = vsel %vm3726, %v3976, %v3977
        %v3979 = vrot.slane %v2642, 1
        %v3980 = vrot.slane %v2646, 1
        %v3981 = vsel %vm3726, %v3979, %v3980
        %v3982 = vrot.slane %v2644, 1
        %v3983 = vrot.slane %v2648, 1
        %v3984 = vsel %vm3726, %v3982, %v3983
        %v3985 = vrot.slane %v3488, 1
        %v3986 = vrot.slane %v3491, 1
        %v3987 = vsel %vm3726, %v3985, %v3986
        %v3988 = vrot.slane %v2656, 1
        %v3989 = vrot.slane %v2662, 1
        %v3990 = vsel %vm3726, %v3988, %v3989
        %v3991 = vrot.slane %v2658, 1
        %v3992 = vrot.slane %v2664, 1
        %v3993 = vsel %vm3726, %v3991, %v3992
        %v3994 = vrot.slane %v3499, 1
        %v3995 = vrot.slane %v3504, 1
        %v3996 = vsel %vm3726, %v3994, %v3995
        %v3997 = vrot.slane %v2672, 1
        %v3998 = vrot.slane %v2676, 1
        %v3999 = vsel %vm3726, %v3997, %v3998
        %v4000 = vrot.slane %v2674, 1
        %v4001 = vrot.slane %v2678, 1
        %v4002 = vsel %vm3726, %v4000, %v4001
        %v4003 = vrot.slane %v3512, 1
        %v4004 = vrot.slane %v3515, 1
        %v4005 = vsel %vm3726, %v4003, %v4004
        %v4006 = vrot.slane %v2686, 1
        %v4007 = vrot.slane %v2692, 1
        %v4008 = vsel %vm3726, %v4006, %v4007
        %v4009 = vrot.slane %v2688, 1
        %v4010 = vrot.slane %v2694, 1
        %v4011 = vsel %vm3726, %v4009, %v4010
        %v4012 = vrot.slane %v3523, 1
        %v4013 = vrot.slane %v3528, 1
        %v4014 = vsel %vm3726, %v4012, %v4013
        %4015 = vrot.lane.b32.xlu0 %v3729, 112
        %v4016 = vpop.permute.xlu0 %4015
        %4017 = vrot.lane.b32.xlu0 %v3732, 112
        %v4018 = vpop.permute.xlu0 %4017
        %4019 = vrot.lane.b32.xlu0 %v3735, 112
        %v4020 = vpop.permute.xlu0 %4019
        %4021 = vrot.lane.b32.xlu0 %v3728, 112
        %v4022 = vpop.permute.xlu0 %4021
        %4023 = vrot.lane.b32.xlu0 %v3731, 112
        %v4024 = vpop.permute.xlu0 %4023
        %4025 = vrot.lane.b32.xlu0 %v3734, 112
        %v4026 = vpop.permute.xlu0 %4025
        %4027 = vrot.lane.b32.xlu0 %v3738, 112
        %v4028 = vpop.permute.xlu0 %4027
        %4029 = vrot.lane.b32.xlu0 %v3741, 112
        %v4030 = vpop.permute.xlu0 %4029
        %4031 = vrot.lane.b32.xlu0 %v3744, 112
        %v4032 = vpop.permute.xlu0 %4031
        %4033 = vrot.lane.b32.xlu0 %v3737, 112
        %v4034 = vpop.permute.xlu0 %4033
        %4035 = vrot.lane.b32.xlu0 %v3740, 112
        %v4036 = vpop.permute.xlu0 %4035
        %4037 = vrot.lane.b32.xlu0 %v3743, 112
        %v4038 = vpop.permute.xlu0 %4037
        %4039 = vrot.lane.b32.xlu0 %v3747, 112
        %v4040 = vpop.permute.xlu0 %4039
        %4041 = vrot.lane.b32.xlu0 %v3750, 112
        %v4042 = vpop.permute.xlu0 %4041
        %4043 = vrot.lane.b32.xlu0 %v3753, 112
        %v4044 = vpop.permute.xlu0 %4043
        %4045 = vrot.lane.b32.xlu0 %v3746, 112
        %v4046 = vpop.permute.xlu0 %4045
        %4047 = vrot.lane.b32.xlu0 %v3749, 112
        %v4048 = vpop.permute.xlu0 %4047
        %4049 = vrot.lane.b32.xlu0 %v3752, 112
        %v4050 = vpop.permute.xlu0 %4049
        %4051 = vrot.lane.b32.xlu0 %v3756, 112
        %v4052 = vpop.permute.xlu0 %4051
        %4053 = vrot.lane.b32.xlu0 %v3759, 112
        %v4054 = vpop.permute.xlu0 %4053
        %4055 = vrot.lane.b32.xlu0 %v3762, 112
        %v4056 = vpop.permute.xlu0 %4055
        %4057 = vrot.lane.b32.xlu0 %v3755, 112
        %v4058 = vpop.permute.xlu0 %4057
        %4059 = vrot.lane.b32.xlu0 %v3758, 112
        %v4060 = vpop.permute.xlu0 %4059
        %4061 = vrot.lane.b32.xlu0 %v3761, 112
        %v4062 = vpop.permute.xlu0 %4061
        %4063 = vrot.lane.b32.xlu0 %v3765, 112
        %v4064 = vpop.permute.xlu0 %4063
        %4065 = vrot.lane.b32.xlu0 %v3768, 112
        %v4066 = vpop.permute.xlu0 %4065
        %4067 = vrot.lane.b32.xlu0 %v3771, 112
        %v4068 = vpop.permute.xlu0 %4067
        %4069 = vrot.lane.b32.xlu0 %v3764, 112
        %v4070 = vpop.permute.xlu0 %4069
        %4071 = vrot.lane.b32.xlu0 %v3767, 112
        %v4072 = vpop.permute.xlu0 %4071
        %4073 = vrot.lane.b32.xlu0 %v3770, 112
        %v4074 = vpop.permute.xlu0 %4073
        %4075 = vrot.lane.b32.xlu0 %v3774, 112
        %v4076 = vpop.permute.xlu0 %4075
        %4077 = vrot.lane.b32.xlu0 %v3777, 112
        %v4078 = vpop.permute.xlu0 %4077
        %4079 = vrot.lane.b32.xlu0 %v3780, 112
        %v4080 = vpop.permute.xlu0 %4079
        %4081 = vrot.lane.b32.xlu0 %v3773, 112
        %v4082 = vpop.permute.xlu0 %4081
        %4083 = vrot.lane.b32.xlu0 %v3776, 112
        %v4084 = vpop.permute.xlu0 %4083
        %4085 = vrot.lane.b32.xlu0 %v3779, 112
        %v4086 = vpop.permute.xlu0 %4085
        %4087 = vrot.lane.b32.xlu0 %v3783, 112
        %v4088 = vpop.permute.xlu0 %4087
        %4089 = vrot.lane.b32.xlu0 %v3786, 112
        %v4090 = vpop.permute.xlu0 %4089
        %4091 = vrot.lane.b32.xlu0 %v3789, 112
        %v4092 = vpop.permute.xlu0 %4091
        %4093 = vrot.lane.b32.xlu0 %v3782, 112
        %v4094 = vpop.permute.xlu0 %4093
        %4095 = vrot.lane.b32.xlu0 %v3785, 112
        %v4096 = vpop.permute.xlu0 %4095
        %4097 = vrot.lane.b32.xlu0 %v3788, 112
        %v4098 = vpop.permute.xlu0 %4097
        %4099 = vrot.lane.b32.xlu0 %v3792, 112
        %v4100 = vpop.permute.xlu0 %4099
        %4101 = vrot.lane.b32.xlu0 %v3795, 112
        %v4102 = vpop.permute.xlu0 %4101
        %4103 = vrot.lane.b32.xlu0 %v3798, 112
        %v4104 = vpop.permute.xlu0 %4103
        %4105 = vrot.lane.b32.xlu0 %v3791, 112
        %v4106 = vpop.permute.xlu0 %4105
        %4107 = vrot.lane.b32.xlu0 %v3794, 112
        %v4108 = vpop.permute.xlu0 %4107
        %4109 = vrot.lane.b32.xlu0 %v3797, 112
        %v4110 = vpop.permute.xlu0 %4109
        %4111 = vrot.lane.b32.xlu0 %v3801, 112
        %v4112 = vpop.permute.xlu0 %4111
        %4113 = vrot.lane.b32.xlu0 %v3804, 112
        %v4114 = vpop.permute.xlu0 %4113
        %4115 = vrot.lane.b32.xlu0 %v3807, 112
        %v4116 = vpop.permute.xlu0 %4115
        %4117 = vrot.lane.b32.xlu0 %v3800, 112
        %v4118 = vpop.permute.xlu0 %4117
        %4119 = vrot.lane.b32.xlu0 %v3803, 112
        %v4120 = vpop.permute.xlu0 %4119
        %4121 = vrot.lane.b32.xlu0 %v3806, 112
        %v4122 = vpop.permute.xlu0 %4121
        %4123 = vrot.lane.b32.xlu0 %v3810, 112
        %v4124 = vpop.permute.xlu0 %4123
        %4125 = vrot.lane.b32.xlu0 %v3813, 112
        %v4126 = vpop.permute.xlu0 %4125
        %4127 = vrot.lane.b32.xlu0 %v3816, 112
        %v4128 = vpop.permute.xlu0 %4127
        %4129 = vrot.lane.b32.xlu0 %v3809, 112
        %v4130 = vpop.permute.xlu0 %4129
        %4131 = vrot.lane.b32.xlu0 %v3812, 112
        %v4132 = vpop.permute.xlu0 %4131
        %4133 = vrot.lane.b32.xlu0 %v3815, 112
        %v4134 = vpop.permute.xlu0 %4133
        %4135 = vrot.lane.b32.xlu0 %v3819, 112
        %v4136 = vpop.permute.xlu0 %4135
        %4137 = vrot.lane.b32.xlu0 %v3822, 112
        %v4138 = vpop.permute.xlu0 %4137
        %4139 = vrot.lane.b32.xlu0 %v3825, 112
        %v4140 = vpop.permute.xlu0 %4139
        %4141 = vrot.lane.b32.xlu0 %v3818, 112
        %v4142 = vpop.permute.xlu0 %4141
        %4143 = vrot.lane.b32.xlu0 %v3821, 112
        %v4144 = vpop.permute.xlu0 %4143
        %4145 = vrot.lane.b32.xlu0 %v3824, 112
        %v4146 = vpop.permute.xlu0 %4145
        %4147 = vrot.lane.b32.xlu0 %v3828, 112
        %v4148 = vpop.permute.xlu0 %4147
        %4149 = vrot.lane.b32.xlu0 %v3831, 112
        %v4150 = vpop.permute.xlu0 %4149
        %4151 = vrot.lane.b32.xlu0 %v3834, 112
        %v4152 = vpop.permute.xlu0 %4151
        %4153 = vrot.lane.b32.xlu0 %v3827, 112
        %v4154 = vpop.permute.xlu0 %4153
        %4155 = vrot.lane.b32.xlu0 %v3830, 112
        %v4156 = vpop.permute.xlu0 %4155
        %4157 = vrot.lane.b32.xlu0 %v3833, 112
        %v4158 = vpop.permute.xlu0 %4157
        %4159 = vrot.lane.b32.xlu0 %v3837, 112
        %v4160 = vpop.permute.xlu0 %4159
        %4161 = vrot.lane.b32.xlu0 %v3840, 112
        %v4162 = vpop.permute.xlu0 %4161
        %4163 = vrot.lane.b32.xlu0 %v3843, 112
        %v4164 = vpop.permute.xlu0 %4163
        %4165 = vrot.lane.b32.xlu0 %v3836, 112
        %v4166 = vpop.permute.xlu0 %4165
        %4167 = vrot.lane.b32.xlu0 %v3839, 112
        %v4168 = vpop.permute.xlu0 %4167
        %4169 = vrot.lane.b32.xlu0 %v3842, 112
        %v4170 = vpop.permute.xlu0 %4169
        %4171 = vrot.lane.b32.xlu0 %v3846, 112
        %v4172 = vpop.permute.xlu0 %4171
        %4173 = vrot.lane.b32.xlu0 %v3849, 112
        %v4174 = vpop.permute.xlu0 %4173
        %4175 = vrot.lane.b32.xlu0 %v3852, 112
        %v4176 = vpop.permute.xlu0 %4175
        %4177 = vrot.lane.b32.xlu0 %v3845, 112
        %v4178 = vpop.permute.xlu0 %4177
        %4179 = vrot.lane.b32.xlu0 %v3848, 112
        %v4180 = vpop.permute.xlu0 %4179
        %4181 = vrot.lane.b32.xlu0 %v3851, 112
        %v4182 = vpop.permute.xlu0 %4181
        %4183 = vrot.lane.b32.xlu0 %v3855, 112
        %v4184 = vpop.permute.xlu0 %4183
        %4185 = vrot.lane.b32.xlu0 %v3858, 112
        %v4186 = vpop.permute.xlu0 %4185
        %4187 = vrot.lane.b32.xlu0 %v3861, 112
        %v4188 = vpop.permute.xlu0 %4187
        %4189 = vrot.lane.b32.xlu0 %v3854, 112
        %v4190 = vpop.permute.xlu0 %4189
        %4191 = vrot.lane.b32.xlu0 %v3857, 112
        %v4192 = vpop.permute.xlu0 %4191
        %4193 = vrot.lane.b32.xlu0 %v3860, 112
        %v4194 = vpop.permute.xlu0 %4193
        %4195 = vrot.lane.b32.xlu0 %v3864, 112
        %v4196 = vpop.permute.xlu0 %4195
        %4197 = vrot.lane.b32.xlu0 %v3867, 112
        %v4198 = vpop.permute.xlu0 %4197
        %4199 = vrot.lane.b32.xlu0 %v3870, 112
        %v4200 = vpop.permute.xlu0 %4199
        %4201 = vrot.lane.b32.xlu0 %v3863, 112
        %v4202 = vpop.permute.xlu0 %4201
        %4203 = vrot.lane.b32.xlu0 %v3866, 112
        %v4204 = vpop.permute.xlu0 %4203
        %4205 = vrot.lane.b32.xlu0 %v3869, 112
        %v4206 = vpop.permute.xlu0 %4205
        %4207 = vrot.lane.b32.xlu0 %v3873, 112
        %v4208 = vpop.permute.xlu0 %4207
        %4209 = vrot.lane.b32.xlu0 %v3876, 112
        %v4210 = vpop.permute.xlu0 %4209
        %4211 = vrot.lane.b32.xlu0 %v3879, 112
        %v4212 = vpop.permute.xlu0 %4211
        %4213 = vrot.lane.b32.xlu0 %v3872, 112
        %v4214 = vpop.permute.xlu0 %4213
        %4215 = vrot.lane.b32.xlu0 %v3875, 112
        %v4216 = vpop.permute.xlu0 %4215
        %4217 = vrot.lane.b32.xlu0 %v3878, 112
        %v4218 = vpop.permute.xlu0 %4217
        %4219 = vrot.lane.b32.xlu0 %v3882, 112
        %v4220 = vpop.permute.xlu0 %4219
        %4221 = vrot.lane.b32.xlu0 %v3885, 112
        %v4222 = vpop.permute.xlu0 %4221
        %4223 = vrot.lane.b32.xlu0 %v3888, 112
        %v4224 = vpop.permute.xlu0 %4223
        %4225 = vrot.lane.b32.xlu0 %v3881, 112
        %v4226 = vpop.permute.xlu0 %4225
        %4227 = vrot.lane.b32.xlu0 %v3884, 112
        %v4228 = vpop.permute.xlu0 %4227
        %4229 = vrot.lane.b32.xlu0 %v3887, 112
        %v4230 = vpop.permute.xlu0 %4229
        %4231 = vrot.lane.b32.xlu0 %v3891, 112
        %v4232 = vpop.permute.xlu0 %4231
        %4233 = vrot.lane.b32.xlu0 %v3894, 112
        %v4234 = vpop.permute.xlu0 %4233
        %4235 = vrot.lane.b32.xlu0 %v3897, 112
        %v4236 = vpop.permute.xlu0 %4235
        %4237 = vrot.lane.b32.xlu0 %v3890, 112
        %v4238 = vpop.permute.xlu0 %4237
        %4239 = vrot.lane.b32.xlu0 %v3893, 112
        %v4240 = vpop.permute.xlu0 %4239
        %4241 = vrot.lane.b32.xlu0 %v3896, 112
        %v4242 = vpop.permute.xlu0 %4241
        %4243 = vrot.lane.b32.xlu0 %v3900, 112
        %v4244 = vpop.permute.xlu0 %4243
        %4245 = vrot.lane.b32.xlu0 %v3903, 112
        %v4246 = vpop.permute.xlu0 %4245
        %4247 = vrot.lane.b32.xlu0 %v3906, 112
        %v4248 = vpop.permute.xlu0 %4247
        %4249 = vrot.lane.b32.xlu0 %v3899, 112
        %v4250 = vpop.permute.xlu0 %4249
        %4251 = vrot.lane.b32.xlu0 %v3902, 112
        %v4252 = vpop.permute.xlu0 %4251
        %4253 = vrot.lane.b32.xlu0 %v3905, 112
        %v4254 = vpop.permute.xlu0 %4253
        %4255 = vrot.lane.b32.xlu0 %v3909, 112
        %v4256 = vpop.permute.xlu0 %4255
        %4257 = vrot.lane.b32.xlu0 %v3912, 112
        %v4258 = vpop.permute.xlu0 %4257
        %4259 = vrot.lane.b32.xlu0 %v3915, 112
        %v4260 = vpop.permute.xlu0 %4259
        %4261 = vrot.lane.b32.xlu0 %v3908, 112
        %v4262 = vpop.permute.xlu0 %4261
        %4263 = vrot.lane.b32.xlu0 %v3911, 112
        %v4264 = vpop.permute.xlu0 %4263
        %4265 = vrot.lane.b32.xlu0 %v3914, 112
        %v4266 = vpop.permute.xlu0 %4265
        %4267 = vrot.lane.b32.xlu0 %v3918, 112
        %v4268 = vpop.permute.xlu0 %4267
        %4269 = vrot.lane.b32.xlu0 %v3921, 112
        %v4270 = vpop.permute.xlu0 %4269
        %4271 = vrot.lane.b32.xlu0 %v3924, 112
        %v4272 = vpop.permute.xlu0 %4271
        %4273 = vrot.lane.b32.xlu0 %v3917, 112
        %v4274 = vpop.permute.xlu0 %4273
        %4275 = vrot.lane.b32.xlu0 %v3920, 112
        %v4276 = vpop.permute.xlu0 %4275
        %4277 = vrot.lane.b32.xlu0 %v3923, 112
        %v4278 = vpop.permute.xlu0 %4277
        %4279 = vrot.lane.b32.xlu0 %v3927, 112
        %v4280 = vpop.permute.xlu0 %4279
        %4281 = vrot.lane.b32.xlu0 %v3930, 112
        %v4282 = vpop.permute.xlu0 %4281
        %4283 = vrot.lane.b32.xlu0 %v3933, 112
        %v4284 = vpop.permute.xlu0 %4283
        %4285 = vrot.lane.b32.xlu0 %v3926, 112
        %v4286 = vpop.permute.xlu0 %4285
        %4287 = vrot.lane.b32.xlu0 %v3929, 112
        %v4288 = vpop.permute.xlu0 %4287
        %4289 = vrot.lane.b32.xlu0 %v3932, 112
        %v4290 = vpop.permute.xlu0 %4289
        %4291 = vrot.lane.b32.xlu0 %v3936, 112
        %v4292 = vpop.permute.xlu0 %4291
        %4293 = vrot.lane.b32.xlu0 %v3939, 112
        %v4294 = vpop.permute.xlu0 %4293
        %4295 = vrot.lane.b32.xlu0 %v3942, 112
        %v4296 = vpop.permute.xlu0 %4295
        %4297 = vrot.lane.b32.xlu0 %v3935, 112
        %v4298 = vpop.permute.xlu0 %4297
        %4299 = vrot.lane.b32.xlu0 %v3938, 112
        %v4300 = vpop.permute.xlu0 %4299
        %4301 = vrot.lane.b32.xlu0 %v3941, 112
        %v4302 = vpop.permute.xlu0 %4301
        %4303 = vrot.lane.b32.xlu0 %v3945, 112
        %v4304 = vpop.permute.xlu0 %4303
        %4305 = vrot.lane.b32.xlu0 %v3948, 112
        %v4306 = vpop.permute.xlu0 %4305
        %4307 = vrot.lane.b32.xlu0 %v3951, 112
        %v4308 = vpop.permute.xlu0 %4307
        %4309 = vrot.lane.b32.xlu0 %v3944, 112
        %v4310 = vpop.permute.xlu0 %4309
        %4311 = vrot.lane.b32.xlu0 %v3947, 112
        %v4312 = vpop.permute.xlu0 %4311
        %4313 = vrot.lane.b32.xlu0 %v3950, 112
        %v4314 = vpop.permute.xlu0 %4313
        %4315 = vrot.lane.b32.xlu0 %v3954, 112
        %v4316 = vpop.permute.xlu0 %4315
        %4317 = vrot.lane.b32.xlu0 %v3957, 112
        %v4318 = vpop.permute.xlu0 %4317
        %4319 = vrot.lane.b32.xlu0 %v3960, 112
        %v4320 = vpop.permute.xlu0 %4319
        %4321 = vrot.lane.b32.xlu0 %v3953, 112
        %v4322 = vpop.permute.xlu0 %4321
        %4323 = vrot.lane.b32.xlu0 %v3956, 112
        %v4324 = vpop.permute.xlu0 %4323
        %4325 = vrot.lane.b32.xlu0 %v3959, 112
        %v4326 = vpop.permute.xlu0 %4325
        %4327 = vrot.lane.b32.xlu0 %v3963, 112
        %v4328 = vpop.permute.xlu0 %4327
        %4329 = vrot.lane.b32.xlu0 %v3966, 112
        %v4330 = vpop.permute.xlu0 %4329
        %4331 = vrot.lane.b32.xlu0 %v3969, 112
        %v4332 = vpop.permute.xlu0 %4331
        %4333 = vrot.lane.b32.xlu0 %v3962, 112
        %v4334 = vpop.permute.xlu0 %4333
        %4335 = vrot.lane.b32.xlu0 %v3965, 112
        %v4336 = vpop.permute.xlu0 %4335
        %4337 = vrot.lane.b32.xlu0 %v3968, 112
        %v4338 = vpop.permute.xlu0 %4337
        %4339 = vrot.lane.b32.xlu0 %v3972, 112
        %v4340 = vpop.permute.xlu0 %4339
        %4341 = vrot.lane.b32.xlu0 %v3975, 112
        %v4342 = vpop.permute.xlu0 %4341
        %4343 = vrot.lane.b32.xlu0 %v3978, 112
        %v4344 = vpop.permute.xlu0 %4343
        %4345 = vrot.lane.b32.xlu0 %v3971, 112
        %v4346 = vpop.permute.xlu0 %4345
        %4347 = vrot.lane.b32.xlu0 %v3974, 112
        %v4348 = vpop.permute.xlu0 %4347
        %4349 = vrot.lane.b32.xlu0 %v3977, 112
        %v4350 = vpop.permute.xlu0 %4349
        %4351 = vrot.lane.b32.xlu0 %v3981, 112
        %v4352 = vpop.permute.xlu0 %4351
        %4353 = vrot.lane.b32.xlu0 %v3984, 112
        %v4354 = vpop.permute.xlu0 %4353
        %4355 = vrot.lane.b32.xlu0 %v3987, 112
        %v4356 = vpop.permute.xlu0 %4355
        %4357 = vrot.lane.b32.xlu0 %v3980, 112
        %v4358 = vpop.permute.xlu0 %4357
        %4359 = vrot.lane.b32.xlu0 %v3983, 112
        %v4360 = vpop.permute.xlu0 %4359
        %4361 = vrot.lane.b32.xlu0 %v3986, 112
        %v4362 = vpop.permute.xlu0 %4361
        %4363 = vrot.lane.b32.xlu0 %v3990, 112
        %v4364 = vpop.permute.xlu0 %4363
        %4365 = vrot.lane.b32.xlu0 %v3993, 112
        %v4366 = vpop.permute.xlu0 %4365
        %4367 = vrot.lane.b32.xlu0 %v3996, 112
        %v4368 = vpop.permute.xlu0 %4367
        %4369 = vrot.lane.b32.xlu0 %v3989, 112
        %v4370 = vpop.permute.xlu0 %4369
        %4371 = vrot.lane.b32.xlu0 %v3992, 112
        %v4372 = vpop.permute.xlu0 %4371
        %4373 = vrot.lane.b32.xlu0 %v3995, 112
        %v4374 = vpop.permute.xlu0 %4373
        %4375 = vrot.lane.b32.xlu0 %v3999, 112
        %v4376 = vpop.permute.xlu0 %4375
        %4377 = vrot.lane.b32.xlu0 %v4002, 112
        %v4378 = vpop.permute.xlu0 %4377
        %4379 = vrot.lane.b32.xlu0 %v4005, 112
        %v4380 = vpop.permute.xlu0 %4379
        %4381 = vrot.lane.b32.xlu0 %v3998, 112
        %v4382 = vpop.permute.xlu0 %4381
        %4383 = vrot.lane.b32.xlu0 %v4001, 112
        %v4384 = vpop.permute.xlu0 %4383
        %4385 = vrot.lane.b32.xlu0 %v4004, 112
        %v4386 = vpop.permute.xlu0 %4385
        %4387 = vrot.lane.b32.xlu0 %v4008, 112
        %v4388 = vpop.permute.xlu0 %4387
        %4389 = vrot.lane.b32.xlu0 %v4011, 112
        %v4390 = vpop.permute.xlu0 %4389
        %4391 = vrot.lane.b32.xlu0 %v4014, 112
        %v4392 = vpop.permute.xlu0 %4391
        %4393 = vrot.lane.b32.xlu0 %v4007, 112
        %v4394 = vpop.permute.xlu0 %4393
        %4395 = vrot.lane.b32.xlu0 %v4010, 112
        %v4396 = vpop.permute.xlu0 %4395
        %4397 = vrot.lane.b32.xlu0 %v4013, 112
        %v4398 = vpop.permute.xlu0 %4397
        %vm4399 = vcmask 916480
        %v4400 = vsel %vm4399, %v4016, %v4018
        %v4401 = vsel %vm4399, %v4018, %v4020
        %v4402 = vsel %vm4399, %v4022, %v4024
        %v4403 = vsel %vm4399, %v4024, %v4026
        %v4404 = vsel %vm4399, %v4028, %v4030
        %v4405 = vsel %vm4399, %v4030, %v4032
        %v4406 = vsel %vm4399, %v4034, %v4036
        %v4407 = vsel %vm4399, %v4036, %v4038
        %v4408 = vsel %vm4399, %v4040, %v4042
        %v4409 = vsel %vm4399, %v4042, %v4044
        %v4410 = vsel %vm4399, %v4046, %v4048
        %v4411 = vsel %vm4399, %v4048, %v4050
        %v4412 = vsel %vm4399, %v4052, %v4054
        %v4413 = vsel %vm4399, %v4054, %v4056
        %v4414 = vsel %vm4399, %v4058, %v4060
        %v4415 = vsel %vm4399, %v4060, %v4062
        %v4416 = vsel %vm4399, %v4064, %v4066
        %v4417 = vsel %vm4399, %v4066, %v4068
        %v4418 = vsel %vm4399, %v4070, %v4072
        %v4419 = vsel %vm4399, %v4072, %v4074
        %v4420 = vsel %vm4399, %v4076, %v4078
        %v4421 = vsel %vm4399, %v4078, %v4080
        %v4422 = vsel %vm4399, %v4082, %v4084
        %v4423 = vsel %vm4399, %v4084, %v4086
        %v4424 = vsel %vm4399, %v4088, %v4090
        %v4425 = vsel %vm4399, %v4090, %v4092
        %v4426 = vsel %vm4399, %v4094, %v4096
        %v4427 = vsel %vm4399, %v4096, %v4098
        %v4428 = vsel %vm4399, %v4100, %v4102
        %v4429 = vsel %vm4399, %v4102, %v4104
        %v4430 = vsel %vm4399, %v4106, %v4108
        %v4431 = vsel %vm4399, %v4108, %v4110
        %v4432 = vsel %vm4399, %v4112, %v4114
        %v4433 = vsel %vm4399, %v4114, %v4116
        %v4434 = vsel %vm4399, %v4118, %v4120
        %v4435 = vsel %vm4399, %v4120, %v4122
        %v4436 = vsel %vm4399, %v4124, %v4126
        %v4437 = vsel %vm4399, %v4126, %v4128
        %v4438 = vsel %vm4399, %v4130, %v4132
        %v4439 = vsel %vm4399, %v4132, %v4134
        %v4440 = vsel %vm4399, %v4136, %v4138
        %v4441 = vsel %vm4399, %v4138, %v4140
        %v4442 = vsel %vm4399, %v4142, %v4144
        %v4443 = vsel %vm4399, %v4144, %v4146
        %v4444 = vsel %vm4399, %v4148, %v4150
        %v4445 = vsel %vm4399, %v4150, %v4152
        %v4446 = vsel %vm4399, %v4154, %v4156
        %v4447 = vsel %vm4399, %v4156, %v4158
        %v4448 = vsel %vm4399, %v4160, %v4162
        %v4449 = vsel %vm4399, %v4162, %v4164
        %v4450 = vsel %vm4399, %v4166, %v4168
        %v4451 = vsel %vm4399, %v4168, %v4170
        %v4452 = vsel %vm4399, %v4172, %v4174
        %v4453 = vsel %vm4399, %v4174, %v4176
        %v4454 = vsel %vm4399, %v4178, %v4180
        %v4455 = vsel %vm4399, %v4180, %v4182
        %v4456 = vsel %vm4399, %v4184, %v4186
        %v4457 = vsel %vm4399, %v4186, %v4188
        %v4458 = vsel %vm4399, %v4190, %v4192
        %v4459 = vsel %vm4399, %v4192, %v4194
        %v4460 = vsel %vm4399, %v4196, %v4198
        %v4461 = vsel %vm4399, %v4198, %v4200
        %v4462 = vsel %vm4399, %v4202, %v4204
        %v4463 = vsel %vm4399, %v4204, %v4206
        %v4464 = vsel %vm4399, %v4208, %v4210
        %v4465 = vsel %vm4399, %v4210, %v4212
        %v4466 = vsel %vm4399, %v4214, %v4216
        %v4467 = vsel %vm4399, %v4216, %v4218
        %v4468 = vsel %vm4399, %v4220, %v4222
        %v4469 = vsel %vm4399, %v4222, %v4224
        %v4470 = vsel %vm4399, %v4226, %v4228
        %v4471 = vsel %vm4399, %v4228, %v4230
        %v4472 = vsel %vm4399, %v4232, %v4234
        %v4473 = vsel %vm4399, %v4234, %v4236
        %v4474 = vsel %vm4399, %v4238, %v4240
        %v4475 = vsel %vm4399, %v4240, %v4242
        %v4476 = vsel %vm4399, %v4244, %v4246
        %v4477 = vsel %vm4399, %v4246, %v4248
        %v4478 = vsel %vm4399, %v4250, %v4252
        %v4479 = vsel %vm4399, %v4252, %v4254
        %v4480 = vsel %vm4399, %v4256, %v4258
        %v4481 = vsel %vm4399, %v4258, %v4260
        %v4482 = vsel %vm4399, %v4262, %v4264
        %v4483 = vsel %vm4399, %v4264, %v4266
        %v4484 = vsel %vm4399, %v4268, %v4270
        %v4485 = vsel %vm4399, %v4270, %v4272
        %v4486 = vsel %vm4399, %v4274, %v4276
        %v4487 = vsel %vm4399, %v4276, %v4278
        %v4488 = vsel %vm4399, %v4280, %v4282
        %v4489 = vsel %vm4399, %v4282, %v4284
        %v4490 = vsel %vm4399, %v4286, %v4288
        %v4491 = vsel %vm4399, %v4288, %v4290
        %v4492 = vsel %vm4399, %v4292, %v4294
        %v4493 = vsel %vm4399, %v4294, %v4296
        %v4494 = vsel %vm4399, %v4298, %v4300
        %v4495 = vsel %vm4399, %v4300, %v4302
        %v4496 = vsel %vm4399, %v4304, %v4306
        %v4497 = vsel %vm4399, %v4306, %v4308
        %v4498 = vsel %vm4399, %v4310, %v4312
        %v4499 = vsel %vm4399, %v4312, %v4314
        %v4500 = vsel %vm4399, %v4316, %v4318
        %v4501 = vsel %vm4399, %v4318, %v4320
        %v4502 = vsel %vm4399, %v4322, %v4324
        %v4503 = vsel %vm4399, %v4324, %v4326
        %v4504 = vsel %vm4399, %v4328, %v4330
        %v4505 = vsel %vm4399, %v4330, %v4332
        %v4506 = vsel %vm4399, %v4334, %v4336
        %v4507 = vsel %vm4399, %v4336, %v4338
        %v4508 = vsel %vm4399, %v4340, %v4342
        %v4509 = vsel %vm4399, %v4342, %v4344
        %v4510 = vsel %vm4399, %v4346, %v4348
        %v4511 = vsel %vm4399, %v4348, %v4350
        %v4512 = vsel %vm4399, %v4352, %v4354
        %v4513 = vsel %vm4399, %v4354, %v4356
        %v4514 = vsel %vm4399, %v4358, %v4360
        %v4515 = vsel %vm4399, %v4360, %v4362
        %v4516 = vsel %vm4399, %v4364, %v4366
        %v4517 = vsel %vm4399, %v4366, %v4368
        %v4518 = vsel %vm4399, %v4370, %v4372
        %v4519 = vsel %vm4399, %v4372, %v4374
        %v4520 = vsel %vm4399, %v4376, %v4378
        %v4521 = vsel %vm4399, %v4378, %v4380
        %v4522 = vsel %vm4399, %v4382, %v4384
        %v4523 = vsel %vm4399, %v4384, %v4386
        %v4524 = vsel %vm4399, %v4388, %v4390
        %v4525 = vsel %vm4399, %v4390, %v4392
        %v4526 = vsel %vm4399, %v4394, %v4396
        %v4527 = vsel %vm4399, %v4396, %v4398
        %v4656 = vadd.f32 %v2222, %v4400
        %v4657 = vadd.f32 %v2224, %v4401
        %v4658 = vadd.f32 %v2226, %v4402
        %v4659 = vadd.f32 %v2228, %v4403
        %v4660 = vadd.f32 %v2236, %v4404
        %v4661 = vadd.f32 %v2238, %v4405
        %v4662 = vadd.f32 %v2242, %v4406
        %v4663 = vadd.f32 %v2244, %v4407
        %v4664 = vadd.f32 %v2252, %v4408
        %v4665 = vadd.f32 %v2254, %v4409
        %v4666 = vadd.f32 %v2256, %v4410
        %v4667 = vadd.f32 %v2258, %v4411
        %v4668 = vadd.f32 %v2266, %v4412
        %v4669 = vadd.f32 %v2268, %v4413
        %v4670 = vadd.f32 %v2272, %v4414
        %v4671 = vadd.f32 %v2274, %v4415
        %v4672 = vadd.f32 %v2282, %v4416
        %v4673 = vadd.f32 %v2284, %v4417
        %v4674 = vadd.f32 %v2286, %v4418
        %v4675 = vadd.f32 %v2288, %v4419
        %v4676 = vadd.f32 %v2296, %v4420
        %v4677 = vadd.f32 %v2298, %v4421
        %v4678 = vadd.f32 %v2302, %v4422
        %v4679 = vadd.f32 %v2304, %v4423
        %v4680 = vadd.f32 %v2312, %v4424
        %v4681 = vadd.f32 %v2314, %v4425
        %v4682 = vadd.f32 %v2316, %v4426
        %v4683 = vadd.f32 %v2318, %v4427
        %v4684 = vadd.f32 %v2326, %v4428
        %v4685 = vadd.f32 %v2328, %v4429
        %v4686 = vadd.f32 %v2332, %v4430
        %v4687 = vadd.f32 %v2334, %v4431
        %v4688 = vadd.f32 %v2342, %v4432
        %v4689 = vadd.f32 %v2344, %v4433
        %v4690 = vadd.f32 %v2346, %v4434
        %v4691 = vadd.f32 %v2348, %v4435
        %v4692 = vadd.f32 %v2356, %v4436
        %v4693 = vadd.f32 %v2358, %v4437
        %v4694 = vadd.f32 %v2362, %v4438
        %v4695 = vadd.f32 %v2364, %v4439
        %v4696 = vadd.f32 %v2372, %v4440
        %v4697 = vadd.f32 %v2374, %v4441
        %v4698 = vadd.f32 %v2376, %v4442
        %v4699 = vadd.f32 %v2378, %v4443
        %v4700 = vadd.f32 %v2386, %v4444
        %v4701 = vadd.f32 %v2388, %v4445
        %v4702 = vadd.f32 %v2392, %v4446
        %v4703 = vadd.f32 %v2394, %v4447
        %v4704 = vadd.f32 %v2402, %v4448
        %v4705 = vadd.f32 %v2404, %v4449
        %v4706 = vadd.f32 %v2406, %v4450
        %v4707 = vadd.f32 %v2408, %v4451
        %v4708 = vadd.f32 %v2416, %v4452
        %v4709 = vadd.f32 %v2418, %v4453
        %v4710 = vadd.f32 %v2422, %v4454
        %v4711 = vadd.f32 %v2424, %v4455
        %v4712 = vadd.f32 %v2432, %v4456
        %v4713 = vadd.f32 %v2434, %v4457
        %v4714 = vadd.f32 %v2436, %v4458
        %v4715 = vadd.f32 %v2438, %v4459
        %v4716 = vadd.f32 %v2446, %v4460
        %v4717 = vadd.f32 %v2448, %v4461
        %v4718 = vadd.f32 %v2452, %v4462
        %v4719 = vadd.f32 %v2454, %v4463
        %v4720 = vadd.f32 %v2462, %v4464
        %v4721 = vadd.f32 %v2464, %v4465
        %v4722 = vadd.f32 %v2466, %v4466
        %v4723 = vadd.f32 %v2468, %v4467
        %v4724 = vadd.f32 %v2476, %v4468
        %v4725 = vadd.f32 %v2478, %v4469
        %v4726 = vadd.f32 %v2482, %v4470
        %v4727 = vadd.f32 %v2484, %v4471
        %v4728 = vadd.f32 %v2492, %v4472
        %v4729 = vadd.f32 %v2494, %v4473
        %v4730 = vadd.f32 %v2496, %v4474
        %v4731 = vadd.f32 %v2498, %v4475
        %v4732 = vadd.f32 %v2506, %v4476
        %v4733 = vadd.f32 %v2508, %v4477
        %v4734 = vadd.f32 %v2512, %v4478
        %v4735 = vadd.f32 %v2514, %v4479
        %v4736 = vadd.f32 %v2522, %v4480
        %v4737 = vadd.f32 %v2524, %v4481
        %v4738 = vadd.f32 %v2526, %v4482
        %v4739 = vadd.f32 %v2528, %v4483
        %v4740 = vadd.f32 %v2536, %v4484
        %v4741 = vadd.f32 %v2538, %v4485
        %v4742 = vadd.f32 %v2542, %v4486
        %v4743 = vadd.f32 %v2544, %v4487
        %v4744 = vadd.f32 %v2552, %v4488
        %v4745 = vadd.f32 %v2554, %v4489
        %v4746 = vadd.f32 %v2556, %v4490
        %v4747 = vadd.f32 %v2558, %v4491
        %v4748 = vadd.f32 %v2566, %v4492
        %v4749 = vadd.f32 %v2568, %v4493
        %v4750 = vadd.f32 %v2572, %v4494
        %v4751 = vadd.f32 %v2574, %v4495
        %v4752 = vadd.f32 %v2582, %v4496
        %v4753 = vadd.f32 %v2584, %v4497
        %v4754 = vadd.f32 %v2586, %v4498
        %v4755 = vadd.f32 %v2588, %v4499
        %v4756 = vadd.f32 %v2596, %v4500
        %v4757 = vadd.f32 %v2598, %v4501
        %v4758 = vadd.f32 %v2602, %v4502
        %v4759 = vadd.f32 %v2604, %v4503
        %v4760 = vadd.f32 %v2612, %v4504
        %v4761 = vadd.f32 %v2614, %v4505
        %v4762 = vadd.f32 %v2616, %v4506
        %v4763 = vadd.f32 %v2618, %v4507
        %v4764 = vadd.f32 %v2626, %v4508
        %v4765 = vadd.f32 %v2628, %v4509
        %v4766 = vadd.f32 %v2632, %v4510
        %v4767 = vadd.f32 %v2634, %v4511
        %v4768 = vadd.f32 %v2642, %v4512
        %v4769 = vadd.f32 %v2644, %v4513
        %v4770 = vadd.f32 %v2646, %v4514
        %v4771 = vadd.f32 %v2648, %v4515
        %v4772 = vadd.f32 %v2656, %v4516
        %v4773 = vadd.f32 %v2658, %v4517
        %v4774 = vadd.f32 %v2662, %v4518
        %v4775 = vadd.f32 %v2664, %v4519
        %v4776 = vadd.f32 %v2672, %v4520
        %v4777 = vadd.f32 %v2674, %v4521
        %v4778 = vadd.f32 %v2676, %v4522
        %v4779 = vadd.f32 %v2678, %v4523
        %v4780 = vadd.f32 %v2686, %v4524
        %v4781 = vadd.f32 %v2688, %v4525
        %v4782 = vadd.f32 %v2692, %v4526
        %v4783 = vadd.f32 %v2694, %v4527
        %v4784 = vrot.slane %v2222, 2
        %v4785 = vrot.slane %v2226, 2
        %v4786 = vsel %vm1664, %v4784, %v4785
        %v4787 = vrot.slane %v2224, 2
        %v4788 = vrot.slane %v2228, 2
        %v4789 = vsel %vm1664, %v4787, %v4788
        %v4790 = vrot.slane %v3152, 2
        %v4791 = vrot.slane %v3155, 2
        %v4792 = vsel %vm1664, %v4790, %v4791
        %v4793 = vrot.slane %v2236, 2
        %v4794 = vrot.slane %v2242, 2
        %v4795 = vsel %vm1664, %v4793, %v4794
        %v4796 = vrot.slane %v2238, 2
        %v4797 = vrot.slane %v2244, 2
        %v4798 = vsel %vm1664, %v4796, %v4797
        %v4799 = vrot.slane %v3163, 2
        %v4800 = vrot.slane %v3168, 2
        %v4801 = vsel %vm1664, %v4799, %v4800
        %v4802 = vrot.slane %v2252, 2
        %v4803 = vrot.slane %v2256, 2
        %v4804 = vsel %vm1664, %v4802, %v4803
        %v4805 = vrot.slane %v2254, 2
        %v4806 = vrot.slane %v2258, 2
        %v4807 = vsel %vm1664, %v4805, %v4806
        %v4808 = vrot.slane %v3176, 2
        %v4809 = vrot.slane %v3179, 2
        %v4810 = vsel %vm1664, %v4808, %v4809
        %v4811 = vrot.slane %v2266, 2
        %v4812 = vrot.slane %v2272, 2
        %v4813 = vsel %vm1664, %v4811, %v4812
        %v4814 = vrot.slane %v2268, 2
        %v4815 = vrot.slane %v2274, 2
        %v4816 = vsel %vm1664, %v4814, %v4815
        %v4817 = vrot.slane %v3187, 2
        %v4818 = vrot.slane %v3192, 2
        %v4819 = vsel %vm1664, %v4817, %v4818
        %v4820 = vrot.slane %v2282, 2
        %v4821 = vrot.slane %v2286, 2
        %v4822 = vsel %vm1664, %v4820, %v4821
        %v4823 = vrot.slane %v2284, 2
        %v4824 = vrot.slane %v2288, 2
        %v4825 = vsel %vm1664, %v4823, %v4824
        %v4826 = vrot.slane %v3200, 2
        %v4827 = vrot.slane %v3203, 2
        %v4828 = vsel %vm1664, %v4826, %v4827
        %v4829 = vrot.slane %v2296, 2
        %v4830 = vrot.slane %v2302, 2
        %v4831 = vsel %vm1664, %v4829, %v4830
        %v4832 = vrot.slane %v2298, 2
        %v4833 = vrot.slane %v2304, 2
        %v4834 = vsel %vm1664, %v4832, %v4833
        %v4835 = vrot.slane %v3211, 2
        %v4836 = vrot.slane %v3216, 2
        %v4837 = vsel %vm1664, %v4835, %v4836
        %v4838 = vrot.slane %v2312, 2
        %v4839 = vrot.slane %v2316, 2
        %v4840 = vsel %vm1664, %v4838, %v4839
        %v4841 = vrot.slane %v2314, 2
        %v4842 = vrot.slane %v2318, 2
        %v4843 = vsel %vm1664, %v4841, %v4842
        %v4844 = vrot.slane %v3224, 2
        %v4845 = vrot.slane %v3227, 2
        %v4846 = vsel %vm1664, %v4844, %v4845
        %v4847 = vrot.slane %v2326, 2
        %v4848 = vrot.slane %v2332, 2
        %v4849 = vsel %vm1664, %v4847, %v4848
        %v4850 = vrot.slane %v2328, 2
        %v4851 = vrot.slane %v2334, 2
        %v4852 = vsel %vm1664, %v4850, %v4851
        %v4853 = vrot.slane %v3235, 2
        %v4854 = vrot.slane %v3240, 2
        %v4855 = vsel %vm1664, %v4853, %v4854
        %v4856 = vrot.slane %v2342, 2
        %v4857 = vrot.slane %v2346, 2
        %v4858 = vsel %vm1664, %v4856, %v4857
        %v4859 = vrot.slane %v2344, 2
        %v4860 = vrot.slane %v2348, 2
        %v4861 = vsel %vm1664, %v4859, %v4860
        %v4862 = vrot.slane %v3248, 2
        %v4863 = vrot.slane %v3251, 2
        %v4864 = vsel %vm1664, %v4862, %v4863
        %v4865 = vrot.slane %v2356, 2
        %v4866 = vrot.slane %v2362, 2
        %v4867 = vsel %vm1664, %v4865, %v4866
        %v4868 = vrot.slane %v2358, 2
        %v4869 = vrot.slane %v2364, 2
        %v4870 = vsel %vm1664, %v4868, %v4869
        %v4871 = vrot.slane %v3259, 2
        %v4872 = vrot.slane %v3264, 2
        %v4873 = vsel %vm1664, %v4871, %v4872
        %v4874 = vrot.slane %v2372, 2
        %v4875 = vrot.slane %v2376, 2
        %v4876 = vsel %vm1664, %v4874, %v4875
        %v4877 = vrot.slane %v2374, 2
        %v4878 = vrot.slane %v2378, 2
        %v4879 = vsel %vm1664, %v4877, %v4878
        %v4880 = vrot.slane %v3272, 2
        %v4881 = vrot.slane %v3275, 2
        %v4882 = vsel %vm1664, %v4880, %v4881
        %v4883 = vrot.slane %v2386, 2
        %v4884 = vrot.slane %v2392, 2
        %v4885 = vsel %vm1664, %v4883, %v4884
        %v4886 = vrot.slane %v2388, 2
        %v4887 = vrot.slane %v2394, 2
        %v4888 = vsel %vm1664, %v4886, %v4887
        %v4889 = vrot.slane %v3283, 2
        %v4890 = vrot.slane %v3288, 2
        %v4891 = vsel %vm1664, %v4889, %v4890
        %v4892 = vrot.slane %v2402, 2
        %v4893 = vrot.slane %v2406, 2
        %v4894 = vsel %vm1664, %v4892, %v4893
        %v4895 = vrot.slane %v2404, 2
        %v4896 = vrot.slane %v2408, 2
        %v4897 = vsel %vm1664, %v4895, %v4896
        %v4898 = vrot.slane %v3296, 2
        %v4899 = vrot.slane %v3299, 2
        %v4900 = vsel %vm1664, %v4898, %v4899
        %v4901 = vrot.slane %v2416, 2
        %v4902 = vrot.slane %v2422, 2
        %v4903 = vsel %vm1664, %v4901, %v4902
        %v4904 = vrot.slane %v2418, 2
        %v4905 = vrot.slane %v2424, 2
        %v4906 = vsel %vm1664, %v4904, %v4905
        %v4907 = vrot.slane %v3307, 2
        %v4908 = vrot.slane %v3312, 2
        %v4909 = vsel %vm1664, %v4907, %v4908
        %v4910 = vrot.slane %v2432, 2
        %v4911 = vrot.slane %v2436, 2
        %v4912 = vsel %vm1664, %v4910, %v4911
        %v4913 = vrot.slane %v2434, 2
        %v4914 = vrot.slane %v2438, 2
        %v4915 = vsel %vm1664, %v4913, %v4914
        %v4916 = vrot.slane %v3320, 2
        %v4917 = vrot.slane %v3323, 2
        %v4918 = vsel %vm1664, %v4916, %v4917
        %v4919 = vrot.slane %v2446, 2
        %v4920 = vrot.slane %v2452, 2
        %v4921 = vsel %vm1664, %v4919, %v4920
        %v4922 = vrot.slane %v2448, 2
        %v4923 = vrot.slane %v2454, 2
        %v4924 = vsel %vm1664, %v4922, %v4923
        %v4925 = vrot.slane %v3331, 2
        %v4926 = vrot.slane %v3336, 2
        %v4927 = vsel %vm1664, %v4925, %v4926
        %v4928 = vrot.slane %v2462, 2
        %v4929 = vrot.slane %v2466, 2
        %v4930 = vsel %vm1664, %v4928, %v4929
        %v4931 = vrot.slane %v2464, 2
        %v4932 = vrot.slane %v2468, 2
        %v4933 = vsel %vm1664, %v4931, %v4932
        %v4934 = vrot.slane %v3344, 2
        %v4935 = vrot.slane %v3347, 2
        %v4936 = vsel %vm1664, %v4934, %v4935
        %v4937 = vrot.slane %v2476, 2
        %v4938 = vrot.slane %v2482, 2
        %v4939 = vsel %vm1664, %v4937, %v4938
        %v4940 = vrot.slane %v2478, 2
        %v4941 = vrot.slane %v2484, 2
        %v4942 = vsel %vm1664, %v4940, %v4941
        %v4943 = vrot.slane %v3355, 2
        %v4944 = vrot.slane %v3360, 2
        %v4945 = vsel %vm1664, %v4943, %v4944
        %v4946 = vrot.slane %v2492, 2
        %v4947 = vrot.slane %v2496, 2
        %v4948 = vsel %vm1664, %v4946, %v4947
        %v4949 = vrot.slane %v2494, 2
        %v4950 = vrot.slane %v2498, 2
        %v4951 = vsel %vm1664, %v4949, %v4950
        %v4952 = vrot.slane %v3368, 2
        %v4953 = vrot.slane %v3371, 2
        %v4954 = vsel %vm1664, %v4952, %v4953
        %v4955 = vrot.slane %v2506, 2
        %v4956 = vrot.slane %v2512, 2
        %v4957 = vsel %vm1664, %v4955, %v4956
        %v4958 = vrot.slane %v2508, 2
        %v4959 = vrot.slane %v2514, 2
        %v4960 = vsel %vm1664, %v4958, %v4959
        %v4961 = vrot.slane %v3379, 2
        %v4962 = vrot.slane %v3384, 2
        %v4963 = vsel %vm1664, %v4961, %v4962
        %v4964 = vrot.slane %v2522, 2
        %v4965 = vrot.slane %v2526, 2
        %v4966 = vsel %vm1664, %v4964, %v4965
        %v4967 = vrot.slane %v2524, 2
        %v4968 = vrot.slane %v2528, 2
        %v4969 = vsel %vm1664, %v4967, %v4968
        %v4970 = vrot.slane %v3392, 2
        %v4971 = vrot.slane %v3395, 2
        %v4972 = vsel %vm1664, %v4970, %v4971
        %v4973 = vrot.slane %v2536, 2
        %v4974 = vrot.slane %v2542, 2
        %v4975 = vsel %vm1664, %v4973, %v4974
        %v4976 = vrot.slane %v2538, 2
        %v4977 = vrot.slane %v2544, 2
        %v4978 = vsel %vm1664, %v4976, %v4977
        %v4979 = vrot.slane %v3403, 2
        %v4980 = vrot.slane %v3408, 2
        %v4981 = vsel %vm1664, %v4979, %v4980
        %v4982 = vrot.slane %v2552, 2
        %v4983 = vrot.slane %v2556, 2
        %v4984 = vsel %vm1664, %v4982, %v4983
        %v4985 = vrot.slane %v2554, 2
        %v4986 = vrot.slane %v2558, 2
        %v4987 = vsel %vm1664, %v4985, %v4986
        %v4988 = vrot.slane %v3416, 2
        %v4989 = vrot.slane %v3419, 2
        %v4990 = vsel %vm1664, %v4988, %v4989
        %v4991 = vrot.slane %v2566, 2
        %v4992 = vrot.slane %v2572, 2
        %v4993 = vsel %vm1664, %v4991, %v4992
        %v4994 = vrot.slane %v2568, 2
        %v4995 = vrot.slane %v2574, 2
        %v4996 = vsel %vm1664, %v4994, %v4995
        %v4997 = vrot.slane %v3427, 2
        %v4998 = vrot.slane %v3432, 2
        %v4999 = vsel %vm1664, %v4997, %v4998
        %v5000 = vrot.slane %v2582, 2
        %v5001 = vrot.slane %v2586, 2
        %v5002 = vsel %vm1664, %v5000, %v5001
        %v5003 = vrot.slane %v2584, 2
        %v5004 = vrot.slane %v2588, 2
        %v5005 = vsel %vm1664, %v5003, %v5004
        %v5006 = vrot.slane %v3440, 2
        %v5007 = vrot.slane %v3443, 2
        %v5008 = vsel %vm1664, %v5006, %v5007
        %v5009 = vrot.slane %v2596, 2
        %v5010 = vrot.slane %v2602, 2
        %v5011 = vsel %vm1664, %v5009, %v5010
        %v5012 = vrot.slane %v2598, 2
        %v5013 = vrot.slane %v2604, 2
        %v5014 = vsel %vm1664, %v5012, %v5013
        %v5015 = vrot.slane %v3451, 2
        %v5016 = vrot.slane %v3456, 2
        %v5017 = vsel %vm1664, %v5015, %v5016
        %v5018 = vrot.slane %v2612, 2
        %v5019 = vrot.slane %v2616, 2
        %v5020 = vsel %vm1664, %v5018, %v5019
        %v5021 = vrot.slane %v2614, 2
        %v5022 = vrot.slane %v2618, 2
        %v5023 = vsel %vm1664, %v5021, %v5022
        %v5024 = vrot.slane %v3464, 2
        %v5025 = vrot.slane %v3467, 2
        %v5026 = vsel %vm1664, %v5024, %v5025
        %v5027 = vrot.slane %v2626, 2
        %v5028 = vrot.slane %v2632, 2
        %v5029 = vsel %vm1664, %v5027, %v5028
        %v5030 = vrot.slane %v2628, 2
        %v5031 = vrot.slane %v2634, 2
        %v5032 = vsel %vm1664, %v5030, %v5031
        %v5033 = vrot.slane %v3475, 2
        %v5034 = vrot.slane %v3480, 2
        %v5035 = vsel %vm1664, %v5033, %v5034
        %v5036 = vrot.slane %v2642, 2
        %v5037 = vrot.slane %v2646, 2
        %v5038 = vsel %vm1664, %v5036, %v5037
        %v5039 = vrot.slane %v2644, 2
        %v5040 = vrot.slane %v2648, 2
        %v5041 = vsel %vm1664, %v5039, %v5040
        %v5042 = vrot.slane %v3488, 2
        %v5043 = vrot.slane %v3491, 2
        %v5044 = vsel %vm1664, %v5042, %v5043
        %v5045 = vrot.slane %v2656, 2
        %v5046 = vrot.slane %v2662, 2
        %v5047 = vsel %vm1664, %v5045, %v5046
        %v5048 = vrot.slane %v2658, 2
        %v5049 = vrot.slane %v2664, 2
        %v5050 = vsel %vm1664, %v5048, %v5049
        %v5051 = vrot.slane %v3499, 2
        %v5052 = vrot.slane %v3504, 2
        %v5053 = vsel %vm1664, %v5051, %v5052
        %v5054 = vrot.slane %v2672, 2
        %v5055 = vrot.slane %v2676, 2
        %v5056 = vsel %vm1664, %v5054, %v5055
        %v5057 = vrot.slane %v2674, 2
        %v5058 = vrot.slane %v2678, 2
        %v5059 = vsel %vm1664, %v5057, %v5058
        %v5060 = vrot.slane %v3512, 2
        %v5061 = vrot.slane %v3515, 2
        %v5062 = vsel %vm1664, %v5060, %v5061
        %v5063 = vrot.slane %v2686, 2
        %v5064 = vrot.slane %v2692, 2
        %v5065 = vsel %vm1664, %v5063, %v5064
        %v5066 = vrot.slane %v2688, 2
        %v5067 = vrot.slane %v2694, 2
        %v5068 = vsel %vm1664, %v5066, %v5067
        %v5069 = vrot.slane %v3523, 2
        %v5070 = vrot.slane %v3528, 2
        %v5071 = vsel %vm1664, %v5069, %v5070
        %5072 = vrot.lane.b32.xlu0 %v4786, 96
        %v5073 = vpop.permute.xlu0 %5072
        %5074 = vrot.lane.b32.xlu0 %v4789, 96
        %v5075 = vpop.permute.xlu0 %5074
        %5076 = vrot.lane.b32.xlu0 %v4792, 96
        %v5077 = vpop.permute.xlu0 %5076
        %5078 = vrot.lane.b32.xlu0 %v4785, 96
        %v5079 = vpop.permute.xlu0 %5078
        %5080 = vrot.lane.b32.xlu0 %v4788, 96
        %v5081 = vpop.permute.xlu0 %5080
        %5082 = vrot.lane.b32.xlu0 %v4791, 96
        %v5083 = vpop.permute.xlu0 %5082
        %5084 = vrot.lane.b32.xlu0 %v4795, 96
        %v5085 = vpop.permute.xlu0 %5084
        %5086 = vrot.lane.b32.xlu0 %v4798, 96
        %v5087 = vpop.permute.xlu0 %5086
        %5088 = vrot.lane.b32.xlu0 %v4801, 96
        %v5089 = vpop.permute.xlu0 %5088
        %5090 = vrot.lane.b32.xlu0 %v4794, 96
        %v5091 = vpop.permute.xlu0 %5090
        %5092 = vrot.lane.b32.xlu0 %v4797, 96
        %v5093 = vpop.permute.xlu0 %5092
        %5094 = vrot.lane.b32.xlu0 %v4800, 96
        %v5095 = vpop.permute.xlu0 %5094
        %5096 = vrot.lane.b32.xlu0 %v4804, 96
        %v5097 = vpop.permute.xlu0 %5096
        %5098 = vrot.lane.b32.xlu0 %v4807, 96
        %v5099 = vpop.permute.xlu0 %5098
        %5100 = vrot.lane.b32.xlu0 %v4810, 96
        %v5101 = vpop.permute.xlu0 %5100
        %5102 = vrot.lane.b32.xlu0 %v4803, 96
        %v5103 = vpop.permute.xlu0 %5102
        %5104 = vrot.lane.b32.xlu0 %v4806, 96
        %v5105 = vpop.permute.xlu0 %5104
        %5106 = vrot.lane.b32.xlu0 %v4809, 96
        %v5107 = vpop.permute.xlu0 %5106
        %5108 = vrot.lane.b32.xlu0 %v4813, 96
        %v5109 = vpop.permute.xlu0 %5108
        %5110 = vrot.lane.b32.xlu0 %v4816, 96
        %v5111 = vpop.permute.xlu0 %5110
        %5112 = vrot.lane.b32.xlu0 %v4819, 96
        %v5113 = vpop.permute.xlu0 %5112
        %5114 = vrot.lane.b32.xlu0 %v4812, 96
        %v5115 = vpop.permute.xlu0 %5114
        %5116 = vrot.lane.b32.xlu0 %v4815, 96
        %v5117 = vpop.permute.xlu0 %5116
        %5118 = vrot.lane.b32.xlu0 %v4818, 96
        %v5119 = vpop.permute.xlu0 %5118
        %5120 = vrot.lane.b32.xlu0 %v4822, 96
        %v5121 = vpop.permute.xlu0 %5120
        %5122 = vrot.lane.b32.xlu0 %v4825, 96
        %v5123 = vpop.permute.xlu0 %5122
        %5124 = vrot.lane.b32.xlu0 %v4828, 96
        %v5125 = vpop.permute.xlu0 %5124
        %5126 = vrot.lane.b32.xlu0 %v4821, 96
        %v5127 = vpop.permute.xlu0 %5126
        %5128 = vrot.lane.b32.xlu0 %v4824, 96
        %v5129 = vpop.permute.xlu0 %5128
        %5130 = vrot.lane.b32.xlu0 %v4827, 96
        %v5131 = vpop.permute.xlu0 %5130
        %5132 = vrot.lane.b32.xlu0 %v4831, 96
        %v5133 = vpop.permute.xlu0 %5132
        %5134 = vrot.lane.b32.xlu0 %v4834, 96
        %v5135 = vpop.permute.xlu0 %5134
        %5136 = vrot.lane.b32.xlu0 %v4837, 96
        %v5137 = vpop.permute.xlu0 %5136
        %5138 = vrot.lane.b32.xlu0 %v4830, 96
        %v5139 = vpop.permute.xlu0 %5138
        %5140 = vrot.lane.b32.xlu0 %v4833, 96
        %v5141 = vpop.permute.xlu0 %5140
        %5142 = vrot.lane.b32.xlu0 %v4836, 96
        %v5143 = vpop.permute.xlu0 %5142
        %5144 = vrot.lane.b32.xlu0 %v4840, 96
        %v5145 = vpop.permute.xlu0 %5144
        %5146 = vrot.lane.b32.xlu0 %v4843, 96
        %v5147 = vpop.permute.xlu0 %5146
        %5148 = vrot.lane.b32.xlu0 %v4846, 96
        %v5149 = vpop.permute.xlu0 %5148
        %5150 = vrot.lane.b32.xlu0 %v4839, 96
        %v5151 = vpop.permute.xlu0 %5150
        %5152 = vrot.lane.b32.xlu0 %v4842, 96
        %v5153 = vpop.permute.xlu0 %5152
        %5154 = vrot.lane.b32.xlu0 %v4845, 96
        %v5155 = vpop.permute.xlu0 %5154
        %5156 = vrot.lane.b32.xlu0 %v4849, 96
        %v5157 = vpop.permute.xlu0 %5156
        %5158 = vrot.lane.b32.xlu0 %v4852, 96
        %v5159 = vpop.permute.xlu0 %5158
        %5160 = vrot.lane.b32.xlu0 %v4855, 96
        %v5161 = vpop.permute.xlu0 %5160
        %5162 = vrot.lane.b32.xlu0 %v4848, 96
        %v5163 = vpop.permute.xlu0 %5162
        %5164 = vrot.lane.b32.xlu0 %v4851, 96
        %v5165 = vpop.permute.xlu0 %5164
        %5166 = vrot.lane.b32.xlu0 %v4854, 96
        %v5167 = vpop.permute.xlu0 %5166
        %5168 = vrot.lane.b32.xlu0 %v4858, 96
        %v5169 = vpop.permute.xlu0 %5168
        %5170 = vrot.lane.b32.xlu0 %v4861, 96
        %v5171 = vpop.permute.xlu0 %5170
        %5172 = vrot.lane.b32.xlu0 %v4864, 96
        %v5173 = vpop.permute.xlu0 %5172
        %5174 = vrot.lane.b32.xlu0 %v4857, 96
        %v5175 = vpop.permute.xlu0 %5174
        %5176 = vrot.lane.b32.xlu0 %v4860, 96
        %v5177 = vpop.permute.xlu0 %5176
        %5178 = vrot.lane.b32.xlu0 %v4863, 96
        %v5179 = vpop.permute.xlu0 %5178
        %5180 = vrot.lane.b32.xlu0 %v4867, 96
        %v5181 = vpop.permute.xlu0 %5180
        %5182 = vrot.lane.b32.xlu0 %v4870, 96
        %v5183 = vpop.permute.xlu0 %5182
        %5184 = vrot.lane.b32.xlu0 %v4873, 96
        %v5185 = vpop.permute.xlu0 %5184
        %5186 = vrot.lane.b32.xlu0 %v4866, 96
        %v5187 = vpop.permute.xlu0 %5186
        %5188 = vrot.lane.b32.xlu0 %v4869, 96
        %v5189 = vpop.permute.xlu0 %5188
        %5190 = vrot.lane.b32.xlu0 %v4872, 96
        %v5191 = vpop.permute.xlu0 %5190
        %5192 = vrot.lane.b32.xlu0 %v4876, 96
        %v5193 = vpop.permute.xlu0 %5192
        %5194 = vrot.lane.b32.xlu0 %v4879, 96
        %v5195 = vpop.permute.xlu0 %5194
        %5196 = vrot.lane.b32.xlu0 %v4882, 96
        %v5197 = vpop.permute.xlu0 %5196
        %5198 = vrot.lane.b32.xlu0 %v4875, 96
        %v5199 = vpop.permute.xlu0 %5198
        %5200 = vrot.lane.b32.xlu0 %v4878, 96
        %v5201 = vpop.permute.xlu0 %5200
        %5202 = vrot.lane.b32.xlu0 %v4881, 96
        %v5203 = vpop.permute.xlu0 %5202
        %5204 = vrot.lane.b32.xlu0 %v4885, 96
        %v5205 = vpop.permute.xlu0 %5204
        %5206 = vrot.lane.b32.xlu0 %v4888, 96
        %v5207 = vpop.permute.xlu0 %5206
        %5208 = vrot.lane.b32.xlu0 %v4891, 96
        %v5209 = vpop.permute.xlu0 %5208
        %5210 = vrot.lane.b32.xlu0 %v4884, 96
        %v5211 = vpop.permute.xlu0 %5210
        %5212 = vrot.lane.b32.xlu0 %v4887, 96
        %v5213 = vpop.permute.xlu0 %5212
        %5214 = vrot.lane.b32.xlu0 %v4890, 96
        %v5215 = vpop.permute.xlu0 %5214
        %5216 = vrot.lane.b32.xlu0 %v4894, 96
        %v5217 = vpop.permute.xlu0 %5216
        %5218 = vrot.lane.b32.xlu0 %v4897, 96
        %v5219 = vpop.permute.xlu0 %5218
        %5220 = vrot.lane.b32.xlu0 %v4900, 96
        %v5221 = vpop.permute.xlu0 %5220
        %5222 = vrot.lane.b32.xlu0 %v4893, 96
        %v5223 = vpop.permute.xlu0 %5222
        %5224 = vrot.lane.b32.xlu0 %v4896, 96
        %v5225 = vpop.permute.xlu0 %5224
        %5226 = vrot.lane.b32.xlu0 %v4899, 96
        %v5227 = vpop.permute.xlu0 %5226
        %5228 = vrot.lane.b32.xlu0 %v4903, 96
        %v5229 = vpop.permute.xlu0 %5228
        %5230 = vrot.lane.b32.xlu0 %v4906, 96
        %v5231 = vpop.permute.xlu0 %5230
        %5232 = vrot.lane.b32.xlu0 %v4909, 96
        %v5233 = vpop.permute.xlu0 %5232
        %5234 = vrot.lane.b32.xlu0 %v4902, 96
        %v5235 = vpop.permute.xlu0 %5234
        %5236 = vrot.lane.b32.xlu0 %v4905, 96
        %v5237 = vpop.permute.xlu0 %5236
        %5238 = vrot.lane.b32.xlu0 %v4908, 96
        %v5239 = vpop.permute.xlu0 %5238
        %5240 = vrot.lane.b32.xlu0 %v4912, 96
        %v5241 = vpop.permute.xlu0 %5240
        %5242 = vrot.lane.b32.xlu0 %v4915, 96
        %v5243 = vpop.permute.xlu0 %5242
        %5244 = vrot.lane.b32.xlu0 %v4918, 96
        %v5245 = vpop.permute.xlu0 %5244
        %5246 = vrot.lane.b32.xlu0 %v4911, 96
        %v5247 = vpop.permute.xlu0 %5246
        %5248 = vrot.lane.b32.xlu0 %v4914, 96
        %v5249 = vpop.permute.xlu0 %5248
        %5250 = vrot.lane.b32.xlu0 %v4917, 96
        %v5251 = vpop.permute.xlu0 %5250
        %5252 = vrot.lane.b32.xlu0 %v4921, 96
        %v5253 = vpop.permute.xlu0 %5252
        %5254 = vrot.lane.b32.xlu0 %v4924, 96
        %v5255 = vpop.permute.xlu0 %5254
        %5256 = vrot.lane.b32.xlu0 %v4927, 96
        %v5257 = vpop.permute.xlu0 %5256
        %5258 = vrot.lane.b32.xlu0 %v4920, 96
        %v5259 = vpop.permute.xlu0 %5258
        %5260 = vrot.lane.b32.xlu0 %v4923, 96
        %v5261 = vpop.permute.xlu0 %5260
        %5262 = vrot.lane.b32.xlu0 %v4926, 96
        %v5263 = vpop.permute.xlu0 %5262
        %5264 = vrot.lane.b32.xlu0 %v4930, 96
        %v5265 = vpop.permute.xlu0 %5264
        %5266 = vrot.lane.b32.xlu0 %v4933, 96
        %v5267 = vpop.permute.xlu0 %5266
        %5268 = vrot.lane.b32.xlu0 %v4936, 96
        %v5269 = vpop.permute.xlu0 %5268
        %5270 = vrot.lane.b32.xlu0 %v4929, 96
        %v5271 = vpop.permute.xlu0 %5270
        %5272 = vrot.lane.b32.xlu0 %v4932, 96
        %v5273 = vpop.permute.xlu0 %5272
        %5274 = vrot.lane.b32.xlu0 %v4935, 96
        %v5275 = vpop.permute.xlu0 %5274
        %5276 = vrot.lane.b32.xlu0 %v4939, 96
        %v5277 = vpop.permute.xlu0 %5276
        %5278 = vrot.lane.b32.xlu0 %v4942, 96
        %v5279 = vpop.permute.xlu0 %5278
        %5280 = vrot.lane.b32.xlu0 %v4945, 96
        %v5281 = vpop.permute.xlu0 %5280
        %5282 = vrot.lane.b32.xlu0 %v4938, 96
        %v5283 = vpop.permute.xlu0 %5282
        %5284 = vrot.lane.b32.xlu0 %v4941, 96
        %v5285 = vpop.permute.xlu0 %5284
        %5286 = vrot.lane.b32.xlu0 %v4944, 96
        %v5287 = vpop.permute.xlu0 %5286
        %5288 = vrot.lane.b32.xlu0 %v4948, 96
        %v5289 = vpop.permute.xlu0 %5288
        %5290 = vrot.lane.b32.xlu0 %v4951, 96
        %v5291 = vpop.permute.xlu0 %5290
        %5292 = vrot.lane.b32.xlu0 %v4954, 96
        %v5293 = vpop.permute.xlu0 %5292
        %5294 = vrot.lane.b32.xlu0 %v4947, 96
        %v5295 = vpop.permute.xlu0 %5294
        %5296 = vrot.lane.b32.xlu0 %v4950, 96
        %v5297 = vpop.permute.xlu0 %5296
        %5298 = vrot.lane.b32.xlu0 %v4953, 96
        %v5299 = vpop.permute.xlu0 %5298
        %5300 = vrot.lane.b32.xlu0 %v4957, 96
        %v5301 = vpop.permute.xlu0 %5300
        %5302 = vrot.lane.b32.xlu0 %v4960, 96
        %v5303 = vpop.permute.xlu0 %5302
        %5304 = vrot.lane.b32.xlu0 %v4963, 96
        %v5305 = vpop.permute.xlu0 %5304
        %5306 = vrot.lane.b32.xlu0 %v4956, 96
        %v5307 = vpop.permute.xlu0 %5306
        %5308 = vrot.lane.b32.xlu0 %v4959, 96
        %v5309 = vpop.permute.xlu0 %5308
        %5310 = vrot.lane.b32.xlu0 %v4962, 96
        %v5311 = vpop.permute.xlu0 %5310
        %5312 = vrot.lane.b32.xlu0 %v4966, 96
        %v5313 = vpop.permute.xlu0 %5312
        %5314 = vrot.lane.b32.xlu0 %v4969, 96
        %v5315 = vpop.permute.xlu0 %5314
        %5316 = vrot.lane.b32.xlu0 %v4972, 96
        %v5317 = vpop.permute.xlu0 %5316
        %5318 = vrot.lane.b32.xlu0 %v4965, 96
        %v5319 = vpop.permute.xlu0 %5318
        %5320 = vrot.lane.b32.xlu0 %v4968, 96
        %v5321 = vpop.permute.xlu0 %5320
        %5322 = vrot.lane.b32.xlu0 %v4971, 96
        %v5323 = vpop.permute.xlu0 %5322
        %5324 = vrot.lane.b32.xlu0 %v4975, 96
        %v5325 = vpop.permute.xlu0 %5324
        %5326 = vrot.lane.b32.xlu0 %v4978, 96
        %v5327 = vpop.permute.xlu0 %5326
        %5328 = vrot.lane.b32.xlu0 %v4981, 96
        %v5329 = vpop.permute.xlu0 %5328
        %5330 = vrot.lane.b32.xlu0 %v4974, 96
        %v5331 = vpop.permute.xlu0 %5330
        %5332 = vrot.lane.b32.xlu0 %v4977, 96
        %v5333 = vpop.permute.xlu0 %5332
        %5334 = vrot.lane.b32.xlu0 %v4980, 96
        %v5335 = vpop.permute.xlu0 %5334
        %5336 = vrot.lane.b32.xlu0 %v4984, 96
        %v5337 = vpop.permute.xlu0 %5336
        %5338 = vrot.lane.b32.xlu0 %v4987, 96
        %v5339 = vpop.permute.xlu0 %5338
        %5340 = vrot.lane.b32.xlu0 %v4990, 96
        %v5341 = vpop.permute.xlu0 %5340
        %5342 = vrot.lane.b32.xlu0 %v4983, 96
        %v5343 = vpop.permute.xlu0 %5342
        %5344 = vrot.lane.b32.xlu0 %v4986, 96
        %v5345 = vpop.permute.xlu0 %5344
        %5346 = vrot.lane.b32.xlu0 %v4989, 96
        %v5347 = vpop.permute.xlu0 %5346
        %5348 = vrot.lane.b32.xlu0 %v4993, 96
        %v5349 = vpop.permute.xlu0 %5348
        %5350 = vrot.lane.b32.xlu0 %v4996, 96
        %v5351 = vpop.permute.xlu0 %5350
        %5352 = vrot.lane.b32.xlu0 %v4999, 96
        %v5353 = vpop.permute.xlu0 %5352
        %5354 = vrot.lane.b32.xlu0 %v4992, 96
        %v5355 = vpop.permute.xlu0 %5354
        %5356 = vrot.lane.b32.xlu0 %v4995, 96
        %v5357 = vpop.permute.xlu0 %5356
        %5358 = vrot.lane.b32.xlu0 %v4998, 96
        %v5359 = vpop.permute.xlu0 %5358
        %5360 = vrot.lane.b32.xlu0 %v5002, 96
        %v5361 = vpop.permute.xlu0 %5360
        %5362 = vrot.lane.b32.xlu0 %v5005, 96
        %v5363 = vpop.permute.xlu0 %5362
        %5364 = vrot.lane.b32.xlu0 %v5008, 96
        %v5365 = vpop.permute.xlu0 %5364
        %5366 = vrot.lane.b32.xlu0 %v5001, 96
        %v5367 = vpop.permute.xlu0 %5366
        %5368 = vrot.lane.b32.xlu0 %v5004, 96
        %v5369 = vpop.permute.xlu0 %5368
        %5370 = vrot.lane.b32.xlu0 %v5007, 96
        %v5371 = vpop.permute.xlu0 %5370
        %5372 = vrot.lane.b32.xlu0 %v5011, 96
        %v5373 = vpop.permute.xlu0 %5372
        %5374 = vrot.lane.b32.xlu0 %v5014, 96
        %v5375 = vpop.permute.xlu0 %5374
        %5376 = vrot.lane.b32.xlu0 %v5017, 96
        %v5377 = vpop.permute.xlu0 %5376
        %5378 = vrot.lane.b32.xlu0 %v5010, 96
        %v5379 = vpop.permute.xlu0 %5378
        %5380 = vrot.lane.b32.xlu0 %v5013, 96
        %v5381 = vpop.permute.xlu0 %5380
        %5382 = vrot.lane.b32.xlu0 %v5016, 96
        %v5383 = vpop.permute.xlu0 %5382
        %5384 = vrot.lane.b32.xlu0 %v5020, 96
        %v5385 = vpop.permute.xlu0 %5384
        %5386 = vrot.lane.b32.xlu0 %v5023, 96
        %v5387 = vpop.permute.xlu0 %5386
        %5388 = vrot.lane.b32.xlu0 %v5026, 96
        %v5389 = vpop.permute.xlu0 %5388
        %5390 = vrot.lane.b32.xlu0 %v5019, 96
        %v5391 = vpop.permute.xlu0 %5390
        %5392 = vrot.lane.b32.xlu0 %v5022, 96
        %v5393 = vpop.permute.xlu0 %5392
        %5394 = vrot.lane.b32.xlu0 %v5025, 96
        %v5395 = vpop.permute.xlu0 %5394
        %5396 = vrot.lane.b32.xlu0 %v5029, 96
        %v5397 = vpop.permute.xlu0 %5396
        %5398 = vrot.lane.b32.xlu0 %v5032, 96
        %v5399 = vpop.permute.xlu0 %5398
        %5400 = vrot.lane.b32.xlu0 %v5035, 96
        %v5401 = vpop.permute.xlu0 %5400
        %5402 = vrot.lane.b32.xlu0 %v5028, 96
        %v5403 = vpop.permute.xlu0 %5402
        %5404 = vrot.lane.b32.xlu0 %v5031, 96
        %v5405 = vpop.permute.xlu0 %5404
        %5406 = vrot.lane.b32.xlu0 %v5034, 96
        %v5407 = vpop.permute.xlu0 %5406
        %5408 = vrot.lane.b32.xlu0 %v5038, 96
        %v5409 = vpop.permute.xlu0 %5408
        %5410 = vrot.lane.b32.xlu0 %v5041, 96
        %v5411 = vpop.permute.xlu0 %5410
        %5412 = vrot.lane.b32.xlu0 %v5044, 96
        %v5413 = vpop.permute.xlu0 %5412
        %5414 = vrot.lane.b32.xlu0 %v5037, 96
        %v5415 = vpop.permute.xlu0 %5414
        %5416 = vrot.lane.b32.xlu0 %v5040, 96
        %v5417 = vpop.permute.xlu0 %5416
        %5418 = vrot.lane.b32.xlu0 %v5043, 96
        %v5419 = vpop.permute.xlu0 %5418
        %5420 = vrot.lane.b32.xlu0 %v5047, 96
        %v5421 = vpop.permute.xlu0 %5420
        %5422 = vrot.lane.b32.xlu0 %v5050, 96
        %v5423 = vpop.permute.xlu0 %5422
        %5424 = vrot.lane.b32.xlu0 %v5053, 96
        %v5425 = vpop.permute.xlu0 %5424
        %5426 = vrot.lane.b32.xlu0 %v5046, 96
        %v5427 = vpop.permute.xlu0 %5426
        %5428 = vrot.lane.b32.xlu0 %v5049, 96
        %v5429 = vpop.permute.xlu0 %5428
        %5430 = vrot.lane.b32.xlu0 %v5052, 96
        %v5431 = vpop.permute.xlu0 %5430
        %5432 = vrot.lane.b32.xlu0 %v5056, 96
        %v5433 = vpop.permute.xlu0 %5432
        %5434 = vrot.lane.b32.xlu0 %v5059, 96
        %v5435 = vpop.permute.xlu0 %5434
        %5436 = vrot.lane.b32.xlu0 %v5062, 96
        %v5437 = vpop.permute.xlu0 %5436
        %5438 = vrot.lane.b32.xlu0 %v5055, 96
        %v5439 = vpop.permute.xlu0 %5438
        %5440 = vrot.lane.b32.xlu0 %v5058, 96
        %v5441 = vpop.permute.xlu0 %5440
        %5442 = vrot.lane.b32.xlu0 %v5061, 96
        %v5443 = vpop.permute.xlu0 %5442
        %5444 = vrot.lane.b32.xlu0 %v5065, 96
        %v5445 = vpop.permute.xlu0 %5444
        %5446 = vrot.lane.b32.xlu0 %v5068, 96
        %v5447 = vpop.permute.xlu0 %5446
        %5448 = vrot.lane.b32.xlu0 %v5071, 96
        %v5449 = vpop.permute.xlu0 %5448
        %5450 = vrot.lane.b32.xlu0 %v5064, 96
        %v5451 = vpop.permute.xlu0 %5450
        %5452 = vrot.lane.b32.xlu0 %v5067, 96
        %v5453 = vpop.permute.xlu0 %5452
        %5454 = vrot.lane.b32.xlu0 %v5070, 96
        %v5455 = vpop.permute.xlu0 %5454
        %vm5456 = vcmask 785408
        %v5457 = vsel %vm5456, %v5073, %v5075
        %v5458 = vsel %vm5456, %v5075, %v5077
        %v5459 = vsel %vm5456, %v5079, %v5081
        %v5460 = vsel %vm5456, %v5081, %v5083
        %v5461 = vsel %vm5456, %v5085, %v5087
        %v5462 = vsel %vm5456, %v5087, %v5089
        %v5463 = vsel %vm5456, %v5091, %v5093
        %v5464 = vsel %vm5456, %v5093, %v5095
        %v5465 = vsel %vm5456, %v5097, %v5099
        %v5466 = vsel %vm5456, %v5099, %v5101
        %v5467 = vsel %vm5456, %v5103, %v5105
        %v5468 = vsel %vm5456, %v5105, %v5107
        %v5469 = vsel %vm5456, %v5109, %v5111
        %v5470 = vsel %vm5456, %v5111, %v5113
        %v5471 = vsel %vm5456, %v5115, %v5117
        %v5472 = vsel %vm5456, %v5117, %v5119
        %v5473 = vsel %vm5456, %v5121, %v5123
        %v5474 = vsel %vm5456, %v5123, %v5125
        %v5475 = vsel %vm5456, %v5127, %v5129
        %v5476 = vsel %vm5456, %v5129, %v5131
        %v5477 = vsel %vm5456, %v5133, %v5135
        %v5478 = vsel %vm5456, %v5135, %v5137
        %v5479 = vsel %vm5456, %v5139, %v5141
        %v5480 = vsel %vm5456, %v5141, %v5143
        %v5481 = vsel %vm5456, %v5145, %v5147
        %v5482 = vsel %vm5456, %v5147, %v5149
        %v5483 = vsel %vm5456, %v5151, %v5153
        %v5484 = vsel %vm5456, %v5153, %v5155
        %v5485 = vsel %vm5456, %v5157, %v5159
        %v5486 = vsel %vm5456, %v5159, %v5161
        %v5487 = vsel %vm5456, %v5163, %v5165
        %v5488 = vsel %vm5456, %v5165, %v5167
        %v5489 = vsel %vm5456, %v5169, %v5171
        %v5490 = vsel %vm5456, %v5171, %v5173
        %v5491 = vsel %vm5456, %v5175, %v5177
        %v5492 = vsel %vm5456, %v5177, %v5179
        %v5493 = vsel %vm5456, %v5181, %v5183
        %v5494 = vsel %vm5456, %v5183, %v5185
        %v5495 = vsel %vm5456, %v5187, %v5189
        %v5496 = vsel %vm5456, %v5189, %v5191
        %v5497 = vsel %vm5456, %v5193, %v5195
        %v5498 = vsel %vm5456, %v5195, %v5197
        %v5499 = vsel %vm5456, %v5199, %v5201
        %v5500 = vsel %vm5456, %v5201, %v5203
        %v5501 = vsel %vm5456, %v5205, %v5207
        %v5502 = vsel %vm5456, %v5207, %v5209
        %v5503 = vsel %vm5456, %v5211, %v5213
        %v5504 = vsel %vm5456, %v5213, %v5215
        %v5505 = vsel %vm5456, %v5217, %v5219
        %v5506 = vsel %vm5456, %v5219, %v5221
        %v5507 = vsel %vm5456, %v5223, %v5225
        %v5508 = vsel %vm5456, %v5225, %v5227
        %v5509 = vsel %vm5456, %v5229, %v5231
        %v5510 = vsel %vm5456, %v5231, %v5233
        %v5511 = vsel %vm5456, %v5235, %v5237
        %v5512 = vsel %vm5456, %v5237, %v5239
        %v5513 = vsel %vm5456, %v5241, %v5243
        %v5514 = vsel %vm5456, %v5243, %v5245
        %v5515 = vsel %vm5456, %v5247, %v5249
        %v5516 = vsel %vm5456, %v5249, %v5251
        %v5517 = vsel %vm5456, %v5253, %v5255
        %v5518 = vsel %vm5456, %v5255, %v5257
        %v5519 = vsel %vm5456, %v5259, %v5261
        %v5520 = vsel %vm5456, %v5261, %v5263
        %v5521 = vsel %vm5456, %v5265, %v5267
        %v5522 = vsel %vm5456, %v5267, %v5269
        %v5523 = vsel %vm5456, %v5271, %v5273
        %v5524 = vsel %vm5456, %v5273, %v5275
        %v5525 = vsel %vm5456, %v5277, %v5279
        %v5526 = vsel %vm5456, %v5279, %v5281
        %v5527 = vsel %vm5456, %v5283, %v5285
        %v5528 = vsel %vm5456, %v5285, %v5287
        %v5529 = vsel %vm5456, %v5289, %v5291
        %v5530 = vsel %vm5456, %v5291, %v5293
        %v5531 = vsel %vm5456, %v5295, %v5297
        %v5532 = vsel %vm5456, %v5297, %v5299
        %v5533 = vsel %vm5456, %v5301, %v5303
        %v5534 = vsel %vm5456, %v5303, %v5305
        %v5535 = vsel %vm5456, %v5307, %v5309
        %v5536 = vsel %vm5456, %v5309, %v5311
        %v5537 = vsel %vm5456, %v5313, %v5315
        %v5538 = vsel %vm5456, %v5315, %v5317
        %v5539 = vsel %vm5456, %v5319, %v5321
        %v5540 = vsel %vm5456, %v5321, %v5323
        %v5541 = vsel %vm5456, %v5325, %v5327
        %v5542 = vsel %vm5456, %v5327, %v5329
        %v5543 = vsel %vm5456, %v5331, %v5333
        %v5544 = vsel %vm5456, %v5333, %v5335
        %v5545 = vsel %vm5456, %v5337, %v5339
        %v5546 = vsel %vm5456, %v5339, %v5341
        %v5547 = vsel %vm5456, %v5343, %v5345
        %v5548 = vsel %vm5456, %v5345, %v5347
        %v5549 = vsel %vm5456, %v5349, %v5351
        %v5550 = vsel %vm5456, %v5351, %v5353
        %v5551 = vsel %vm5456, %v5355, %v5357
        %v5552 = vsel %vm5456, %v5357, %v5359
        %v5553 = vsel %vm5456, %v5361, %v5363
        %v5554 = vsel %vm5456, %v5363, %v5365
        %v5555 = vsel %vm5456, %v5367, %v5369
        %v5556 = vsel %vm5456, %v5369, %v5371
        %v5557 = vsel %vm5456, %v5373, %v5375
        %v5558 = vsel %vm5456, %v5375, %v5377
        %v5559 = vsel %vm5456, %v5379, %v5381
        %v5560 = vsel %vm5456, %v5381, %v5383
        %v5561 = vsel %vm5456, %v5385, %v5387
        %v5562 = vsel %vm5456, %v5387, %v5389
        %v5563 = vsel %vm5456, %v5391, %v5393
        %v5564 = vsel %vm5456, %v5393, %v5395
        %v5565 = vsel %vm5456, %v5397, %v5399
        %v5566 = vsel %vm5456, %v5399, %v5401
        %v5567 = vsel %vm5456, %v5403, %v5405
        %v5568 = vsel %vm5456, %v5405, %v5407
        %v5569 = vsel %vm5456, %v5409, %v5411
        %v5570 = vsel %vm5456, %v5411, %v5413
        %v5571 = vsel %vm5456, %v5415, %v5417
        %v5572 = vsel %vm5456, %v5417, %v5419
        %v5573 = vsel %vm5456, %v5421, %v5423
        %v5574 = vsel %vm5456, %v5423, %v5425
        %v5575 = vsel %vm5456, %v5427, %v5429
        %v5576 = vsel %vm5456, %v5429, %v5431
        %v5577 = vsel %vm5456, %v5433, %v5435
        %v5578 = vsel %vm5456, %v5435, %v5437
        %v5579 = vsel %vm5456, %v5439, %v5441
        %v5580 = vsel %vm5456, %v5441, %v5443
        %v5581 = vsel %vm5456, %v5445, %v5447
        %v5582 = vsel %vm5456, %v5447, %v5449
        %v5583 = vsel %vm5456, %v5451, %v5453
        %v5584 = vsel %vm5456, %v5453, %v5455
        %v5713 = vadd.f32 %v4656, %v5457
        %v5714 = vadd.f32 %v4657, %v5458
        %v5715 = vadd.f32 %v4658, %v5459
        %v5716 = vadd.f32 %v4659, %v5460
        %v5717 = vadd.f32 %v4660, %v5461
        %v5718 = vadd.f32 %v4661, %v5462
        %v5719 = vadd.f32 %v4662, %v5463
        %v5720 = vadd.f32 %v4663, %v5464
        %v5721 = vadd.f32 %v4664, %v5465
        %v5722 = vadd.f32 %v4665, %v5466
        %v5723 = vadd.f32 %v4666, %v5467
        %v5724 = vadd.f32 %v4667, %v5468
        %v5725 = vadd.f32 %v4668, %v5469
        %v5726 = vadd.f32 %v4669, %v5470
        %v5727 = vadd.f32 %v4670, %v5471
        %v5728 = vadd.f32 %v4671, %v5472
        %v5729 = vadd.f32 %v4672, %v5473
        %v5730 = vadd.f32 %v4673, %v5474
        %v5731 = vadd.f32 %v4674, %v5475
        %v5732 = vadd.f32 %v4675, %v5476
        %v5733 = vadd.f32 %v4676, %v5477
        %v5734 = vadd.f32 %v4677, %v5478
        %v5735 = vadd.f32 %v4678, %v5479
        %v5736 = vadd.f32 %v4679, %v5480
        %v5737 = vadd.f32 %v4680, %v5481
        %v5738 = vadd.f32 %v4681, %v5482
        %v5739 = vadd.f32 %v4682, %v5483
        %v5740 = vadd.f32 %v4683, %v5484
        %v5741 = vadd.f32 %v4684, %v5485
        %v5742 = vadd.f32 %v4685, %v5486
        %v5743 = vadd.f32 %v4686, %v5487
        %v5744 = vadd.f32 %v4687, %v5488
        %v5745 = vadd.f32 %v4688, %v5489
        %v5746 = vadd.f32 %v4689, %v5490
        %v5747 = vadd.f32 %v4690, %v5491
        %v5748 = vadd.f32 %v4691, %v5492
        %v5749 = vadd.f32 %v4692, %v5493
        %v5750 = vadd.f32 %v4693, %v5494
        %v5751 = vadd.f32 %v4694, %v5495
        %v5752 = vadd.f32 %v4695, %v5496
        %v5753 = vadd.f32 %v4696, %v5497
        %v5754 = vadd.f32 %v4697, %v5498
        %v5755 = vadd.f32 %v4698, %v5499
        %v5756 = vadd.f32 %v4699, %v5500
        %v5757 = vadd.f32 %v4700, %v5501
        %v5758 = vadd.f32 %v4701, %v5502
        %v5759 = vadd.f32 %v4702, %v5503
        %v5760 = vadd.f32 %v4703, %v5504
        %v5761 = vadd.f32 %v4704, %v5505
        %v5762 = vadd.f32 %v4705, %v5506
        %v5763 = vadd.f32 %v4706, %v5507
        %v5764 = vadd.f32 %v4707, %v5508
        %v5765 = vadd.f32 %v4708, %v5509
        %v5766 = vadd.f32 %v4709, %v5510
        %v5767 = vadd.f32 %v4710, %v5511
        %v5768 = vadd.f32 %v4711, %v5512
        %v5769 = vadd.f32 %v4712, %v5513
        %v5770 = vadd.f32 %v4713, %v5514
        %v5771 = vadd.f32 %v4714, %v5515
        %v5772 = vadd.f32 %v4715, %v5516
        %v5773 = vadd.f32 %v4716, %v5517
        %v5774 = vadd.f32 %v4717, %v5518
        %v5775 = vadd.f32 %v4718, %v5519
        %v5776 = vadd.f32 %v4719, %v5520
        %v5777 = vadd.f32 %v4720, %v5521
        %v5778 = vadd.f32 %v4721, %v5522
        %v5779 = vadd.f32 %v4722, %v5523
        %v5780 = vadd.f32 %v4723, %v5524
        %v5781 = vadd.f32 %v4724, %v5525
        %v5782 = vadd.f32 %v4725, %v5526
        %v5783 = vadd.f32 %v4726, %v5527
        %v5784 = vadd.f32 %v4727, %v5528
        %v5785 = vadd.f32 %v4728, %v5529
        %v5786 = vadd.f32 %v4729, %v5530
        %v5787 = vadd.f32 %v4730, %v5531
        %v5788 = vadd.f32 %v4731, %v5532
        %v5789 = vadd.f32 %v4732, %v5533
        %v5790 = vadd.f32 %v4733, %v5534
        %v5791 = vadd.f32 %v4734, %v5535
        %v5792 = vadd.f32 %v4735, %v5536
        %v5793 = vadd.f32 %v4736, %v5537
        %v5794 = vadd.f32 %v4737, %v5538
        %v5795 = vadd.f32 %v4738, %v5539
        %v5796 = vadd.f32 %v4739, %v5540
        %v5797 = vadd.f32 %v4740, %v5541
        %v5798 = vadd.f32 %v4741, %v5542
        %v5799 = vadd.f32 %v4742, %v5543
        %v5800 = vadd.f32 %v4743, %v5544
        %v5801 = vadd.f32 %v4744, %v5545
        %v5802 = vadd.f32 %v4745, %v5546
        %v5803 = vadd.f32 %v4746, %v5547
        %v5804 = vadd.f32 %v4747, %v5548
        %v5805 = vadd.f32 %v4748, %v5549
        %v5806 = vadd.f32 %v4749, %v5550
        %v5807 = vadd.f32 %v4750, %v5551
        %v5808 = vadd.f32 %v4751, %v5552
        %v5809 = vadd.f32 %v4752, %v5553
        %v5810 = vadd.f32 %v4753, %v5554
        %v5811 = vadd.f32 %v4754, %v5555
        %v5812 = vadd.f32 %v4755, %v5556
        %v5813 = vadd.f32 %v4756, %v5557
        %v5814 = vadd.f32 %v4757, %v5558
        %v5815 = vadd.f32 %v4758, %v5559
        %v5816 = vadd.f32 %v4759, %v5560
        %v5817 = vadd.f32 %v4760, %v5561
        %v5818 = vadd.f32 %v4761, %v5562
        %v5819 = vadd.f32 %v4762, %v5563
        %v5820 = vadd.f32 %v4763, %v5564
        %v5821 = vadd.f32 %v4764, %v5565
        %v5822 = vadd.f32 %v4765, %v5566
        %v5823 = vadd.f32 %v4766, %v5567
        %v5824 = vadd.f32 %v4767, %v5568
        %v5825 = vadd.f32 %v4768, %v5569
        %v5826 = vadd.f32 %v4769, %v5570
        %v5827 = vadd.f32 %v4770, %v5571
        %v5828 = vadd.f32 %v4771, %v5572
        %v5829 = vadd.f32 %v4772, %v5573
        %v5830 = vadd.f32 %v4773, %v5574
        %v5831 = vadd.f32 %v4774, %v5575
        %v5832 = vadd.f32 %v4775, %v5576
        %v5833 = vadd.f32 %v4776, %v5577
        %v5834 = vadd.f32 %v4777, %v5578
        %v5835 = vadd.f32 %v4778, %v5579
        %v5836 = vadd.f32 %v4779, %v5580
        %v5837 = vadd.f32 %v4780, %v5581
        %v5838 = vadd.f32 %v4781, %v5582
        %v5839 = vadd.f32 %v4782, %v5583
        %v5840 = vadd.f32 %v4783, %v5584
        %vm5841 = vcmask 1044480
        %v5842 = vrot.slane %v2222, 3
        %v5843 = vrot.slane %v2226, 3
        %v5844 = vsel %vm5841, %v5842, %v5843
        %v5845 = vrot.slane %v2224, 3
        %v5846 = vrot.slane %v2228, 3
        %v5847 = vsel %vm5841, %v5845, %v5846
        %v5848 = vrot.slane %v3152, 3
        %v5849 = vrot.slane %v3155, 3
        %v5850 = vsel %vm5841, %v5848, %v5849
        %v5851 = vrot.slane %v2236, 3
        %v5852 = vrot.slane %v2242, 3
        %v5853 = vsel %vm5841, %v5851, %v5852
        %v5854 = vrot.slane %v2238, 3
        %v5855 = vrot.slane %v2244, 3
        %v5856 = vsel %vm5841, %v5854, %v5855
        %v5857 = vrot.slane %v3163, 3
        %v5858 = vrot.slane %v3168, 3
        %v5859 = vsel %vm5841, %v5857, %v5858
        %v5860 = vrot.slane %v2252, 3
        %v5861 = vrot.slane %v2256, 3
        %v5862 = vsel %vm5841, %v5860, %v5861
        %v5863 = vrot.slane %v2254, 3
        %v5864 = vrot.slane %v2258, 3
        %v5865 = vsel %vm5841, %v5863, %v5864
        %v5866 = vrot.slane %v3176, 3
        %v5867 = vrot.slane %v3179, 3
        %v5868 = vsel %vm5841, %v5866, %v5867
        %v5869 = vrot.slane %v2266, 3
        %v5870 = vrot.slane %v2272, 3
        %v5871 = vsel %vm5841, %v5869, %v5870
        %v5872 = vrot.slane %v2268, 3
        %v5873 = vrot.slane %v2274, 3
        %v5874 = vsel %vm5841, %v5872, %v5873
        %v5875 = vrot.slane %v3187, 3
        %v5876 = vrot.slane %v3192, 3
        %v5877 = vsel %vm5841, %v5875, %v5876
        %v5878 = vrot.slane %v2282, 3
        %v5879 = vrot.slane %v2286, 3
        %v5880 = vsel %vm5841, %v5878, %v5879
        %v5881 = vrot.slane %v2284, 3
        %v5882 = vrot.slane %v2288, 3
        %v5883 = vsel %vm5841, %v5881, %v5882
        %v5884 = vrot.slane %v3200, 3
        %v5885 = vrot.slane %v3203, 3
        %v5886 = vsel %vm5841, %v5884, %v5885
        %v5887 = vrot.slane %v2296, 3
        %v5888 = vrot.slane %v2302, 3
        %v5889 = vsel %vm5841, %v5887, %v5888
        %v5890 = vrot.slane %v2298, 3
        %v5891 = vrot.slane %v2304, 3
        %v5892 = vsel %vm5841, %v5890, %v5891
        %v5893 = vrot.slane %v3211, 3
        %v5894 = vrot.slane %v3216, 3
        %v5895 = vsel %vm5841, %v5893, %v5894
        %v5896 = vrot.slane %v2312, 3
        %v5897 = vrot.slane %v2316, 3
        %v5898 = vsel %vm5841, %v5896, %v5897
        %v5899 = vrot.slane %v2314, 3
        %v5900 = vrot.slane %v2318, 3
        %v5901 = vsel %vm5841, %v5899, %v5900
        %v5902 = vrot.slane %v3224, 3
        %v5903 = vrot.slane %v3227, 3
        %v5904 = vsel %vm5841, %v5902, %v5903
        %v5905 = vrot.slane %v2326, 3
        %v5906 = vrot.slane %v2332, 3
        %v5907 = vsel %vm5841, %v5905, %v5906
        %v5908 = vrot.slane %v2328, 3
        %v5909 = vrot.slane %v2334, 3
        %v5910 = vsel %vm5841, %v5908, %v5909
        %v5911 = vrot.slane %v3235, 3
        %v5912 = vrot.slane %v3240, 3
        %v5913 = vsel %vm5841, %v5911, %v5912
        %v5914 = vrot.slane %v2342, 3
        %v5915 = vrot.slane %v2346, 3
        %v5916 = vsel %vm5841, %v5914, %v5915
        %v5917 = vrot.slane %v2344, 3
        %v5918 = vrot.slane %v2348, 3
        %v5919 = vsel %vm5841, %v5917, %v5918
        %v5920 = vrot.slane %v3248, 3
        %v5921 = vrot.slane %v3251, 3
        %v5922 = vsel %vm5841, %v5920, %v5921
        %v5923 = vrot.slane %v2356, 3
        %v5924 = vrot.slane %v2362, 3
        %v5925 = vsel %vm5841, %v5923, %v5924
        %v5926 = vrot.slane %v2358, 3
        %v5927 = vrot.slane %v2364, 3
        %v5928 = vsel %vm5841, %v5926, %v5927
        %v5929 = vrot.slane %v3259, 3
        %v5930 = vrot.slane %v3264, 3
        %v5931 = vsel %vm5841, %v5929, %v5930
        %v5932 = vrot.slane %v2372, 3
        %v5933 = vrot.slane %v2376, 3
        %v5934 = vsel %vm5841, %v5932, %v5933
        %v5935 = vrot.slane %v2374, 3
        %v5936 = vrot.slane %v2378, 3
        %v5937 = vsel %vm5841, %v5935, %v5936
        %v5938 = vrot.slane %v3272, 3
        %v5939 = vrot.slane %v3275, 3
        %v5940 = vsel %vm5841, %v5938, %v5939
        %v5941 = vrot.slane %v2386, 3
        %v5942 = vrot.slane %v2392, 3
        %v5943 = vsel %vm5841, %v5941, %v5942
        %v5944 = vrot.slane %v2388, 3
        %v5945 = vrot.slane %v2394, 3
        %v5946 = vsel %vm5841, %v5944, %v5945
        %v5947 = vrot.slane %v3283, 3
        %v5948 = vrot.slane %v3288, 3
        %v5949 = vsel %vm5841, %v5947, %v5948
        %v5950 = vrot.slane %v2402, 3
        %v5951 = vrot.slane %v2406, 3
        %v5952 = vsel %vm5841, %v5950, %v5951
        %v5953 = vrot.slane %v2404, 3
        %v5954 = vrot.slane %v2408, 3
        %v5955 = vsel %vm5841, %v5953, %v5954
        %v5956 = vrot.slane %v3296, 3
        %v5957 = vrot.slane %v3299, 3
        %v5958 = vsel %vm5841, %v5956, %v5957
        %v5959 = vrot.slane %v2416, 3
        %v5960 = vrot.slane %v2422, 3
        %v5961 = vsel %vm5841, %v5959, %v5960
        %v5962 = vrot.slane %v2418, 3
        %v5963 = vrot.slane %v2424, 3
        %v5964 = vsel %vm5841, %v5962, %v5963
        %v5965 = vrot.slane %v3307, 3
        %v5966 = vrot.slane %v3312, 3
        %v5967 = vsel %vm5841, %v5965, %v5966
        %v5968 = vrot.slane %v2432, 3
        %v5969 = vrot.slane %v2436, 3
        %v5970 = vsel %vm5841, %v5968, %v5969
        %v5971 = vrot.slane %v2434, 3
        %v5972 = vrot.slane %v2438, 3
        %v5973 = vsel %vm5841, %v5971, %v5972
        %v5974 = vrot.slane %v3320, 3
        %v5975 = vrot.slane %v3323, 3
        %v5976 = vsel %vm5841, %v5974, %v5975
        %v5977 = vrot.slane %v2446, 3
        %v5978 = vrot.slane %v2452, 3
        %v5979 = vsel %vm5841, %v5977, %v5978
        %v5980 = vrot.slane %v2448, 3
        %v5981 = vrot.slane %v2454, 3
        %v5982 = vsel %vm5841, %v5980, %v5981
        %v5983 = vrot.slane %v3331, 3
        %v5984 = vrot.slane %v3336, 3
        %v5985 = vsel %vm5841, %v5983, %v5984
        %v5986 = vrot.slane %v2462, 3
        %v5987 = vrot.slane %v2466, 3
        %v5988 = vsel %vm5841, %v5986, %v5987
        %v5989 = vrot.slane %v2464, 3
        %v5990 = vrot.slane %v2468, 3
        %v5991 = vsel %vm5841, %v5989, %v5990
        %v5992 = vrot.slane %v3344, 3
        %v5993 = vrot.slane %v3347, 3
        %v5994 = vsel %vm5841, %v5992, %v5993
        %v5995 = vrot.slane %v2476, 3
        %v5996 = vrot.slane %v2482, 3
        %v5997 = vsel %vm5841, %v5995, %v5996
        %v5998 = vrot.slane %v2478, 3
        %v5999 = vrot.slane %v2484, 3
        %v6000 = vsel %vm5841, %v5998, %v5999
        %v6001 = vrot.slane %v3355, 3
        %v6002 = vrot.slane %v3360, 3
        %v6003 = vsel %vm5841, %v6001, %v6002
        %v6004 = vrot.slane %v2492, 3
        %v6005 = vrot.slane %v2496, 3
        %v6006 = vsel %vm5841, %v6004, %v6005
        %v6007 = vrot.slane %v2494, 3
        %v6008 = vrot.slane %v2498, 3
        %v6009 = vsel %vm5841, %v6007, %v6008
        %v6010 = vrot.slane %v3368, 3
        %v6011 = vrot.slane %v3371, 3
        %v6012 = vsel %vm5841, %v6010, %v6011
        %v6013 = vrot.slane %v2506, 3
        %v6014 = vrot.slane %v2512, 3
        %v6015 = vsel %vm5841, %v6013, %v6014
        %v6016 = vrot.slane %v2508, 3
        %v6017 = vrot.slane %v2514, 3
        %v6018 = vsel %vm5841, %v6016, %v6017
        %v6019 = vrot.slane %v3379, 3
        %v6020 = vrot.slane %v3384, 3
        %v6021 = vsel %vm5841, %v6019, %v6020
        %v6022 = vrot.slane %v2522, 3
        %v6023 = vrot.slane %v2526, 3
        %v6024 = vsel %vm5841, %v6022, %v6023
        %v6025 = vrot.slane %v2524, 3
        %v6026 = vrot.slane %v2528, 3
        %v6027 = vsel %vm5841, %v6025, %v6026
        %v6028 = vrot.slane %v3392, 3
        %v6029 = vrot.slane %v3395, 3
        %v6030 = vsel %vm5841, %v6028, %v6029
        %v6031 = vrot.slane %v2536, 3
        %v6032 = vrot.slane %v2542, 3
        %v6033 = vsel %vm5841, %v6031, %v6032
        %v6034 = vrot.slane %v2538, 3
        %v6035 = vrot.slane %v2544, 3
        %v6036 = vsel %vm5841, %v6034, %v6035
        %v6037 = vrot.slane %v3403, 3
        %v6038 = vrot.slane %v3408, 3
        %v6039 = vsel %vm5841, %v6037, %v6038
        %v6040 = vrot.slane %v2552, 3
        %v6041 = vrot.slane %v2556, 3
        %v6042 = vsel %vm5841, %v6040, %v6041
        %v6043 = vrot.slane %v2554, 3
        %v6044 = vrot.slane %v2558, 3
        %v6045 = vsel %vm5841, %v6043, %v6044
        %v6046 = vrot.slane %v3416, 3
        %v6047 = vrot.slane %v3419, 3
        %v6048 = vsel %vm5841, %v6046, %v6047
        %v6049 = vrot.slane %v2566, 3
        %v6050 = vrot.slane %v2572, 3
        %v6051 = vsel %vm5841, %v6049, %v6050
        %v6052 = vrot.slane %v2568, 3
        %v6053 = vrot.slane %v2574, 3
        %v6054 = vsel %vm5841, %v6052, %v6053
        %v6055 = vrot.slane %v3427, 3
        %v6056 = vrot.slane %v3432, 3
        %v6057 = vsel %vm5841, %v6055, %v6056
        %v6058 = vrot.slane %v2582, 3
        %v6059 = vrot.slane %v2586, 3
        %v6060 = vsel %vm5841, %v6058, %v6059
        %v6061 = vrot.slane %v2584, 3
        %v6062 = vrot.slane %v2588, 3
        %v6063 = vsel %vm5841, %v6061, %v6062
        %v6064 = vrot.slane %v3440, 3
        %v6065 = vrot.slane %v3443, 3
        %v6066 = vsel %vm5841, %v6064, %v6065
        %v6067 = vrot.slane %v2596, 3
        %v6068 = vrot.slane %v2602, 3
        %v6069 = vsel %vm5841, %v6067, %v6068
        %v6070 = vrot.slane %v2598, 3
        %v6071 = vrot.slane %v2604, 3
        %v6072 = vsel %vm5841, %v6070, %v6071
        %v6073 = vrot.slane %v3451, 3
        %v6074 = vrot.slane %v3456, 3
        %v6075 = vsel %vm5841, %v6073, %v6074
        %v6076 = vrot.slane %v2612, 3
        %v6077 = vrot.slane %v2616, 3
        %v6078 = vsel %vm5841, %v6076, %v6077
        %v6079 = vrot.slane %v2614, 3
        %v6080 = vrot.slane %v2618, 3
        %v6081 = vsel %vm5841, %v6079, %v6080
        %v6082 = vrot.slane %v3464, 3
        %v6083 = vrot.slane %v3467, 3
        %v6084 = vsel %vm5841, %v6082, %v6083
        %v6085 = vrot.slane %v2626, 3
        %v6086 = vrot.slane %v2632, 3
        %v6087 = vsel %vm5841, %v6085, %v6086
        %v6088 = vrot.slane %v2628, 3
        %v6089 = vrot.slane %v2634, 3
        %v6090 = vsel %vm5841, %v6088, %v6089
        %v6091 = vrot.slane %v3475, 3
        %v6092 = vrot.slane %v3480, 3
        %v6093 = vsel %vm5841, %v6091, %v6092
        %v6094 = vrot.slane %v2642, 3
        %v6095 = vrot.slane %v2646, 3
        %v6096 = vsel %vm5841, %v6094, %v6095
        %v6097 = vrot.slane %v2644, 3
        %v6098 = vrot.slane %v2648, 3
        %v6099 = vsel %vm5841, %v6097, %v6098
        %v6100 = vrot.slane %v3488, 3
        %v6101 = vrot.slane %v3491, 3
        %v6102 = vsel %vm5841, %v6100, %v6101
        %v6103 = vrot.slane %v2656, 3
        %v6104 = vrot.slane %v2662, 3
        %v6105 = vsel %vm5841, %v6103, %v6104
        %v6106 = vrot.slane %v2658, 3
        %v6107 = vrot.slane %v2664, 3
        %v6108 = vsel %vm5841, %v6106, %v6107
        %v6109 = vrot.slane %v3499, 3
        %v6110 = vrot.slane %v3504, 3
        %v6111 = vsel %vm5841, %v6109, %v6110
        %v6112 = vrot.slane %v2672, 3
        %v6113 = vrot.slane %v2676, 3
        %v6114 = vsel %vm5841, %v6112, %v6113
        %v6115 = vrot.slane %v2674, 3
        %v6116 = vrot.slane %v2678, 3
        %v6117 = vsel %vm5841, %v6115, %v6116
        %v6118 = vrot.slane %v3512, 3
        %v6119 = vrot.slane %v3515, 3
        %v6120 = vsel %vm5841, %v6118, %v6119
        %v6121 = vrot.slane %v2686, 3
        %v6122 = vrot.slane %v2692, 3
        %v6123 = vsel %vm5841, %v6121, %v6122
        %v6124 = vrot.slane %v2688, 3
        %v6125 = vrot.slane %v2694, 3
        %v6126 = vsel %vm5841, %v6124, %v6125
        %v6127 = vrot.slane %v3523, 3
        %v6128 = vrot.slane %v3528, 3
        %v6129 = vsel %vm5841, %v6127, %v6128
        %6130 = vrot.lane.b32.xlu0 %v5844, 80
        %v6131 = vpop.permute.xlu0 %6130
        %6132 = vrot.lane.b32.xlu0 %v5847, 80
        %v6133 = vpop.permute.xlu0 %6132
        %6134 = vrot.lane.b32.xlu0 %v5850, 80
        %v6135 = vpop.permute.xlu0 %6134
        %6136 = vrot.lane.b32.xlu0 %v5843, 80
        %v6137 = vpop.permute.xlu0 %6136
        %6138 = vrot.lane.b32.xlu0 %v5846, 80
        %v6139 = vpop.permute.xlu0 %6138
        %6140 = vrot.lane.b32.xlu0 %v5849, 80
        %v6141 = vpop.permute.xlu0 %6140
        %6142 = vrot.lane.b32.xlu0 %v5853, 80
        %v6143 = vpop.permute.xlu0 %6142
        %6144 = vrot.lane.b32.xlu0 %v5856, 80
        %v6145 = vpop.permute.xlu0 %6144
        %6146 = vrot.lane.b32.xlu0 %v5859, 80
        %v6147 = vpop.permute.xlu0 %6146
        %6148 = vrot.lane.b32.xlu0 %v5852, 80
        %v6149 = vpop.permute.xlu0 %6148
        %6150 = vrot.lane.b32.xlu0 %v5855, 80
        %v6151 = vpop.permute.xlu0 %6150
        %6152 = vrot.lane.b32.xlu0 %v5858, 80
        %v6153 = vpop.permute.xlu0 %6152
        %6154 = vrot.lane.b32.xlu0 %v5862, 80
        %v6155 = vpop.permute.xlu0 %6154
        %6156 = vrot.lane.b32.xlu0 %v5865, 80
        %v6157 = vpop.permute.xlu0 %6156
        %6158 = vrot.lane.b32.xlu0 %v5868, 80
        %v6159 = vpop.permute.xlu0 %6158
        %6160 = vrot.lane.b32.xlu0 %v5861, 80
        %v6161 = vpop.permute.xlu0 %6160
        %6162 = vrot.lane.b32.xlu0 %v5864, 80
        %v6163 = vpop.permute.xlu0 %6162
        %6164 = vrot.lane.b32.xlu0 %v5867, 80
        %v6165 = vpop.permute.xlu0 %6164
        %6166 = vrot.lane.b32.xlu0 %v5871, 80
        %v6167 = vpop.permute.xlu0 %6166
        %6168 = vrot.lane.b32.xlu0 %v5874, 80
        %v6169 = vpop.permute.xlu0 %6168
        %6170 = vrot.lane.b32.xlu0 %v5877, 80
        %v6171 = vpop.permute.xlu0 %6170
        %6172 = vrot.lane.b32.xlu0 %v5870, 80
        %v6173 = vpop.permute.xlu0 %6172
        %6174 = vrot.lane.b32.xlu0 %v5873, 80
        %v6175 = vpop.permute.xlu0 %6174
        %6176 = vrot.lane.b32.xlu0 %v5876, 80
        %v6177 = vpop.permute.xlu0 %6176
        %6178 = vrot.lane.b32.xlu0 %v5880, 80
        %v6179 = vpop.permute.xlu0 %6178
        %6180 = vrot.lane.b32.xlu0 %v5883, 80
        %v6181 = vpop.permute.xlu0 %6180
        %6182 = vrot.lane.b32.xlu0 %v5886, 80
        %v6183 = vpop.permute.xlu0 %6182
        %6184 = vrot.lane.b32.xlu0 %v5879, 80
        %v6185 = vpop.permute.xlu0 %6184
        %6186 = vrot.lane.b32.xlu0 %v5882, 80
        %v6187 = vpop.permute.xlu0 %6186
        %6188 = vrot.lane.b32.xlu0 %v5885, 80
        %v6189 = vpop.permute.xlu0 %6188
        %6190 = vrot.lane.b32.xlu0 %v5889, 80
        %v6191 = vpop.permute.xlu0 %6190
        %6192 = vrot.lane.b32.xlu0 %v5892, 80
        %v6193 = vpop.permute.xlu0 %6192
        %6194 = vrot.lane.b32.xlu0 %v5895, 80
        %v6195 = vpop.permute.xlu0 %6194
        %6196 = vrot.lane.b32.xlu0 %v5888, 80
        %v6197 = vpop.permute.xlu0 %6196
        %6198 = vrot.lane.b32.xlu0 %v5891, 80
        %v6199 = vpop.permute.xlu0 %6198
        %6200 = vrot.lane.b32.xlu0 %v5894, 80
        %v6201 = vpop.permute.xlu0 %6200
        %6202 = vrot.lane.b32.xlu0 %v5898, 80
        %v6203 = vpop.permute.xlu0 %6202
        %6204 = vrot.lane.b32.xlu0 %v5901, 80
        %v6205 = vpop.permute.xlu0 %6204
        %6206 = vrot.lane.b32.xlu0 %v5904, 80
        %v6207 = vpop.permute.xlu0 %6206
        %6208 = vrot.lane.b32.xlu0 %v5897, 80
        %v6209 = vpop.permute.xlu0 %6208
        %6210 = vrot.lane.b32.xlu0 %v5900, 80
        %v6211 = vpop.permute.xlu0 %6210
        %6212 = vrot.lane.b32.xlu0 %v5903, 80
        %v6213 = vpop.permute.xlu0 %6212
        %6214 = vrot.lane.b32.xlu0 %v5907, 80
        %v6215 = vpop.permute.xlu0 %6214
        %6216 = vrot.lane.b32.xlu0 %v5910, 80
        %v6217 = vpop.permute.xlu0 %6216
        %6218 = vrot.lane.b32.xlu0 %v5913, 80
        %v6219 = vpop.permute.xlu0 %6218
        %6220 = vrot.lane.b32.xlu0 %v5906, 80
        %v6221 = vpop.permute.xlu0 %6220
        %6222 = vrot.lane.b32.xlu0 %v5909, 80
        %v6223 = vpop.permute.xlu0 %6222
        %6224 = vrot.lane.b32.xlu0 %v5912, 80
        %v6225 = vpop.permute.xlu0 %6224
        %6226 = vrot.lane.b32.xlu0 %v5916, 80
        %v6227 = vpop.permute.xlu0 %6226
        %6228 = vrot.lane.b32.xlu0 %v5919, 80
        %v6229 = vpop.permute.xlu0 %6228
        %6230 = vrot.lane.b32.xlu0 %v5922, 80
        %v6231 = vpop.permute.xlu0 %6230
        %6232 = vrot.lane.b32.xlu0 %v5915, 80
        %v6233 = vpop.permute.xlu0 %6232
        %6234 = vrot.lane.b32.xlu0 %v5918, 80
        %v6235 = vpop.permute.xlu0 %6234
        %6236 = vrot.lane.b32.xlu0 %v5921, 80
        %v6237 = vpop.permute.xlu0 %6236
        %6238 = vrot.lane.b32.xlu0 %v5925, 80
        %v6239 = vpop.permute.xlu0 %6238
        %6240 = vrot.lane.b32.xlu0 %v5928, 80
        %v6241 = vpop.permute.xlu0 %6240
        %6242 = vrot.lane.b32.xlu0 %v5931, 80
        %v6243 = vpop.permute.xlu0 %6242
        %6244 = vrot.lane.b32.xlu0 %v5924, 80
        %v6245 = vpop.permute.xlu0 %6244
        %6246 = vrot.lane.b32.xlu0 %v5927, 80
        %v6247 = vpop.permute.xlu0 %6246
        %6248 = vrot.lane.b32.xlu0 %v5930, 80
        %v6249 = vpop.permute.xlu0 %6248
        %6250 = vrot.lane.b32.xlu0 %v5934, 80
        %v6251 = vpop.permute.xlu0 %6250
        %6252 = vrot.lane.b32.xlu0 %v5937, 80
        %v6253 = vpop.permute.xlu0 %6252
        %6254 = vrot.lane.b32.xlu0 %v5940, 80
        %v6255 = vpop.permute.xlu0 %6254
        %6256 = vrot.lane.b32.xlu0 %v5933, 80
        %v6257 = vpop.permute.xlu0 %6256
        %6258 = vrot.lane.b32.xlu0 %v5936, 80
        %v6259 = vpop.permute.xlu0 %6258
        %6260 = vrot.lane.b32.xlu0 %v5939, 80
        %v6261 = vpop.permute.xlu0 %6260
        %6262 = vrot.lane.b32.xlu0 %v5943, 80
        %v6263 = vpop.permute.xlu0 %6262
        %6264 = vrot.lane.b32.xlu0 %v5946, 80
        %v6265 = vpop.permute.xlu0 %6264
        %6266 = vrot.lane.b32.xlu0 %v5949, 80
        %v6267 = vpop.permute.xlu0 %6266
        %6268 = vrot.lane.b32.xlu0 %v5942, 80
        %v6269 = vpop.permute.xlu0 %6268
        %6270 = vrot.lane.b32.xlu0 %v5945, 80
        %v6271 = vpop.permute.xlu0 %6270
        %6272 = vrot.lane.b32.xlu0 %v5948, 80
        %v6273 = vpop.permute.xlu0 %6272
        %6274 = vrot.lane.b32.xlu0 %v5952, 80
        %v6275 = vpop.permute.xlu0 %6274
        %6276 = vrot.lane.b32.xlu0 %v5955, 80
        %v6277 = vpop.permute.xlu0 %6276
        %6278 = vrot.lane.b32.xlu0 %v5958, 80
        %v6279 = vpop.permute.xlu0 %6278
        %6280 = vrot.lane.b32.xlu0 %v5951, 80
        %v6281 = vpop.permute.xlu0 %6280
        %6282 = vrot.lane.b32.xlu0 %v5954, 80
        %v6283 = vpop.permute.xlu0 %6282
        %6284 = vrot.lane.b32.xlu0 %v5957, 80
        %v6285 = vpop.permute.xlu0 %6284
        %6286 = vrot.lane.b32.xlu0 %v5961, 80
        %v6287 = vpop.permute.xlu0 %6286
        %6288 = vrot.lane.b32.xlu0 %v5964, 80
        %v6289 = vpop.permute.xlu0 %6288
        %6290 = vrot.lane.b32.xlu0 %v5967, 80
        %v6291 = vpop.permute.xlu0 %6290
        %6292 = vrot.lane.b32.xlu0 %v5960, 80
        %v6293 = vpop.permute.xlu0 %6292
        %6294 = vrot.lane.b32.xlu0 %v5963, 80
        %v6295 = vpop.permute.xlu0 %6294
        %6296 = vrot.lane.b32.xlu0 %v5966, 80
        %v6297 = vpop.permute.xlu0 %6296
        %6298 = vrot.lane.b32.xlu0 %v5970, 80
        %v6299 = vpop.permute.xlu0 %6298
        %6300 = vrot.lane.b32.xlu0 %v5973, 80
        %v6301 = vpop.permute.xlu0 %6300
        %6302 = vrot.lane.b32.xlu0 %v5976, 80
        %v6303 = vpop.permute.xlu0 %6302
        %6304 = vrot.lane.b32.xlu0 %v5969, 80
        %v6305 = vpop.permute.xlu0 %6304
        %6306 = vrot.lane.b32.xlu0 %v5972, 80
        %v6307 = vpop.permute.xlu0 %6306
        %6308 = vrot.lane.b32.xlu0 %v5975, 80
        %v6309 = vpop.permute.xlu0 %6308
        %6310 = vrot.lane.b32.xlu0 %v5979, 80
        %v6311 = vpop.permute.xlu0 %6310
        %6312 = vrot.lane.b32.xlu0 %v5982, 80
        %v6313 = vpop.permute.xlu0 %6312
        %6314 = vrot.lane.b32.xlu0 %v5985, 80
        %v6315 = vpop.permute.xlu0 %6314
        %6316 = vrot.lane.b32.xlu0 %v5978, 80
        %v6317 = vpop.permute.xlu0 %6316
        %6318 = vrot.lane.b32.xlu0 %v5981, 80
        %v6319 = vpop.permute.xlu0 %6318
        %6320 = vrot.lane.b32.xlu0 %v5984, 80
        %v6321 = vpop.permute.xlu0 %6320
        %6322 = vrot.lane.b32.xlu0 %v5988, 80
        %v6323 = vpop.permute.xlu0 %6322
        %6324 = vrot.lane.b32.xlu0 %v5991, 80
        %v6325 = vpop.permute.xlu0 %6324
        %6326 = vrot.lane.b32.xlu0 %v5994, 80
        %v6327 = vpop.permute.xlu0 %6326
        %6328 = vrot.lane.b32.xlu0 %v5987, 80
        %v6329 = vpop.permute.xlu0 %6328
        %6330 = vrot.lane.b32.xlu0 %v5990, 80
        %v6331 = vpop.permute.xlu0 %6330
        %6332 = vrot.lane.b32.xlu0 %v5993, 80
        %v6333 = vpop.permute.xlu0 %6332
        %6334 = vrot.lane.b32.xlu0 %v5997, 80
        %v6335 = vpop.permute.xlu0 %6334
        %6336 = vrot.lane.b32.xlu0 %v6000, 80
        %v6337 = vpop.permute.xlu0 %6336
        %6338 = vrot.lane.b32.xlu0 %v6003, 80
        %v6339 = vpop.permute.xlu0 %6338
        %6340 = vrot.lane.b32.xlu0 %v5996, 80
        %v6341 = vpop.permute.xlu0 %6340
        %6342 = vrot.lane.b32.xlu0 %v5999, 80
        %v6343 = vpop.permute.xlu0 %6342
        %6344 = vrot.lane.b32.xlu0 %v6002, 80
        %v6345 = vpop.permute.xlu0 %6344
        %6346 = vrot.lane.b32.xlu0 %v6006, 80
        %v6347 = vpop.permute.xlu0 %6346
        %6348 = vrot.lane.b32.xlu0 %v6009, 80
        %v6349 = vpop.permute.xlu0 %6348
        %6350 = vrot.lane.b32.xlu0 %v6012, 80
        %v6351 = vpop.permute.xlu0 %6350
        %6352 = vrot.lane.b32.xlu0 %v6005, 80
        %v6353 = vpop.permute.xlu0 %6352
        %6354 = vrot.lane.b32.xlu0 %v6008, 80
        %v6355 = vpop.permute.xlu0 %6354
        %6356 = vrot.lane.b32.xlu0 %v6011, 80
        %v6357 = vpop.permute.xlu0 %6356
        %6358 = vrot.lane.b32.xlu0 %v6015, 80
        %v6359 = vpop.permute.xlu0 %6358
        %6360 = vrot.lane.b32.xlu0 %v6018, 80
        %v6361 = vpop.permute.xlu0 %6360
        %6362 = vrot.lane.b32.xlu0 %v6021, 80
        %v6363 = vpop.permute.xlu0 %6362
        %6364 = vrot.lane.b32.xlu0 %v6014, 80
        %v6365 = vpop.permute.xlu0 %6364
        %6366 = vrot.lane.b32.xlu0 %v6017, 80
        %v6367 = vpop.permute.xlu0 %6366
        %6368 = vrot.lane.b32.xlu0 %v6020, 80
        %v6369 = vpop.permute.xlu0 %6368
        %6370 = vrot.lane.b32.xlu0 %v6024, 80
        %v6371 = vpop.permute.xlu0 %6370
        %6372 = vrot.lane.b32.xlu0 %v6027, 80
        %v6373 = vpop.permute.xlu0 %6372
        %6374 = vrot.lane.b32.xlu0 %v6030, 80
        %v6375 = vpop.permute.xlu0 %6374
        %6376 = vrot.lane.b32.xlu0 %v6023, 80
        %v6377 = vpop.permute.xlu0 %6376
        %6378 = vrot.lane.b32.xlu0 %v6026, 80
        %v6379 = vpop.permute.xlu0 %6378
        %6380 = vrot.lane.b32.xlu0 %v6029, 80
        %v6381 = vpop.permute.xlu0 %6380
        %6382 = vrot.lane.b32.xlu0 %v6033, 80
        %v6383 = vpop.permute.xlu0 %6382
        %6384 = vrot.lane.b32.xlu0 %v6036, 80
        %v6385 = vpop.permute.xlu0 %6384
        %6386 = vrot.lane.b32.xlu0 %v6039, 80
        %v6387 = vpop.permute.xlu0 %6386
        %6388 = vrot.lane.b32.xlu0 %v6032, 80
        %v6389 = vpop.permute.xlu0 %6388
        %6390 = vrot.lane.b32.xlu0 %v6035, 80
        %v6391 = vpop.permute.xlu0 %6390
        %6392 = vrot.lane.b32.xlu0 %v6038, 80
        %v6393 = vpop.permute.xlu0 %6392
        %6394 = vrot.lane.b32.xlu0 %v6042, 80
        %v6395 = vpop.permute.xlu0 %6394
        %6396 = vrot.lane.b32.xlu0 %v6045, 80
        %v6397 = vpop.permute.xlu0 %6396
        %6398 = vrot.lane.b32.xlu0 %v6048, 80
        %v6399 = vpop.permute.xlu0 %6398
        %6400 = vrot.lane.b32.xlu0 %v6041, 80
        %v6401 = vpop.permute.xlu0 %6400
        %6402 = vrot.lane.b32.xlu0 %v6044, 80
        %v6403 = vpop.permute.xlu0 %6402
        %6404 = vrot.lane.b32.xlu0 %v6047, 80
        %v6405 = vpop.permute.xlu0 %6404
        %6406 = vrot.lane.b32.xlu0 %v6051, 80
        %v6407 = vpop.permute.xlu0 %6406
        %6408 = vrot.lane.b32.xlu0 %v6054, 80
        %v6409 = vpop.permute.xlu0 %6408
        %6410 = vrot.lane.b32.xlu0 %v6057, 80
        %v6411 = vpop.permute.xlu0 %6410
        %6412 = vrot.lane.b32.xlu0 %v6050, 80
        %v6413 = vpop.permute.xlu0 %6412
        %6414 = vrot.lane.b32.xlu0 %v6053, 80
        %v6415 = vpop.permute.xlu0 %6414
        %6416 = vrot.lane.b32.xlu0 %v6056, 80
        %v6417 = vpop.permute.xlu0 %6416
        %6418 = vrot.lane.b32.xlu0 %v6060, 80
        %v6419 = vpop.permute.xlu0 %6418
        %6420 = vrot.lane.b32.xlu0 %v6063, 80
        %v6421 = vpop.permute.xlu0 %6420
        %6422 = vrot.lane.b32.xlu0 %v6066, 80
        %v6423 = vpop.permute.xlu0 %6422
        %6424 = vrot.lane.b32.xlu0 %v6059, 80
        %v6425 = vpop.permute.xlu0 %6424
        %6426 = vrot.lane.b32.xlu0 %v6062, 80
        %v6427 = vpop.permute.xlu0 %6426
        %6428 = vrot.lane.b32.xlu0 %v6065, 80
        %v6429 = vpop.permute.xlu0 %6428
        %6430 = vrot.lane.b32.xlu0 %v6069, 80
        %v6431 = vpop.permute.xlu0 %6430
        %6432 = vrot.lane.b32.xlu0 %v6072, 80
        %v6433 = vpop.permute.xlu0 %6432
        %6434 = vrot.lane.b32.xlu0 %v6075, 80
        %v6435 = vpop.permute.xlu0 %6434
        %6436 = vrot.lane.b32.xlu0 %v6068, 80
        %v6437 = vpop.permute.xlu0 %6436
        %6438 = vrot.lane.b32.xlu0 %v6071, 80
        %v6439 = vpop.permute.xlu0 %6438
        %6440 = vrot.lane.b32.xlu0 %v6074, 80
        %v6441 = vpop.permute.xlu0 %6440
        %6442 = vrot.lane.b32.xlu0 %v6078, 80
        %v6443 = vpop.permute.xlu0 %6442
        %6444 = vrot.lane.b32.xlu0 %v6081, 80
        %v6445 = vpop.permute.xlu0 %6444
        %6446 = vrot.lane.b32.xlu0 %v6084, 80
        %v6447 = vpop.permute.xlu0 %6446
        %6448 = vrot.lane.b32.xlu0 %v6077, 80
        %v6449 = vpop.permute.xlu0 %6448
        %6450 = vrot.lane.b32.xlu0 %v6080, 80
        %v6451 = vpop.permute.xlu0 %6450
        %6452 = vrot.lane.b32.xlu0 %v6083, 80
        %v6453 = vpop.permute.xlu0 %6452
        %6454 = vrot.lane.b32.xlu0 %v6087, 80
        %v6455 = vpop.permute.xlu0 %6454
        %6456 = vrot.lane.b32.xlu0 %v6090, 80
        %v6457 = vpop.permute.xlu0 %6456
        %6458 = vrot.lane.b32.xlu0 %v6093, 80
        %v6459 = vpop.permute.xlu0 %6458
        %6460 = vrot.lane.b32.xlu0 %v6086, 80
        %v6461 = vpop.permute.xlu0 %6460
        %6462 = vrot.lane.b32.xlu0 %v6089, 80
        %v6463 = vpop.permute.xlu0 %6462
        %6464 = vrot.lane.b32.xlu0 %v6092, 80
        %v6465 = vpop.permute.xlu0 %6464
        %6466 = vrot.lane.b32.xlu0 %v6096, 80
        %v6467 = vpop.permute.xlu0 %6466
        %6468 = vrot.lane.b32.xlu0 %v6099, 80
        %v6469 = vpop.permute.xlu0 %6468
        %6470 = vrot.lane.b32.xlu0 %v6102, 80
        %v6471 = vpop.permute.xlu0 %6470
        %6472 = vrot.lane.b32.xlu0 %v6095, 80
        %v6473 = vpop.permute.xlu0 %6472
        %6474 = vrot.lane.b32.xlu0 %v6098, 80
        %v6475 = vpop.permute.xlu0 %6474
        %6476 = vrot.lane.b32.xlu0 %v6101, 80
        %v6477 = vpop.permute.xlu0 %6476
        %6478 = vrot.lane.b32.xlu0 %v6105, 80
        %v6479 = vpop.permute.xlu0 %6478
        %6480 = vrot.lane.b32.xlu0 %v6108, 80
        %v6481 = vpop.permute.xlu0 %6480
        %6482 = vrot.lane.b32.xlu0 %v6111, 80
        %v6483 = vpop.permute.xlu0 %6482
        %6484 = vrot.lane.b32.xlu0 %v6104, 80
        %v6485 = vpop.permute.xlu0 %6484
        %6486 = vrot.lane.b32.xlu0 %v6107, 80
        %v6487 = vpop.permute.xlu0 %6486
        %6488 = vrot.lane.b32.xlu0 %v6110, 80
        %v6489 = vpop.permute.xlu0 %6488
        %6490 = vrot.lane.b32.xlu0 %v6114, 80
        %v6491 = vpop.permute.xlu0 %6490
        %6492 = vrot.lane.b32.xlu0 %v6117, 80
        %v6493 = vpop.permute.xlu0 %6492
        %6494 = vrot.lane.b32.xlu0 %v6120, 80
        %v6495 = vpop.permute.xlu0 %6494
        %6496 = vrot.lane.b32.xlu0 %v6113, 80
        %v6497 = vpop.permute.xlu0 %6496
        %6498 = vrot.lane.b32.xlu0 %v6116, 80
        %v6499 = vpop.permute.xlu0 %6498
        %6500 = vrot.lane.b32.xlu0 %v6119, 80
        %v6501 = vpop.permute.xlu0 %6500
        %6502 = vrot.lane.b32.xlu0 %v6123, 80
        %v6503 = vpop.permute.xlu0 %6502
        %6504 = vrot.lane.b32.xlu0 %v6126, 80
        %v6505 = vpop.permute.xlu0 %6504
        %6506 = vrot.lane.b32.xlu0 %v6129, 80
        %v6507 = vpop.permute.xlu0 %6506
        %6508 = vrot.lane.b32.xlu0 %v6122, 80
        %v6509 = vpop.permute.xlu0 %6508
        %6510 = vrot.lane.b32.xlu0 %v6125, 80
        %v6511 = vpop.permute.xlu0 %6510
        %6512 = vrot.lane.b32.xlu0 %v6128, 80
        %v6513 = vpop.permute.xlu0 %6512
        %vm6514 = vcmask 654336
        %v6515 = vsel %vm6514, %v6131, %v6133
        %v6516 = vsel %vm6514, %v6133, %v6135
        %v6517 = vsel %vm6514, %v6137, %v6139
        %v6518 = vsel %vm6514, %v6139, %v6141
        %v6519 = vsel %vm6514, %v6143, %v6145
        %v6520 = vsel %vm6514, %v6145, %v6147
        %v6521 = vsel %vm6514, %v6149, %v6151
        %v6522 = vsel %vm6514, %v6151, %v6153
        %v6523 = vsel %vm6514, %v6155, %v6157
        %v6524 = vsel %vm6514, %v6157, %v6159
        %v6525 = vsel %vm6514, %v6161, %v6163
        %v6526 = vsel %vm6514, %v6163, %v6165
        %v6527 = vsel %vm6514, %v6167, %v6169
        %v6528 = vsel %vm6514, %v6169, %v6171
        %v6529 = vsel %vm6514, %v6173, %v6175
        %v6530 = vsel %vm6514, %v6175, %v6177
        %v6531 = vsel %vm6514, %v6179, %v6181
        %v6532 = vsel %vm6514, %v6181, %v6183
        %v6533 = vsel %vm6514, %v6185, %v6187
        %v6534 = vsel %vm6514, %v6187, %v6189
        %v6535 = vsel %vm6514, %v6191, %v6193
        %v6536 = vsel %vm6514, %v6193, %v6195
        %v6537 = vsel %vm6514, %v6197, %v6199
        %v6538 = vsel %vm6514, %v6199, %v6201
        %v6539 = vsel %vm6514, %v6203, %v6205
        %v6540 = vsel %vm6514, %v6205, %v6207
        %v6541 = vsel %vm6514, %v6209, %v6211
        %v6542 = vsel %vm6514, %v6211, %v6213
        %v6543 = vsel %vm6514, %v6215, %v6217
        %v6544 = vsel %vm6514, %v6217, %v6219
        %v6545 = vsel %vm6514, %v6221, %v6223
        %v6546 = vsel %vm6514, %v6223, %v6225
        %v6547 = vsel %vm6514, %v6227, %v6229
        %v6548 = vsel %vm6514, %v6229, %v6231
        %v6549 = vsel %vm6514, %v6233, %v6235
        %v6550 = vsel %vm6514, %v6235, %v6237
        %v6551 = vsel %vm6514, %v6239, %v6241
        %v6552 = vsel %vm6514, %v6241, %v6243
        %v6553 = vsel %vm6514, %v6245, %v6247
        %v6554 = vsel %vm6514, %v6247, %v6249
        %v6555 = vsel %vm6514, %v6251, %v6253
        %v6556 = vsel %vm6514, %v6253, %v6255
        %v6557 = vsel %vm6514, %v6257, %v6259
        %v6558 = vsel %vm6514, %v6259, %v6261
        %v6559 = vsel %vm6514, %v6263, %v6265
        %v6560 = vsel %vm6514, %v6265, %v6267
        %v6561 = vsel %vm6514, %v6269, %v6271
        %v6562 = vsel %vm6514, %v6271, %v6273
        %v6563 = vsel %vm6514, %v6275, %v6277
        %v6564 = vsel %vm6514, %v6277, %v6279
        %v6565 = vsel %vm6514, %v6281, %v6283
        %v6566 = vsel %vm6514, %v6283, %v6285
        %v6567 = vsel %vm6514, %v6287, %v6289
        %v6568 = vsel %vm6514, %v6289, %v6291
        %v6569 = vsel %vm6514, %v6293, %v6295
        %v6570 = vsel %vm6514, %v6295, %v6297
        %v6571 = vsel %vm6514, %v6299, %v6301
        %v6572 = vsel %vm6514, %v6301, %v6303
        %v6573 = vsel %vm6514, %v6305, %v6307
        %v6574 = vsel %vm6514, %v6307, %v6309
        %v6575 = vsel %vm6514, %v6311, %v6313
        %v6576 = vsel %vm6514, %v6313, %v6315
        %v6577 = vsel %vm6514, %v6317, %v6319
        %v6578 = vsel %vm6514, %v6319, %v6321
        %v6579 = vsel %vm6514, %v6323, %v6325
        %v6580 = vsel %vm6514, %v6325, %v6327
        %v6581 = vsel %vm6514, %v6329, %v6331
        %v6582 = vsel %vm6514, %v6331, %v6333
        %v6583 = vsel %vm6514, %v6335, %v6337
        %v6584 = vsel %vm6514, %v6337, %v6339
        %v6585 = vsel %vm6514, %v6341, %v6343
        %v6586 = vsel %vm6514, %v6343, %v6345
        %v6587 = vsel %vm6514, %v6347, %v6349
        %v6588 = vsel %vm6514, %v6349, %v6351
        %v6589 = vsel %vm6514, %v6353, %v6355
        %v6590 = vsel %vm6514, %v6355, %v6357
        %v6591 = vsel %vm6514, %v6359, %v6361
        %v6592 = vsel %vm6514, %v6361, %v6363
        %v6593 = vsel %vm6514, %v6365, %v6367
        %v6594 = vsel %vm6514, %v6367, %v6369
        %v6595 = vsel %vm6514, %v6371, %v6373
        %v6596 = vsel %vm6514, %v6373, %v6375
        %v6597 = vsel %vm6514, %v6377, %v6379
        %v6598 = vsel %vm6514, %v6379, %v6381
        %v6599 = vsel %vm6514, %v6383, %v6385
        %v6600 = vsel %vm6514, %v6385, %v6387
        %v6601 = vsel %vm6514, %v6389, %v6391
        %v6602 = vsel %vm6514, %v6391, %v6393
        %v6603 = vsel %vm6514, %v6395, %v6397
        %v6604 = vsel %vm6514, %v6397, %v6399
        %v6605 = vsel %vm6514, %v6401, %v6403
        %v6606 = vsel %vm6514, %v6403, %v6405
        %v6607 = vsel %vm6514, %v6407, %v6409
        %v6608 = vsel %vm6514, %v6409, %v6411
        %v6609 = vsel %vm6514, %v6413, %v6415
        %v6610 = vsel %vm6514, %v6415, %v6417
        %v6611 = vsel %vm6514, %v6419, %v6421
        %v6612 = vsel %vm6514, %v6421, %v6423
        %v6613 = vsel %vm6514, %v6425, %v6427
        %v6614 = vsel %vm6514, %v6427, %v6429
        %v6615 = vsel %vm6514, %v6431, %v6433
        %v6616 = vsel %vm6514, %v6433, %v6435
        %v6617 = vsel %vm6514, %v6437, %v6439
        %v6618 = vsel %vm6514, %v6439, %v6441
        %v6619 = vsel %vm6514, %v6443, %v6445
        %v6620 = vsel %vm6514, %v6445, %v6447
        %v6621 = vsel %vm6514, %v6449, %v6451
        %v6622 = vsel %vm6514, %v6451, %v6453
        %v6623 = vsel %vm6514, %v6455, %v6457
        %v6624 = vsel %vm6514, %v6457, %v6459
        %v6625 = vsel %vm6514, %v6461, %v6463
        %v6626 = vsel %vm6514, %v6463, %v6465
        %v6627 = vsel %vm6514, %v6467, %v6469
        %v6628 = vsel %vm6514, %v6469, %v6471
        %v6629 = vsel %vm6514, %v6473, %v6475
        %v6630 = vsel %vm6514, %v6475, %v6477
        %v6631 = vsel %vm6514, %v6479, %v6481
        %v6632 = vsel %vm6514, %v6481, %v6483
        %v6633 = vsel %vm6514, %v6485, %v6487
        %v6634 = vsel %vm6514, %v6487, %v6489
        %v6635 = vsel %vm6514, %v6491, %v6493
        %v6636 = vsel %vm6514, %v6493, %v6495
        %v6637 = vsel %vm6514, %v6497, %v6499
        %v6638 = vsel %vm6514, %v6499, %v6501
        %v6639 = vsel %vm6514, %v6503, %v6505
        %v6640 = vsel %vm6514, %v6505, %v6507
        %v6641 = vsel %vm6514, %v6509, %v6511
        %v6642 = vsel %vm6514, %v6511, %v6513
        %v6771 = vadd.f32 %v5713, %v6515
        %v6772 = vadd.f32 %v5714, %v6516
        %v6773 = vadd.f32 %v5715, %v6517
        %v6774 = vadd.f32 %v5716, %v6518
        %v6775 = vadd.f32 %v5717, %v6519
        %v6776 = vadd.f32 %v5718, %v6520
        %v6777 = vadd.f32 %v5719, %v6521
        %v6778 = vadd.f32 %v5720, %v6522
        %v6779 = vadd.f32 %v5721, %v6523
        %v6780 = vadd.f32 %v5722, %v6524
        %v6781 = vadd.f32 %v5723, %v6525
        %v6782 = vadd.f32 %v5724, %v6526
        %v6783 = vadd.f32 %v5725, %v6527
        %v6784 = vadd.f32 %v5726, %v6528
        %v6785 = vadd.f32 %v5727, %v6529
        %v6786 = vadd.f32 %v5728, %v6530
        %v6787 = vadd.f32 %v5729, %v6531
        %v6788 = vadd.f32 %v5730, %v6532
        %v6789 = vadd.f32 %v5731, %v6533
        %v6790 = vadd.f32 %v5732, %v6534
        %v6791 = vadd.f32 %v5733, %v6535
        %v6792 = vadd.f32 %v5734, %v6536
        %v6793 = vadd.f32 %v5735, %v6537
        %v6794 = vadd.f32 %v5736, %v6538
        %v6795 = vadd.f32 %v5737, %v6539
        %v6796 = vadd.f32 %v5738, %v6540
        %v6797 = vadd.f32 %v5739, %v6541
        %v6798 = vadd.f32 %v5740, %v6542
        %v6799 = vadd.f32 %v5741, %v6543
        %v6800 = vadd.f32 %v5742, %v6544
        %v6801 = vadd.f32 %v5743, %v6545
        %v6802 = vadd.f32 %v5744, %v6546
        %v6803 = vadd.f32 %v5745, %v6547
        %v6804 = vadd.f32 %v5746, %v6548
        %v6805 = vadd.f32 %v5747, %v6549
        %v6806 = vadd.f32 %v5748, %v6550
        %v6807 = vadd.f32 %v5749, %v6551
        %v6808 = vadd.f32 %v5750, %v6552
        %v6809 = vadd.f32 %v5751, %v6553
        %v6810 = vadd.f32 %v5752, %v6554
        %v6811 = vadd.f32 %v5753, %v6555
        %v6812 = vadd.f32 %v5754, %v6556
        %v6813 = vadd.f32 %v5755, %v6557
        %v6814 = vadd.f32 %v5756, %v6558
        %v6815 = vadd.f32 %v5757, %v6559
        %v6816 = vadd.f32 %v5758, %v6560
        %v6817 = vadd.f32 %v5759, %v6561
        %v6818 = vadd.f32 %v5760, %v6562
        %v6819 = vadd.f32 %v5761, %v6563
        %v6820 = vadd.f32 %v5762, %v6564
        %v6821 = vadd.f32 %v5763, %v6565
        %v6822 = vadd.f32 %v5764, %v6566
        %v6823 = vadd.f32 %v5765, %v6567
        %v6824 = vadd.f32 %v5766, %v6568
        %v6825 = vadd.f32 %v5767, %v6569
        %v6826 = vadd.f32 %v5768, %v6570
        %v6827 = vadd.f32 %v5769, %v6571
        %v6828 = vadd.f32 %v5770, %v6572
        %v6829 = vadd.f32 %v5771, %v6573
        %v6830 = vadd.f32 %v5772, %v6574
        %v6831 = vadd.f32 %v5773, %v6575
        %v6832 = vadd.f32 %v5774, %v6576
        %v6833 = vadd.f32 %v5775, %v6577
        %v6834 = vadd.f32 %v5776, %v6578
        %v6835 = vadd.f32 %v5777, %v6579
        %v6836 = vadd.f32 %v5778, %v6580
        %v6837 = vadd.f32 %v5779, %v6581
        %v6838 = vadd.f32 %v5780, %v6582
        %v6839 = vadd.f32 %v5781, %v6583
        %v6840 = vadd.f32 %v5782, %v6584
        %v6841 = vadd.f32 %v5783, %v6585
        %v6842 = vadd.f32 %v5784, %v6586
        %v6843 = vadd.f32 %v5785, %v6587
        %v6844 = vadd.f32 %v5786, %v6588
        %v6845 = vadd.f32 %v5787, %v6589
        %v6846 = vadd.f32 %v5788, %v6590
        %v6847 = vadd.f32 %v5789, %v6591
        %v6848 = vadd.f32 %v5790, %v6592
        %v6849 = vadd.f32 %v5791, %v6593
        %v6850 = vadd.f32 %v5792, %v6594
        %v6851 = vadd.f32 %v5793, %v6595
        %v6852 = vadd.f32 %v5794, %v6596
        %v6853 = vadd.f32 %v5795, %v6597
        %v6854 = vadd.f32 %v5796, %v6598
        %v6855 = vadd.f32 %v5797, %v6599
        %v6856 = vadd.f32 %v5798, %v6600
        %v6857 = vadd.f32 %v5799, %v6601
        %v6858 = vadd.f32 %v5800, %v6602
        %v6859 = vadd.f32 %v5801, %v6603
        %v6860 = vadd.f32 %v5802, %v6604
        %v6861 = vadd.f32 %v5803, %v6605
        %v6862 = vadd.f32 %v5804, %v6606
        %v6863 = vadd.f32 %v5805, %v6607
        %v6864 = vadd.f32 %v5806, %v6608
        %v6865 = vadd.f32 %v5807, %v6609
        %v6866 = vadd.f32 %v5808, %v6610
        %v6867 = vadd.f32 %v5809, %v6611
        %v6868 = vadd.f32 %v5810, %v6612
        %v6869 = vadd.f32 %v5811, %v6613
        %v6870 = vadd.f32 %v5812, %v6614
        %v6871 = vadd.f32 %v5813, %v6615
        %v6872 = vadd.f32 %v5814, %v6616
        %v6873 = vadd.f32 %v5815, %v6617
        %v6874 = vadd.f32 %v5816, %v6618
        %v6875 = vadd.f32 %v5817, %v6619
        %v6876 = vadd.f32 %v5818, %v6620
        %v6877 = vadd.f32 %v5819, %v6621
        %v6878 = vadd.f32 %v5820, %v6622
        %v6879 = vadd.f32 %v5821, %v6623
        %v6880 = vadd.f32 %v5822, %v6624
        %v6881 = vadd.f32 %v5823, %v6625
        %v6882 = vadd.f32 %v5824, %v6626
        %v6883 = vadd.f32 %v5825, %v6627
        %v6884 = vadd.f32 %v5826, %v6628
        %v6885 = vadd.f32 %v5827, %v6629
        %v6886 = vadd.f32 %v5828, %v6630
        %v6887 = vadd.f32 %v5829, %v6631
        %v6888 = vadd.f32 %v5830, %v6632
        %v6889 = vadd.f32 %v5831, %v6633
        %v6890 = vadd.f32 %v5832, %v6634
        %v6891 = vadd.f32 %v5833, %v6635
        %v6892 = vadd.f32 %v5834, %v6636
        %v6893 = vadd.f32 %v5835, %v6637
        %v6894 = vadd.f32 %v5836, %v6638
        %v6895 = vadd.f32 %v5837, %v6639
        %v6896 = vadd.f32 %v5838, %v6640
        %v6897 = vadd.f32 %v5839, %v6641
        %v6898 = vadd.f32 %v5840, %v6642
        %vm6995 = vcmask 1043456
        %v6996 = vrot.slane %v2222, 4
        %v6997 = vrot.slane %v2226, 4
        %v6998 = vsel %vm6995, %v6996, %v6997
        %v6999 = vrot.slane %v2224, 4
        %v7000 = vrot.slane %v2228, 4
        %v7001 = vsel %vm6995, %v6999, %v7000
        %v7002 = vrot.slane %v3152, 4
        %v7003 = vrot.slane %v3155, 4
        %v7004 = vsel %vm6995, %v7002, %v7003
        %v7005 = vrot.slane %v2232, 4
        %v7006 = vsel %vm6995, %v6997, %v7005
        %v7007 = vrot.slane %v2234, 4
        %v7008 = vsel %vm6995, %v7000, %v7007
        %v7009 = vrot.slane %v3160, 4
        %v7010 = vsel %vm6995, %v7003, %v7009
        %v7011 = vrot.slane %v2236, 4
        %v7012 = vrot.slane %v2242, 4
        %v7013 = vsel %vm6995, %v7011, %v7012
        %v7014 = vrot.slane %v2238, 4
        %v7015 = vrot.slane %v2244, 4
        %v7016 = vsel %vm6995, %v7014, %v7015
        %v7017 = vrot.slane %v3163, 4
        %v7018 = vrot.slane %v3168, 4
        %v7019 = vsel %vm6995, %v7017, %v7018
        %v7020 = vrot.slane %v2246, 4
        %v7021 = vsel %vm6995, %v7012, %v7020
        %v7022 = vrot.slane %v2248, 4
        %v7023 = vsel %vm6995, %v7015, %v7022
        %v7024 = vrot.slane %v3171, 4
        %v7025 = vsel %vm6995, %v7018, %v7024
        %v7026 = vrot.slane %v2252, 4
        %v7027 = vrot.slane %v2256, 4
        %v7028 = vsel %vm6995, %v7026, %v7027
        %v7029 = vrot.slane %v2254, 4
        %v7030 = vrot.slane %v2258, 4
        %v7031 = vsel %vm6995, %v7029, %v7030
        %v7032 = vrot.slane %v3176, 4
        %v7033 = vrot.slane %v3179, 4
        %v7034 = vsel %vm6995, %v7032, %v7033
        %v7035 = vrot.slane %v2262, 4
        %v7036 = vsel %vm6995, %v7027, %v7035
        %v7037 = vrot.slane %v2264, 4
        %v7038 = vsel %vm6995, %v7030, %v7037
        %v7039 = vrot.slane %v3184, 4
        %v7040 = vsel %vm6995, %v7033, %v7039
        %v7041 = vrot.slane %v2266, 4
        %v7042 = vrot.slane %v2272, 4
        %v7043 = vsel %vm6995, %v7041, %v7042
        %v7044 = vrot.slane %v2268, 4
        %v7045 = vrot.slane %v2274, 4
        %v7046 = vsel %vm6995, %v7044, %v7045
        %v7047 = vrot.slane %v3187, 4
        %v7048 = vrot.slane %v3192, 4
        %v7049 = vsel %vm6995, %v7047, %v7048
        %v7050 = vrot.slane %v2276, 4
        %v7051 = vsel %vm6995, %v7042, %v7050
        %v7052 = vrot.slane %v2278, 4
        %v7053 = vsel %vm6995, %v7045, %v7052
        %v7054 = vrot.slane %v3195, 4
        %v7055 = vsel %vm6995, %v7048, %v7054
        %v7056 = vrot.slane %v2282, 4
        %v7057 = vrot.slane %v2286, 4
        %v7058 = vsel %vm6995, %v7056, %v7057
        %v7059 = vrot.slane %v2284, 4
        %v7060 = vrot.slane %v2288, 4
        %v7061 = vsel %vm6995, %v7059, %v7060
        %v7062 = vrot.slane %v3200, 4
        %v7063 = vrot.slane %v3203, 4
        %v7064 = vsel %vm6995, %v7062, %v7063
        %v7065 = vrot.slane %v2292, 4
        %v7066 = vsel %vm6995, %v7057, %v7065
        %v7067 = vrot.slane %v2294, 4
        %v7068 = vsel %vm6995, %v7060, %v7067
        %v7069 = vrot.slane %v3208, 4
        %v7070 = vsel %vm6995, %v7063, %v7069
        %v7071 = vrot.slane %v2296, 4
        %v7072 = vrot.slane %v2302, 4
        %v7073 = vsel %vm6995, %v7071, %v7072
        %v7074 = vrot.slane %v2298, 4
        %v7075 = vrot.slane %v2304, 4
        %v7076 = vsel %vm6995, %v7074, %v7075
        %v7077 = vrot.slane %v3211, 4
        %v7078 = vrot.slane %v3216, 4
        %v7079 = vsel %vm6995, %v7077, %v7078
        %v7080 = vrot.slane %v2306, 4
        %v7081 = vsel %vm6995, %v7072, %v7080
        %v7082 = vrot.slane %v2308, 4
        %v7083 = vsel %vm6995, %v7075, %v7082
        %v7084 = vrot.slane %v3219, 4
        %v7085 = vsel %vm6995, %v7078, %v7084
        %v7086 = vrot.slane %v2312, 4
        %v7087 = vrot.slane %v2316, 4
        %v7088 = vsel %vm6995, %v7086, %v7087
        %v7089 = vrot.slane %v2314, 4
        %v7090 = vrot.slane %v2318, 4
        %v7091 = vsel %vm6995, %v7089, %v7090
        %v7092 = vrot.slane %v3224, 4
        %v7093 = vrot.slane %v3227, 4
        %v7094 = vsel %vm6995, %v7092, %v7093
        %v7095 = vrot.slane %v2322, 4
        %v7096 = vsel %vm6995, %v7087, %v7095
        %v7097 = vrot.slane %v2324, 4
        %v7098 = vsel %vm6995, %v7090, %v7097
        %v7099 = vrot.slane %v3232, 4
        %v7100 = vsel %vm6995, %v7093, %v7099
        %v7101 = vrot.slane %v2326, 4
        %v7102 = vrot.slane %v2332, 4
        %v7103 = vsel %vm6995, %v7101, %v7102
        %v7104 = vrot.slane %v2328, 4
        %v7105 = vrot.slane %v2334, 4
        %v7106 = vsel %vm6995, %v7104, %v7105
        %v7107 = vrot.slane %v3235, 4
        %v7108 = vrot.slane %v3240, 4
        %v7109 = vsel %vm6995, %v7107, %v7108
        %v7110 = vrot.slane %v2336, 4
        %v7111 = vsel %vm6995, %v7102, %v7110
        %v7112 = vrot.slane %v2338, 4
        %v7113 = vsel %vm6995, %v7105, %v7112
        %v7114 = vrot.slane %v3243, 4
        %v7115 = vsel %vm6995, %v7108, %v7114
        %v7116 = vrot.slane %v2342, 4
        %v7117 = vrot.slane %v2346, 4
        %v7118 = vsel %vm6995, %v7116, %v7117
        %v7119 = vrot.slane %v2344, 4
        %v7120 = vrot.slane %v2348, 4
        %v7121 = vsel %vm6995, %v7119, %v7120
        %v7122 = vrot.slane %v3248, 4
        %v7123 = vrot.slane %v3251, 4
        %v7124 = vsel %vm6995, %v7122, %v7123
        %v7125 = vrot.slane %v2352, 4
        %v7126 = vsel %vm6995, %v7117, %v7125
        %v7127 = vrot.slane %v2354, 4
        %v7128 = vsel %vm6995, %v7120, %v7127
        %v7129 = vrot.slane %v3256, 4
        %v7130 = vsel %vm6995, %v7123, %v7129
        %v7131 = vrot.slane %v2356, 4
        %v7132 = vrot.slane %v2362, 4
        %v7133 = vsel %vm6995, %v7131, %v7132
        %v7134 = vrot.slane %v2358, 4
        %v7135 = vrot.slane %v2364, 4
        %v7136 = vsel %vm6995, %v7134, %v7135
        %v7137 = vrot.slane %v3259, 4
        %v7138 = vrot.slane %v3264, 4
        %v7139 = vsel %vm6995, %v7137, %v7138
        %v7140 = vrot.slane %v2366, 4
        %v7141 = vsel %vm6995, %v7132, %v7140
        %v7142 = vrot.slane %v2368, 4
        %v7143 = vsel %vm6995, %v7135, %v7142
        %v7144 = vrot.slane %v3267, 4
        %v7145 = vsel %vm6995, %v7138, %v7144
        %v7146 = vrot.slane %v2372, 4
        %v7147 = vrot.slane %v2376, 4
        %v7148 = vsel %vm6995, %v7146, %v7147
        %v7149 = vrot.slane %v2374, 4
        %v7150 = vrot.slane %v2378, 4
        %v7151 = vsel %vm6995, %v7149, %v7150
        %v7152 = vrot.slane %v3272, 4
        %v7153 = vrot.slane %v3275, 4
        %v7154 = vsel %vm6995, %v7152, %v7153
        %v7155 = vrot.slane %v2382, 4
        %v7156 = vsel %vm6995, %v7147, %v7155
        %v7157 = vrot.slane %v2384, 4
        %v7158 = vsel %vm6995, %v7150, %v7157
        %v7159 = vrot.slane %v3280, 4
        %v7160 = vsel %vm6995, %v7153, %v7159
        %v7161 = vrot.slane %v2386, 4
        %v7162 = vrot.slane %v2392, 4
        %v7163 = vsel %vm6995, %v7161, %v7162
        %v7164 = vrot.slane %v2388, 4
        %v7165 = vrot.slane %v2394, 4
        %v7166 = vsel %vm6995, %v7164, %v7165
        %v7167 = vrot.slane %v3283, 4
        %v7168 = vrot.slane %v3288, 4
        %v7169 = vsel %vm6995, %v7167, %v7168
        %v7170 = vrot.slane %v2396, 4
        %v7171 = vsel %vm6995, %v7162, %v7170
        %v7172 = vrot.slane %v2398, 4
        %v7173 = vsel %vm6995, %v7165, %v7172
        %v7174 = vrot.slane %v3291, 4
        %v7175 = vsel %vm6995, %v7168, %v7174
        %v7176 = vrot.slane %v2402, 4
        %v7177 = vrot.slane %v2406, 4
        %v7178 = vsel %vm6995, %v7176, %v7177
        %v7179 = vrot.slane %v2404, 4
        %v7180 = vrot.slane %v2408, 4
        %v7181 = vsel %vm6995, %v7179, %v7180
        %v7182 = vrot.slane %v3296, 4
        %v7183 = vrot.slane %v3299, 4
        %v7184 = vsel %vm6995, %v7182, %v7183
        %v7185 = vrot.slane %v2412, 4
        %v7186 = vsel %vm6995, %v7177, %v7185
        %v7187 = vrot.slane %v2414, 4
        %v7188 = vsel %vm6995, %v7180, %v7187
        %v7189 = vrot.slane %v3304, 4
        %v7190 = vsel %vm6995, %v7183, %v7189
        %v7191 = vrot.slane %v2416, 4
        %v7192 = vrot.slane %v2422, 4
        %v7193 = vsel %vm6995, %v7191, %v7192
        %v7194 = vrot.slane %v2418, 4
        %v7195 = vrot.slane %v2424, 4
        %v7196 = vsel %vm6995, %v7194, %v7195
        %v7197 = vrot.slane %v3307, 4
        %v7198 = vrot.slane %v3312, 4
        %v7199 = vsel %vm6995, %v7197, %v7198
        %v7200 = vrot.slane %v2426, 4
        %v7201 = vsel %vm6995, %v7192, %v7200
        %v7202 = vrot.slane %v2428, 4
        %v7203 = vsel %vm6995, %v7195, %v7202
        %v7204 = vrot.slane %v3315, 4
        %v7205 = vsel %vm6995, %v7198, %v7204
        %v7206 = vrot.slane %v2432, 4
        %v7207 = vrot.slane %v2436, 4
        %v7208 = vsel %vm6995, %v7206, %v7207
        %v7209 = vrot.slane %v2434, 4
        %v7210 = vrot.slane %v2438, 4
        %v7211 = vsel %vm6995, %v7209, %v7210
        %v7212 = vrot.slane %v3320, 4
        %v7213 = vrot.slane %v3323, 4
        %v7214 = vsel %vm6995, %v7212, %v7213
        %v7215 = vrot.slane %v2442, 4
        %v7216 = vsel %vm6995, %v7207, %v7215
        %v7217 = vrot.slane %v2444, 4
        %v7218 = vsel %vm6995, %v7210, %v7217
        %v7219 = vrot.slane %v3328, 4
        %v7220 = vsel %vm6995, %v7213, %v7219
        %v7221 = vrot.slane %v2446, 4
        %v7222 = vrot.slane %v2452, 4
        %v7223 = vsel %vm6995, %v7221, %v7222
        %v7224 = vrot.slane %v2448, 4
        %v7225 = vrot.slane %v2454, 4
        %v7226 = vsel %vm6995, %v7224, %v7225
        %v7227 = vrot.slane %v3331, 4
        %v7228 = vrot.slane %v3336, 4
        %v7229 = vsel %vm6995, %v7227, %v7228
        %v7230 = vrot.slane %v2456, 4
        %v7231 = vsel %vm6995, %v7222, %v7230
        %v7232 = vrot.slane %v2458, 4
        %v7233 = vsel %vm6995, %v7225, %v7232
        %v7234 = vrot.slane %v3339, 4
        %v7235 = vsel %vm6995, %v7228, %v7234
        %v7236 = vrot.slane %v2462, 4
        %v7237 = vrot.slane %v2466, 4
        %v7238 = vsel %vm6995, %v7236, %v7237
        %v7239 = vrot.slane %v2464, 4
        %v7240 = vrot.slane %v2468, 4
        %v7241 = vsel %vm6995, %v7239, %v7240
        %v7242 = vrot.slane %v3344, 4
        %v7243 = vrot.slane %v3347, 4
        %v7244 = vsel %vm6995, %v7242, %v7243
        %v7245 = vrot.slane %v2472, 4
        %v7246 = vsel %vm6995, %v7237, %v7245
        %v7247 = vrot.slane %v2474, 4
        %v7248 = vsel %vm6995, %v7240, %v7247
        %v7249 = vrot.slane %v3352, 4
        %v7250 = vsel %vm6995, %v7243, %v7249
        %v7251 = vrot.slane %v2476, 4
        %v7252 = vrot.slane %v2482, 4
        %v7253 = vsel %vm6995, %v7251, %v7252
        %v7254 = vrot.slane %v2478, 4
        %v7255 = vrot.slane %v2484, 4
        %v7256 = vsel %vm6995, %v7254, %v7255
        %v7257 = vrot.slane %v3355, 4
        %v7258 = vrot.slane %v3360, 4
        %v7259 = vsel %vm6995, %v7257, %v7258
        %v7260 = vrot.slane %v2486, 4
        %v7261 = vsel %vm6995, %v7252, %v7260
        %v7262 = vrot.slane %v2488, 4
        %v7263 = vsel %vm6995, %v7255, %v7262
        %v7264 = vrot.slane %v3363, 4
        %v7265 = vsel %vm6995, %v7258, %v7264
        %v7266 = vrot.slane %v2492, 4
        %v7267 = vrot.slane %v2496, 4
        %v7268 = vsel %vm6995, %v7266, %v7267
        %v7269 = vrot.slane %v2494, 4
        %v7270 = vrot.slane %v2498, 4
        %v7271 = vsel %vm6995, %v7269, %v7270
        %v7272 = vrot.slane %v3368, 4
        %v7273 = vrot.slane %v3371, 4
        %v7274 = vsel %vm6995, %v7272, %v7273
        %v7275 = vrot.slane %v2502, 4
        %v7276 = vsel %vm6995, %v7267, %v7275
        %v7277 = vrot.slane %v2504, 4
        %v7278 = vsel %vm6995, %v7270, %v7277
        %v7279 = vrot.slane %v3376, 4
        %v7280 = vsel %vm6995, %v7273, %v7279
        %v7281 = vrot.slane %v2506, 4
        %v7282 = vrot.slane %v2512, 4
        %v7283 = vsel %vm6995, %v7281, %v7282
        %v7284 = vrot.slane %v2508, 4
        %v7285 = vrot.slane %v2514, 4
        %v7286 = vsel %vm6995, %v7284, %v7285
        %v7287 = vrot.slane %v3379, 4
        %v7288 = vrot.slane %v3384, 4
        %v7289 = vsel %vm6995, %v7287, %v7288
        %v7290 = vrot.slane %v2516, 4
        %v7291 = vsel %vm6995, %v7282, %v7290
        %v7292 = vrot.slane %v2518, 4
        %v7293 = vsel %vm6995, %v7285, %v7292
        %v7294 = vrot.slane %v3387, 4
        %v7295 = vsel %vm6995, %v7288, %v7294
        %v7296 = vrot.slane %v2522, 4
        %v7297 = vrot.slane %v2526, 4
        %v7298 = vsel %vm6995, %v7296, %v7297
        %v7299 = vrot.slane %v2524, 4
        %v7300 = vrot.slane %v2528, 4
        %v7301 = vsel %vm6995, %v7299, %v7300
        %v7302 = vrot.slane %v3392, 4
        %v7303 = vrot.slane %v3395, 4
        %v7304 = vsel %vm6995, %v7302, %v7303
        %v7305 = vrot.slane %v2532, 4
        %v7306 = vsel %vm6995, %v7297, %v7305
        %v7307 = vrot.slane %v2534, 4
        %v7308 = vsel %vm6995, %v7300, %v7307
        %v7309 = vrot.slane %v3400, 4
        %v7310 = vsel %vm6995, %v7303, %v7309
        %v7311 = vrot.slane %v2536, 4
        %v7312 = vrot.slane %v2542, 4
        %v7313 = vsel %vm6995, %v7311, %v7312
        %v7314 = vrot.slane %v2538, 4
        %v7315 = vrot.slane %v2544, 4
        %v7316 = vsel %vm6995, %v7314, %v7315
        %v7317 = vrot.slane %v3403, 4
        %v7318 = vrot.slane %v3408, 4
        %v7319 = vsel %vm6995, %v7317, %v7318
        %v7320 = vrot.slane %v2546, 4
        %v7321 = vsel %vm6995, %v7312, %v7320
        %v7322 = vrot.slane %v2548, 4
        %v7323 = vsel %vm6995, %v7315, %v7322
        %v7324 = vrot.slane %v3411, 4
        %v7325 = vsel %vm6995, %v7318, %v7324
        %v7326 = vrot.slane %v2552, 4
        %v7327 = vrot.slane %v2556, 4
        %v7328 = vsel %vm6995, %v7326, %v7327
        %v7329 = vrot.slane %v2554, 4
        %v7330 = vrot.slane %v2558, 4
        %v7331 = vsel %vm6995, %v7329, %v7330
        %v7332 = vrot.slane %v3416, 4
        %v7333 = vrot.slane %v3419, 4
        %v7334 = vsel %vm6995, %v7332, %v7333
        %v7335 = vrot.slane %v2562, 4
        %v7336 = vsel %vm6995, %v7327, %v7335
        %v7337 = vrot.slane %v2564, 4
        %v7338 = vsel %vm6995, %v7330, %v7337
        %v7339 = vrot.slane %v3424, 4
        %v7340 = vsel %vm6995, %v7333, %v7339
        %v7341 = vrot.slane %v2566, 4
        %v7342 = vrot.slane %v2572, 4
        %v7343 = vsel %vm6995, %v7341, %v7342
        %v7344 = vrot.slane %v2568, 4
        %v7345 = vrot.slane %v2574, 4
        %v7346 = vsel %vm6995, %v7344, %v7345
        %v7347 = vrot.slane %v3427, 4
        %v7348 = vrot.slane %v3432, 4
        %v7349 = vsel %vm6995, %v7347, %v7348
        %v7350 = vrot.slane %v2576, 4
        %v7351 = vsel %vm6995, %v7342, %v7350
        %v7352 = vrot.slane %v2578, 4
        %v7353 = vsel %vm6995, %v7345, %v7352
        %v7354 = vrot.slane %v3435, 4
        %v7355 = vsel %vm6995, %v7348, %v7354
        %v7356 = vrot.slane %v2582, 4
        %v7357 = vrot.slane %v2586, 4
        %v7358 = vsel %vm6995, %v7356, %v7357
        %v7359 = vrot.slane %v2584, 4
        %v7360 = vrot.slane %v2588, 4
        %v7361 = vsel %vm6995, %v7359, %v7360
        %v7362 = vrot.slane %v3440, 4
        %v7363 = vrot.slane %v3443, 4
        %v7364 = vsel %vm6995, %v7362, %v7363
        %v7365 = vrot.slane %v2592, 4
        %v7366 = vsel %vm6995, %v7357, %v7365
        %v7367 = vrot.slane %v2594, 4
        %v7368 = vsel %vm6995, %v7360, %v7367
        %v7369 = vrot.slane %v3448, 4
        %v7370 = vsel %vm6995, %v7363, %v7369
        %v7371 = vrot.slane %v2596, 4
        %v7372 = vrot.slane %v2602, 4
        %v7373 = vsel %vm6995, %v7371, %v7372
        %v7374 = vrot.slane %v2598, 4
        %v7375 = vrot.slane %v2604, 4
        %v7376 = vsel %vm6995, %v7374, %v7375
        %v7377 = vrot.slane %v3451, 4
        %v7378 = vrot.slane %v3456, 4
        %v7379 = vsel %vm6995, %v7377, %v7378
        %v7380 = vrot.slane %v2606, 4
        %v7381 = vsel %vm6995, %v7372, %v7380
        %v7382 = vrot.slane %v2608, 4
        %v7383 = vsel %vm6995, %v7375, %v7382
        %v7384 = vrot.slane %v3459, 4
        %v7385 = vsel %vm6995, %v7378, %v7384
        %v7386 = vrot.slane %v2612, 4
        %v7387 = vrot.slane %v2616, 4
        %v7388 = vsel %vm6995, %v7386, %v7387
        %v7389 = vrot.slane %v2614, 4
        %v7390 = vrot.slane %v2618, 4
        %v7391 = vsel %vm6995, %v7389, %v7390
        %v7392 = vrot.slane %v3464, 4
        %v7393 = vrot.slane %v3467, 4
        %v7394 = vsel %vm6995, %v7392, %v7393
        %v7395 = vrot.slane %v2622, 4
        %v7396 = vsel %vm6995, %v7387, %v7395
        %v7397 = vrot.slane %v2624, 4
        %v7398 = vsel %vm6995, %v7390, %v7397
        %v7399 = vrot.slane %v3472, 4
        %v7400 = vsel %vm6995, %v7393, %v7399
        %v7401 = vrot.slane %v2626, 4
        %v7402 = vrot.slane %v2632, 4
        %v7403 = vsel %vm6995, %v7401, %v7402
        %v7404 = vrot.slane %v2628, 4
        %v7405 = vrot.slane %v2634, 4
        %v7406 = vsel %vm6995, %v7404, %v7405
        %v7407 = vrot.slane %v3475, 4
        %v7408 = vrot.slane %v3480, 4
        %v7409 = vsel %vm6995, %v7407, %v7408
        %v7410 = vrot.slane %v2636, 4
        %v7411 = vsel %vm6995, %v7402, %v7410
        %v7412 = vrot.slane %v2638, 4
        %v7413 = vsel %vm6995, %v7405, %v7412
        %v7414 = vrot.slane %v3483, 4
        %v7415 = vsel %vm6995, %v7408, %v7414
        %v7416 = vrot.slane %v2642, 4
        %v7417 = vrot.slane %v2646, 4
        %v7418 = vsel %vm6995, %v7416, %v7417
        %v7419 = vrot.slane %v2644, 4
        %v7420 = vrot.slane %v2648, 4
        %v7421 = vsel %vm6995, %v7419, %v7420
        %v7422 = vrot.slane %v3488, 4
        %v7423 = vrot.slane %v3491, 4
        %v7424 = vsel %vm6995, %v7422, %v7423
        %v7425 = vrot.slane %v2652, 4
        %v7426 = vsel %vm6995, %v7417, %v7425
        %v7427 = vrot.slane %v2654, 4
        %v7428 = vsel %vm6995, %v7420, %v7427
        %v7429 = vrot.slane %v3496, 4
        %v7430 = vsel %vm6995, %v7423, %v7429
        %v7431 = vrot.slane %v2656, 4
        %v7432 = vrot.slane %v2662, 4
        %v7433 = vsel %vm6995, %v7431, %v7432
        %v7434 = vrot.slane %v2658, 4
        %v7435 = vrot.slane %v2664, 4
        %v7436 = vsel %vm6995, %v7434, %v7435
        %v7437 = vrot.slane %v3499, 4
        %v7438 = vrot.slane %v3504, 4
        %v7439 = vsel %vm6995, %v7437, %v7438
        %v7440 = vrot.slane %v2666, 4
        %v7441 = vsel %vm6995, %v7432, %v7440
        %v7442 = vrot.slane %v2668, 4
        %v7443 = vsel %vm6995, %v7435, %v7442
        %v7444 = vrot.slane %v3507, 4
        %v7445 = vsel %vm6995, %v7438, %v7444
        %v7446 = vrot.slane %v2672, 4
        %v7447 = vrot.slane %v2676, 4
        %v7448 = vsel %vm6995, %v7446, %v7447
        %v7449 = vrot.slane %v2674, 4
        %v7450 = vrot.slane %v2678, 4
        %v7451 = vsel %vm6995, %v7449, %v7450
        %v7452 = vrot.slane %v3512, 4
        %v7453 = vrot.slane %v3515, 4
        %v7454 = vsel %vm6995, %v7452, %v7453
        %v7455 = vrot.slane %v2682, 4
        %v7456 = vsel %vm6995, %v7447, %v7455
        %v7457 = vrot.slane %v2684, 4
        %v7458 = vsel %vm6995, %v7450, %v7457
        %v7459 = vrot.slane %v3520, 4
        %v7460 = vsel %vm6995, %v7453, %v7459
        %v7461 = vrot.slane %v2686, 4
        %v7462 = vrot.slane %v2692, 4
        %v7463 = vsel %vm6995, %v7461, %v7462
        %v7464 = vrot.slane %v2688, 4
        %v7465 = vrot.slane %v2694, 4
        %v7466 = vsel %vm6995, %v7464, %v7465
        %v7467 = vrot.slane %v3523, 4
        %v7468 = vrot.slane %v3528, 4
        %v7469 = vsel %vm6995, %v7467, %v7468
        %v7470 = vrot.slane %v2696, 4
        %v7471 = vsel %vm6995, %v7462, %v7470
        %v7472 = vrot.slane %v2698, 4
        %v7473 = vsel %vm6995, %v7465, %v7472
        %v7474 = vrot.slane %v3531, 4
        %v7475 = vsel %vm6995, %v7468, %v7474
        %7476 = vrot.lane.b32.xlu0 %v6998, 64
        %v7477 = vpop.permute.xlu0 %7476
        %7478 = vrot.lane.b32.xlu0 %v7001, 64
        %v7479 = vpop.permute.xlu0 %7478
        %7480 = vrot.lane.b32.xlu0 %v7004, 64
        %v7481 = vpop.permute.xlu0 %7480
        %7482 = vrot.lane.b32.xlu0 %v7006, 64
        %v7483 = vpop.permute.xlu0 %7482
        %7484 = vrot.lane.b32.xlu0 %v7008, 64
        %v7485 = vpop.permute.xlu0 %7484
        %7486 = vrot.lane.b32.xlu0 %v7010, 64
        %v7487 = vpop.permute.xlu0 %7486
        %7488 = vrot.lane.b32.xlu0 %v7013, 64
        %v7489 = vpop.permute.xlu0 %7488
        %7490 = vrot.lane.b32.xlu0 %v7016, 64
        %v7491 = vpop.permute.xlu0 %7490
        %7492 = vrot.lane.b32.xlu0 %v7019, 64
        %v7493 = vpop.permute.xlu0 %7492
        %7494 = vrot.lane.b32.xlu0 %v7021, 64
        %v7495 = vpop.permute.xlu0 %7494
        %7496 = vrot.lane.b32.xlu0 %v7023, 64
        %v7497 = vpop.permute.xlu0 %7496
        %7498 = vrot.lane.b32.xlu0 %v7025, 64
        %v7499 = vpop.permute.xlu0 %7498
        %7500 = vrot.lane.b32.xlu0 %v7028, 64
        %v7501 = vpop.permute.xlu0 %7500
        %7502 = vrot.lane.b32.xlu0 %v7031, 64
        %v7503 = vpop.permute.xlu0 %7502
        %7504 = vrot.lane.b32.xlu0 %v7034, 64
        %v7505 = vpop.permute.xlu0 %7504
        %7506 = vrot.lane.b32.xlu0 %v7036, 64
        %v7507 = vpop.permute.xlu0 %7506
        %7508 = vrot.lane.b32.xlu0 %v7038, 64
        %v7509 = vpop.permute.xlu0 %7508
        %7510 = vrot.lane.b32.xlu0 %v7040, 64
        %v7511 = vpop.permute.xlu0 %7510
        %7512 = vrot.lane.b32.xlu0 %v7043, 64
        %v7513 = vpop.permute.xlu0 %7512
        %7514 = vrot.lane.b32.xlu0 %v7046, 64
        %v7515 = vpop.permute.xlu0 %7514
        %7516 = vrot.lane.b32.xlu0 %v7049, 64
        %v7517 = vpop.permute.xlu0 %7516
        %7518 = vrot.lane.b32.xlu0 %v7051, 64
        %v7519 = vpop.permute.xlu0 %7518
        %7520 = vrot.lane.b32.xlu0 %v7053, 64
        %v7521 = vpop.permute.xlu0 %7520
        %7522 = vrot.lane.b32.xlu0 %v7055, 64
        %v7523 = vpop.permute.xlu0 %7522
        %7524 = vrot.lane.b32.xlu0 %v7058, 64
        %v7525 = vpop.permute.xlu0 %7524
        %7526 = vrot.lane.b32.xlu0 %v7061, 64
        %v7527 = vpop.permute.xlu0 %7526
        %7528 = vrot.lane.b32.xlu0 %v7064, 64
        %v7529 = vpop.permute.xlu0 %7528
        %7530 = vrot.lane.b32.xlu0 %v7066, 64
        %v7531 = vpop.permute.xlu0 %7530
        %7532 = vrot.lane.b32.xlu0 %v7068, 64
        %v7533 = vpop.permute.xlu0 %7532
        %7534 = vrot.lane.b32.xlu0 %v7070, 64
        %v7535 = vpop.permute.xlu0 %7534
        %7536 = vrot.lane.b32.xlu0 %v7073, 64
        %v7537 = vpop.permute.xlu0 %7536
        %7538 = vrot.lane.b32.xlu0 %v7076, 64
        %v7539 = vpop.permute.xlu0 %7538
        %7540 = vrot.lane.b32.xlu0 %v7079, 64
        %v7541 = vpop.permute.xlu0 %7540
        %7542 = vrot.lane.b32.xlu0 %v7081, 64
        %v7543 = vpop.permute.xlu0 %7542
        %7544 = vrot.lane.b32.xlu0 %v7083, 64
        %v7545 = vpop.permute.xlu0 %7544
        %7546 = vrot.lane.b32.xlu0 %v7085, 64
        %v7547 = vpop.permute.xlu0 %7546
        %7548 = vrot.lane.b32.xlu0 %v7088, 64
        %v7549 = vpop.permute.xlu0 %7548
        %7550 = vrot.lane.b32.xlu0 %v7091, 64
        %v7551 = vpop.permute.xlu0 %7550
        %7552 = vrot.lane.b32.xlu0 %v7094, 64
        %v7553 = vpop.permute.xlu0 %7552
        %7554 = vrot.lane.b32.xlu0 %v7096, 64
        %v7555 = vpop.permute.xlu0 %7554
        %7556 = vrot.lane.b32.xlu0 %v7098, 64
        %v7557 = vpop.permute.xlu0 %7556
        %7558 = vrot.lane.b32.xlu0 %v7100, 64
        %v7559 = vpop.permute.xlu0 %7558
        %7560 = vrot.lane.b32.xlu0 %v7103, 64
        %v7561 = vpop.permute.xlu0 %7560
        %7562 = vrot.lane.b32.xlu0 %v7106, 64
        %v7563 = vpop.permute.xlu0 %7562
        %7564 = vrot.lane.b32.xlu0 %v7109, 64
        %v7565 = vpop.permute.xlu0 %7564
        %7566 = vrot.lane.b32.xlu0 %v7111, 64
        %v7567 = vpop.permute.xlu0 %7566
        %7568 = vrot.lane.b32.xlu0 %v7113, 64
        %v7569 = vpop.permute.xlu0 %7568
        %7570 = vrot.lane.b32.xlu0 %v7115, 64
        %v7571 = vpop.permute.xlu0 %7570
        %7572 = vrot.lane.b32.xlu0 %v7118, 64
        %v7573 = vpop.permute.xlu0 %7572
        %7574 = vrot.lane.b32.xlu0 %v7121, 64
        %v7575 = vpop.permute.xlu0 %7574
        %7576 = vrot.lane.b32.xlu0 %v7124, 64
        %v7577 = vpop.permute.xlu0 %7576
        %7578 = vrot.lane.b32.xlu0 %v7126, 64
        %v7579 = vpop.permute.xlu0 %7578
        %7580 = vrot.lane.b32.xlu0 %v7128, 64
        %v7581 = vpop.permute.xlu0 %7580
        %7582 = vrot.lane.b32.xlu0 %v7130, 64
        %v7583 = vpop.permute.xlu0 %7582
        %7584 = vrot.lane.b32.xlu0 %v7133, 64
        %v7585 = vpop.permute.xlu0 %7584
        %7586 = vrot.lane.b32.xlu0 %v7136, 64
        %v7587 = vpop.permute.xlu0 %7586
        %7588 = vrot.lane.b32.xlu0 %v7139, 64
        %v7589 = vpop.permute.xlu0 %7588
        %7590 = vrot.lane.b32.xlu0 %v7141, 64
        %v7591 = vpop.permute.xlu0 %7590
        %7592 = vrot.lane.b32.xlu0 %v7143, 64
        %v7593 = vpop.permute.xlu0 %7592
        %7594 = vrot.lane.b32.xlu0 %v7145, 64
        %v7595 = vpop.permute.xlu0 %7594
        %7596 = vrot.lane.b32.xlu0 %v7148, 64
        %v7597 = vpop.permute.xlu0 %7596
        %7598 = vrot.lane.b32.xlu0 %v7151, 64
        %v7599 = vpop.permute.xlu0 %7598
        %7600 = vrot.lane.b32.xlu0 %v7154, 64
        %v7601 = vpop.permute.xlu0 %7600
        %7602 = vrot.lane.b32.xlu0 %v7156, 64
        %v7603 = vpop.permute.xlu0 %7602
        %7604 = vrot.lane.b32.xlu0 %v7158, 64
        %v7605 = vpop.permute.xlu0 %7604
        %7606 = vrot.lane.b32.xlu0 %v7160, 64
        %v7607 = vpop.permute.xlu0 %7606
        %7608 = vrot.lane.b32.xlu0 %v7163, 64
        %v7609 = vpop.permute.xlu0 %7608
        %7610 = vrot.lane.b32.xlu0 %v7166, 64
        %v7611 = vpop.permute.xlu0 %7610
        %7612 = vrot.lane.b32.xlu0 %v7169, 64
        %v7613 = vpop.permute.xlu0 %7612
        %7614 = vrot.lane.b32.xlu0 %v7171, 64
        %v7615 = vpop.permute.xlu0 %7614
        %7616 = vrot.lane.b32.xlu0 %v7173, 64
        %v7617 = vpop.permute.xlu0 %7616
        %7618 = vrot.lane.b32.xlu0 %v7175, 64
        %v7619 = vpop.permute.xlu0 %7618
        %7620 = vrot.lane.b32.xlu0 %v7178, 64
        %v7621 = vpop.permute.xlu0 %7620
        %7622 = vrot.lane.b32.xlu0 %v7181, 64
        %v7623 = vpop.permute.xlu0 %7622
        %7624 = vrot.lane.b32.xlu0 %v7184, 64
        %v7625 = vpop.permute.xlu0 %7624
        %7626 = vrot.lane.b32.xlu0 %v7186, 64
        %v7627 = vpop.permute.xlu0 %7626
        %7628 = vrot.lane.b32.xlu0 %v7188, 64
        %v7629 = vpop.permute.xlu0 %7628
        %7630 = vrot.lane.b32.xlu0 %v7190, 64
        %v7631 = vpop.permute.xlu0 %7630
        %7632 = vrot.lane.b32.xlu0 %v7193, 64
        %v7633 = vpop.permute.xlu0 %7632
        %7634 = vrot.lane.b32.xlu0 %v7196, 64
        %v7635 = vpop.permute.xlu0 %7634
        %7636 = vrot.lane.b32.xlu0 %v7199, 64
        %v7637 = vpop.permute.xlu0 %7636
        %7638 = vrot.lane.b32.xlu0 %v7201, 64
        %v7639 = vpop.permute.xlu0 %7638
        %7640 = vrot.lane.b32.xlu0 %v7203, 64
        %v7641 = vpop.permute.xlu0 %7640
        %7642 = vrot.lane.b32.xlu0 %v7205, 64
        %v7643 = vpop.permute.xlu0 %7642
        %7644 = vrot.lane.b32.xlu0 %v7208, 64
        %v7645 = vpop.permute.xlu0 %7644
        %7646 = vrot.lane.b32.xlu0 %v7211, 64
        %v7647 = vpop.permute.xlu0 %7646
        %7648 = vrot.lane.b32.xlu0 %v7214, 64
        %v7649 = vpop.permute.xlu0 %7648
        %7650 = vrot.lane.b32.xlu0 %v7216, 64
        %v7651 = vpop.permute.xlu0 %7650
        %7652 = vrot.lane.b32.xlu0 %v7218, 64
        %v7653 = vpop.permute.xlu0 %7652
        %7654 = vrot.lane.b32.xlu0 %v7220, 64
        %v7655 = vpop.permute.xlu0 %7654
        %7656 = vrot.lane.b32.xlu0 %v7223, 64
        %v7657 = vpop.permute.xlu0 %7656
        %7658 = vrot.lane.b32.xlu0 %v7226, 64
        %v7659 = vpop.permute.xlu0 %7658
        %7660 = vrot.lane.b32.xlu0 %v7229, 64
        %v7661 = vpop.permute.xlu0 %7660
        %7662 = vrot.lane.b32.xlu0 %v7231, 64
        %v7663 = vpop.permute.xlu0 %7662
        %7664 = vrot.lane.b32.xlu0 %v7233, 64
        %v7665 = vpop.permute.xlu0 %7664
        %7666 = vrot.lane.b32.xlu0 %v7235, 64
        %v7667 = vpop.permute.xlu0 %7666
        %7668 = vrot.lane.b32.xlu0 %v7238, 64
        %v7669 = vpop.permute.xlu0 %7668
        %7670 = vrot.lane.b32.xlu0 %v7241, 64
        %v7671 = vpop.permute.xlu0 %7670
        %7672 = vrot.lane.b32.xlu0 %v7244, 64
        %v7673 = vpop.permute.xlu0 %7672
        %7674 = vrot.lane.b32.xlu0 %v7246, 64
        %v7675 = vpop.permute.xlu0 %7674
        %7676 = vrot.lane.b32.xlu0 %v7248, 64
        %v7677 = vpop.permute.xlu0 %7676
        %7678 = vrot.lane.b32.xlu0 %v7250, 64
        %v7679 = vpop.permute.xlu0 %7678
        %7680 = vrot.lane.b32.xlu0 %v7253, 64
        %v7681 = vpop.permute.xlu0 %7680
        %7682 = vrot.lane.b32.xlu0 %v7256, 64
        %v7683 = vpop.permute.xlu0 %7682
        %7684 = vrot.lane.b32.xlu0 %v7259, 64
        %v7685 = vpop.permute.xlu0 %7684
        %7686 = vrot.lane.b32.xlu0 %v7261, 64
        %v7687 = vpop.permute.xlu0 %7686
        %7688 = vrot.lane.b32.xlu0 %v7263, 64
        %v7689 = vpop.permute.xlu0 %7688
        %7690 = vrot.lane.b32.xlu0 %v7265, 64
        %v7691 = vpop.permute.xlu0 %7690
        %7692 = vrot.lane.b32.xlu0 %v7268, 64
        %v7693 = vpop.permute.xlu0 %7692
        %7694 = vrot.lane.b32.xlu0 %v7271, 64
        %v7695 = vpop.permute.xlu0 %7694
        %7696 = vrot.lane.b32.xlu0 %v7274, 64
        %v7697 = vpop.permute.xlu0 %7696
        %7698 = vrot.lane.b32.xlu0 %v7276, 64
        %v7699 = vpop.permute.xlu0 %7698
        %7700 = vrot.lane.b32.xlu0 %v7278, 64
        %v7701 = vpop.permute.xlu0 %7700
        %7702 = vrot.lane.b32.xlu0 %v7280, 64
        %v7703 = vpop.permute.xlu0 %7702
        %7704 = vrot.lane.b32.xlu0 %v7283, 64
        %v7705 = vpop.permute.xlu0 %7704
        %7706 = vrot.lane.b32.xlu0 %v7286, 64
        %v7707 = vpop.permute.xlu0 %7706
        %7708 = vrot.lane.b32.xlu0 %v7289, 64
        %v7709 = vpop.permute.xlu0 %7708
        %7710 = vrot.lane.b32.xlu0 %v7291, 64
        %v7711 = vpop.permute.xlu0 %7710
        %7712 = vrot.lane.b32.xlu0 %v7293, 64
        %v7713 = vpop.permute.xlu0 %7712
        %7714 = vrot.lane.b32.xlu0 %v7295, 64
        %v7715 = vpop.permute.xlu0 %7714
        %7716 = vrot.lane.b32.xlu0 %v7298, 64
        %v7717 = vpop.permute.xlu0 %7716
        %7718 = vrot.lane.b32.xlu0 %v7301, 64
        %v7719 = vpop.permute.xlu0 %7718
        %7720 = vrot.lane.b32.xlu0 %v7304, 64
        %v7721 = vpop.permute.xlu0 %7720
        %7722 = vrot.lane.b32.xlu0 %v7306, 64
        %v7723 = vpop.permute.xlu0 %7722
        %7724 = vrot.lane.b32.xlu0 %v7308, 64
        %v7725 = vpop.permute.xlu0 %7724
        %7726 = vrot.lane.b32.xlu0 %v7310, 64
        %v7727 = vpop.permute.xlu0 %7726
        %7728 = vrot.lane.b32.xlu0 %v7313, 64
        %v7729 = vpop.permute.xlu0 %7728
        %7730 = vrot.lane.b32.xlu0 %v7316, 64
        %v7731 = vpop.permute.xlu0 %7730
        %7732 = vrot.lane.b32.xlu0 %v7319, 64
        %v7733 = vpop.permute.xlu0 %7732
        %7734 = vrot.lane.b32.xlu0 %v7321, 64
        %v7735 = vpop.permute.xlu0 %7734
        %7736 = vrot.lane.b32.xlu0 %v7323, 64
        %v7737 = vpop.permute.xlu0 %7736
        %7738 = vrot.lane.b32.xlu0 %v7325, 64
        %v7739 = vpop.permute.xlu0 %7738
        %7740 = vrot.lane.b32.xlu0 %v7328, 64
        %v7741 = vpop.permute.xlu0 %7740
        %7742 = vrot.lane.b32.xlu0 %v7331, 64
        %v7743 = vpop.permute.xlu0 %7742
        %7744 = vrot.lane.b32.xlu0 %v7334, 64
        %v7745 = vpop.permute.xlu0 %7744
        %7746 = vrot.lane.b32.xlu0 %v7336, 64
        %v7747 = vpop.permute.xlu0 %7746
        %7748 = vrot.lane.b32.xlu0 %v7338, 64
        %v7749 = vpop.permute.xlu0 %7748
        %7750 = vrot.lane.b32.xlu0 %v7340, 64
        %v7751 = vpop.permute.xlu0 %7750
        %7752 = vrot.lane.b32.xlu0 %v7343, 64
        %v7753 = vpop.permute.xlu0 %7752
        %7754 = vrot.lane.b32.xlu0 %v7346, 64
        %v7755 = vpop.permute.xlu0 %7754
        %7756 = vrot.lane.b32.xlu0 %v7349, 64
        %v7757 = vpop.permute.xlu0 %7756
        %7758 = vrot.lane.b32.xlu0 %v7351, 64
        %v7759 = vpop.permute.xlu0 %7758
        %7760 = vrot.lane.b32.xlu0 %v7353, 64
        %v7761 = vpop.permute.xlu0 %7760
        %7762 = vrot.lane.b32.xlu0 %v7355, 64
        %v7763 = vpop.permute.xlu0 %7762
        %7764 = vrot.lane.b32.xlu0 %v7358, 64
        %v7765 = vpop.permute.xlu0 %7764
        %7766 = vrot.lane.b32.xlu0 %v7361, 64
        %v7767 = vpop.permute.xlu0 %7766
        %7768 = vrot.lane.b32.xlu0 %v7364, 64
        %v7769 = vpop.permute.xlu0 %7768
        %7770 = vrot.lane.b32.xlu0 %v7366, 64
        %v7771 = vpop.permute.xlu0 %7770
        %7772 = vrot.lane.b32.xlu0 %v7368, 64
        %v7773 = vpop.permute.xlu0 %7772
        %7774 = vrot.lane.b32.xlu0 %v7370, 64
        %v7775 = vpop.permute.xlu0 %7774
        %7776 = vrot.lane.b32.xlu0 %v7373, 64
        %v7777 = vpop.permute.xlu0 %7776
        %7778 = vrot.lane.b32.xlu0 %v7376, 64
        %v7779 = vpop.permute.xlu0 %7778
        %7780 = vrot.lane.b32.xlu0 %v7379, 64
        %v7781 = vpop.permute.xlu0 %7780
        %7782 = vrot.lane.b32.xlu0 %v7381, 64
        %v7783 = vpop.permute.xlu0 %7782
        %7784 = vrot.lane.b32.xlu0 %v7383, 64
        %v7785 = vpop.permute.xlu0 %7784
        %7786 = vrot.lane.b32.xlu0 %v7385, 64
        %v7787 = vpop.permute.xlu0 %7786
        %7788 = vrot.lane.b32.xlu0 %v7388, 64
        %v7789 = vpop.permute.xlu0 %7788
        %7790 = vrot.lane.b32.xlu0 %v7391, 64
        %v7791 = vpop.permute.xlu0 %7790
        %7792 = vrot.lane.b32.xlu0 %v7394, 64
        %v7793 = vpop.permute.xlu0 %7792
        %7794 = vrot.lane.b32.xlu0 %v7396, 64
        %v7795 = vpop.permute.xlu0 %7794
        %7796 = vrot.lane.b32.xlu0 %v7398, 64
        %v7797 = vpop.permute.xlu0 %7796
        %7798 = vrot.lane.b32.xlu0 %v7400, 64
        %v7799 = vpop.permute.xlu0 %7798
        %7800 = vrot.lane.b32.xlu0 %v7403, 64
        %v7801 = vpop.permute.xlu0 %7800
        %7802 = vrot.lane.b32.xlu0 %v7406, 64
        %v7803 = vpop.permute.xlu0 %7802
        %7804 = vrot.lane.b32.xlu0 %v7409, 64
        %v7805 = vpop.permute.xlu0 %7804
        %7806 = vrot.lane.b32.xlu0 %v7411, 64
        %v7807 = vpop.permute.xlu0 %7806
        %7808 = vrot.lane.b32.xlu0 %v7413, 64
        %v7809 = vpop.permute.xlu0 %7808
        %7810 = vrot.lane.b32.xlu0 %v7415, 64
        %v7811 = vpop.permute.xlu0 %7810
        %7812 = vrot.lane.b32.xlu0 %v7418, 64
        %v7813 = vpop.permute.xlu0 %7812
        %7814 = vrot.lane.b32.xlu0 %v7421, 64
        %v7815 = vpop.permute.xlu0 %7814
        %7816 = vrot.lane.b32.xlu0 %v7424, 64
        %v7817 = vpop.permute.xlu0 %7816
        %7818 = vrot.lane.b32.xlu0 %v7426, 64
        %v7819 = vpop.permute.xlu0 %7818
        %7820 = vrot.lane.b32.xlu0 %v7428, 64
        %v7821 = vpop.permute.xlu0 %7820
        %7822 = vrot.lane.b32.xlu0 %v7430, 64
        %v7823 = vpop.permute.xlu0 %7822
        %7824 = vrot.lane.b32.xlu0 %v7433, 64
        %v7825 = vpop.permute.xlu0 %7824
        %7826 = vrot.lane.b32.xlu0 %v7436, 64
        %v7827 = vpop.permute.xlu0 %7826
        %7828 = vrot.lane.b32.xlu0 %v7439, 64
        %v7829 = vpop.permute.xlu0 %7828
        %7830 = vrot.lane.b32.xlu0 %v7441, 64
        %v7831 = vpop.permute.xlu0 %7830
        %7832 = vrot.lane.b32.xlu0 %v7443, 64
        %v7833 = vpop.permute.xlu0 %7832
        %7834 = vrot.lane.b32.xlu0 %v7445, 64
        %v7835 = vpop.permute.xlu0 %7834
        %7836 = vrot.lane.b32.xlu0 %v7448, 64
        %v7837 = vpop.permute.xlu0 %7836
        %7838 = vrot.lane.b32.xlu0 %v7451, 64
        %v7839 = vpop.permute.xlu0 %7838
        %7840 = vrot.lane.b32.xlu0 %v7454, 64
        %v7841 = vpop.permute.xlu0 %7840
        %7842 = vrot.lane.b32.xlu0 %v7456, 64
        %v7843 = vpop.permute.xlu0 %7842
        %7844 = vrot.lane.b32.xlu0 %v7458, 64
        %v7845 = vpop.permute.xlu0 %7844
        %7846 = vrot.lane.b32.xlu0 %v7460, 64
        %v7847 = vpop.permute.xlu0 %7846
        %7848 = vrot.lane.b32.xlu0 %v7463, 64
        %v7849 = vpop.permute.xlu0 %7848
        %7850 = vrot.lane.b32.xlu0 %v7466, 64
        %v7851 = vpop.permute.xlu0 %7850
        %7852 = vrot.lane.b32.xlu0 %v7469, 64
        %v7853 = vpop.permute.xlu0 %7852
        %7854 = vrot.lane.b32.xlu0 %v7471, 64
        %v7855 = vpop.permute.xlu0 %7854
        %7856 = vrot.lane.b32.xlu0 %v7473, 64
        %v7857 = vpop.permute.xlu0 %7856
        %7858 = vrot.lane.b32.xlu0 %v7475, 64
        %v7859 = vpop.permute.xlu0 %7858
        %vm7860 = vcmask 523264
        %v7861 = vsel %vm7860, %v7477, %v7479
        %v7862 = vsel %vm7860, %v7479, %v7481
        %v7863 = vsel %vm7860, %v7483, %v7485
        %v7864 = vsel %vm7860, %v7485, %v7487
        %v7865 = vsel %vm7860, %v7489, %v7491
        %v7866 = vsel %vm7860, %v7491, %v7493
        %v7867 = vsel %vm7860, %v7495, %v7497
        %v7868 = vsel %vm7860, %v7497, %v7499
        %v7869 = vsel %vm7860, %v7501, %v7503
        %v7870 = vsel %vm7860, %v7503, %v7505
        %v7871 = vsel %vm7860, %v7507, %v7509
        %v7872 = vsel %vm7860, %v7509, %v7511
        %v7873 = vsel %vm7860, %v7513, %v7515
        %v7874 = vsel %vm7860, %v7515, %v7517
        %v7875 = vsel %vm7860, %v7519, %v7521
        %v7876 = vsel %vm7860, %v7521, %v7523
        %v7877 = vsel %vm7860, %v7525, %v7527
        %v7878 = vsel %vm7860, %v7527, %v7529
        %v7879 = vsel %vm7860, %v7531, %v7533
        %v7880 = vsel %vm7860, %v7533, %v7535
        %v7881 = vsel %vm7860, %v7537, %v7539
        %v7882 = vsel %vm7860, %v7539, %v7541
        %v7883 = vsel %vm7860, %v7543, %v7545
        %v7884 = vsel %vm7860, %v7545, %v7547
        %v7885 = vsel %vm7860, %v7549, %v7551
        %v7886 = vsel %vm7860, %v7551, %v7553
        %v7887 = vsel %vm7860, %v7555, %v7557
        %v7888 = vsel %vm7860, %v7557, %v7559
        %v7889 = vsel %vm7860, %v7561, %v7563
        %v7890 = vsel %vm7860, %v7563, %v7565
        %v7891 = vsel %vm7860, %v7567, %v7569
        %v7892 = vsel %vm7860, %v7569, %v7571
        %v7893 = vsel %vm7860, %v7573, %v7575
        %v7894 = vsel %vm7860, %v7575, %v7577
        %v7895 = vsel %vm7860, %v7579, %v7581
        %v7896 = vsel %vm7860, %v7581, %v7583
        %v7897 = vsel %vm7860, %v7585, %v7587
        %v7898 = vsel %vm7860, %v7587, %v7589
        %v7899 = vsel %vm7860, %v7591, %v7593
        %v7900 = vsel %vm7860, %v7593, %v7595
        %v7901 = vsel %vm7860, %v7597, %v7599
        %v7902 = vsel %vm7860, %v7599, %v7601
        %v7903 = vsel %vm7860, %v7603, %v7605
        %v7904 = vsel %vm7860, %v7605, %v7607
        %v7905 = vsel %vm7860, %v7609, %v7611
        %v7906 = vsel %vm7860, %v7611, %v7613
        %v7907 = vsel %vm7860, %v7615, %v7617
        %v7908 = vsel %vm7860, %v7617, %v7619
        %v7909 = vsel %vm7860, %v7621, %v7623
        %v7910 = vsel %vm7860, %v7623, %v7625
        %v7911 = vsel %vm7860, %v7627, %v7629
        %v7912 = vsel %vm7860, %v7629, %v7631
        %v7913 = vsel %vm7860, %v7633, %v7635
        %v7914 = vsel %vm7860, %v7635, %v7637
        %v7915 = vsel %vm7860, %v7639, %v7641
        %v7916 = vsel %vm7860, %v7641, %v7643
        %v7917 = vsel %vm7860, %v7645, %v7647
        %v7918 = vsel %vm7860, %v7647, %v7649
        %v7919 = vsel %vm7860, %v7651, %v7653
        %v7920 = vsel %vm7860, %v7653, %v7655
        %v7921 = vsel %vm7860, %v7657, %v7659
        %v7922 = vsel %vm7860, %v7659, %v7661
        %v7923 = vsel %vm7860, %v7663, %v7665
        %v7924 = vsel %vm7860, %v7665, %v7667
        %v7925 = vsel %vm7860, %v7669, %v7671
        %v7926 = vsel %vm7860, %v7671, %v7673
        %v7927 = vsel %vm7860, %v7675, %v7677
        %v7928 = vsel %vm7860, %v7677, %v7679
        %v7929 = vsel %vm7860, %v7681, %v7683
        %v7930 = vsel %vm7860, %v7683, %v7685
        %v7931 = vsel %vm7860, %v7687, %v7689
        %v7932 = vsel %vm7860, %v7689, %v7691
        %v7933 = vsel %vm7860, %v7693, %v7695
        %v7934 = vsel %vm7860, %v7695, %v7697
        %v7935 = vsel %vm7860, %v7699, %v7701
        %v7936 = vsel %vm7860, %v7701, %v7703
        %v7937 = vsel %vm7860, %v7705, %v7707
        %v7938 = vsel %vm7860, %v7707, %v7709
        %v7939 = vsel %vm7860, %v7711, %v7713
        %v7940 = vsel %vm7860, %v7713, %v7715
        %v7941 = vsel %vm7860, %v7717, %v7719
        %v7942 = vsel %vm7860, %v7719, %v7721
        %v7943 = vsel %vm7860, %v7723, %v7725
        %v7944 = vsel %vm7860, %v7725, %v7727
        %v7945 = vsel %vm7860, %v7729, %v7731
        %v7946 = vsel %vm7860, %v7731, %v7733
        %v7947 = vsel %vm7860, %v7735, %v7737
        %v7948 = vsel %vm7860, %v7737, %v7739
        %v7949 = vsel %vm7860, %v7741, %v7743
        %v7950 = vsel %vm7860, %v7743, %v7745
        %v7951 = vsel %vm7860, %v7747, %v7749
        %v7952 = vsel %vm7860, %v7749, %v7751
        %v7953 = vsel %vm7860, %v7753, %v7755
        %v7954 = vsel %vm7860, %v7755, %v7757
        %v7955 = vsel %vm7860, %v7759, %v7761
        %v7956 = vsel %vm7860, %v7761, %v7763
        %v7957 = vsel %vm7860, %v7765, %v7767
        %v7958 = vsel %vm7860, %v7767, %v7769
        %v7959 = vsel %vm7860, %v7771, %v7773
        %v7960 = vsel %vm7860, %v7773, %v7775
        %v7961 = vsel %vm7860, %v7777, %v7779
        %v7962 = vsel %vm7860, %v7779, %v7781
        %v7963 = vsel %vm7860, %v7783, %v7785
        %v7964 = vsel %vm7860, %v7785, %v7787
        %v7965 = vsel %vm7860, %v7789, %v7791
        %v7966 = vsel %vm7860, %v7791, %v7793
        %v7967 = vsel %vm7860, %v7795, %v7797
        %v7968 = vsel %vm7860, %v7797, %v7799
        %v7969 = vsel %vm7860, %v7801, %v7803
        %v7970 = vsel %vm7860, %v7803, %v7805
        %v7971 = vsel %vm7860, %v7807, %v7809
        %v7972 = vsel %vm7860, %v7809, %v7811
        %v7973 = vsel %vm7860, %v7813, %v7815
        %v7974 = vsel %vm7860, %v7815, %v7817
        %v7975 = vsel %vm7860, %v7819, %v7821
        %v7976 = vsel %vm7860, %v7821, %v7823
        %v7977 = vsel %vm7860, %v7825, %v7827
        %v7978 = vsel %vm7860, %v7827, %v7829
        %v7979 = vsel %vm7860, %v7831, %v7833
        %v7980 = vsel %vm7860, %v7833, %v7835
        %v7981 = vsel %vm7860, %v7837, %v7839
        %v7982 = vsel %vm7860, %v7839, %v7841
        %v7983 = vsel %vm7860, %v7843, %v7845
        %v7984 = vsel %vm7860, %v7845, %v7847
        %v7985 = vsel %vm7860, %v7849, %v7851
        %v7986 = vsel %vm7860, %v7851, %v7853
        %v7987 = vsel %vm7860, %v7855, %v7857
        %v7988 = vsel %vm7860, %v7857, %v7859
        %v8117 = vadd.f32 %v6771, %v7861
        %v8118 = vadd.f32 %v6772, %v7862
        %v8119 = vadd.f32 %v6773, %v7863
        %v8120 = vadd.f32 %v6774, %v7864
        %v8121 = vadd.f32 %v6775, %v7865
        %v8122 = vadd.f32 %v6776, %v7866
        %v8123 = vadd.f32 %v6777, %v7867
        %v8124 = vadd.f32 %v6778, %v7868
        %v8125 = vadd.f32 %v6779, %v7869
        %v8126 = vadd.f32 %v6780, %v7870
        %v8127 = vadd.f32 %v6781, %v7871
        %v8128 = vadd.f32 %v6782, %v7872
        %v8129 = vadd.f32 %v6783, %v7873
        %v8130 = vadd.f32 %v6784, %v7874
        %v8131 = vadd.f32 %v6785, %v7875
        %v8132 = vadd.f32 %v6786, %v7876
        %v8133 = vadd.f32 %v6787, %v7877
        %v8134 = vadd.f32 %v6788, %v7878
        %v8135 = vadd.f32 %v6789, %v7879
        %v8136 = vadd.f32 %v6790, %v7880
        %v8137 = vadd.f32 %v6791, %v7881
        %v8138 = vadd.f32 %v6792, %v7882
        %v8139 = vadd.f32 %v6793, %v7883
        %v8140 = vadd.f32 %v6794, %v7884
        %v8141 = vadd.f32 %v6795, %v7885
        %v8142 = vadd.f32 %v6796, %v7886
        %v8143 = vadd.f32 %v6797, %v7887
        %v8144 = vadd.f32 %v6798, %v7888
        %v8145 = vadd.f32 %v6799, %v7889
        %v8146 = vadd.f32 %v6800, %v7890
        %v8147 = vadd.f32 %v6801, %v7891
        %v8148 = vadd.f32 %v6802, %v7892
        %v8149 = vadd.f32 %v6803, %v7893
        %v8150 = vadd.f32 %v6804, %v7894
        %v8151 = vadd.f32 %v6805, %v7895
        %v8152 = vadd.f32 %v6806, %v7896
        %v8153 = vadd.f32 %v6807, %v7897
        %v8154 = vadd.f32 %v6808, %v7898
        %v8155 = vadd.f32 %v6809, %v7899
        %v8156 = vadd.f32 %v6810, %v7900
        %v8157 = vadd.f32 %v6811, %v7901
        %v8158 = vadd.f32 %v6812, %v7902
        %v8159 = vadd.f32 %v6813, %v7903
        %v8160 = vadd.f32 %v6814, %v7904
        %v8161 = vadd.f32 %v6815, %v7905
        %v8162 = vadd.f32 %v6816, %v7906
        %v8163 = vadd.f32 %v6817, %v7907
        %v8164 = vadd.f32 %v6818, %v7908
        %v8165 = vadd.f32 %v6819, %v7909
        %v8166 = vadd.f32 %v6820, %v7910
        %v8167 = vadd.f32 %v6821, %v7911
        %v8168 = vadd.f32 %v6822, %v7912
        %v8169 = vadd.f32 %v6823, %v7913
        %v8170 = vadd.f32 %v6824, %v7914
        %v8171 = vadd.f32 %v6825, %v7915
        %v8172 = vadd.f32 %v6826, %v7916
        %v8173 = vadd.f32 %v6827, %v7917
        %v8174 = vadd.f32 %v6828, %v7918
        %v8175 = vadd.f32 %v6829, %v7919
        %v8176 = vadd.f32 %v6830, %v7920
        %v8177 = vadd.f32 %v6831, %v7921
        %v8178 = vadd.f32 %v6832, %v7922
        %v8179 = vadd.f32 %v6833, %v7923
        %v8180 = vadd.f32 %v6834, %v7924
        %v8181 = vadd.f32 %v6835, %v7925
        %v8182 = vadd.f32 %v6836, %v7926
        %v8183 = vadd.f32 %v6837, %v7927
        %v8184 = vadd.f32 %v6838, %v7928
        %v8185 = vadd.f32 %v6839, %v7929
        %v8186 = vadd.f32 %v6840, %v7930
        %v8187 = vadd.f32 %v6841, %v7931
        %v8188 = vadd.f32 %v6842, %v7932
        %v8189 = vadd.f32 %v6843, %v7933
        %v8190 = vadd.f32 %v6844, %v7934
        %v8191 = vadd.f32 %v6845, %v7935
        %v8192 = vadd.f32 %v6846, %v7936
        %v8193 = vadd.f32 %v6847, %v7937
        %v8194 = vadd.f32 %v6848, %v7938
        %v8195 = vadd.f32 %v6849, %v7939
        %v8196 = vadd.f32 %v6850, %v7940
        %v8197 = vadd.f32 %v6851, %v7941
        %v8198 = vadd.f32 %v6852, %v7942
        %v8199 = vadd.f32 %v6853, %v7943
        %v8200 = vadd.f32 %v6854, %v7944
        %v8201 = vadd.f32 %v6855, %v7945
        %v8202 = vadd.f32 %v6856, %v7946
        %v8203 = vadd.f32 %v6857, %v7947
        %v8204 = vadd.f32 %v6858, %v7948
        %v8205 = vadd.f32 %v6859, %v7949
        %v8206 = vadd.f32 %v6860, %v7950
        %v8207 = vadd.f32 %v6861, %v7951
        %v8208 = vadd.f32 %v6862, %v7952
        %v8209 = vadd.f32 %v6863, %v7953
        %v8210 = vadd.f32 %v6864, %v7954
        %v8211 = vadd.f32 %v6865, %v7955
        %v8212 = vadd.f32 %v6866, %v7956
        %v8213 = vadd.f32 %v6867, %v7957
        %v8214 = vadd.f32 %v6868, %v7958
        %v8215 = vadd.f32 %v6869, %v7959
        %v8216 = vadd.f32 %v6870, %v7960
        %v8217 = vadd.f32 %v6871, %v7961
        %v8218 = vadd.f32 %v6872, %v7962
        %v8219 = vadd.f32 %v6873, %v7963
        %v8220 = vadd.f32 %v6874, %v7964
        %v8221 = vadd.f32 %v6875, %v7965
        %v8222 = vadd.f32 %v6876, %v7966
        %v8223 = vadd.f32 %v6877, %v7967
        %v8224 = vadd.f32 %v6878, %v7968
        %v8225 = vadd.f32 %v6879, %v7969
        %v8226 = vadd.f32 %v6880, %v7970
        %v8227 = vadd.f32 %v6881, %v7971
        %v8228 = vadd.f32 %v6882, %v7972
        %v8229 = vadd.f32 %v6883, %v7973
        %v8230 = vadd.f32 %v6884, %v7974
        %v8231 = vadd.f32 %v6885, %v7975
        %v8232 = vadd.f32 %v6886, %v7976
        %v8233 = vadd.f32 %v6887, %v7977
        %v8234 = vadd.f32 %v6888, %v7978
        %v8235 = vadd.f32 %v6889, %v7979
        %v8236 = vadd.f32 %v6890, %v7980
        %v8237 = vadd.f32 %v6891, %v7981
        %v8238 = vadd.f32 %v6892, %v7982
        %v8239 = vadd.f32 %v6893, %v7983
        %v8240 = vadd.f32 %v6894, %v7984
        %v8241 = vadd.f32 %v6895, %v7985
        %v8242 = vadd.f32 %v6896, %v7986
        %v8243 = vadd.f32 %v6897, %v7987
        %v8244 = vadd.f32 %v6898, %v7988
        %vm8245 = vcmask 1042432
        %v8246 = vrot.slane %v2222, 5
        %v8247 = vrot.slane %v2226, 5
        %v8248 = vsel %vm8245, %v8246, %v8247
        %v8249 = vrot.slane %v2224, 5
        %v8250 = vrot.slane %v2228, 5
        %v8251 = vsel %vm8245, %v8249, %v8250
        %v8252 = vrot.slane %v3152, 5
        %v8253 = vrot.slane %v3155, 5
        %v8254 = vsel %vm8245, %v8252, %v8253
        %v8255 = vrot.slane %v2232, 5
        %v8256 = vsel %vm8245, %v8247, %v8255
        %v8257 = vrot.slane %v2234, 5
        %v8258 = vsel %vm8245, %v8250, %v8257
        %v8259 = vrot.slane %v3160, 5
        %v8260 = vsel %vm8245, %v8253, %v8259
        %v8261 = vrot.slane %v2236, 5
        %v8262 = vrot.slane %v2242, 5
        %v8263 = vsel %vm8245, %v8261, %v8262
        %v8264 = vrot.slane %v2238, 5
        %v8265 = vrot.slane %v2244, 5
        %v8266 = vsel %vm8245, %v8264, %v8265
        %v8267 = vrot.slane %v3163, 5
        %v8268 = vrot.slane %v3168, 5
        %v8269 = vsel %vm8245, %v8267, %v8268
        %v8270 = vrot.slane %v2246, 5
        %v8271 = vsel %vm8245, %v8262, %v8270
        %v8272 = vrot.slane %v2248, 5
        %v8273 = vsel %vm8245, %v8265, %v8272
        %v8274 = vrot.slane %v3171, 5
        %v8275 = vsel %vm8245, %v8268, %v8274
        %v8276 = vrot.slane %v2252, 5
        %v8277 = vrot.slane %v2256, 5
        %v8278 = vsel %vm8245, %v8276, %v8277
        %v8279 = vrot.slane %v2254, 5
        %v8280 = vrot.slane %v2258, 5
        %v8281 = vsel %vm8245, %v8279, %v8280
        %v8282 = vrot.slane %v3176, 5
        %v8283 = vrot.slane %v3179, 5
        %v8284 = vsel %vm8245, %v8282, %v8283
        %v8285 = vrot.slane %v2262, 5
        %v8286 = vsel %vm8245, %v8277, %v8285
        %v8287 = vrot.slane %v2264, 5
        %v8288 = vsel %vm8245, %v8280, %v8287
        %v8289 = vrot.slane %v3184, 5
        %v8290 = vsel %vm8245, %v8283, %v8289
        %v8291 = vrot.slane %v2266, 5
        %v8292 = vrot.slane %v2272, 5
        %v8293 = vsel %vm8245, %v8291, %v8292
        %v8294 = vrot.slane %v2268, 5
        %v8295 = vrot.slane %v2274, 5
        %v8296 = vsel %vm8245, %v8294, %v8295
        %v8297 = vrot.slane %v3187, 5
        %v8298 = vrot.slane %v3192, 5
        %v8299 = vsel %vm8245, %v8297, %v8298
        %v8300 = vrot.slane %v2276, 5
        %v8301 = vsel %vm8245, %v8292, %v8300
        %v8302 = vrot.slane %v2278, 5
        %v8303 = vsel %vm8245, %v8295, %v8302
        %v8304 = vrot.slane %v3195, 5
        %v8305 = vsel %vm8245, %v8298, %v8304
        %v8306 = vrot.slane %v2282, 5
        %v8307 = vrot.slane %v2286, 5
        %v8308 = vsel %vm8245, %v8306, %v8307
        %v8309 = vrot.slane %v2284, 5
        %v8310 = vrot.slane %v2288, 5
        %v8311 = vsel %vm8245, %v8309, %v8310
        %v8312 = vrot.slane %v3200, 5
        %v8313 = vrot.slane %v3203, 5
        %v8314 = vsel %vm8245, %v8312, %v8313
        %v8315 = vrot.slane %v2292, 5
        %v8316 = vsel %vm8245, %v8307, %v8315
        %v8317 = vrot.slane %v2294, 5
        %v8318 = vsel %vm8245, %v8310, %v8317
        %v8319 = vrot.slane %v3208, 5
        %v8320 = vsel %vm8245, %v8313, %v8319
        %v8321 = vrot.slane %v2296, 5
        %v8322 = vrot.slane %v2302, 5
        %v8323 = vsel %vm8245, %v8321, %v8322
        %v8324 = vrot.slane %v2298, 5
        %v8325 = vrot.slane %v2304, 5
        %v8326 = vsel %vm8245, %v8324, %v8325
        %v8327 = vrot.slane %v3211, 5
        %v8328 = vrot.slane %v3216, 5
        %v8329 = vsel %vm8245, %v8327, %v8328
        %v8330 = vrot.slane %v2306, 5
        %v8331 = vsel %vm8245, %v8322, %v8330
        %v8332 = vrot.slane %v2308, 5
        %v8333 = vsel %vm8245, %v8325, %v8332
        %v8334 = vrot.slane %v3219, 5
        %v8335 = vsel %vm8245, %v8328, %v8334
        %v8336 = vrot.slane %v2312, 5
        %v8337 = vrot.slane %v2316, 5
        %v8338 = vsel %vm8245, %v8336, %v8337
        %v8339 = vrot.slane %v2314, 5
        %v8340 = vrot.slane %v2318, 5
        %v8341 = vsel %vm8245, %v8339, %v8340
        %v8342 = vrot.slane %v3224, 5
        %v8343 = vrot.slane %v3227, 5
        %v8344 = vsel %vm8245, %v8342, %v8343
        %v8345 = vrot.slane %v2322, 5
        %v8346 = vsel %vm8245, %v8337, %v8345
        %v8347 = vrot.slane %v2324, 5
        %v8348 = vsel %vm8245, %v8340, %v8347
        %v8349 = vrot.slane %v3232, 5
        %v8350 = vsel %vm8245, %v8343, %v8349
        %v8351 = vrot.slane %v2326, 5
        %v8352 = vrot.slane %v2332, 5
        %v8353 = vsel %vm8245, %v8351, %v8352
        %v8354 = vrot.slane %v2328, 5
        %v8355 = vrot.slane %v2334, 5
        %v8356 = vsel %vm8245, %v8354, %v8355
        %v8357 = vrot.slane %v3235, 5
        %v8358 = vrot.slane %v3240, 5
        %v8359 = vsel %vm8245, %v8357, %v8358
        %v8360 = vrot.slane %v2336, 5
        %v8361 = vsel %vm8245, %v8352, %v8360
        %v8362 = vrot.slane %v2338, 5
        %v8363 = vsel %vm8245, %v8355, %v8362
        %v8364 = vrot.slane %v3243, 5
        %v8365 = vsel %vm8245, %v8358, %v8364
        %v8366 = vrot.slane %v2342, 5
        %v8367 = vrot.slane %v2346, 5
        %v8368 = vsel %vm8245, %v8366, %v8367
        %v8369 = vrot.slane %v2344, 5
        %v8370 = vrot.slane %v2348, 5
        %v8371 = vsel %vm8245, %v8369, %v8370
        %v8372 = vrot.slane %v3248, 5
        %v8373 = vrot.slane %v3251, 5
        %v8374 = vsel %vm8245, %v8372, %v8373
        %v8375 = vrot.slane %v2352, 5
        %v8376 = vsel %vm8245, %v8367, %v8375
        %v8377 = vrot.slane %v2354, 5
        %v8378 = vsel %vm8245, %v8370, %v8377
        %v8379 = vrot.slane %v3256, 5
        %v8380 = vsel %vm8245, %v8373, %v8379
        %v8381 = vrot.slane %v2356, 5
        %v8382 = vrot.slane %v2362, 5
        %v8383 = vsel %vm8245, %v8381, %v8382
        %v8384 = vrot.slane %v2358, 5
        %v8385 = vrot.slane %v2364, 5
        %v8386 = vsel %vm8245, %v8384, %v8385
        %v8387 = vrot.slane %v3259, 5
        %v8388 = vrot.slane %v3264, 5
        %v8389 = vsel %vm8245, %v8387, %v8388
        %v8390 = vrot.slane %v2366, 5
        %v8391 = vsel %vm8245, %v8382, %v8390
        %v8392 = vrot.slane %v2368, 5
        %v8393 = vsel %vm8245, %v8385, %v8392
        %v8394 = vrot.slane %v3267, 5
        %v8395 = vsel %vm8245, %v8388, %v8394
        %v8396 = vrot.slane %v2372, 5
        %v8397 = vrot.slane %v2376, 5
        %v8398 = vsel %vm8245, %v8396, %v8397
        %v8399 = vrot.slane %v2374, 5
        %v8400 = vrot.slane %v2378, 5
        %v8401 = vsel %vm8245, %v8399, %v8400
        %v8402 = vrot.slane %v3272, 5
        %v8403 = vrot.slane %v3275, 5
        %v8404 = vsel %vm8245, %v8402, %v8403
        %v8405 = vrot.slane %v2382, 5
        %v8406 = vsel %vm8245, %v8397, %v8405
        %v8407 = vrot.slane %v2384, 5
        %v8408 = vsel %vm8245, %v8400, %v8407
        %v8409 = vrot.slane %v3280, 5
        %v8410 = vsel %vm8245, %v8403, %v8409
        %v8411 = vrot.slane %v2386, 5
        %v8412 = vrot.slane %v2392, 5
        %v8413 = vsel %vm8245, %v8411, %v8412
        %v8414 = vrot.slane %v2388, 5
        %v8415 = vrot.slane %v2394, 5
        %v8416 = vsel %vm8245, %v8414, %v8415
        %v8417 = vrot.slane %v3283, 5
        %v8418 = vrot.slane %v3288, 5
        %v8419 = vsel %vm8245, %v8417, %v8418
        %v8420 = vrot.slane %v2396, 5
        %v8421 = vsel %vm8245, %v8412, %v8420
        %v8422 = vrot.slane %v2398, 5
        %v8423 = vsel %vm8245, %v8415, %v8422
        %v8424 = vrot.slane %v3291, 5
        %v8425 = vsel %vm8245, %v8418, %v8424
        %v8426 = vrot.slane %v2402, 5
        %v8427 = vrot.slane %v2406, 5
        %v8428 = vsel %vm8245, %v8426, %v8427
        %v8429 = vrot.slane %v2404, 5
        %v8430 = vrot.slane %v2408, 5
        %v8431 = vsel %vm8245, %v8429, %v8430
        %v8432 = vrot.slane %v3296, 5
        %v8433 = vrot.slane %v3299, 5
        %v8434 = vsel %vm8245, %v8432, %v8433
        %v8435 = vrot.slane %v2412, 5
        %v8436 = vsel %vm8245, %v8427, %v8435
        %v8437 = vrot.slane %v2414, 5
        %v8438 = vsel %vm8245, %v8430, %v8437
        %v8439 = vrot.slane %v3304, 5
        %v8440 = vsel %vm8245, %v8433, %v8439
        %v8441 = vrot.slane %v2416, 5
        %v8442 = vrot.slane %v2422, 5
        %v8443 = vsel %vm8245, %v8441, %v8442
        %v8444 = vrot.slane %v2418, 5
        %v8445 = vrot.slane %v2424, 5
        %v8446 = vsel %vm8245, %v8444, %v8445
        %v8447 = vrot.slane %v3307, 5
        %v8448 = vrot.slane %v3312, 5
        %v8449 = vsel %vm8245, %v8447, %v8448
        %v8450 = vrot.slane %v2426, 5
        %v8451 = vsel %vm8245, %v8442, %v8450
        %v8452 = vrot.slane %v2428, 5
        %v8453 = vsel %vm8245, %v8445, %v8452
        %v8454 = vrot.slane %v3315, 5
        %v8455 = vsel %vm8245, %v8448, %v8454
        %v8456 = vrot.slane %v2432, 5
        %v8457 = vrot.slane %v2436, 5
        %v8458 = vsel %vm8245, %v8456, %v8457
        %v8459 = vrot.slane %v2434, 5
        %v8460 = vrot.slane %v2438, 5
        %v8461 = vsel %vm8245, %v8459, %v8460
        %v8462 = vrot.slane %v3320, 5
        %v8463 = vrot.slane %v3323, 5
        %v8464 = vsel %vm8245, %v8462, %v8463
        %v8465 = vrot.slane %v2442, 5
        %v8466 = vsel %vm8245, %v8457, %v8465
        %v8467 = vrot.slane %v2444, 5
        %v8468 = vsel %vm8245, %v8460, %v8467
        %v8469 = vrot.slane %v3328, 5
        %v8470 = vsel %vm8245, %v8463, %v8469
        %v8471 = vrot.slane %v2446, 5
        %v8472 = vrot.slane %v2452, 5
        %v8473 = vsel %vm8245, %v8471, %v8472
        %v8474 = vrot.slane %v2448, 5
        %v8475 = vrot.slane %v2454, 5
        %v8476 = vsel %vm8245, %v8474, %v8475
        %v8477 = vrot.slane %v3331, 5
        %v8478 = vrot.slane %v3336, 5
        %v8479 = vsel %vm8245, %v8477, %v8478
        %v8480 = vrot.slane %v2456, 5
        %v8481 = vsel %vm8245, %v8472, %v8480
        %v8482 = vrot.slane %v2458, 5
        %v8483 = vsel %vm8245, %v8475, %v8482
        %v8484 = vrot.slane %v3339, 5
        %v8485 = vsel %vm8245, %v8478, %v8484
        %v8486 = vrot.slane %v2462, 5
        %v8487 = vrot.slane %v2466, 5
        %v8488 = vsel %vm8245, %v8486, %v8487
        %v8489 = vrot.slane %v2464, 5
        %v8490 = vrot.slane %v2468, 5
        %v8491 = vsel %vm8245, %v8489, %v8490
        %v8492 = vrot.slane %v3344, 5
        %v8493 = vrot.slane %v3347, 5
        %v8494 = vsel %vm8245, %v8492, %v8493
        %v8495 = vrot.slane %v2472, 5
        %v8496 = vsel %vm8245, %v8487, %v8495
        %v8497 = vrot.slane %v2474, 5
        %v8498 = vsel %vm8245, %v8490, %v8497
        %v8499 = vrot.slane %v3352, 5
        %v8500 = vsel %vm8245, %v8493, %v8499
        %v8501 = vrot.slane %v2476, 5
        %v8502 = vrot.slane %v2482, 5
        %v8503 = vsel %vm8245, %v8501, %v8502
        %v8504 = vrot.slane %v2478, 5
        %v8505 = vrot.slane %v2484, 5
        %v8506 = vsel %vm8245, %v8504, %v8505
        %v8507 = vrot.slane %v3355, 5
        %v8508 = vrot.slane %v3360, 5
        %v8509 = vsel %vm8245, %v8507, %v8508
        %v8510 = vrot.slane %v2486, 5
        %v8511 = vsel %vm8245, %v8502, %v8510
        %v8512 = vrot.slane %v2488, 5
        %v8513 = vsel %vm8245, %v8505, %v8512
        %v8514 = vrot.slane %v3363, 5
        %v8515 = vsel %vm8245, %v8508, %v8514
        %v8516 = vrot.slane %v2492, 5
        %v8517 = vrot.slane %v2496, 5
        %v8518 = vsel %vm8245, %v8516, %v8517
        %v8519 = vrot.slane %v2494, 5
        %v8520 = vrot.slane %v2498, 5
        %v8521 = vsel %vm8245, %v8519, %v8520
        %v8522 = vrot.slane %v3368, 5
        %v8523 = vrot.slane %v3371, 5
        %v8524 = vsel %vm8245, %v8522, %v8523
        %v8525 = vrot.slane %v2502, 5
        %v8526 = vsel %vm8245, %v8517, %v8525
        %v8527 = vrot.slane %v2504, 5
        %v8528 = vsel %vm8245, %v8520, %v8527
        %v8529 = vrot.slane %v3376, 5
        %v8530 = vsel %vm8245, %v8523, %v8529
        %v8531 = vrot.slane %v2506, 5
        %v8532 = vrot.slane %v2512, 5
        %v8533 = vsel %vm8245, %v8531, %v8532
        %v8534 = vrot.slane %v2508, 5
        %v8535 = vrot.slane %v2514, 5
        %v8536 = vsel %vm8245, %v8534, %v8535
        %v8537 = vrot.slane %v3379, 5
        %v8538 = vrot.slane %v3384, 5
        %v8539 = vsel %vm8245, %v8537, %v8538
        %v8540 = vrot.slane %v2516, 5
        %v8541 = vsel %vm8245, %v8532, %v8540
        %v8542 = vrot.slane %v2518, 5
        %v8543 = vsel %vm8245, %v8535, %v8542
        %v8544 = vrot.slane %v3387, 5
        %v8545 = vsel %vm8245, %v8538, %v8544
        %v8546 = vrot.slane %v2522, 5
        %v8547 = vrot.slane %v2526, 5
        %v8548 = vsel %vm8245, %v8546, %v8547
        %v8549 = vrot.slane %v2524, 5
        %v8550 = vrot.slane %v2528, 5
        %v8551 = vsel %vm8245, %v8549, %v8550
        %v8552 = vrot.slane %v3392, 5
        %v8553 = vrot.slane %v3395, 5
        %v8554 = vsel %vm8245, %v8552, %v8553
        %v8555 = vrot.slane %v2532, 5
        %v8556 = vsel %vm8245, %v8547, %v8555
        %v8557 = vrot.slane %v2534, 5
        %v8558 = vsel %vm8245, %v8550, %v8557
        %v8559 = vrot.slane %v3400, 5
        %v8560 = vsel %vm8245, %v8553, %v8559
        %v8561 = vrot.slane %v2536, 5
        %v8562 = vrot.slane %v2542, 5
        %v8563 = vsel %vm8245, %v8561, %v8562
        %v8564 = vrot.slane %v2538, 5
        %v8565 = vrot.slane %v2544, 5
        %v8566 = vsel %vm8245, %v8564, %v8565
        %v8567 = vrot.slane %v3403, 5
        %v8568 = vrot.slane %v3408, 5
        %v8569 = vsel %vm8245, %v8567, %v8568
        %v8570 = vrot.slane %v2546, 5
        %v8571 = vsel %vm8245, %v8562, %v8570
        %v8572 = vrot.slane %v2548, 5
        %v8573 = vsel %vm8245, %v8565, %v8572
        %v8574 = vrot.slane %v3411, 5
        %v8575 = vsel %vm8245, %v8568, %v8574
        %v8576 = vrot.slane %v2552, 5
        %v8577 = vrot.slane %v2556, 5
        %v8578 = vsel %vm8245, %v8576, %v8577
        %v8579 = vrot.slane %v2554, 5
        %v8580 = vrot.slane %v2558, 5
        %v8581 = vsel %vm8245, %v8579, %v8580
        %v8582 = vrot.slane %v3416, 5
        %v8583 = vrot.slane %v3419, 5
        %v8584 = vsel %vm8245, %v8582, %v8583
        %v8585 = vrot.slane %v2562, 5
        %v8586 = vsel %vm8245, %v8577, %v8585
        %v8587 = vrot.slane %v2564, 5
        %v8588 = vsel %vm8245, %v8580, %v8587
        %v8589 = vrot.slane %v3424, 5
        %v8590 = vsel %vm8245, %v8583, %v8589
        %v8591 = vrot.slane %v2566, 5
        %v8592 = vrot.slane %v2572, 5
        %v8593 = vsel %vm8245, %v8591, %v8592
        %v8594 = vrot.slane %v2568, 5
        %v8595 = vrot.slane %v2574, 5
        %v8596 = vsel %vm8245, %v8594, %v8595
        %v8597 = vrot.slane %v3427, 5
        %v8598 = vrot.slane %v3432, 5
        %v8599 = vsel %vm8245, %v8597, %v8598
        %v8600 = vrot.slane %v2576, 5
        %v8601 = vsel %vm8245, %v8592, %v8600
        %v8602 = vrot.slane %v2578, 5
        %v8603 = vsel %vm8245, %v8595, %v8602
        %v8604 = vrot.slane %v3435, 5
        %v8605 = vsel %vm8245, %v8598, %v8604
        %v8606 = vrot.slane %v2582, 5
        %v8607 = vrot.slane %v2586, 5
        %v8608 = vsel %vm8245, %v8606, %v8607
        %v8609 = vrot.slane %v2584, 5
        %v8610 = vrot.slane %v2588, 5
        %v8611 = vsel %vm8245, %v8609, %v8610
        %v8612 = vrot.slane %v3440, 5
        %v8613 = vrot.slane %v3443, 5
        %v8614 = vsel %vm8245, %v8612, %v8613
        %v8615 = vrot.slane %v2592, 5
        %v8616 = vsel %vm8245, %v8607, %v8615
        %v8617 = vrot.slane %v2594, 5
        %v8618 = vsel %vm8245, %v8610, %v8617
        %v8619 = vrot.slane %v3448, 5
        %v8620 = vsel %vm8245, %v8613, %v8619
        %v8621 = vrot.slane %v2596, 5
        %v8622 = vrot.slane %v2602, 5
        %v8623 = vsel %vm8245, %v8621, %v8622
        %v8624 = vrot.slane %v2598, 5
        %v8625 = vrot.slane %v2604, 5
        %v8626 = vsel %vm8245, %v8624, %v8625
        %v8627 = vrot.slane %v3451, 5
        %v8628 = vrot.slane %v3456, 5
        %v8629 = vsel %vm8245, %v8627, %v8628
        %v8630 = vrot.slane %v2606, 5
        %v8631 = vsel %vm8245, %v8622, %v8630
        %v8632 = vrot.slane %v2608, 5
        %v8633 = vsel %vm8245, %v8625, %v8632
        %v8634 = vrot.slane %v3459, 5
        %v8635 = vsel %vm8245, %v8628, %v8634
        %v8636 = vrot.slane %v2612, 5
        %v8637 = vrot.slane %v2616, 5
        %v8638 = vsel %vm8245, %v8636, %v8637
        %v8639 = vrot.slane %v2614, 5
        %v8640 = vrot.slane %v2618, 5
        %v8641 = vsel %vm8245, %v8639, %v8640
        %v8642 = vrot.slane %v3464, 5
        %v8643 = vrot.slane %v3467, 5
        %v8644 = vsel %vm8245, %v8642, %v8643
        %v8645 = vrot.slane %v2622, 5
        %v8646 = vsel %vm8245, %v8637, %v8645
        %v8647 = vrot.slane %v2624, 5
        %v8648 = vsel %vm8245, %v8640, %v8647
        %v8649 = vrot.slane %v3472, 5
        %v8650 = vsel %vm8245, %v8643, %v8649
        %v8651 = vrot.slane %v2626, 5
        %v8652 = vrot.slane %v2632, 5
        %v8653 = vsel %vm8245, %v8651, %v8652
        %v8654 = vrot.slane %v2628, 5
        %v8655 = vrot.slane %v2634, 5
        %v8656 = vsel %vm8245, %v8654, %v8655
        %v8657 = vrot.slane %v3475, 5
        %v8658 = vrot.slane %v3480, 5
        %v8659 = vsel %vm8245, %v8657, %v8658
        %v8660 = vrot.slane %v2636, 5
        %v8661 = vsel %vm8245, %v8652, %v8660
        %v8662 = vrot.slane %v2638, 5
        %v8663 = vsel %vm8245, %v8655, %v8662
        %v8664 = vrot.slane %v3483, 5
        %v8665 = vsel %vm8245, %v8658, %v8664
        %v8666 = vrot.slane %v2642, 5
        %v8667 = vrot.slane %v2646, 5
        %v8668 = vsel %vm8245, %v8666, %v8667
        %v8669 = vrot.slane %v2644, 5
        %v8670 = vrot.slane %v2648, 5
        %v8671 = vsel %vm8245, %v8669, %v8670
        %v8672 = vrot.slane %v3488, 5
        %v8673 = vrot.slane %v3491, 5
        %v8674 = vsel %vm8245, %v8672, %v8673
        %v8675 = vrot.slane %v2652, 5
        %v8676 = vsel %vm8245, %v8667, %v8675
        %v8677 = vrot.slane %v2654, 5
        %v8678 = vsel %vm8245, %v8670, %v8677
        %v8679 = vrot.slane %v3496, 5
        %v8680 = vsel %vm8245, %v8673, %v8679
        %v8681 = vrot.slane %v2656, 5
        %v8682 = vrot.slane %v2662, 5
        %v8683 = vsel %vm8245, %v8681, %v8682
        %v8684 = vrot.slane %v2658, 5
        %v8685 = vrot.slane %v2664, 5
        %v8686 = vsel %vm8245, %v8684, %v8685
        %v8687 = vrot.slane %v3499, 5
        %v8688 = vrot.slane %v3504, 5
        %v8689 = vsel %vm8245, %v8687, %v8688
        %v8690 = vrot.slane %v2666, 5
        %v8691 = vsel %vm8245, %v8682, %v8690
        %v8692 = vrot.slane %v2668, 5
        %v8693 = vsel %vm8245, %v8685, %v8692
        %v8694 = vrot.slane %v3507, 5
        %v8695 = vsel %vm8245, %v8688, %v8694
        %v8696 = vrot.slane %v2672, 5
        %v8697 = vrot.slane %v2676, 5
        %v8698 = vsel %vm8245, %v8696, %v8697
        %v8699 = vrot.slane %v2674, 5
        %v8700 = vrot.slane %v2678, 5
        %v8701 = vsel %vm8245, %v8699, %v8700
        %v8702 = vrot.slane %v3512, 5
        %v8703 = vrot.slane %v3515, 5
        %v8704 = vsel %vm8245, %v8702, %v8703
        %v8705 = vrot.slane %v2682, 5
        %v8706 = vsel %vm8245, %v8697, %v8705
        %v8707 = vrot.slane %v2684, 5
        %v8708 = vsel %vm8245, %v8700, %v8707
        %v8709 = vrot.slane %v3520, 5
        %v8710 = vsel %vm8245, %v8703, %v8709
        %v8711 = vrot.slane %v2686, 5
        %v8712 = vrot.slane %v2692, 5
        %v8713 = vsel %vm8245, %v8711, %v8712
        %v8714 = vrot.slane %v2688, 5
        %v8715 = vrot.slane %v2694, 5
        %v8716 = vsel %vm8245, %v8714, %v8715
        %v8717 = vrot.slane %v3523, 5
        %v8718 = vrot.slane %v3528, 5
        %v8719 = vsel %vm8245, %v8717, %v8718
        %v8720 = vrot.slane %v2696, 5
        %v8721 = vsel %vm8245, %v8712, %v8720
        %v8722 = vrot.slane %v2698, 5
        %v8723 = vsel %vm8245, %v8715, %v8722
        %v8724 = vrot.slane %v3531, 5
        %v8725 = vsel %vm8245, %v8718, %v8724
        %8726 = vrot.lane.b32.xlu0 %v8248, 48
        %v8727 = vpop.permute.xlu0 %8726
        %8728 = vrot.lane.b32.xlu0 %v8251, 48
        %v8729 = vpop.permute.xlu0 %8728
        %8730 = vrot.lane.b32.xlu0 %v8254, 48
        %v8731 = vpop.permute.xlu0 %8730
        %8732 = vrot.lane.b32.xlu0 %v8256, 48
        %v8733 = vpop.permute.xlu0 %8732
        %8734 = vrot.lane.b32.xlu0 %v8258, 48
        %v8735 = vpop.permute.xlu0 %8734
        %8736 = vrot.lane.b32.xlu0 %v8260, 48
        %v8737 = vpop.permute.xlu0 %8736
        %8738 = vrot.lane.b32.xlu0 %v8263, 48
        %v8739 = vpop.permute.xlu0 %8738
        %8740 = vrot.lane.b32.xlu0 %v8266, 48
        %v8741 = vpop.permute.xlu0 %8740
        %8742 = vrot.lane.b32.xlu0 %v8269, 48
        %v8743 = vpop.permute.xlu0 %8742
        %8744 = vrot.lane.b32.xlu0 %v8271, 48
        %v8745 = vpop.permute.xlu0 %8744
        %8746 = vrot.lane.b32.xlu0 %v8273, 48
        %v8747 = vpop.permute.xlu0 %8746
        %8748 = vrot.lane.b32.xlu0 %v8275, 48
        %v8749 = vpop.permute.xlu0 %8748
        %8750 = vrot.lane.b32.xlu0 %v8278, 48
        %v8751 = vpop.permute.xlu0 %8750
        %8752 = vrot.lane.b32.xlu0 %v8281, 48
        %v8753 = vpop.permute.xlu0 %8752
        %8754 = vrot.lane.b32.xlu0 %v8284, 48
        %v8755 = vpop.permute.xlu0 %8754
        %8756 = vrot.lane.b32.xlu0 %v8286, 48
        %v8757 = vpop.permute.xlu0 %8756
        %8758 = vrot.lane.b32.xlu0 %v8288, 48
        %v8759 = vpop.permute.xlu0 %8758
        %8760 = vrot.lane.b32.xlu0 %v8290, 48
        %v8761 = vpop.permute.xlu0 %8760
        %8762 = vrot.lane.b32.xlu0 %v8293, 48
        %v8763 = vpop.permute.xlu0 %8762
        %8764 = vrot.lane.b32.xlu0 %v8296, 48
        %v8765 = vpop.permute.xlu0 %8764
        %8766 = vrot.lane.b32.xlu0 %v8299, 48
        %v8767 = vpop.permute.xlu0 %8766
        %8768 = vrot.lane.b32.xlu0 %v8301, 48
        %v8769 = vpop.permute.xlu0 %8768
        %8770 = vrot.lane.b32.xlu0 %v8303, 48
        %v8771 = vpop.permute.xlu0 %8770
        %8772 = vrot.lane.b32.xlu0 %v8305, 48
        %v8773 = vpop.permute.xlu0 %8772
        %8774 = vrot.lane.b32.xlu0 %v8308, 48
        %v8775 = vpop.permute.xlu0 %8774
        %8776 = vrot.lane.b32.xlu0 %v8311, 48
        %v8777 = vpop.permute.xlu0 %8776
        %8778 = vrot.lane.b32.xlu0 %v8314, 48
        %v8779 = vpop.permute.xlu0 %8778
        %8780 = vrot.lane.b32.xlu0 %v8316, 48
        %v8781 = vpop.permute.xlu0 %8780
        %8782 = vrot.lane.b32.xlu0 %v8318, 48
        %v8783 = vpop.permute.xlu0 %8782
        %8784 = vrot.lane.b32.xlu0 %v8320, 48
        %v8785 = vpop.permute.xlu0 %8784
        %8786 = vrot.lane.b32.xlu0 %v8323, 48
        %v8787 = vpop.permute.xlu0 %8786
        %8788 = vrot.lane.b32.xlu0 %v8326, 48
        %v8789 = vpop.permute.xlu0 %8788
        %8790 = vrot.lane.b32.xlu0 %v8329, 48
        %v8791 = vpop.permute.xlu0 %8790
        %8792 = vrot.lane.b32.xlu0 %v8331, 48
        %v8793 = vpop.permute.xlu0 %8792
        %8794 = vrot.lane.b32.xlu0 %v8333, 48
        %v8795 = vpop.permute.xlu0 %8794
        %8796 = vrot.lane.b32.xlu0 %v8335, 48
        %v8797 = vpop.permute.xlu0 %8796
        %8798 = vrot.lane.b32.xlu0 %v8338, 48
        %v8799 = vpop.permute.xlu0 %8798
        %8800 = vrot.lane.b32.xlu0 %v8341, 48
        %v8801 = vpop.permute.xlu0 %8800
        %8802 = vrot.lane.b32.xlu0 %v8344, 48
        %v8803 = vpop.permute.xlu0 %8802
        %8804 = vrot.lane.b32.xlu0 %v8346, 48
        %v8805 = vpop.permute.xlu0 %8804
        %8806 = vrot.lane.b32.xlu0 %v8348, 48
        %v8807 = vpop.permute.xlu0 %8806
        %8808 = vrot.lane.b32.xlu0 %v8350, 48
        %v8809 = vpop.permute.xlu0 %8808
        %8810 = vrot.lane.b32.xlu0 %v8353, 48
        %v8811 = vpop.permute.xlu0 %8810
        %8812 = vrot.lane.b32.xlu0 %v8356, 48
        %v8813 = vpop.permute.xlu0 %8812
        %8814 = vrot.lane.b32.xlu0 %v8359, 48
        %v8815 = vpop.permute.xlu0 %8814
        %8816 = vrot.lane.b32.xlu0 %v8361, 48
        %v8817 = vpop.permute.xlu0 %8816
        %8818 = vrot.lane.b32.xlu0 %v8363, 48
        %v8819 = vpop.permute.xlu0 %8818
        %8820 = vrot.lane.b32.xlu0 %v8365, 48
        %v8821 = vpop.permute.xlu0 %8820
        %8822 = vrot.lane.b32.xlu0 %v8368, 48
        %v8823 = vpop.permute.xlu0 %8822
        %8824 = vrot.lane.b32.xlu0 %v8371, 48
        %v8825 = vpop.permute.xlu0 %8824
        %8826 = vrot.lane.b32.xlu0 %v8374, 48
        %v8827 = vpop.permute.xlu0 %8826
        %8828 = vrot.lane.b32.xlu0 %v8376, 48
        %v8829 = vpop.permute.xlu0 %8828
        %8830 = vrot.lane.b32.xlu0 %v8378, 48
        %v8831 = vpop.permute.xlu0 %8830
        %8832 = vrot.lane.b32.xlu0 %v8380, 48
        %v8833 = vpop.permute.xlu0 %8832
        %8834 = vrot.lane.b32.xlu0 %v8383, 48
        %v8835 = vpop.permute.xlu0 %8834
        %8836 = vrot.lane.b32.xlu0 %v8386, 48
        %v8837 = vpop.permute.xlu0 %8836
        %8838 = vrot.lane.b32.xlu0 %v8389, 48
        %v8839 = vpop.permute.xlu0 %8838
        %8840 = vrot.lane.b32.xlu0 %v8391, 48
        %v8841 = vpop.permute.xlu0 %8840
        %8842 = vrot.lane.b32.xlu0 %v8393, 48
        %v8843 = vpop.permute.xlu0 %8842
        %8844 = vrot.lane.b32.xlu0 %v8395, 48
        %v8845 = vpop.permute.xlu0 %8844
        %8846 = vrot.lane.b32.xlu0 %v8398, 48
        %v8847 = vpop.permute.xlu0 %8846
        %8848 = vrot.lane.b32.xlu0 %v8401, 48
        %v8849 = vpop.permute.xlu0 %8848
        %8850 = vrot.lane.b32.xlu0 %v8404, 48
        %v8851 = vpop.permute.xlu0 %8850
        %8852 = vrot.lane.b32.xlu0 %v8406, 48
        %v8853 = vpop.permute.xlu0 %8852
        %8854 = vrot.lane.b32.xlu0 %v8408, 48
        %v8855 = vpop.permute.xlu0 %8854
        %8856 = vrot.lane.b32.xlu0 %v8410, 48
        %v8857 = vpop.permute.xlu0 %8856
        %8858 = vrot.lane.b32.xlu0 %v8413, 48
        %v8859 = vpop.permute.xlu0 %8858
        %8860 = vrot.lane.b32.xlu0 %v8416, 48
        %v8861 = vpop.permute.xlu0 %8860
        %8862 = vrot.lane.b32.xlu0 %v8419, 48
        %v8863 = vpop.permute.xlu0 %8862
        %8864 = vrot.lane.b32.xlu0 %v8421, 48
        %v8865 = vpop.permute.xlu0 %8864
        %8866 = vrot.lane.b32.xlu0 %v8423, 48
        %v8867 = vpop.permute.xlu0 %8866
        %8868 = vrot.lane.b32.xlu0 %v8425, 48
        %v8869 = vpop.permute.xlu0 %8868
        %8870 = vrot.lane.b32.xlu0 %v8428, 48
        %v8871 = vpop.permute.xlu0 %8870
        %8872 = vrot.lane.b32.xlu0 %v8431, 48
        %v8873 = vpop.permute.xlu0 %8872
        %8874 = vrot.lane.b32.xlu0 %v8434, 48
        %v8875 = vpop.permute.xlu0 %8874
        %8876 = vrot.lane.b32.xlu0 %v8436, 48
        %v8877 = vpop.permute.xlu0 %8876
        %8878 = vrot.lane.b32.xlu0 %v8438, 48
        %v8879 = vpop.permute.xlu0 %8878
        %8880 = vrot.lane.b32.xlu0 %v8440, 48
        %v8881 = vpop.permute.xlu0 %8880
        %8882 = vrot.lane.b32.xlu0 %v8443, 48
        %v8883 = vpop.permute.xlu0 %8882
        %8884 = vrot.lane.b32.xlu0 %v8446, 48
        %v8885 = vpop.permute.xlu0 %8884
        %8886 = vrot.lane.b32.xlu0 %v8449, 48
        %v8887 = vpop.permute.xlu0 %8886
        %8888 = vrot.lane.b32.xlu0 %v8451, 48
        %v8889 = vpop.permute.xlu0 %8888
        %8890 = vrot.lane.b32.xlu0 %v8453, 48
        %v8891 = vpop.permute.xlu0 %8890
        %8892 = vrot.lane.b32.xlu0 %v8455, 48
        %v8893 = vpop.permute.xlu0 %8892
        %8894 = vrot.lane.b32.xlu0 %v8458, 48
        %v8895 = vpop.permute.xlu0 %8894
        %8896 = vrot.lane.b32.xlu0 %v8461, 48
        %v8897 = vpop.permute.xlu0 %8896
        %8898 = vrot.lane.b32.xlu0 %v8464, 48
        %v8899 = vpop.permute.xlu0 %8898
        %8900 = vrot.lane.b32.xlu0 %v8466, 48
        %v8901 = vpop.permute.xlu0 %8900
        %8902 = vrot.lane.b32.xlu0 %v8468, 48
        %v8903 = vpop.permute.xlu0 %8902
        %8904 = vrot.lane.b32.xlu0 %v8470, 48
        %v8905 = vpop.permute.xlu0 %8904
        %8906 = vrot.lane.b32.xlu0 %v8473, 48
        %v8907 = vpop.permute.xlu0 %8906
        %8908 = vrot.lane.b32.xlu0 %v8476, 48
        %v8909 = vpop.permute.xlu0 %8908
        %8910 = vrot.lane.b32.xlu0 %v8479, 48
        %v8911 = vpop.permute.xlu0 %8910
        %8912 = vrot.lane.b32.xlu0 %v8481, 48
        %v8913 = vpop.permute.xlu0 %8912
        %8914 = vrot.lane.b32.xlu0 %v8483, 48
        %v8915 = vpop.permute.xlu0 %8914
        %8916 = vrot.lane.b32.xlu0 %v8485, 48
        %v8917 = vpop.permute.xlu0 %8916
        %8918 = vrot.lane.b32.xlu0 %v8488, 48
        %v8919 = vpop.permute.xlu0 %8918
        %8920 = vrot.lane.b32.xlu0 %v8491, 48
        %v8921 = vpop.permute.xlu0 %8920
        %8922 = vrot.lane.b32.xlu0 %v8494, 48
        %v8923 = vpop.permute.xlu0 %8922
        %8924 = vrot.lane.b32.xlu0 %v8496, 48
        %v8925 = vpop.permute.xlu0 %8924
        %8926 = vrot.lane.b32.xlu0 %v8498, 48
        %v8927 = vpop.permute.xlu0 %8926
        %8928 = vrot.lane.b32.xlu0 %v8500, 48
        %v8929 = vpop.permute.xlu0 %8928
        %8930 = vrot.lane.b32.xlu0 %v8503, 48
        %v8931 = vpop.permute.xlu0 %8930
        %8932 = vrot.lane.b32.xlu0 %v8506, 48
        %v8933 = vpop.permute.xlu0 %8932
        %8934 = vrot.lane.b32.xlu0 %v8509, 48
        %v8935 = vpop.permute.xlu0 %8934
        %8936 = vrot.lane.b32.xlu0 %v8511, 48
        %v8937 = vpop.permute.xlu0 %8936
        %8938 = vrot.lane.b32.xlu0 %v8513, 48
        %v8939 = vpop.permute.xlu0 %8938
        %8940 = vrot.lane.b32.xlu0 %v8515, 48
        %v8941 = vpop.permute.xlu0 %8940
        %8942 = vrot.lane.b32.xlu0 %v8518, 48
        %v8943 = vpop.permute.xlu0 %8942
        %8944 = vrot.lane.b32.xlu0 %v8521, 48
        %v8945 = vpop.permute.xlu0 %8944
        %8946 = vrot.lane.b32.xlu0 %v8524, 48
        %v8947 = vpop.permute.xlu0 %8946
        %8948 = vrot.lane.b32.xlu0 %v8526, 48
        %v8949 = vpop.permute.xlu0 %8948
        %8950 = vrot.lane.b32.xlu0 %v8528, 48
        %v8951 = vpop.permute.xlu0 %8950
        %8952 = vrot.lane.b32.xlu0 %v8530, 48
        %v8953 = vpop.permute.xlu0 %8952
        %8954 = vrot.lane.b32.xlu0 %v8533, 48
        %v8955 = vpop.permute.xlu0 %8954
        %8956 = vrot.lane.b32.xlu0 %v8536, 48
        %v8957 = vpop.permute.xlu0 %8956
        %8958 = vrot.lane.b32.xlu0 %v8539, 48
        %v8959 = vpop.permute.xlu0 %8958
        %8960 = vrot.lane.b32.xlu0 %v8541, 48
        %v8961 = vpop.permute.xlu0 %8960
        %8962 = vrot.lane.b32.xlu0 %v8543, 48
        %v8963 = vpop.permute.xlu0 %8962
        %8964 = vrot.lane.b32.xlu0 %v8545, 48
        %v8965 = vpop.permute.xlu0 %8964
        %8966 = vrot.lane.b32.xlu0 %v8548, 48
        %v8967 = vpop.permute.xlu0 %8966
        %8968 = vrot.lane.b32.xlu0 %v8551, 48
        %v8969 = vpop.permute.xlu0 %8968
        %8970 = vrot.lane.b32.xlu0 %v8554, 48
        %v8971 = vpop.permute.xlu0 %8970
        %8972 = vrot.lane.b32.xlu0 %v8556, 48
        %v8973 = vpop.permute.xlu0 %8972
        %8974 = vrot.lane.b32.xlu0 %v8558, 48
        %v8975 = vpop.permute.xlu0 %8974
        %8976 = vrot.lane.b32.xlu0 %v8560, 48
        %v8977 = vpop.permute.xlu0 %8976
        %8978 = vrot.lane.b32.xlu0 %v8563, 48
        %v8979 = vpop.permute.xlu0 %8978
        %8980 = vrot.lane.b32.xlu0 %v8566, 48
        %v8981 = vpop.permute.xlu0 %8980
        %8982 = vrot.lane.b32.xlu0 %v8569, 48
        %v8983 = vpop.permute.xlu0 %8982
        %8984 = vrot.lane.b32.xlu0 %v8571, 48
        %v8985 = vpop.permute.xlu0 %8984
        %8986 = vrot.lane.b32.xlu0 %v8573, 48
        %v8987 = vpop.permute.xlu0 %8986
        %8988 = vrot.lane.b32.xlu0 %v8575, 48
        %v8989 = vpop.permute.xlu0 %8988
        %8990 = vrot.lane.b32.xlu0 %v8578, 48
        %v8991 = vpop.permute.xlu0 %8990
        %8992 = vrot.lane.b32.xlu0 %v8581, 48
        %v8993 = vpop.permute.xlu0 %8992
        %8994 = vrot.lane.b32.xlu0 %v8584, 48
        %v8995 = vpop.permute.xlu0 %8994
        %8996 = vrot.lane.b32.xlu0 %v8586, 48
        %v8997 = vpop.permute.xlu0 %8996
        %8998 = vrot.lane.b32.xlu0 %v8588, 48
        %v8999 = vpop.permute.xlu0 %8998
        %9000 = vrot.lane.b32.xlu0 %v8590, 48
        %v9001 = vpop.permute.xlu0 %9000
        %9002 = vrot.lane.b32.xlu0 %v8593, 48
        %v9003 = vpop.permute.xlu0 %9002
        %9004 = vrot.lane.b32.xlu0 %v8596, 48
        %v9005 = vpop.permute.xlu0 %9004
        %9006 = vrot.lane.b32.xlu0 %v8599, 48
        %v9007 = vpop.permute.xlu0 %9006
        %9008 = vrot.lane.b32.xlu0 %v8601, 48
        %v9009 = vpop.permute.xlu0 %9008
        %9010 = vrot.lane.b32.xlu0 %v8603, 48
        %v9011 = vpop.permute.xlu0 %9010
        %9012 = vrot.lane.b32.xlu0 %v8605, 48
        %v9013 = vpop.permute.xlu0 %9012
        %9014 = vrot.lane.b32.xlu0 %v8608, 48
        %v9015 = vpop.permute.xlu0 %9014
        %9016 = vrot.lane.b32.xlu0 %v8611, 48
        %v9017 = vpop.permute.xlu0 %9016
        %9018 = vrot.lane.b32.xlu0 %v8614, 48
        %v9019 = vpop.permute.xlu0 %9018
        %9020 = vrot.lane.b32.xlu0 %v8616, 48
        %v9021 = vpop.permute.xlu0 %9020
        %9022 = vrot.lane.b32.xlu0 %v8618, 48
        %v9023 = vpop.permute.xlu0 %9022
        %9024 = vrot.lane.b32.xlu0 %v8620, 48
        %v9025 = vpop.permute.xlu0 %9024
        %9026 = vrot.lane.b32.xlu0 %v8623, 48
        %v9027 = vpop.permute.xlu0 %9026
        %9028 = vrot.lane.b32.xlu0 %v8626, 48
        %v9029 = vpop.permute.xlu0 %9028
        %9030 = vrot.lane.b32.xlu0 %v8629, 48
        %v9031 = vpop.permute.xlu0 %9030
        %9032 = vrot.lane.b32.xlu0 %v8631, 48
        %v9033 = vpop.permute.xlu0 %9032
        %9034 = vrot.lane.b32.xlu0 %v8633, 48
        %v9035 = vpop.permute.xlu0 %9034
        %9036 = vrot.lane.b32.xlu0 %v8635, 48
        %v9037 = vpop.permute.xlu0 %9036
        %9038 = vrot.lane.b32.xlu0 %v8638, 48
        %v9039 = vpop.permute.xlu0 %9038
        %9040 = vrot.lane.b32.xlu0 %v8641, 48
        %v9041 = vpop.permute.xlu0 %9040
        %9042 = vrot.lane.b32.xlu0 %v8644, 48
        %v9043 = vpop.permute.xlu0 %9042
        %9044 = vrot.lane.b32.xlu0 %v8646, 48
        %v9045 = vpop.permute.xlu0 %9044
        %9046 = vrot.lane.b32.xlu0 %v8648, 48
        %v9047 = vpop.permute.xlu0 %9046
        %9048 = vrot.lane.b32.xlu0 %v8650, 48
        %v9049 = vpop.permute.xlu0 %9048
        %9050 = vrot.lane.b32.xlu0 %v8653, 48
        %v9051 = vpop.permute.xlu0 %9050
        %9052 = vrot.lane.b32.xlu0 %v8656, 48
        %v9053 = vpop.permute.xlu0 %9052
        %9054 = vrot.lane.b32.xlu0 %v8659, 48
        %v9055 = vpop.permute.xlu0 %9054
        %9056 = vrot.lane.b32.xlu0 %v8661, 48
        %v9057 = vpop.permute.xlu0 %9056
        %9058 = vrot.lane.b32.xlu0 %v8663, 48
        %v9059 = vpop.permute.xlu0 %9058
        %9060 = vrot.lane.b32.xlu0 %v8665, 48
        %v9061 = vpop.permute.xlu0 %9060
        %9062 = vrot.lane.b32.xlu0 %v8668, 48
        %v9063 = vpop.permute.xlu0 %9062
        %9064 = vrot.lane.b32.xlu0 %v8671, 48
        %v9065 = vpop.permute.xlu0 %9064
        %9066 = vrot.lane.b32.xlu0 %v8674, 48
        %v9067 = vpop.permute.xlu0 %9066
        %9068 = vrot.lane.b32.xlu0 %v8676, 48
        %v9069 = vpop.permute.xlu0 %9068
        %9070 = vrot.lane.b32.xlu0 %v8678, 48
        %v9071 = vpop.permute.xlu0 %9070
        %9072 = vrot.lane.b32.xlu0 %v8680, 48
        %v9073 = vpop.permute.xlu0 %9072
        %9074 = vrot.lane.b32.xlu0 %v8683, 48
        %v9075 = vpop.permute.xlu0 %9074
        %9076 = vrot.lane.b32.xlu0 %v8686, 48
        %v9077 = vpop.permute.xlu0 %9076
        %9078 = vrot.lane.b32.xlu0 %v8689, 48
        %v9079 = vpop.permute.xlu0 %9078
        %9080 = vrot.lane.b32.xlu0 %v8691, 48
        %v9081 = vpop.permute.xlu0 %9080
        %9082 = vrot.lane.b32.xlu0 %v8693, 48
        %v9083 = vpop.permute.xlu0 %9082
        %9084 = vrot.lane.b32.xlu0 %v8695, 48
        %v9085 = vpop.permute.xlu0 %9084
        %9086 = vrot.lane.b32.xlu0 %v8698, 48
        %v9087 = vpop.permute.xlu0 %9086
        %9088 = vrot.lane.b32.xlu0 %v8701, 48
        %v9089 = vpop.permute.xlu0 %9088
        %9090 = vrot.lane.b32.xlu0 %v8704, 48
        %v9091 = vpop.permute.xlu0 %9090
        %9092 = vrot.lane.b32.xlu0 %v8706, 48
        %v9093 = vpop.permute.xlu0 %9092
        %9094 = vrot.lane.b32.xlu0 %v8708, 48
        %v9095 = vpop.permute.xlu0 %9094
        %9096 = vrot.lane.b32.xlu0 %v8710, 48
        %v9097 = vpop.permute.xlu0 %9096
        %9098 = vrot.lane.b32.xlu0 %v8713, 48
        %v9099 = vpop.permute.xlu0 %9098
        %9100 = vrot.lane.b32.xlu0 %v8716, 48
        %v9101 = vpop.permute.xlu0 %9100
        %9102 = vrot.lane.b32.xlu0 %v8719, 48
        %v9103 = vpop.permute.xlu0 %9102
        %9104 = vrot.lane.b32.xlu0 %v8721, 48
        %v9105 = vpop.permute.xlu0 %9104
        %9106 = vrot.lane.b32.xlu0 %v8723, 48
        %v9107 = vpop.permute.xlu0 %9106
        %9108 = vrot.lane.b32.xlu0 %v8725, 48
        %v9109 = vpop.permute.xlu0 %9108
        %vm9110 = vcmask 392192
        %v9111 = vsel %vm9110, %v8727, %v8729
        %v9112 = vsel %vm9110, %v8729, %v8731
        %v9113 = vsel %vm9110, %v8733, %v8735
        %v9114 = vsel %vm9110, %v8735, %v8737
        %v9115 = vsel %vm9110, %v8739, %v8741
        %v9116 = vsel %vm9110, %v8741, %v8743
        %v9117 = vsel %vm9110, %v8745, %v8747
        %v9118 = vsel %vm9110, %v8747, %v8749
        %v9119 = vsel %vm9110, %v8751, %v8753
        %v9120 = vsel %vm9110, %v8753, %v8755
        %v9121 = vsel %vm9110, %v8757, %v8759
        %v9122 = vsel %vm9110, %v8759, %v8761
        %v9123 = vsel %vm9110, %v8763, %v8765
        %v9124 = vsel %vm9110, %v8765, %v8767
        %v9125 = vsel %vm9110, %v8769, %v8771
        %v9126 = vsel %vm9110, %v8771, %v8773
        %v9127 = vsel %vm9110, %v8775, %v8777
        %v9128 = vsel %vm9110, %v8777, %v8779
        %v9129 = vsel %vm9110, %v8781, %v8783
        %v9130 = vsel %vm9110, %v8783, %v8785
        %v9131 = vsel %vm9110, %v8787, %v8789
        %v9132 = vsel %vm9110, %v8789, %v8791
        %v9133 = vsel %vm9110, %v8793, %v8795
        %v9134 = vsel %vm9110, %v8795, %v8797
        %v9135 = vsel %vm9110, %v8799, %v8801
        %v9136 = vsel %vm9110, %v8801, %v8803
        %v9137 = vsel %vm9110, %v8805, %v8807
        %v9138 = vsel %vm9110, %v8807, %v8809
        %v9139 = vsel %vm9110, %v8811, %v8813
        %v9140 = vsel %vm9110, %v8813, %v8815
        %v9141 = vsel %vm9110, %v8817, %v8819
        %v9142 = vsel %vm9110, %v8819, %v8821
        %v9143 = vsel %vm9110, %v8823, %v8825
        %v9144 = vsel %vm9110, %v8825, %v8827
        %v9145 = vsel %vm9110, %v8829, %v8831
        %v9146 = vsel %vm9110, %v8831, %v8833
        %v9147 = vsel %vm9110, %v8835, %v8837
        %v9148 = vsel %vm9110, %v8837, %v8839
        %v9149 = vsel %vm9110, %v8841, %v8843
        %v9150 = vsel %vm9110, %v8843, %v8845
        %v9151 = vsel %vm9110, %v8847, %v8849
        %v9152 = vsel %vm9110, %v8849, %v8851
        %v9153 = vsel %vm9110, %v8853, %v8855
        %v9154 = vsel %vm9110, %v8855, %v8857
        %v9155 = vsel %vm9110, %v8859, %v8861
        %v9156 = vsel %vm9110, %v8861, %v8863
        %v9157 = vsel %vm9110, %v8865, %v8867
        %v9158 = vsel %vm9110, %v8867, %v8869
        %v9159 = vsel %vm9110, %v8871, %v8873
        %v9160 = vsel %vm9110, %v8873, %v8875
        %v9161 = vsel %vm9110, %v8877, %v8879
        %v9162 = vsel %vm9110, %v8879, %v8881
        %v9163 = vsel %vm9110, %v8883, %v8885
        %v9164 = vsel %vm9110, %v8885, %v8887
        %v9165 = vsel %vm9110, %v8889, %v8891
        %v9166 = vsel %vm9110, %v8891, %v8893
        %v9167 = vsel %vm9110, %v8895, %v8897
        %v9168 = vsel %vm9110, %v8897, %v8899
        %v9169 = vsel %vm9110, %v8901, %v8903
        %v9170 = vsel %vm9110, %v8903, %v8905
        %v9171 = vsel %vm9110, %v8907, %v8909
        %v9172 = vsel %vm9110, %v8909, %v8911
        %v9173 = vsel %vm9110, %v8913, %v8915
        %v9174 = vsel %vm9110, %v8915, %v8917
        %v9175 = vsel %vm9110, %v8919, %v8921
        %v9176 = vsel %vm9110, %v8921, %v8923
        %v9177 = vsel %vm9110, %v8925, %v8927
        %v9178 = vsel %vm9110, %v8927, %v8929
        %v9179 = vsel %vm9110, %v8931, %v8933
        %v9180 = vsel %vm9110, %v8933, %v8935
        %v9181 = vsel %vm9110, %v8937, %v8939
        %v9182 = vsel %vm9110, %v8939, %v8941
        %v9183 = vsel %vm9110, %v8943, %v8945
        %v9184 = vsel %vm9110, %v8945, %v8947
        %v9185 = vsel %vm9110, %v8949, %v8951
        %v9186 = vsel %vm9110, %v8951, %v8953
        %v9187 = vsel %vm9110, %v8955, %v8957
        %v9188 = vsel %vm9110, %v8957, %v8959
        %v9189 = vsel %vm9110, %v8961, %v8963
        %v9190 = vsel %vm9110, %v8963, %v8965
        %v9191 = vsel %vm9110, %v8967, %v8969
        %v9192 = vsel %vm9110, %v8969, %v8971
        %v9193 = vsel %vm9110, %v8973, %v8975
        %v9194 = vsel %vm9110, %v8975, %v8977
        %v9195 = vsel %vm9110, %v8979, %v8981
        %v9196 = vsel %vm9110, %v8981, %v8983
        %v9197 = vsel %vm9110, %v8985, %v8987
        %v9198 = vsel %vm9110, %v8987, %v8989
        %v9199 = vsel %vm9110, %v8991, %v8993
        %v9200 = vsel %vm9110, %v8993, %v8995
        %v9201 = vsel %vm9110, %v8997, %v8999
        %v9202 = vsel %vm9110, %v8999, %v9001
        %v9203 = vsel %vm9110, %v9003, %v9005
        %v9204 = vsel %vm9110, %v9005, %v9007
        %v9205 = vsel %vm9110, %v9009, %v9011
        %v9206 = vsel %vm9110, %v9011, %v9013
        %v9207 = vsel %vm9110, %v9015, %v9017
        %v9208 = vsel %vm9110, %v9017, %v9019
        %v9209 = vsel %vm9110, %v9021, %v9023
        %v9210 = vsel %vm9110, %v9023, %v9025
        %v9211 = vsel %vm9110, %v9027, %v9029
        %v9212 = vsel %vm9110, %v9029, %v9031
        %v9213 = vsel %vm9110, %v9033, %v9035
        %v9214 = vsel %vm9110, %v9035, %v9037
        %v9215 = vsel %vm9110, %v9039, %v9041
        %v9216 = vsel %vm9110, %v9041, %v9043
        %v9217 = vsel %vm9110, %v9045, %v9047
        %v9218 = vsel %vm9110, %v9047, %v9049
        %v9219 = vsel %vm9110, %v9051, %v9053
        %v9220 = vsel %vm9110, %v9053, %v9055
        %v9221 = vsel %vm9110, %v9057, %v9059
        %v9222 = vsel %vm9110, %v9059, %v9061
        %v9223 = vsel %vm9110, %v9063, %v9065
        %v9224 = vsel %vm9110, %v9065, %v9067
        %v9225 = vsel %vm9110, %v9069, %v9071
        %v9226 = vsel %vm9110, %v9071, %v9073
        %v9227 = vsel %vm9110, %v9075, %v9077
        %v9228 = vsel %vm9110, %v9077, %v9079
        %v9229 = vsel %vm9110, %v9081, %v9083
        %v9230 = vsel %vm9110, %v9083, %v9085
        %v9231 = vsel %vm9110, %v9087, %v9089
        %v9232 = vsel %vm9110, %v9089, %v9091
        %v9233 = vsel %vm9110, %v9093, %v9095
        %v9234 = vsel %vm9110, %v9095, %v9097
        %v9235 = vsel %vm9110, %v9099, %v9101
        %v9236 = vsel %vm9110, %v9101, %v9103
        %v9237 = vsel %vm9110, %v9105, %v9107
        %v9238 = vsel %vm9110, %v9107, %v9109
        %v9367 = vadd.f32 %v8117, %v9111
        %v9368 = vadd.f32 %v8118, %v9112
        %v9369 = vadd.f32 %v8119, %v9113
        %v9370 = vadd.f32 %v8120, %v9114
        %v9371 = vadd.f32 %v8121, %v9115
        %v9372 = vadd.f32 %v8122, %v9116
        %v9373 = vadd.f32 %v8123, %v9117
        %v9374 = vadd.f32 %v8124, %v9118
        %v9375 = vadd.f32 %v8125, %v9119
        %v9376 = vadd.f32 %v8126, %v9120
        %v9377 = vadd.f32 %v8127, %v9121
        %v9378 = vadd.f32 %v8128, %v9122
        %v9379 = vadd.f32 %v8129, %v9123
        %v9380 = vadd.f32 %v8130, %v9124
        %v9381 = vadd.f32 %v8131, %v9125
        %v9382 = vadd.f32 %v8132, %v9126
        %v9383 = vadd.f32 %v8133, %v9127
        %v9384 = vadd.f32 %v8134, %v9128
        %v9385 = vadd.f32 %v8135, %v9129
        %v9386 = vadd.f32 %v8136, %v9130
        %v9387 = vadd.f32 %v8137, %v9131
        %v9388 = vadd.f32 %v8138, %v9132
        %v9389 = vadd.f32 %v8139, %v9133
        %v9390 = vadd.f32 %v8140, %v9134
        %v9391 = vadd.f32 %v8141, %v9135
        %v9392 = vadd.f32 %v8142, %v9136
        %v9393 = vadd.f32 %v8143, %v9137
        %v9394 = vadd.f32 %v8144, %v9138
        %v9395 = vadd.f32 %v8145, %v9139
        %v9396 = vadd.f32 %v8146, %v9140
        %v9397 = vadd.f32 %v8147, %v9141
        %v9398 = vadd.f32 %v8148, %v9142
        %v9399 = vadd.f32 %v8149, %v9143
        %v9400 = vadd.f32 %v8150, %v9144
        %v9401 = vadd.f32 %v8151, %v9145
        %v9402 = vadd.f32 %v8152, %v9146
        %v9403 = vadd.f32 %v8153, %v9147
        %v9404 = vadd.f32 %v8154, %v9148
        %v9405 = vadd.f32 %v8155, %v9149
        %v9406 = vadd.f32 %v8156, %v9150
        %v9407 = vadd.f32 %v8157, %v9151
        %v9408 = vadd.f32 %v8158, %v9152
        %v9409 = vadd.f32 %v8159, %v9153
        %v9410 = vadd.f32 %v8160, %v9154
        %v9411 = vadd.f32 %v8161, %v9155
        %v9412 = vadd.f32 %v8162, %v9156
        %v9413 = vadd.f32 %v8163, %v9157
        %v9414 = vadd.f32 %v8164, %v9158
        %v9415 = vadd.f32 %v8165, %v9159
        %v9416 = vadd.f32 %v8166, %v9160
        %v9417 = vadd.f32 %v8167, %v9161
        %v9418 = vadd.f32 %v8168, %v9162
        %v9419 = vadd.f32 %v8169, %v9163
        %v9420 = vadd.f32 %v8170, %v9164
        %v9421 = vadd.f32 %v8171, %v9165
        %v9422 = vadd.f32 %v8172, %v9166
        %v9423 = vadd.f32 %v8173, %v9167
        %v9424 = vadd.f32 %v8174, %v9168
        %v9425 = vadd.f32 %v8175, %v9169
        %v9426 = vadd.f32 %v8176, %v9170
        %v9427 = vadd.f32 %v8177, %v9171
        %v9428 = vadd.f32 %v8178, %v9172
        %v9429 = vadd.f32 %v8179, %v9173
        %v9430 = vadd.f32 %v8180, %v9174
        %v9431 = vadd.f32 %v8181, %v9175
        %v9432 = vadd.f32 %v8182, %v9176
        %v9433 = vadd.f32 %v8183, %v9177
        %v9434 = vadd.f32 %v8184, %v9178
        %v9435 = vadd.f32 %v8185, %v9179
        %v9436 = vadd.f32 %v8186, %v9180
        %v9437 = vadd.f32 %v8187, %v9181
        %v9438 = vadd.f32 %v8188, %v9182
        %v9439 = vadd.f32 %v8189, %v9183
        %v9440 = vadd.f32 %v8190, %v9184
        %v9441 = vadd.f32 %v8191, %v9185
        %v9442 = vadd.f32 %v8192, %v9186
        %v9443 = vadd.f32 %v8193, %v9187
        %v9444 = vadd.f32 %v8194, %v9188
        %v9445 = vadd.f32 %v8195, %v9189
        %v9446 = vadd.f32 %v8196, %v9190
        %v9447 = vadd.f32 %v8197, %v9191
        %v9448 = vadd.f32 %v8198, %v9192
        %v9449 = vadd.f32 %v8199, %v9193
        %v9450 = vadd.f32 %v8200, %v9194
        %v9451 = vadd.f32 %v8201, %v9195
        %v9452 = vadd.f32 %v8202, %v9196
        %v9453 = vadd.f32 %v8203, %v9197
        %v9454 = vadd.f32 %v8204, %v9198
        %v9455 = vadd.f32 %v8205, %v9199
        %v9456 = vadd.f32 %v8206, %v9200
        %v9457 = vadd.f32 %v8207, %v9201
        %v9458 = vadd.f32 %v8208, %v9202
        %v9459 = vadd.f32 %v8209, %v9203
        %v9460 = vadd.f32 %v8210, %v9204
        %v9461 = vadd.f32 %v8211, %v9205
        %v9462 = vadd.f32 %v8212, %v9206
        %v9463 = vadd.f32 %v8213, %v9207
        %v9464 = vadd.f32 %v8214, %v9208
        %v9465 = vadd.f32 %v8215, %v9209
        %v9466 = vadd.f32 %v8216, %v9210
        %v9467 = vadd.f32 %v8217, %v9211
        %v9468 = vadd.f32 %v8218, %v9212
        %v9469 = vadd.f32 %v8219, %v9213
        %v9470 = vadd.f32 %v8220, %v9214
        %v9471 = vadd.f32 %v8221, %v9215
        %v9472 = vadd.f32 %v8222, %v9216
        %v9473 = vadd.f32 %v8223, %v9217
        %v9474 = vadd.f32 %v8224, %v9218
        %v9475 = vadd.f32 %v8225, %v9219
        %v9476 = vadd.f32 %v8226, %v9220
        %v9477 = vadd.f32 %v8227, %v9221
        %v9478 = vadd.f32 %v8228, %v9222
        %v9479 = vadd.f32 %v8229, %v9223
        %v9480 = vadd.f32 %v8230, %v9224
        %v9481 = vadd.f32 %v8231, %v9225
        %v9482 = vadd.f32 %v8232, %v9226
        %v9483 = vadd.f32 %v8233, %v9227
        %v9484 = vadd.f32 %v8234, %v9228
        %v9485 = vadd.f32 %v8235, %v9229
        %v9486 = vadd.f32 %v8236, %v9230
        %v9487 = vadd.f32 %v8237, %v9231
        %v9488 = vadd.f32 %v8238, %v9232
        %v9489 = vadd.f32 %v8239, %v9233
        %v9490 = vadd.f32 %v8240, %v9234
        %v9491 = vadd.f32 %v8241, %v9235
        %v9492 = vadd.f32 %v8242, %v9236
        %v9493 = vadd.f32 %v8243, %v9237
        %v9494 = vadd.f32 %v8244, %v9238
        %v9495 = vlaneseq
        %v9496 = vshrl.u32 %v9495, 7
        %v9497 = vadd.s32 %v9496, 8
        %v9498 = vlaneseq
        %v9499 = vand.u32 %v9498, 127
        %v9500 = vadd.s32 %v9499, 128
        %vm9501 = vcmp.lt.s32.totalorder %v9499, 96
        %vm9502 = vcmp.lt.s32.totalorder %v9500, 96
        %vm9503 = vcmp.lt.s32.totalorder %v9499, 192
        %vm9504 = vcmp.lt.s32.totalorder %v9500, 192
        %v9505 = vsel %vm9503, 12, 11
        %v9506 = vsel %vm9504, 12, 11
        %v9507 = vsel %vm9501, 13, %v9505
        %v9508 = vsel %vm9502, 13, %v9506
        %vm9509 = vcmp.lt.s32.totalorder %v9496, %v9507
        %vm9510 = vcmp.lt.s32.totalorder %v9496, %v9508
        %vm9511 = vcmp.lt.s32.totalorder %v9497, %v9507
        %vm9512 = vcmp.lt.s32.totalorder %v9497, %v9508
        %v9513 = vsel %vm9509, 0.0, -1e+30
        %v9514 = vsel %vm9510, 0.0, -1e+30
        %v9515 = vsel %vm9511, 0.0, -1e+30
        %v9516 = vsel %vm9512, 0.0, -1e+30
        %v9517 = vadd.f32 %v9367, %v9513
        %v9518 = vadd.f32 %v9368, %v9514
        %v9519 = vadd.f32 %v9369, %v9515
        %v9520 = vadd.f32 %v9370, %v9516
        %v9521 = vadd.f32 %v9371, %v9513
        %v9522 = vadd.f32 %v9372, %v9514
        %v9523 = vadd.f32 %v9373, %v9515
        %v9524 = vadd.f32 %v9374, %v9516
        %v9525 = vadd.f32 %v9375, %v9513
        %v9526 = vadd.f32 %v9376, %v9514
        %v9527 = vadd.f32 %v9377, %v9515
        %v9528 = vadd.f32 %v9378, %v9516
        %v9529 = vadd.f32 %v9379, %v9513
        %v9530 = vadd.f32 %v9380, %v9514
        %v9531 = vadd.f32 %v9381, %v9515
        %v9532 = vadd.f32 %v9382, %v9516
        %v9533 = vadd.f32 %v9383, %v9513
        %v9534 = vadd.f32 %v9384, %v9514
        %v9535 = vadd.f32 %v9385, %v9515
        %v9536 = vadd.f32 %v9386, %v9516
        %v9537 = vadd.f32 %v9387, %v9513
        %v9538 = vadd.f32 %v9388, %v9514
        %v9539 = vadd.f32 %v9389, %v9515
        %v9540 = vadd.f32 %v9390, %v9516
        %v9541 = vadd.f32 %v9391, %v9513
        %v9542 = vadd.f32 %v9392, %v9514
        %v9543 = vadd.f32 %v9393, %v9515
        %v9544 = vadd.f32 %v9394, %v9516
        %v9545 = vadd.f32 %v9395, %v9513
        %v9546 = vadd.f32 %v9396, %v9514
        %v9547 = vadd.f32 %v9397, %v9515
        %v9548 = vadd.f32 %v9398, %v9516
        %v9549 = vadd.f32 %v9399, %v9513
        %v9550 = vadd.f32 %v9400, %v9514
        %v9551 = vadd.f32 %v9401, %v9515
        %v9552 = vadd.f32 %v9402, %v9516
        %v9553 = vadd.f32 %v9403, %v9513
        %v9554 = vadd.f32 %v9404, %v9514
        %v9555 = vadd.f32 %v9405, %v9515
        %v9556 = vadd.f32 %v9406, %v9516
        %v9557 = vadd.f32 %v9407, %v9513
        %v9558 = vadd.f32 %v9408, %v9514
        %v9559 = vadd.f32 %v9409, %v9515
        %v9560 = vadd.f32 %v9410, %v9516
        %v9561 = vadd.f32 %v9411, %v9513
        %v9562 = vadd.f32 %v9412, %v9514
        %v9563 = vadd.f32 %v9413, %v9515
        %v9564 = vadd.f32 %v9414, %v9516
        %v9565 = vadd.f32 %v9415, %v9513
        %v9566 = vadd.f32 %v9416, %v9514
        %v9567 = vadd.f32 %v9417, %v9515
        %v9568 = vadd.f32 %v9418, %v9516
        %v9569 = vadd.f32 %v9419, %v9513
        %v9570 = vadd.f32 %v9420, %v9514
        %v9571 = vadd.f32 %v9421, %v9515
        %v9572 = vadd.f32 %v9422, %v9516
        %v9573 = vadd.f32 %v9423, %v9513
        %v9574 = vadd.f32 %v9424, %v9514
        %v9575 = vadd.f32 %v9425, %v9515
        %v9576 = vadd.f32 %v9426, %v9516
        %v9577 = vadd.f32 %v9427, %v9513
        %v9578 = vadd.f32 %v9428, %v9514
        %v9579 = vadd.f32 %v9429, %v9515
        %v9580 = vadd.f32 %v9430, %v9516
        %v9581 = vadd.f32 %v9431, %v9513
        %v9582 = vadd.f32 %v9432, %v9514
        %v9583 = vadd.f32 %v9433, %v9515
        %v9584 = vadd.f32 %v9434, %v9516
        %v9585 = vadd.f32 %v9435, %v9513
        %v9586 = vadd.f32 %v9436, %v9514
        %v9587 = vadd.f32 %v9437, %v9515
        %v9588 = vadd.f32 %v9438, %v9516
        %v9589 = vadd.f32 %v9439, %v9513
        %v9590 = vadd.f32 %v9440, %v9514
        %v9591 = vadd.f32 %v9441, %v9515
        %v9592 = vadd.f32 %v9442, %v9516
        %v9593 = vadd.f32 %v9443, %v9513
        %v9594 = vadd.f32 %v9444, %v9514
        %v9595 = vadd.f32 %v9445, %v9515
        %v9596 = vadd.f32 %v9446, %v9516
        %v9597 = vadd.f32 %v9447, %v9513
        %v9598 = vadd.f32 %v9448, %v9514
        %v9599 = vadd.f32 %v9449, %v9515
        %v9600 = vadd.f32 %v9450, %v9516
        %v9601 = vadd.f32 %v9451, %v9513
        %v9602 = vadd.f32 %v9452, %v9514
        %v9603 = vadd.f32 %v9453, %v9515
        %v9604 = vadd.f32 %v9454, %v9516
        %v9605 = vadd.f32 %v9455, %v9513
        %v9606 = vadd.f32 %v9456, %v9514
        %v9607 = vadd.f32 %v9457, %v9515
        %v9608 = vadd.f32 %v9458, %v9516
        %v9609 = vadd.f32 %v9459, %v9513
        %v9610 = vadd.f32 %v9460, %v9514
        %v9611 = vadd.f32 %v9461, %v9515
        %v9612 = vadd.f32 %v9462, %v9516
        %v9613 = vadd.f32 %v9463, %v9513
        %v9614 = vadd.f32 %v9464, %v9514
        %v9615 = vadd.f32 %v9465, %v9515
        %v9616 = vadd.f32 %v9466, %v9516
        %v9617 = vadd.f32 %v9467, %v9513
        %v9618 = vadd.f32 %v9468, %v9514
        %v9619 = vadd.f32 %v9469, %v9515
        %v9620 = vadd.f32 %v9470, %v9516
        %v9621 = vadd.f32 %v9471, %v9513
        %v9622 = vadd.f32 %v9472, %v9514
        %v9623 = vadd.f32 %v9473, %v9515
        %v9624 = vadd.f32 %v9474, %v9516
        %v9625 = vadd.f32 %v9475, %v9513
        %v9626 = vadd.f32 %v9476, %v9514
        %v9627 = vadd.f32 %v9477, %v9515
        %v9628 = vadd.f32 %v9478, %v9516
        %v9629 = vadd.f32 %v9479, %v9513
        %v9630 = vadd.f32 %v9480, %v9514
        %v9631 = vadd.f32 %v9481, %v9515
        %v9632 = vadd.f32 %v9482, %v9516
        %v9633 = vadd.f32 %v9483, %v9513
        %v9634 = vadd.f32 %v9484, %v9514
        %v9635 = vadd.f32 %v9485, %v9515
        %v9636 = vadd.f32 %v9486, %v9516
        %v9637 = vadd.f32 %v9487, %v9513
        %v9638 = vadd.f32 %v9488, %v9514
        %v9639 = vadd.f32 %v9489, %v9515
        %v9640 = vadd.f32 %v9490, %v9516
        %v9641 = vadd.f32 %v9491, %v9513
        %v9642 = vadd.f32 %v9492, %v9514
        %v9643 = vadd.f32 %v9493, %v9515
        %v9644 = vadd.f32 %v9494, %v9516
        %v9645 = vsel %vm5841, %v9519, -inf
        %v9646 = vmax.f32 %v9517, %v9645
        %v9647 = vrot.slane %v9646, 4
        %v9648 = vmax.f32 %v9646, %v9647
        %v9649 = vrot.slane %v9648, 2
        %v9650 = vmax.f32 %v9648, %v9649
        %v9651 = vrot.slane %v9650, 1
        %v9652 = vmax.f32 %v9650, %v9651
        %v9653 = vsel %vm5841, %v9520, -inf
        %v9654 = vmax.f32 %v9518, %v9653
        %v9655 = vrot.slane %v9654, 4
        %v9656 = vmax.f32 %v9654, %v9655
        %v9657 = vrot.slane %v9656, 2
        %v9658 = vmax.f32 %v9656, %v9657
        %v9659 = vrot.slane %v9658, 1
        %v9660 = vmax.f32 %v9658, %v9659
        %v9661 = vsel %vm5841, %v9523, -inf
        %v9662 = vmax.f32 %v9521, %v9661
        %v9663 = vrot.slane %v9662, 4
        %v9664 = vmax.f32 %v9662, %v9663
        %v9665 = vrot.slane %v9664, 2
        %v9666 = vmax.f32 %v9664, %v9665
        %v9667 = vrot.slane %v9666, 1
        %v9668 = vmax.f32 %v9666, %v9667
        %v9669 = vsel %vm5841, %v9524, -inf
        %v9670 = vmax.f32 %v9522, %v9669
        %v9671 = vrot.slane %v9670, 4
        %v9672 = vmax.f32 %v9670, %v9671
        %v9673 = vrot.slane %v9672, 2
        %v9674 = vmax.f32 %v9672, %v9673
        %v9675 = vrot.slane %v9674, 1
        %v9676 = vmax.f32 %v9674, %v9675
        %v9677 = vsel %vm5841, %v9527, -inf
        %v9678 = vmax.f32 %v9525, %v9677
        %v9679 = vrot.slane %v9678, 4
        %v9680 = vmax.f32 %v9678, %v9679
        %v9681 = vrot.slane %v9680, 2
        %v9682 = vmax.f32 %v9680, %v9681
        %v9683 = vrot.slane %v9682, 1
        %v9684 = vmax.f32 %v9682, %v9683
        %v9685 = vsel %vm5841, %v9528, -inf
        %v9686 = vmax.f32 %v9526, %v9685
        %v9687 = vrot.slane %v9686, 4
        %v9688 = vmax.f32 %v9686, %v9687
        %v9689 = vrot.slane %v9688, 2
        %v9690 = vmax.f32 %v9688, %v9689
        %v9691 = vrot.slane %v9690, 1
        %v9692 = vmax.f32 %v9690, %v9691
        %v9693 = vsel %vm5841, %v9531, -inf
        %v9694 = vmax.f32 %v9529, %v9693
        %v9695 = vrot.slane %v9694, 4
        %v9696 = vmax.f32 %v9694, %v9695
        %v9697 = vrot.slane %v9696, 2
        %v9698 = vmax.f32 %v9696, %v9697
        %v9699 = vrot.slane %v9698, 1
        %v9700 = vmax.f32 %v9698, %v9699
        %v9701 = vsel %vm5841, %v9532, -inf
        %v9702 = vmax.f32 %v9530, %v9701
        %v9703 = vrot.slane %v9702, 4
        %v9704 = vmax.f32 %v9702, %v9703
        %v9705 = vrot.slane %v9704, 2
        %v9706 = vmax.f32 %v9704, %v9705
        %v9707 = vrot.slane %v9706, 1
        %v9708 = vmax.f32 %v9706, %v9707
        %v9709 = vsel %vm5841, %v9535, -inf
        %v9710 = vmax.f32 %v9533, %v9709
        %v9711 = vrot.slane %v9710, 4
        %v9712 = vmax.f32 %v9710, %v9711
        %v9713 = vrot.slane %v9712, 2
        %v9714 = vmax.f32 %v9712, %v9713
        %v9715 = vrot.slane %v9714, 1
        %v9716 = vmax.f32 %v9714, %v9715
        %v9717 = vsel %vm5841, %v9536, -inf
        %v9718 = vmax.f32 %v9534, %v9717
        %v9719 = vrot.slane %v9718, 4
        %v9720 = vmax.f32 %v9718, %v9719
        %v9721 = vrot.slane %v9720, 2
        %v9722 = vmax.f32 %v9720, %v9721
        %v9723 = vrot.slane %v9722, 1
        %v9724 = vmax.f32 %v9722, %v9723
        %v9725 = vsel %vm5841, %v9539, -inf
        %v9726 = vmax.f32 %v9537, %v9725
        %v9727 = vrot.slane %v9726, 4
        %v9728 = vmax.f32 %v9726, %v9727
        %v9729 = vrot.slane %v9728, 2
        %v9730 = vmax.f32 %v9728, %v9729
        %v9731 = vrot.slane %v9730, 1
        %v9732 = vmax.f32 %v9730, %v9731
        %v9733 = vsel %vm5841, %v9540, -inf
        %v9734 = vmax.f32 %v9538, %v9733
        %v9735 = vrot.slane %v9734, 4
        %v9736 = vmax.f32 %v9734, %v9735
        %v9737 = vrot.slane %v9736, 2
        %v9738 = vmax.f32 %v9736, %v9737
        %v9739 = vrot.slane %v9738, 1
        %v9740 = vmax.f32 %v9738, %v9739
        %v9741 = vsel %vm5841, %v9543, -inf
        %v9742 = vmax.f32 %v9541, %v9741
        %v9743 = vrot.slane %v9742, 4
        %v9744 = vmax.f32 %v9742, %v9743
        %v9745 = vrot.slane %v9744, 2
        %v9746 = vmax.f32 %v9744, %v9745
        %v9747 = vrot.slane %v9746, 1
        %v9748 = vmax.f32 %v9746, %v9747
        %v9749 = vsel %vm5841, %v9544, -inf
        %v9750 = vmax.f32 %v9542, %v9749
        %v9751 = vrot.slane %v9750, 4
        %v9752 = vmax.f32 %v9750, %v9751
        %v9753 = vrot.slane %v9752, 2
        %v9754 = vmax.f32 %v9752, %v9753
        %v9755 = vrot.slane %v9754, 1
        %v9756 = vmax.f32 %v9754, %v9755
        %v9757 = vsel %vm5841, %v9547, -inf
        %v9758 = vmax.f32 %v9545, %v9757
        %v9759 = vrot.slane %v9758, 4
        %v9760 = vmax.f32 %v9758, %v9759
        %v9761 = vrot.slane %v9760, 2
        %v9762 = vmax.f32 %v9760, %v9761
        %v9763 = vrot.slane %v9762, 1
        %v9764 = vmax.f32 %v9762, %v9763
        %v9765 = vsel %vm5841, %v9548, -inf
        %v9766 = vmax.f32 %v9546, %v9765
        %v9767 = vrot.slane %v9766, 4
        %v9768 = vmax.f32 %v9766, %v9767
        %v9769 = vrot.slane %v9768, 2
        %v9770 = vmax.f32 %v9768, %v9769
        %v9771 = vrot.slane %v9770, 1
        %v9772 = vmax.f32 %v9770, %v9771
        %v9773 = vsel %vm5841, %v9551, -inf
        %v9774 = vmax.f32 %v9549, %v9773
        %v9775 = vrot.slane %v9774, 4
        %v9776 = vmax.f32 %v9774, %v9775
        %v9777 = vrot.slane %v9776, 2
        %v9778 = vmax.f32 %v9776, %v9777
        %v9779 = vrot.slane %v9778, 1
        %v9780 = vmax.f32 %v9778, %v9779
        %v9781 = vsel %vm5841, %v9552, -inf
        %v9782 = vmax.f32 %v9550, %v9781
        %v9783 = vrot.slane %v9782, 4
        %v9784 = vmax.f32 %v9782, %v9783
        %v9785 = vrot.slane %v9784, 2
        %v9786 = vmax.f32 %v9784, %v9785
        %v9787 = vrot.slane %v9786, 1
        %v9788 = vmax.f32 %v9786, %v9787
        %v9789 = vsel %vm5841, %v9555, -inf
        %v9790 = vmax.f32 %v9553, %v9789
        %v9791 = vrot.slane %v9790, 4
        %v9792 = vmax.f32 %v9790, %v9791
        %v9793 = vrot.slane %v9792, 2
        %v9794 = vmax.f32 %v9792, %v9793
        %v9795 = vrot.slane %v9794, 1
        %v9796 = vmax.f32 %v9794, %v9795
        %v9797 = vsel %vm5841, %v9556, -inf
        %v9798 = vmax.f32 %v9554, %v9797
        %v9799 = vrot.slane %v9798, 4
        %v9800 = vmax.f32 %v9798, %v9799
        %v9801 = vrot.slane %v9800, 2
        %v9802 = vmax.f32 %v9800, %v9801
        %v9803 = vrot.slane %v9802, 1
        %v9804 = vmax.f32 %v9802, %v9803
        %v9805 = vsel %vm5841, %v9559, -inf
        %v9806 = vmax.f32 %v9557, %v9805
        %v9807 = vrot.slane %v9806, 4
        %v9808 = vmax.f32 %v9806, %v9807
        %v9809 = vrot.slane %v9808, 2
        %v9810 = vmax.f32 %v9808, %v9809
        %v9811 = vrot.slane %v9810, 1
        %v9812 = vmax.f32 %v9810, %v9811
        %v9813 = vsel %vm5841, %v9560, -inf
        %v9814 = vmax.f32 %v9558, %v9813
        %v9815 = vrot.slane %v9814, 4
        %v9816 = vmax.f32 %v9814, %v9815
        %v9817 = vrot.slane %v9816, 2
        %v9818 = vmax.f32 %v9816, %v9817
        %v9819 = vrot.slane %v9818, 1
        %v9820 = vmax.f32 %v9818, %v9819
        %v9821 = vsel %vm5841, %v9563, -inf
        %v9822 = vmax.f32 %v9561, %v9821
        %v9823 = vrot.slane %v9822, 4
        %v9824 = vmax.f32 %v9822, %v9823
        %v9825 = vrot.slane %v9824, 2
        %v9826 = vmax.f32 %v9824, %v9825
        %v9827 = vrot.slane %v9826, 1
        %v9828 = vmax.f32 %v9826, %v9827
        %v9829 = vsel %vm5841, %v9564, -inf
        %v9830 = vmax.f32 %v9562, %v9829
        %v9831 = vrot.slane %v9830, 4
        %v9832 = vmax.f32 %v9830, %v9831
        %v9833 = vrot.slane %v9832, 2
        %v9834 = vmax.f32 %v9832, %v9833
        %v9835 = vrot.slane %v9834, 1
        %v9836 = vmax.f32 %v9834, %v9835
        %v9837 = vsel %vm5841, %v9567, -inf
        %v9838 = vmax.f32 %v9565, %v9837
        %v9839 = vrot.slane %v9838, 4
        %v9840 = vmax.f32 %v9838, %v9839
        %v9841 = vrot.slane %v9840, 2
        %v9842 = vmax.f32 %v9840, %v9841
        %v9843 = vrot.slane %v9842, 1
        %v9844 = vmax.f32 %v9842, %v9843
        %v9845 = vsel %vm5841, %v9568, -inf
        %v9846 = vmax.f32 %v9566, %v9845
        %v9847 = vrot.slane %v9846, 4
        %v9848 = vmax.f32 %v9846, %v9847
        %v9849 = vrot.slane %v9848, 2
        %v9850 = vmax.f32 %v9848, %v9849
        %v9851 = vrot.slane %v9850, 1
        %v9852 = vmax.f32 %v9850, %v9851
        %v9853 = vsel %vm5841, %v9571, -inf
        %v9854 = vmax.f32 %v9569, %v9853
        %v9855 = vrot.slane %v9854, 4
        %v9856 = vmax.f32 %v9854, %v9855
        %v9857 = vrot.slane %v9856, 2
        %v9858 = vmax.f32 %v9856, %v9857
        %v9859 = vrot.slane %v9858, 1
        %v9860 = vmax.f32 %v9858, %v9859
        %v9861 = vsel %vm5841, %v9572, -inf
        %v9862 = vmax.f32 %v9570, %v9861
        %v9863 = vrot.slane %v9862, 4
        %v9864 = vmax.f32 %v9862, %v9863
        %v9865 = vrot.slane %v9864, 2
        %v9866 = vmax.f32 %v9864, %v9865
        %v9867 = vrot.slane %v9866, 1
        %v9868 = vmax.f32 %v9866, %v9867
        %v9869 = vsel %vm5841, %v9575, -inf
        %v9870 = vmax.f32 %v9573, %v9869
        %v9871 = vrot.slane %v9870, 4
        %v9872 = vmax.f32 %v9870, %v9871
        %v9873 = vrot.slane %v9872, 2
        %v9874 = vmax.f32 %v9872, %v9873
        %v9875 = vrot.slane %v9874, 1
        %v9876 = vmax.f32 %v9874, %v9875
        %v9877 = vsel %vm5841, %v9576, -inf
        %v9878 = vmax.f32 %v9574, %v9877
        %v9879 = vrot.slane %v9878, 4
        %v9880 = vmax.f32 %v9878, %v9879
        %v9881 = vrot.slane %v9880, 2
        %v9882 = vmax.f32 %v9880, %v9881
        %v9883 = vrot.slane %v9882, 1
        %v9884 = vmax.f32 %v9882, %v9883
        %v9885 = vsel %vm5841, %v9579, -inf
        %v9886 = vmax.f32 %v9577, %v9885
        %v9887 = vrot.slane %v9886, 4
        %v9888 = vmax.f32 %v9886, %v9887
        %v9889 = vrot.slane %v9888, 2
        %v9890 = vmax.f32 %v9888, %v9889
        %v9891 = vrot.slane %v9890, 1
        %v9892 = vmax.f32 %v9890, %v9891
        %v9893 = vsel %vm5841, %v9580, -inf
        %v9894 = vmax.f32 %v9578, %v9893
        %v9895 = vrot.slane %v9894, 4
        %v9896 = vmax.f32 %v9894, %v9895
        %v9897 = vrot.slane %v9896, 2
        %v9898 = vmax.f32 %v9896, %v9897
        %v9899 = vrot.slane %v9898, 1
        %v9900 = vmax.f32 %v9898, %v9899
        %v9901 = vsel %vm5841, %v9583, -inf
        %v9902 = vmax.f32 %v9581, %v9901
        %v9903 = vrot.slane %v9902, 4
        %v9904 = vmax.f32 %v9902, %v9903
        %v9905 = vrot.slane %v9904, 2
        %v9906 = vmax.f32 %v9904, %v9905
        %v9907 = vrot.slane %v9906, 1
        %v9908 = vmax.f32 %v9906, %v9907
        %v9909 = vsel %vm5841, %v9584, -inf
        %v9910 = vmax.f32 %v9582, %v9909
        %v9911 = vrot.slane %v9910, 4
        %v9912 = vmax.f32 %v9910, %v9911
        %v9913 = vrot.slane %v9912, 2
        %v9914 = vmax.f32 %v9912, %v9913
        %v9915 = vrot.slane %v9914, 1
        %v9916 = vmax.f32 %v9914, %v9915
        %v9917 = vsel %vm5841, %v9587, -inf
        %v9918 = vmax.f32 %v9585, %v9917
        %v9919 = vrot.slane %v9918, 4
        %v9920 = vmax.f32 %v9918, %v9919
        %v9921 = vrot.slane %v9920, 2
        %v9922 = vmax.f32 %v9920, %v9921
        %v9923 = vrot.slane %v9922, 1
        %v9924 = vmax.f32 %v9922, %v9923
        %v9925 = vsel %vm5841, %v9588, -inf
        %v9926 = vmax.f32 %v9586, %v9925
        %v9927 = vrot.slane %v9926, 4
        %v9928 = vmax.f32 %v9926, %v9927
        %v9929 = vrot.slane %v9928, 2
        %v9930 = vmax.f32 %v9928, %v9929
        %v9931 = vrot.slane %v9930, 1
        %v9932 = vmax.f32 %v9930, %v9931
        %v9933 = vsel %vm5841, %v9591, -inf
        %v9934 = vmax.f32 %v9589, %v9933
        %v9935 = vrot.slane %v9934, 4
        %v9936 = vmax.f32 %v9934, %v9935
        %v9937 = vrot.slane %v9936, 2
        %v9938 = vmax.f32 %v9936, %v9937
        %v9939 = vrot.slane %v9938, 1
        %v9940 = vmax.f32 %v9938, %v9939
        %v9941 = vsel %vm5841, %v9592, -inf
        %v9942 = vmax.f32 %v9590, %v9941
        %v9943 = vrot.slane %v9942, 4
        %v9944 = vmax.f32 %v9942, %v9943
        %v9945 = vrot.slane %v9944, 2
        %v9946 = vmax.f32 %v9944, %v9945
        %v9947 = vrot.slane %v9946, 1
        %v9948 = vmax.f32 %v9946, %v9947
        %v9949 = vsel %vm5841, %v9595, -inf
        %v9950 = vmax.f32 %v9593, %v9949
        %v9951 = vrot.slane %v9950, 4
        %v9952 = vmax.f32 %v9950, %v9951
        %v9953 = vrot.slane %v9952, 2
        %v9954 = vmax.f32 %v9952, %v9953
        %v9955 = vrot.slane %v9954, 1
        %v9956 = vmax.f32 %v9954, %v9955
        %v9957 = vsel %vm5841, %v9596, -inf
        %v9958 = vmax.f32 %v9594, %v9957
        %v9959 = vrot.slane %v9958, 4
        %v9960 = vmax.f32 %v9958, %v9959
        %v9961 = vrot.slane %v9960, 2
        %v9962 = vmax.f32 %v9960, %v9961
        %v9963 = vrot.slane %v9962, 1
        %v9964 = vmax.f32 %v9962, %v9963
        %v9965 = vsel %vm5841, %v9599, -inf
        %v9966 = vmax.f32 %v9597, %v9965
        %v9967 = vrot.slane %v9966, 4
        %v9968 = vmax.f32 %v9966, %v9967
        %v9969 = vrot.slane %v9968, 2
        %v9970 = vmax.f32 %v9968, %v9969
        %v9971 = vrot.slane %v9970, 1
        %v9972 = vmax.f32 %v9970, %v9971
        %v9973 = vsel %vm5841, %v9600, -inf
        %v9974 = vmax.f32 %v9598, %v9973
        %v9975 = vrot.slane %v9974, 4
        %v9976 = vmax.f32 %v9974, %v9975
        %v9977 = vrot.slane %v9976, 2
        %v9978 = vmax.f32 %v9976, %v9977
        %v9979 = vrot.slane %v9978, 1
        %v9980 = vmax.f32 %v9978, %v9979
        %v9981 = vsel %vm5841, %v9603, -inf
        %v9982 = vmax.f32 %v9601, %v9981
        %v9983 = vrot.slane %v9982, 4
        %v9984 = vmax.f32 %v9982, %v9983
        %v9985 = vrot.slane %v9984, 2
        %v9986 = vmax.f32 %v9984, %v9985
        %v9987 = vrot.slane %v9986, 1
        %v9988 = vmax.f32 %v9986, %v9987
        %v9989 = vsel %vm5841, %v9604, -inf
        %v9990 = vmax.f32 %v9602, %v9989
        %v9991 = vrot.slane %v9990, 4
        %v9992 = vmax.f32 %v9990, %v9991
        %v9993 = vrot.slane %v9992, 2
        %v9994 = vmax.f32 %v9992, %v9993
        %v9995 = vrot.slane %v9994, 1
        %v9996 = vmax.f32 %v9994, %v9995
        %v9997 = vsel %vm5841, %v9607, -inf
        %v9998 = vmax.f32 %v9605, %v9997
        %v9999 = vrot.slane %v9998, 4
        %v10000 = vmax.f32 %v9998, %v9999
        %v10001 = vrot.slane %v10000, 2
        %v10002 = vmax.f32 %v10000, %v10001
        %v10003 = vrot.slane %v10002, 1
        %v10004 = vmax.f32 %v10002, %v10003
        %v10005 = vsel %vm5841, %v9608, -inf
        %v10006 = vmax.f32 %v9606, %v10005
        %v10007 = vrot.slane %v10006, 4
        %v10008 = vmax.f32 %v10006, %v10007
        %v10009 = vrot.slane %v10008, 2
        %v10010 = vmax.f32 %v10008, %v10009
        %v10011 = vrot.slane %v10010, 1
        %v10012 = vmax.f32 %v10010, %v10011
        %v10013 = vsel %vm5841, %v9611, -inf
        %v10014 = vmax.f32 %v9609, %v10013
        %v10015 = vrot.slane %v10014, 4
        %v10016 = vmax.f32 %v10014, %v10015
        %v10017 = vrot.slane %v10016, 2
        %v10018 = vmax.f32 %v10016, %v10017
        %v10019 = vrot.slane %v10018, 1
        %v10020 = vmax.f32 %v10018, %v10019
        %v10021 = vsel %vm5841, %v9612, -inf
        %v10022 = vmax.f32 %v9610, %v10021
        %v10023 = vrot.slane %v10022, 4
        %v10024 = vmax.f32 %v10022, %v10023
        %v10025 = vrot.slane %v10024, 2
        %v10026 = vmax.f32 %v10024, %v10025
        %v10027 = vrot.slane %v10026, 1
        %v10028 = vmax.f32 %v10026, %v10027
        %v10029 = vsel %vm5841, %v9615, -inf
        %v10030 = vmax.f32 %v9613, %v10029
        %v10031 = vrot.slane %v10030, 4
        %v10032 = vmax.f32 %v10030, %v10031
        %v10033 = vrot.slane %v10032, 2
        %v10034 = vmax.f32 %v10032, %v10033
        %v10035 = vrot.slane %v10034, 1
        %v10036 = vmax.f32 %v10034, %v10035
        %v10037 = vsel %vm5841, %v9616, -inf
        %v10038 = vmax.f32 %v9614, %v10037
        %v10039 = vrot.slane %v10038, 4
        %v10040 = vmax.f32 %v10038, %v10039
        %v10041 = vrot.slane %v10040, 2
        %v10042 = vmax.f32 %v10040, %v10041
        %v10043 = vrot.slane %v10042, 1
        %v10044 = vmax.f32 %v10042, %v10043
        %v10045 = vsel %vm5841, %v9619, -inf
        %v10046 = vmax.f32 %v9617, %v10045
        %v10047 = vrot.slane %v10046, 4
        %v10048 = vmax.f32 %v10046, %v10047
        %v10049 = vrot.slane %v10048, 2
        %v10050 = vmax.f32 %v10048, %v10049
        %v10051 = vrot.slane %v10050, 1
        %v10052 = vmax.f32 %v10050, %v10051
        %v10053 = vsel %vm5841, %v9620, -inf
        %v10054 = vmax.f32 %v9618, %v10053
        %v10055 = vrot.slane %v10054, 4
        %v10056 = vmax.f32 %v10054, %v10055
        %v10057 = vrot.slane %v10056, 2
        %v10058 = vmax.f32 %v10056, %v10057
        %v10059 = vrot.slane %v10058, 1
        %v10060 = vmax.f32 %v10058, %v10059
        %v10061 = vsel %vm5841, %v9623, -inf
        %v10062 = vmax.f32 %v9621, %v10061
        %v10063 = vrot.slane %v10062, 4
        %v10064 = vmax.f32 %v10062, %v10063
        %v10065 = vrot.slane %v10064, 2
        %v10066 = vmax.f32 %v10064, %v10065
        %v10067 = vrot.slane %v10066, 1
        %v10068 = vmax.f32 %v10066, %v10067
        %v10069 = vsel %vm5841, %v9624, -inf
        %v10070 = vmax.f32 %v9622, %v10069
        %v10071 = vrot.slane %v10070, 4
        %v10072 = vmax.f32 %v10070, %v10071
        %v10073 = vrot.slane %v10072, 2
        %v10074 = vmax.f32 %v10072, %v10073
        %v10075 = vrot.slane %v10074, 1
        %v10076 = vmax.f32 %v10074, %v10075
        %v10077 = vsel %vm5841, %v9627, -inf
        %v10078 = vmax.f32 %v9625, %v10077
        %v10079 = vrot.slane %v10078, 4
        %v10080 = vmax.f32 %v10078, %v10079
        %v10081 = vrot.slane %v10080, 2
        %v10082 = vmax.f32 %v10080, %v10081
        %v10083 = vrot.slane %v10082, 1
        %v10084 = vmax.f32 %v10082, %v10083
        %v10085 = vsel %vm5841, %v9628, -inf
        %v10086 = vmax.f32 %v9626, %v10085
        %v10087 = vrot.slane %v10086, 4
        %v10088 = vmax.f32 %v10086, %v10087
        %v10089 = vrot.slane %v10088, 2
        %v10090 = vmax.f32 %v10088, %v10089
        %v10091 = vrot.slane %v10090, 1
        %v10092 = vmax.f32 %v10090, %v10091
        %v10093 = vsel %vm5841, %v9631, -inf
        %v10094 = vmax.f32 %v9629, %v10093
        %v10095 = vrot.slane %v10094, 4
        %v10096 = vmax.f32 %v10094, %v10095
        %v10097 = vrot.slane %v10096, 2
        %v10098 = vmax.f32 %v10096, %v10097
        %v10099 = vrot.slane %v10098, 1
        %v10100 = vmax.f32 %v10098, %v10099
        %v10101 = vsel %vm5841, %v9632, -inf
        %v10102 = vmax.f32 %v9630, %v10101
        %v10103 = vrot.slane %v10102, 4
        %v10104 = vmax.f32 %v10102, %v10103
        %v10105 = vrot.slane %v10104, 2
        %v10106 = vmax.f32 %v10104, %v10105
        %v10107 = vrot.slane %v10106, 1
        %v10108 = vmax.f32 %v10106, %v10107
        %v10109 = vsel %vm5841, %v9635, -inf
        %v10110 = vmax.f32 %v9633, %v10109
        %v10111 = vrot.slane %v10110, 4
        %v10112 = vmax.f32 %v10110, %v10111
        %v10113 = vrot.slane %v10112, 2
        %v10114 = vmax.f32 %v10112, %v10113
        %v10115 = vrot.slane %v10114, 1
        %v10116 = vmax.f32 %v10114, %v10115
        %v10117 = vsel %vm5841, %v9636, -inf
        %v10118 = vmax.f32 %v9634, %v10117
        %v10119 = vrot.slane %v10118, 4
        %v10120 = vmax.f32 %v10118, %v10119
        %v10121 = vrot.slane %v10120, 2
        %v10122 = vmax.f32 %v10120, %v10121
        %v10123 = vrot.slane %v10122, 1
        %v10124 = vmax.f32 %v10122, %v10123
        %v10125 = vsel %vm5841, %v9639, -inf
        %v10126 = vmax.f32 %v9637, %v10125
        %v10127 = vrot.slane %v10126, 4
        %v10128 = vmax.f32 %v10126, %v10127
        %v10129 = vrot.slane %v10128, 2
        %v10130 = vmax.f32 %v10128, %v10129
        %v10131 = vrot.slane %v10130, 1
        %v10132 = vmax.f32 %v10130, %v10131
        %v10133 = vsel %vm5841, %v9640, -inf
        %v10134 = vmax.f32 %v9638, %v10133
        %v10135 = vrot.slane %v10134, 4
        %v10136 = vmax.f32 %v10134, %v10135
        %v10137 = vrot.slane %v10136, 2
        %v10138 = vmax.f32 %v10136, %v10137
        %v10139 = vrot.slane %v10138, 1
        %v10140 = vmax.f32 %v10138, %v10139
        %v10141 = vsel %vm5841, %v9643, -inf
        %v10142 = vmax.f32 %v9641, %v10141
        %v10143 = vrot.slane %v10142, 4
        %v10144 = vmax.f32 %v10142, %v10143
        %v10145 = vrot.slane %v10144, 2
        %v10146 = vmax.f32 %v10144, %v10145
        %v10147 = vrot.slane %v10146, 1
        %v10148 = vmax.f32 %v10146, %v10147
        %v10149 = vsel %vm5841, %v9644, -inf
        %v10150 = vmax.f32 %v9642, %v10149
        %v10151 = vrot.slane %v10150, 4
        %v10152 = vmax.f32 %v10150, %v10151
        %v10153 = vrot.slane %v10152, 2
        %v10154 = vmax.f32 %v10152, %v10153
        %v10155 = vrot.slane %v10154, 1
        %v10156 = vmax.f32 %v10154, %v10155
        %v10157 = vld [vmem:[%s2] sm:$0x3]
        %v10159 = vlaneseq
        %v10160 = vshrl.u32 %v10159, 7
        %v10161 = vsub.s32 0, %v10160
        %v10162 = vrot.slane %v10157, %v10161
        %v10163 = vlaneseq
        %v10164 = vshrl.u32 %v10163, 7
        %v10165 = vsub.s32 1, %v10164
        %v10166 = vrot.slane %v10157, %v10165
        %v10169 = vadd.f32 %v9652, %v10162
        %v10170 = vadd.f32 %v9660, %v10166
        %v10171 = vadd.f32 %v9668, %v10162
        %v10172 = vadd.f32 %v9676, %v10166
        %v10173 = vadd.f32 %v9684, %v10162
        %v10174 = vadd.f32 %v9692, %v10166
        %v10175 = vadd.f32 %v9700, %v10162
        %v10176 = vadd.f32 %v9708, %v10166
        %v10177 = vadd.f32 %v9716, %v10162
        %v10178 = vadd.f32 %v9724, %v10166
        %v10179 = vadd.f32 %v9732, %v10162
        %v10180 = vadd.f32 %v9740, %v10166
        %v10181 = vadd.f32 %v9748, %v10162
        %v10182 = vadd.f32 %v9756, %v10166
        %v10183 = vadd.f32 %v9764, %v10162
        %v10184 = vadd.f32 %v9772, %v10166
        %v10185 = vadd.f32 %v9780, %v10162
        %v10186 = vadd.f32 %v9788, %v10166
        %v10187 = vadd.f32 %v9796, %v10162
        %v10188 = vadd.f32 %v9804, %v10166
        %v10189 = vadd.f32 %v9812, %v10162
        %v10190 = vadd.f32 %v9820, %v10166
        %v10191 = vadd.f32 %v9828, %v10162
        %v10192 = vadd.f32 %v9836, %v10166
        %v10193 = vadd.f32 %v9844, %v10162
        %v10194 = vadd.f32 %v9852, %v10166
        %v10195 = vadd.f32 %v9860, %v10162
        %v10196 = vadd.f32 %v9868, %v10166
        %v10197 = vadd.f32 %v9876, %v10162
        %v10198 = vadd.f32 %v9884, %v10166
        %v10199 = vadd.f32 %v9892, %v10162
        %v10200 = vadd.f32 %v9900, %v10166
        %v10201 = vadd.f32 %v9908, %v10162
        %v10202 = vadd.f32 %v9916, %v10166
        %v10203 = vadd.f32 %v9924, %v10162
        %v10204 = vadd.f32 %v9932, %v10166
        %v10205 = vadd.f32 %v9940, %v10162
        %v10206 = vadd.f32 %v9948, %v10166
        %v10207 = vadd.f32 %v9956, %v10162
        %v10208 = vadd.f32 %v9964, %v10166
        %v10209 = vadd.f32 %v9972, %v10162
        %v10210 = vadd.f32 %v9980, %v10166
        %v10211 = vadd.f32 %v9988, %v10162
        %v10212 = vadd.f32 %v9996, %v10166
        %v10213 = vadd.f32 %v10004, %v10162
        %v10214 = vadd.f32 %v10012, %v10166
        %v10215 = vadd.f32 %v10020, %v10162
        %v10216 = vadd.f32 %v10028, %v10166
        %v10217 = vadd.f32 %v10036, %v10162
        %v10218 = vadd.f32 %v10044, %v10166
        %v10219 = vadd.f32 %v10052, %v10162
        %v10220 = vadd.f32 %v10060, %v10166
        %v10221 = vadd.f32 %v10068, %v10162
        %v10222 = vadd.f32 %v10076, %v10166
        %v10223 = vadd.f32 %v10084, %v10162
        %v10224 = vadd.f32 %v10092, %v10166
        %v10225 = vadd.f32 %v10100, %v10162
        %v10226 = vadd.f32 %v10108, %v10166
        %v10227 = vadd.f32 %v10116, %v10162
        %v10228 = vadd.f32 %v10124, %v10166
        %v10229 = vadd.f32 %v10132, %v10162
        %v10230 = vadd.f32 %v10140, %v10166
        %v10231 = vadd.f32 %v10148, %v10162
        %v10232 = vadd.f32 %v10156, %v10166
        %v10233 = vmax.f32 %v10169, 0.0
        %v10234 = vmax.f32 %v10170, 0.0
        %v10235 = vmax.f32 %v10171, 0.0
        %v10236 = vmax.f32 %v10172, 0.0
        %v10237 = vmax.f32 %v10173, 0.0
        %v10238 = vmax.f32 %v10174, 0.0
        %v10239 = vmax.f32 %v10175, 0.0
        %v10240 = vmax.f32 %v10176, 0.0
        %v10241 = vmax.f32 %v10177, 0.0
        %v10242 = vmax.f32 %v10178, 0.0
        %v10243 = vmax.f32 %v10179, 0.0
        %v10244 = vmax.f32 %v10180, 0.0
        %v10245 = vmax.f32 %v10181, 0.0
        %v10246 = vmax.f32 %v10182, 0.0
        %v10247 = vmax.f32 %v10183, 0.0
        %v10248 = vmax.f32 %v10184, 0.0
        %v10249 = vmax.f32 %v10185, 0.0
        %v10250 = vmax.f32 %v10186, 0.0
        %v10251 = vmax.f32 %v10187, 0.0
        %v10252 = vmax.f32 %v10188, 0.0
        %v10253 = vmax.f32 %v10189, 0.0
        %v10254 = vmax.f32 %v10190, 0.0
        %v10255 = vmax.f32 %v10191, 0.0
        %v10256 = vmax.f32 %v10192, 0.0
        %v10257 = vmax.f32 %v10193, 0.0
        %v10258 = vmax.f32 %v10194, 0.0
        %v10259 = vmax.f32 %v10195, 0.0
        %v10260 = vmax.f32 %v10196, 0.0
        %v10261 = vmax.f32 %v10197, 0.0
        %v10262 = vmax.f32 %v10198, 0.0
        %v10263 = vmax.f32 %v10199, 0.0
        %v10264 = vmax.f32 %v10200, 0.0
        %v10265 = vmax.f32 %v10201, 0.0
        %v10266 = vmax.f32 %v10202, 0.0
        %v10267 = vmax.f32 %v10203, 0.0
        %v10268 = vmax.f32 %v10204, 0.0
        %v10269 = vmax.f32 %v10205, 0.0
        %v10270 = vmax.f32 %v10206, 0.0
        %v10271 = vmax.f32 %v10207, 0.0
        %v10272 = vmax.f32 %v10208, 0.0
        %v10273 = vmax.f32 %v10209, 0.0
        %v10274 = vmax.f32 %v10210, 0.0
        %v10275 = vmax.f32 %v10211, 0.0
        %v10276 = vmax.f32 %v10212, 0.0
        %v10277 = vmax.f32 %v10213, 0.0
        %v10278 = vmax.f32 %v10214, 0.0
        %v10279 = vmax.f32 %v10215, 0.0
        %v10280 = vmax.f32 %v10216, 0.0
        %v10281 = vmax.f32 %v10217, 0.0
        %v10282 = vmax.f32 %v10218, 0.0
        %v10283 = vmax.f32 %v10219, 0.0
        %v10284 = vmax.f32 %v10220, 0.0
        %v10285 = vmax.f32 %v10221, 0.0
        %v10286 = vmax.f32 %v10222, 0.0
        %v10287 = vmax.f32 %v10223, 0.0
        %v10288 = vmax.f32 %v10224, 0.0
        %v10289 = vmax.f32 %v10225, 0.0
        %v10290 = vmax.f32 %v10226, 0.0
        %v10291 = vmax.f32 %v10227, 0.0
        %v10292 = vmax.f32 %v10228, 0.0
        %v10293 = vmax.f32 %v10229, 0.0
        %v10294 = vmax.f32 %v10230, 0.0
        %v10295 = vmax.f32 %v10231, 0.0
        %v10296 = vmax.f32 %v10232, 0.0
        %v10297 = vld [vmem:[%s3] sm:$0xff]
        %v10298 = vld [vmem:[%s3 + $0x8] sm:$0xff]
        %v10299 = vld [vmem:[%s3 + $0x10] sm:$0xff]
        %v10300 = vld [vmem:[%s3 + $0x18] sm:$0xff]
        %v10301 = vld [vmem:[%s3 + $0x20] sm:$0xff]
        %v10302 = vld [vmem:[%s3 + $0x28] sm:$0xff]
        %v10303 = vld [vmem:[%s3 + $0x30] sm:$0xff]
        %v10304 = vld [vmem:[%s3 + $0x38] sm:$0xff]
        %v10305 = vld [vmem:[%s3 + $0x40] sm:$0xff]
        %v10306 = vld [vmem:[%s3 + $0x48] sm:$0xff]
        %v10307 = vld [vmem:[%s3 + $0x50] sm:$0xff]
        %v10308 = vld [vmem:[%s3 + $0x58] sm:$0xff]
        %v10309 = vld [vmem:[%s3 + $0x60] sm:$0xff]
        %v10310 = vld [vmem:[%s3 + $0x68] sm:$0xff]
        %v10311 = vld [vmem:[%s3 + $0x70] sm:$0xff]
        %v10312 = vld [vmem:[%s3 + $0x78] sm:$0xff]
        %v10313 = vld [vmem:[%s3 + $0x80] sm:$0xff]
        %v10314 = vld [vmem:[%s3 + $0x88] sm:$0xff]
        %v10315 = vld [vmem:[%s3 + $0x90] sm:$0xff]
        %v10316 = vld [vmem:[%s3 + $0x98] sm:$0xff]
        %v10317 = vld [vmem:[%s3 + $0xa0] sm:$0xff]
        %v10318 = vld [vmem:[%s3 + $0xa8] sm:$0xff]
        %v10319 = vld [vmem:[%s3 + $0xb0] sm:$0xff]
        %v10320 = vld [vmem:[%s3 + $0xb8] sm:$0xff]
        %v10321 = vld [vmem:[%s3 + $0xc0] sm:$0xff]
        %v10322 = vld [vmem:[%s3 + $0xc8] sm:$0xff]
        %v10323 = vld [vmem:[%s3 + $0xd0] sm:$0xff]
        %v10324 = vld [vmem:[%s3 + $0xd8] sm:$0xff]
        %v10325 = vld [vmem:[%s3 + $0xe0] sm:$0xff]
        %v10326 = vld [vmem:[%s3 + $0xe8] sm:$0xff]
        %v10327 = vld [vmem:[%s3 + $0xf0] sm:$0xff]
        %v10328 = vld [vmem:[%s3 + $0xf8] sm:$0xff]
        %v10329 = vld [vmem:[%s4] sm:$0x1]
        %v10331 = vlaneseq
        %v10332 = vshrl.u32 %v10331, 7
        %v10333 = vsub.s32 0, %v10332
        %v10334 = vrot.slane %v10329, %v10333
        %v10400 = vrot.slane %v10235, 7
        %vm10401 = vcmask 1041409
        %v10402 = vsel %vm10401, %v10400, %v10233
        %v10403 = vrot.slane %v10237, 6
        %vm10404 = vcmask 1042434
        %v10405 = vsel %vm10404, %v10403, %v10402
        %v10406 = vrot.slane %v10239, 5
        %vm10407 = vcmask 1043459
        %v10408 = vsel %vm10407, %v10406, %v10405
        %v10409 = vrot.slane %v10241, 4
        %vm10410 = vcmask 1044484
        %v10411 = vsel %vm10410, %v10409, %v10408
        %v10412 = vrot.slane %v10243, 3
        %vm10413 = vcmask 1045509
        %v10414 = vsel %vm10413, %v10412, %v10411
        %v10415 = vrot.slane %v10245, 2
        %vm10416 = vcmask 1046534
        %v10417 = vsel %vm10416, %v10415, %v10414
        %v10418 = vrot.slane %v10247, 1
        %vm10419 = vcmask 1047559
        %v10420 = vsel %vm10419, %v10418, %v10417
        %v10421 = vrot.slane %v10236, 7
        %v10422 = vsel %vm10401, %v10421, %v10234
        %v10423 = vrot.slane %v10238, 6
        %v10424 = vsel %vm10404, %v10423, %v10422
        %v10425 = vrot.slane %v10240, 5
        %v10426 = vsel %vm10407, %v10425, %v10424
        %v10427 = vrot.slane %v10242, 4
        %v10428 = vsel %vm10410, %v10427, %v10426
        %v10429 = vrot.slane %v10244, 3
        %v10430 = vsel %vm10413, %v10429, %v10428
        %v10431 = vrot.slane %v10246, 2
        %v10432 = vsel %vm10416, %v10431, %v10430
        %v10433 = vrot.slane %v10248, 1
        %v10434 = vsel %vm10419, %v10433, %v10432
        %v10435 = vrot.slane %v10251, 7
        %v10436 = vsel %vm10401, %v10435, %v10249
        %v10437 = vrot.slane %v10253, 6
        %v10438 = vsel %vm10404, %v10437, %v10436
        %v10439 = vrot.slane %v10255, 5
        %v10440 = vsel %vm10407, %v10439, %v10438
        %v10441 = vrot.slane %v10257, 4
        %v10442 = vsel %vm10410, %v10441, %v10440
        %v10443 = vrot.slane %v10259, 3
        %v10444 = vsel %vm10413, %v10443, %v10442
        %v10445 = vrot.slane %v10261, 2
        %v10446 = vsel %vm10416, %v10445, %v10444
        %v10447 = vrot.slane %v10263, 1
        %v10448 = vsel %vm10419, %v10447, %v10446
        %v10449 = vrot.slane %v10252, 7
        %v10450 = vsel %vm10401, %v10449, %v10250
        %v10451 = vrot.slane %v10254, 6
        %v10452 = vsel %vm10404, %v10451, %v10450
        %v10453 = vrot.slane %v10256, 5
        %v10454 = vsel %vm10407, %v10453, %v10452
        %v10455 = vrot.slane %v10258, 4
        %v10456 = vsel %vm10410, %v10455, %v10454
        %v10457 = vrot.slane %v10260, 3
        %v10458 = vsel %vm10413, %v10457, %v10456
        %v10459 = vrot.slane %v10262, 2
        %v10460 = vsel %vm10416, %v10459, %v10458
        %v10461 = vrot.slane %v10264, 1
        %v10462 = vsel %vm10419, %v10461, %v10460
        %v10463 = vrot.slane %v10267, 7
        %v10464 = vsel %vm10401, %v10463, %v10265
        %v10465 = vrot.slane %v10269, 6
        %v10466 = vsel %vm10404, %v10465, %v10464
        %v10467 = vrot.slane %v10271, 5
        %v10468 = vsel %vm10407, %v10467, %v10466
        %v10469 = vrot.slane %v10273, 4
        %v10470 = vsel %vm10410, %v10469, %v10468
        %v10471 = vrot.slane %v10275, 3
        %v10472 = vsel %vm10413, %v10471, %v10470
        %v10473 = vrot.slane %v10277, 2
        %v10474 = vsel %vm10416, %v10473, %v10472
        %v10475 = vrot.slane %v10279, 1
        %v10476 = vsel %vm10419, %v10475, %v10474
        %v10477 = vrot.slane %v10268, 7
        %v10478 = vsel %vm10401, %v10477, %v10266
        %v10479 = vrot.slane %v10270, 6
        %v10480 = vsel %vm10404, %v10479, %v10478
        %v10481 = vrot.slane %v10272, 5
        %v10482 = vsel %vm10407, %v10481, %v10480
        %v10483 = vrot.slane %v10274, 4
        %v10484 = vsel %vm10410, %v10483, %v10482
        %v10485 = vrot.slane %v10276, 3
        %v10486 = vsel %vm10413, %v10485, %v10484
        %v10487 = vrot.slane %v10278, 2
        %v10488 = vsel %vm10416, %v10487, %v10486
        %v10489 = vrot.slane %v10280, 1
        %v10490 = vsel %vm10419, %v10489, %v10488
        %v10491 = vrot.slane %v10283, 7
        %v10492 = vsel %vm10401, %v10491, %v10281
        %v10493 = vrot.slane %v10285, 6
        %v10494 = vsel %vm10404, %v10493, %v10492
        %v10495 = vrot.slane %v10287, 5
        %v10496 = vsel %vm10407, %v10495, %v10494
        %v10497 = vrot.slane %v10289, 4
        %v10498 = vsel %vm10410, %v10497, %v10496
        %v10499 = vrot.slane %v10291, 3
        %v10500 = vsel %vm10413, %v10499, %v10498
        %v10501 = vrot.slane %v10293, 2
        %v10502 = vsel %vm10416, %v10501, %v10500
        %v10503 = vrot.slane %v10295, 1
        %v10504 = vsel %vm10419, %v10503, %v10502
        %v10505 = vrot.slane %v10284, 7
        %v10506 = vsel %vm10401, %v10505, %v10282
        %v10507 = vrot.slane %v10286, 6
        %v10508 = vsel %vm10404, %v10507, %v10506
        %v10509 = vrot.slane %v10288, 5
        %v10510 = vsel %vm10407, %v10509, %v10508
        %v10511 = vrot.slane %v10290, 4
        %v10512 = vsel %vm10410, %v10511, %v10510
        %v10513 = vrot.slane %v10292, 3
        %v10514 = vsel %vm10413, %v10513, %v10512
        %v10515 = vrot.slane %v10294, 2
        %v10516 = vsel %vm10416, %v10515, %v10514
        %v10517 = vrot.slane %v10296, 1
        %v10518 = vsel %vm10419, %v10517, %v10516
        %10527 = vmatprep.subr.mxu0 0.0
        %10528 = vmatpush1.msra.mxu0 %v10312
        %10529 = vmatprep.subr.mxu0 0.0
        %10530 = vmatpush1.msra.mxu0 %v10311
        %10531 = vmatprep.subr.mxu0 0.0
        %10532 = vmatpush1.msra.mxu0 %v10310
        %10533 = vmatprep.subr.mxu0 0.0
        %10534 = vmatpush1.msra.mxu0 %v10309
        %10535 = vmatprep.subr.mxu0 0.0
        %10536 = vmatpush1.msra.mxu0 %v10308
        %10537 = vmatprep.subr.mxu0 0.0
        %10538 = vmatpush1.msra.mxu0 %v10307
        %10539 = vmatprep.subr.mxu0 0.0
        %10540 = vmatpush1.msra.mxu0 %v10306
        %10541 = vmatprep.subr.mxu0 0.0
        %10542 = vmatpush1.msra.mxu0 %v10305
        %10543 = vmatprep.subr.mxu0 0.0
        %10544 = vmatpush1.msra.mxu0 %v10304
        %10545 = vmatprep.subr.mxu0 0.0
        %10546 = vmatpush1.msra.mxu0 %v10303
        %10547 = vmatprep.subr.mxu0 0.0
        %10548 = vmatpush1.msra.mxu0 %v10302
        %10549 = vmatprep.subr.mxu0 0.0
        %10550 = vmatpush1.msra.mxu0 %v10301
        %10551 = vmatprep.subr.mxu0 0.0
        %10552 = vmatpush1.msra.mxu0 %v10300
        %10553 = vmatprep.subr.mxu0 0.0
        %10554 = vmatpush1.msra.mxu0 %v10299
        %10555 = vmatprep.subr.mxu0 0.0
        %10556 = vmatpush1.msra.mxu0 %v10298
        %10557 = vmatprep.subr.mxu0 0.0
        %10558 = vmatpush1.msra.mxu0 %v10297
        %10559 = vmatprep.subr.mxu0 0.0
        %10560 = vmatpush2.msra.mxu0 %v10328
        %10561 = vmatprep.subr.mxu0 0.0
        %10562 = vmatpush2.msra.mxu0 %v10327
        %10563 = vmatprep.subr.mxu0 0.0
        %10564 = vmatpush2.msra.mxu0 %v10326
        %10565 = vmatprep.subr.mxu0 0.0
        %10566 = vmatpush2.msra.mxu0 %v10325
        %10567 = vmatprep.subr.mxu0 0.0
        %10568 = vmatpush2.msra.mxu0 %v10324
        %10569 = vmatprep.subr.mxu0 0.0
        %10570 = vmatpush2.msra.mxu0 %v10323
        %10571 = vmatprep.subr.mxu0 0.0
        %10572 = vmatpush2.msra.mxu0 %v10322
        %10573 = vmatprep.subr.mxu0 0.0
        %10574 = vmatpush2.msra.mxu0 %v10321
        %10575 = vmatprep.subr.mxu0 0.0
        %10576 = vmatpush2.msra.mxu0 %v10320
        %10577 = vmatprep.subr.mxu0 0.0
        %10578 = vmatpush2.msra.mxu0 %v10319
        %10579 = vmatprep.subr.mxu0 0.0
        %10580 = vmatpush2.msra.mxu0 %v10318
        %10581 = vmatprep.subr.mxu0 0.0
        %10582 = vmatpush2.msra.mxu0 %v10317
        %10583 = vmatprep.subr.mxu0 0.0
        %10584 = vmatpush2.msra.mxu0 %v10316
        %10585 = vmatprep.subr.mxu0 0.0
        %10586 = vmatpush2.msra.mxu0 %v10315
        %10587 = vmatprep.subr.mxu0 0.0
        %10588 = vmatpush2.msra.mxu0 %v10314
        %10589 = vmatprep.subr.mxu0 0.0
        %10590 = vmatpush2.msra.mxu0 %v10313
        %10591 = vmatprep.mubr.f32.mxu0 %v10434
        %10592 = vmatmul.mubr.f32.gmra.mxu0 %v10420
        %v10593 = vpop.f32.mrf.mxu0
        %v10594 = vadd.f32 %v10334, %v10593
        %v10595 = vpop.f32.mrf.mxu0
        %10596 = vmatprep.mubr.f32.mxu0 %v10462
        %10597 = vmatmul.mubr.f32.gmra.mxu0 %v10448
        %v10598 = vpop.f32.mrf.mxu0
        %v10599 = vadd.f32 %v10334, %v10598
        %v10600 = vpop.f32.mrf.mxu0
        %10601 = vmatprep.mubr.f32.mxu0 %v10490
        %10602 = vmatmul.mubr.f32.gmra.mxu0 %v10476
        %v10603 = vpop.f32.mrf.mxu0
        %v10604 = vadd.f32 %v10334, %v10603
        %v10605 = vpop.f32.mrf.mxu0
        %10606 = vmatprep.mubr.f32.mxu0 %v10518
        %10607 = vmatmul.mubr.f32.gmra.mxu0 %v10504
        %v10608 = vpop.f32.mrf.mxu0
        %v10609 = vadd.f32 %v10334, %v10608
        %v10610 = vpop.f32.mrf.mxu0
        %10611 = vdwg.mxu0
        %10612 = vmax.xlane.f32.xlu0 %v10594
        %v10613 = vpop.xlane.xlu0 %10612
        %10614 = vmax.xlane.f32.xlu0 %v10599
        %v10615 = vpop.xlane.xlu0 %10614
        %10616 = vmax.xlane.f32.xlu0 %v10604
        %v10617 = vpop.xlane.xlu0 %10616
        %10618 = vmax.xlane.f32.xlu0 %v10609
        %v10619 = vpop.xlane.xlu0 %10618
        %v10620 = vsub.f32 %v10594, %v10613
        %v10621 = vsub.f32 %v10599, %v10615
        %v10622 = vsub.f32 %v10604, %v10617
        %v10623 = vsub.f32 %v10609, %v10619
        %v10624 = vmul.f32 %v10620, 1.442695
        %v10625 = vpow.pop %v10624
        %v10626 = vmul.f32 %v10621, 1.442695
        %v10627 = vpow.pop %v10626
        %v10628 = vmul.f32 %v10622, 1.442695
        %v10629 = vpow.pop %v10628
        %v10630 = vmul.f32 %v10623, 1.442695
        %v10631 = vpow.pop %v10630
        %10632 = vadd.xlane.f32.xlu0 %v10625
        %v10633 = vpop.xlane.xlu0 %10632
        %10634 = vadd.xlane.f32.xlu0 %v10627
        %v10635 = vpop.xlane.xlu0 %10634
        %10636 = vadd.xlane.f32.xlu0 %v10629
        %v10637 = vpop.xlane.xlu0 %10636
        %10638 = vadd.xlane.f32.xlu0 %v10631
        %v10639 = vpop.xlane.xlu0 %10638
        %v10640 = vlog2.pop %v10633
        %v10641 = vmul.f32 %v10640, 0.6931472
        %v10642 = vlog2.pop %v10635
        %v10643 = vmul.f32 %v10642, 0.6931472
        %v10644 = vlog2.pop %v10637
        %v10645 = vmul.f32 %v10644, 0.6931472
        %v10646 = vlog2.pop %v10639
        %v10647 = vmul.f32 %v10646, 0.6931472
        %v10648 = vsub.f32 %v10620, %v10641
        %v10649 = vsub.f32 %v10621, %v10643
        %v10650 = vsub.f32 %v10622, %v10645
        %v10651 = vsub.f32 %v10623, %v10647
        %10652 = vst [vmem:[%s220] sm:$0xff] %v10648
        %10653 = vst [vmem:[%s220 + $0x8] sm:$0xff] %v10649
        %10654 = vst [vmem:[%s220 + $0x10] sm:$0xff] %v10650
        %10655 = vst [vmem:[%s220 + $0x18] sm:$0xff] %v10651
        %s10656 = sand.u32 %s137, 1
        %s10657 = scalar_lea.sflag [#allocation3], %s10656
        %s10658 = sand.u32 %s137, 1
        %s10659 = smul.addr %s10658, 32
        %s10660 = scalar_lea.vmem [#allocation2], %s10659
        // Predicated region
        $region41: #{tpu_custom_call.1} parent=39 // pred_check
          %p10661 = pneg %p147
        $region42: #{tpu_custom_call.1} parent=39 // pred_check_branch
          %10663 = sbr.rel (%p10661) target = $region44
        $region43: #{tpu_custom_call.1} parent=39 // pred_region
          %s10664 = smul.u32 4, %s19
          %s10666 = ssub.s32 512, 512
          %10667 = vsyncadd %s10657, %s10666
          %s10668 = smul.addr %s10664, 128
          %s10669 = scalar_lea.hbm %s5, %s10668
          %s10670 = sshll.u32 %s10660, 4
          %s10671 = int_to_ptr.vmem [resolvable:$true] %s10670
          %10676 = dma.vmem_to_hbm [thread:$0]  %s10671, 512, %s10669, %s10657, 128, 128, 8
        $region44: #{tpu_custom_call.1} parent=39 // pred_fallthru
          _
      $region40: #{tpu_custom_call.1} parent=5 // pred_fallthru
        _
      %p10677 = scmp.le.s32.totalorder 2, %s14
      // Predicated region
      $region45: #{tpu_custom_call.1} parent=5 // pred_check
        %p10678 = pneg %p10677
      $region46: #{tpu_custom_call.1} parent=5 // pred_check_branch
        %10680 = sbr.rel (%p10678) target = $region48
      $region47: #{tpu_custom_call.1} parent=5 // pred_region
        %s10681 = ssub.s32 %s14, 2
        // Predicated region
        $region49: #{tpu_custom_call.1} parent=47 // pred_check
          %p10682 = pneg %p153
        $region50: #{tpu_custom_call.1} parent=47 // pred_check_branch
          %10684 = sbr.rel (%p10682) target = $region52
        $region51: #{tpu_custom_call.1} parent=47 // pred_region
          %s10685 = sand.u32 %s138, 1
          %s10686 = scalar_lea.sflag [#allocation3], %s10685
          %s10687 = sand.u32 %s138, 1
          %s10688 = smul.addr %s10687, 32
          %s10689 = scalar_lea.vmem [#allocation2], %s10688
          %10690 = dma.done %s10686, 512
        $region52: #{tpu_custom_call.1} parent=47 // pred_fallthru
          _
      $region48: #{tpu_custom_call.1} parent=5 // pred_fallthru
        _
    $region6: #{tpu_custom_call.1} parent=1 // loop_footer
      %s18 = sadd.s32 1, %s14
    $region7: #{tpu_custom_call.1} parent=1 // loop_footer_branch
      %13 = sbr.rel target = $region3
    $region8: #{tpu_custom_call.1} parent=1 // loop_exit
      _
    %10691 = vsyncpa [#allocation3], 1
    %s10692 = scalar_lea.sflag [#allocation3], 1
    %10693 = vsyncpa %s10692, 1

</llo_original>
